<compile_context>
chip_gen: v7x
topology: tpu7x:2x2x1
jax: 0.10.0
libtpu: 0.0.40
codegen_flags: <defaults>
</compile_context>

<pallas_src>
import math

import numpy as np
import jax
import jax.numpy as jnp
from jax.experimental import pallas as pl
from jax.experimental.pallas import tpu as pltpu


NET_CONFIG = [
    [[8, 16], 'basic_block', ['basic_block'], 1, 1],
    [[16, 32], 'basic_block', ['basic_block'], 1, 2],
]
TASK_HYPERS = {'pde': (1, 3), 'protein': (1, 57), 'cosmic': (1, 1)}
TASK = 'pde'

# The fused kernel hard-codes this exact block structure.
assert [cfg[1] for cfg in NET_CONFIG] == ['basic_block', 'basic_block']
assert [len(cfg[2]) for cfg in NET_CONFIG] == [1, 1]
assert [cfg[-1] for cfg in NET_CONFIG] == [1, 2]

C0 = NET_CONFIG[0][0][0]        # 8  (real stem output channels)
C1 = NET_CONFIG[0][0][1]        # 16
C2 = NET_CONFIG[1][0][1]        # 32
CP = 16                         # stem path padded to 16 ch so every bf16
                                # im2col row-block is packed-sublane aligned
C_MAX = max(CP, C1, C2)         # 32


def _round_up(x, m):
    return ((x + m - 1) // m) * m


# ----------------------------------------------------------------------------
# Static packing layout: one bf16 weight blob (rows = Cout, cols = K) and one
# small f32 bias/classifier blob.
# ----------------------------------------------------------------------------
LAYER_LAYOUT = [
    # name,  Cout, K
    ('stem', CP, 9 * CP),
    ('w11', C1, 9 * CP),
    ('w12', C1, 9 * C1),
    ('w21', C1, 9 * C1),
    ('w22', C1, 9 * C1),
    ('w31', C2, 9 * C1),
    ('w32', C2, 9 * C2),
    ('w41', C2, 9 * C2),
    ('w42', C2, 9 * C2),
    ('wd1', C1, CP),    # 1x1 downsample, block-1 head
    ('wd3', C2, C1),    # 1x1 stride-2 downsample, block-2 head
]


def _layer_rows():
    rows, r = {}, 0
    for name, cout, k in LAYER_LAYOUT:
        rows[name] = (r, cout, k)
        r += cout
    return rows, r


W_ROWS, W_TOTAL = _layer_rows()                 # 256 rows of weights/biases
K_MAX = max(k for _, _, k in LAYER_LAYOUT)      # 288
R_FC = W_TOTAL                                  # classifier rows in f32 blob
B_ROWS = W_TOTAL + 8                            # keep the fc chunk 8-aligned


# ----------------------------------------------------------------------------
# Fused forward-pass kernel
# ----------------------------------------------------------------------------
def build_kernel(*, WP1, OFF, WC, LB, n_classes):
    """Single pallas_call running stem + 4 basic blocks + per-pixel classifier.

    Activation layout: (C, LB) f32 frames, flattened padded spatial dim on the
    lane axis at columns [OFF, OFF+WC); 128-lane halo bands on both sides hold
    zeros so the 9 shifted conv taps never read garbage.
    """
    assert 2 * (WP1 + 1) <= OFF, "halo too small for this spatial width"
    assert WC % 128 == 0 and OFF % 128 == 0 and LB == OFF + WC + OFF

    shifts = [kh * WP1 + kw for kh in (-1, 0, 1) for kw in (-1, 0, 1)]

    def kernel(x_ref, masks_ref, wblob_ref, bblob_ref, out_ref,
               buf_a, buf_b, tap_buf):

        def wslice(name):
            r, cout, k = W_ROWS[name]
            return wblob_ref[r:r + cout, 0:k]           # (Cout, K) bf16

        def bslice(name):
            r, cout, _ = W_ROWS[name]
            return bblob_ref[r:r + cout, 0:1]            # (Cout, 1) f32

        def conv3x3(src_ref, cin, name, dil):
            # im2col into the resident bf16 scratch, then ONE matmul with
            # contraction depth K = 9*cin (instead of 9 shallow matmuls).
            xf = src_ref[0:cin, :]                        # one (cin, LB) load
            for t, sh in enumerate(shifts):
                s = OFF + dil * sh                        # static lane offset
                tap_buf[t * cin:(t + 1) * cin, :] = (
                    xf[:, s:s + WC].astype(jnp.bfloat16))
            return jnp.dot(wslice(name), tap_buf[0:9 * cin, :],
                           preferred_element_type=jnp.float32) + bslice(name)

        def conv1x1(src_ref, cin, name):
            x = src_ref[0:cin, OFF:OFF + WC].astype(jnp.bfloat16)
            return jnp.dot(wslice(name), x,
                           preferred_element_type=jnp.float32) + bslice(name)

        def store(dst_ref, val):
            dst_ref[0:val.shape[0], OFF:OFF + WC] = val

        def interior(src_ref, c):
            return src_ref[0:c, OFF:OFF + WC]

        relu = lambda v: jnp.maximum(v, 0.0)

        # ---- zero only the halo bands; frame interiors are always overwritten
        for buf in (buf_a, buf_b):
            buf[:, 0:OFF] = jnp.zeros((C_MAX, OFF), jnp.float32)
            buf[:, OFF + WC:LB] = jnp.zeros((C_MAX, LB - OFF - WC), jnp.float32)

        mm = masks_ref[...]
        m1 = mm[0:1, :]           # full-res interior mask (zero border / tail)
        m2 = mm[1:2, :]           # stride-2 sample mask (dilated half-res)

        # ---- input block: conv3x3 + BN + ReLU6 -------------------------------
        s = conv3x3(x_ref, CP, 'stem', 1)
        store(buf_a, jnp.clip(s, 0.0, 6.0) * m1)

        # ---- block 1 head: basic_block(8 -> 16, stride 1, 1x1 downsample) ----
        store(buf_b, relu(conv3x3(buf_a, CP, 'w11', 1)) * m1)
        res = conv1x1(buf_a, CP, 'wd1')
        store(buf_a, relu(conv3x3(buf_b, C1, 'w12', 1) + res) * m1)

        # ---- block 1 stack: basic_block(16 -> 16, stride 1, identity) --------
        store(buf_b, relu(conv3x3(buf_a, C1, 'w21', 1)) * m1)
        res = interior(buf_a, C1)
        store(buf_a, relu(conv3x3(buf_b, C1, 'w22', 1) + res) * m1)

        # ---- block 2 head: basic_block(16 -> 32, stride 2, 1x1 s2 downsample) -
        # Stride-2 conv / 1x1 downsample evaluated at full res, masked to the
        # stride-2 sample points (m2); the following stride-1 convs on the
        # half-res map become dilation-2 convs in the same full-res layout.
        store(buf_b, relu(conv3x3(buf_a, C1, 'w31', 1)) * m2)
        res = conv1x1(buf_a, C1, 'wd3')
        store(buf_a, relu(conv3x3(buf_b, C2, 'w32', 2) + res) * m2)

        # ---- block 2 stack: basic_block(32 -> 32, stride 1, identity) --------
        store(buf_b, relu(conv3x3(buf_a, C2, 'w41', 2)) * m2)
        res = interior(buf_a, C2)
        feat = relu(conv3x3(buf_b, C2, 'w42', 2) + res) * m2       # (C2, WC)

        # ---- classifier: per-pixel Linear(C2 -> n_classes), f32 --------------
        fc = bblob_ref[R_FC:R_FC + 8, 0:C2]
        fw = fc[0:n_classes, :]                  # (n_classes, C2)
        fb = fc[n_classes:n_classes + 1, 0:1]    # (1, 1)
        out_ref[...] = jnp.dot(fw, feat, preferred_element_type=jnp.float32) + fb

    vmem = pl.BlockSpec(memory_space=pltpu.MemorySpace.VMEM)
    return pl.pallas_call(
        kernel,
        out_shape=jax.ShapeDtypeStruct((n_classes, WC), jnp.float32),
        in_specs=[vmem] * 4,
        out_specs=vmem,
        scratch_shapes=[
            pltpu.VMEM((C_MAX, LB), jnp.float32),        # buf_a
            pltpu.VMEM((C_MAX, LB), jnp.float32),        # buf_b
            pltpu.VMEM((9 * C_MAX, WC), jnp.bfloat16),   # im2col tap stack
        ],
        compiler_params=pltpu.CompilerParams(
            vmem_limit_bytes=32 * 1024 * 1024),          # safe on v5e/v6e/v7x
    )


# ----------------------------------------------------------------------------
# Host-side constants / glue (pure data movement)
# ----------------------------------------------------------------------------
def make_masks(N, H, W, WC):
    HP, WP = H + 2, W + 2
    M = N * HP * WP
    m1 = np.zeros((N, HP, WP), np.float32)
    m1[:, 1:H + 1, 1:W + 1] = 1.0                        # full-res interior
    m2 = np.zeros((N, HP, WP), np.float32)
    m2[:, 1:H + 1:2, 1:W + 1:2] = 1.0                    # stride-2 sample points
    mm = np.zeros((8, WC), np.float32)
    mm[0, :M] = m1.reshape(-1)
    mm[1, :M] = m2.reshape(-1)
    return jnp.asarray(mm)


def prep_input(x_nchw, OFF, LB):
    N, C, H, W = x_nchw.shape
    x = jnp.transpose(x_nchw, (1, 0, 2, 3)).astype(jnp.float32)   # (C, N, H, W)
    x = jnp.pad(x, ((0, CP - C), (0, 0), (1, 1), (1, 1)))         # ch pad + border
    x = x.reshape(CP, N * (H + 2) * (W + 2))
    return jnp.pad(x, ((0, 0), (OFF, LB - OFF - x.shape[1])))


# ----------------------------------------------------------------------------
# Parameter init (mirrors the PyTorch module's __init__) + one-time BN folding
# ----------------------------------------------------------------------------
def kaiming_conv(key, KH, KW, Cin, Cout):
    fan_out = Cout * KH * KW                       # kaiming_normal_, mode='fan_out'
    return math.sqrt(2.0 / fan_out) * jax.random.normal(
        key, (KH, KW, Cin, Cout), jnp.float32)


def bn_fold(C, eps=1e-5):
    gamma = jnp.ones((C,), jnp.float32)
    beta = jnp.zeros((C,), jnp.float32)
    mean = jnp.zeros((C,), jnp.float32)
    var = jnp.ones((C,), jnp.float32)
    scale = gamma / jnp.sqrt(var + eps)
    return scale, beta - mean * scale


def init_basic_block(key, cin, cout, stride):
    k1, k2, k3 = jax.random.split(key, 3)
    p = {'w1': kaiming_conv(k1, 3, 3, cin, cout), 'bn1': bn_fold(cout),
         'w2': kaiming_conv(k2, 3, 3, cout, cout), 'bn2': bn_fold(cout),
         'stride': stride, 'down_w': None, 'down_bn': None}
    if stride != 1 or cin != cout:
        p['down_w'] = kaiming_conv(k3, 1, 1, cin, cout)
        p['down_bn'] = bn_fold(cout)
    return p


def init_params(key):
    keys = iter(jax.random.split(key, 64))
    n_classes, in_channels = TASK_HYPERS[TASK]
    in_chs = NET_CONFIG[0][0][0]
    params = {'stem_w': kaiming_conv(next(keys), 3, 3, in_channels, in_chs),
              'stem_bn': bn_fold(in_chs)}
    blocks = []
    for (chs, _head_op, stack_ops, _n, stride) in NET_CONFIG:
        cin, cout = chs
        layers = [init_basic_block(next(keys), cin, cout, stride)]
        for _ in stack_ops:
            layers.append(init_basic_block(next(keys), cout, cout, 1))
        blocks.append(layers)
    params['blocks'] = blocks
    last_dim = NET_CONFIG[-1][0][1]                # head_op != 'bottle_neck'
    k = 1.0 / math.sqrt(last_dim)
    kw, kb = jax.random.split(next(keys))
    params['fc_w'] = jax.random.uniform(kw, (last_dim, n_classes), jnp.float32, -k, k)
    params['fc_b'] = jax.random.uniform(kb, (n_classes,), jnp.float32, -k, k)
    return params


def _fold3x3(w, bn, cin_pad=None, cout_pad=None):
    scale, bias = bn
    wf = np.asarray(w, np.float32) * np.asarray(scale, np.float32)[None, None, None, :]
    bf = np.asarray(bias, np.float32)
    KH, KW, Cin, Cout = wf.shape
    if cin_pad and cin_pad > Cin:
        wf = np.pad(wf, ((0, 0), (0, 0), (0, cin_pad - Cin), (0, 0)))
    if cout_pad and cout_pad > Cout:
        wf = np.pad(wf, ((0, 0), (0, 0), (0, 0), (0, cout_pad - Cout)))
        bf = np.pad(bf, ((0, cout_pad - Cout),))
    KH, KW, Cin, Cout = wf.shape
    return wf.reshape(KH * KW * Cin, Cout).T, bf          # (Cout, 9*Cin), (Cout,)


def _fold1x1(w, bn, cin_pad=None):
    scale, bias = bn
    wf = np.asarray(w, np.float32)[0, 0] * np.asarray(scale, np.float32)[None, :]
    bf = np.asarray(bias, np.float32)
    if cin_pad and cin_pad > wf.shape[0]:
        wf = np.pad(wf, ((0, cin_pad - wf.shape[0]), (0, 0)))
    return wf.T, bf                                       # (Cout, Cin_pad), (Cout,)


def fold_and_pack(params):
    """Fold BN scale into conv weights; pack everything into one bf16 weight
    blob and one small f32 bias/classifier blob (2 DMAs instead of ~24)."""
    (b1h, b1s), (b2h, b2s) = params['blocks']
    folded = {
        'stem': _fold3x3(params['stem_w'], params['stem_bn'], cin_pad=CP, cout_pad=CP),
        'w11': _fold3x3(b1h['w1'], b1h['bn1'], cin_pad=CP),
        'w12': _fold3x3(b1h['w2'], b1h['bn2']),
        'wd1': _fold1x1(b1h['down_w'], b1h['down_bn'], cin_pad=CP),
        'w21': _fold3x3(b1s['w1'], b1s['bn1']),
        'w22': _fold3x3(b1s['w2'], b1s['bn2']),
        'w31': _fold3x3(b2h['w1'], b2h['bn1']),
        'w32': _fold3x3(b2h['w2'], b2h['bn2']),
        'wd3': _fold1x1(b2h['down_w'], b2h['down_bn']),
        'w41': _fold3x3(b2s['w1'], b2s['bn1']),
        'w42': _fold3x3(b2s['w2'], b2s['bn2']),
    }
    wblob = np.zeros((W_TOTAL, K_MAX), np.float32)
    bblob = np.zeros((B_ROWS, C2), np.float32)
    for name, (r, cout, k) in W_ROWS.items():
        w2d, bias = folded[name]
        assert w2d.shape == (cout, k), (name, w2d.shape, (cout, k))
        wblob[r:r + cout, :k] = w2d
        bblob[r:r + cout, 0] = bias
    n_classes = TASK_HYPERS[TASK][0]
    assert n_classes == 1
    bblob[R_FC:R_FC + n_classes, :C2] = np.asarray(params['fc_w'], np.float32).T
    bblob[R_FC + n_classes, 0] = float(np.asarray(params['fc_b'])[0])
    return {'wblob': jnp.asarray(wblob).astype(jnp.bfloat16),
            'bblob': jnp.asarray(bblob, dtype=jnp.float32)}


# ----------------------------------------------------------------------------
# Forward pass (single fused pallas_call + tiny layout glue)
# ----------------------------------------------------------------------------
def res_net_forward(packed, x_nchw):
    # PyTorch permutes only if x.size(3) == 3 (NHWC input); here W = 16, so the
    # input is NCHW, matching the reference module's main path.
    N, C_in, H, W = x_nchw.shape
    assert H % 2 == 0 and W % 2 == 0
    n_classes = TASK_HYPERS[TASK][0]

    HP1, WP1 = H + 2, W + 2
    M1 = N * HP1 * WP1
    WC = _round_up(M1, 128)                          # lane-dense compute width
    OFF = max(128, _round_up(2 * (WP1 + 1), 128))    # halo >= max dilated shift
    LB = OFF + WC + OFF

    call = build_kernel(WP1=WP1, OFF=OFF, WC=WC, LB=LB, n_classes=n_classes)
    out = call(prep_input(x_nchw, OFF, LB),
               make_masks(N, H, W, WC),
               packed['wblob'], packed['bblob'])      # (n_classes, WC)

    out = out[:, :M1].reshape(n_classes, N, HP1, WP1)
    out = out[:, :, 1:H + 1:2, 1:W + 1:2]             # stride-2 sample points
    return jnp.transpose(out, (1, 2, 3, 0))           # (N, H/2, W/2, n_classes)


# ----------------------------------------------------------------------------
# Pure-JAX (XLA) reference of the same forward pass, f32 everywhere
# ----------------------------------------------------------------------------
def _conv_ref(x, w, stride, pad):
    return jax.lax.conv_general_dilated(
        x, w, window_strides=(stride, stride),
        padding=[(pad, pad), (pad, pad)],
        dimension_numbers=('NHWC', 'HWIO', 'NHWC'))


def res_net_forward_ref(params, x_nchw):
    bn = lambda v, p: v * p[0] + p[1]
    x = jnp.transpose(x_nchw, (0, 2, 3, 1)).astype(jnp.float32)
    v = jnp.clip(bn(_conv_ref(x, params['stem_w'], 1, 1), params['stem_bn']), 0.0, 6.0)
    for layers in params['blocks']:
        for p in layers:
            st = p['stride']
            out = jax.nn.relu(bn(_conv_ref(v, p['w1'], st, 1), p['bn1']))
            out = bn(_conv_ref(out, p['w2'], 1, 1), p['bn2'])
            res = v if p['down_w'] is None else bn(
                _conv_ref(v, p['down_w'], st, 0), p['down_bn'])
            v = jax.nn.relu(out + res)
    return jnp.einsum('nhwc,ck->nhwk', v, params['fc_w']) + params['fc_b']


if __name__ == "__main__":
    key = jax.random.PRNGKey(0)
    kp, kx = jax.random.split(key)
    params = init_params(kp)
    packed = fold_and_pack(params)
    x = jax.random.normal(kx, (2, 3, 16, 16), jnp.float32)   # NCHW, like PyTorch

    logits = jax.jit(res_net_forward)(packed, x)
    jax.block_until_ready(logits)
    assert logits.shape == (2, 8, 8, 1), logits.shape

    # Cross-check against the pure-JAX f32 reference (bf16 MXU operands in the
    # kernel introduce only small rounding differences).
    ref = res_net_forward_ref(params, x)
    err = float(jnp.max(jnp.abs(logits - ref)))
    assert err < 0.15, f"max abs error vs reference: {err}"

    print("KERNEL_OK")
</pallas_src>

<mosaic_0001>
module attributes {stable_mosaic.version = 11 : i64} {
  func.func @kernel(%arg0: memref<16x1024xf32, #tpu.memory_space<vmem>>, %arg1: memref<8x768xf32, #tpu.memory_space<vmem>>, %arg2: memref<256x288xbf16, #tpu.memory_space<vmem>>, %arg3: memref<264x32xf32, #tpu.memory_space<vmem>>, %arg4: memref<1x768xf32, #tpu.memory_space<vmem>>, %arg5: memref<32x1024xf32, #tpu.memory_space<vmem>>, %arg6: memref<32x1024xf32, #tpu.memory_space<vmem>>, %arg7: memref<288x768xbf16, #tpu.memory_space<vmem>>) attributes {dimension_semantics = [], scalar_prefetch = 0 : i64, scratch_operands = 3 : i64, tpu.core_type = #tpu.core_type<tc>} {
    %cst = arith.constant 0.000000e+00 : f32
    %0 = vector.broadcast %cst : f32 to vector<32x128xf32>
    %c0 = arith.constant 0 : index
    %c0_0 = arith.constant 0 : index
    %1 = vector.load %arg5[%c0, %c0_0] : memref<32x1024xf32, #tpu.memory_space<vmem>>, vector<32x128xf32>
    tpu.vector_store %arg5[%c0, %c0_0], %0 {strides = array<i32>} : memref<32x1024xf32, #tpu.memory_space<vmem>>, vector<32x128xf32>,
    %cst_1 = arith.constant 0.000000e+00 : f32
    %2 = vector.broadcast %cst_1 : f32 to vector<32x128xf32>
    %c0_2 = arith.constant 0 : index
    %c896 = arith.constant 896 : index
    %3 = vector.load %arg5[%c0_2, %c896] : memref<32x1024xf32, #tpu.memory_space<vmem>>, vector<32x128xf32>
    tpu.vector_store %arg5[%c0_2, %c896], %2 {strides = array<i32>} : memref<32x1024xf32, #tpu.memory_space<vmem>>, vector<32x128xf32>,
    %cst_3 = arith.constant 0.000000e+00 : f32
    %4 = vector.broadcast %cst_3 : f32 to vector<32x128xf32>
    %c0_4 = arith.constant 0 : index
    %c0_5 = arith.constant 0 : index
    %5 = vector.load %arg6[%c0_4, %c0_5] : memref<32x1024xf32, #tpu.memory_space<vmem>>, vector<32x128xf32>
    tpu.vector_store %arg6[%c0_4, %c0_5], %4 {strides = array<i32>} : memref<32x1024xf32, #tpu.memory_space<vmem>>, vector<32x128xf32>,
    %cst_6 = arith.constant 0.000000e+00 : f32
    %6 = vector.broadcast %cst_6 : f32 to vector<32x128xf32>
    %c0_7 = arith.constant 0 : index
    %c896_8 = arith.constant 896 : index
    %7 = vector.load %arg6[%c0_7, %c896_8] : memref<32x1024xf32, #tpu.memory_space<vmem>>, vector<32x128xf32>
    tpu.vector_store %arg6[%c0_7, %c896_8], %6 {strides = array<i32>} : memref<32x1024xf32, #tpu.memory_space<vmem>>, vector<32x128xf32>,
    %c0_9 = arith.constant 0 : index
    %c0_10 = arith.constant 0 : index
    %8 = vector.load %arg1[%c0_9, %c0_10] : memref<8x768xf32, #tpu.memory_space<vmem>>, vector<8x768xf32>
    %9 = vector.extract_strided_slice %8 {offsets = [0, 0], sizes = [1, 768], strides = [1, 1]} : vector<8x768xf32> to vector<1x768xf32>
    %10 = vector.extract_strided_slice %8 {offsets = [1, 0], sizes = [1, 768], strides = [1, 1]} : vector<8x768xf32> to vector<1x768xf32>
    %c0_11 = arith.constant 0 : index
    %c0_12 = arith.constant 0 : index
    %11 = vector.load %arg0[%c0_11, %c0_12] : memref<16x1024xf32, #tpu.memory_space<vmem>>, vector<16x1024xf32>
    %12 = vector.extract_strided_slice %11 {offsets = [0, 109], sizes = [16, 768], strides = [1, 1]} : vector<16x1024xf32> to vector<16x768xf32>
    %13 = arith.truncf %12 : vector<16x768xf32> to vector<16x768xbf16>
    %c0_13 = arith.constant 0 : index
    %c0_14 = arith.constant 0 : index
    %14 = vector.load %arg7[%c0_13, %c0_14] : memref<288x768xbf16, #tpu.memory_space<vmem>>, vector<16x768xbf16>
    tpu.vector_store %arg7[%c0_13, %c0_14], %13 {strides = array<i32>} : memref<288x768xbf16, #tpu.memory_space<vmem>>, vector<16x768xbf16>,
    %15 = vector.extract_strided_slice %11 {offsets = [0, 110], sizes = [16, 768], strides = [1, 1]} : vector<16x1024xf32> to vector<16x768xf32>
    %16 = arith.truncf %15 : vector<16x768xf32> to vector<16x768xbf16>
    %c16 = arith.constant 16 : index
    %c0_15 = arith.constant 0 : index
    %17 = vector.load %arg7[%c16, %c0_15] : memref<288x768xbf16, #tpu.memory_space<vmem>>, vector<16x768xbf16>
    tpu.vector_store %arg7[%c16, %c0_15], %16 {strides = array<i32>} : memref<288x768xbf16, #tpu.memory_space<vmem>>, vector<16x768xbf16>,
    %18 = vector.extract_strided_slice %11 {offsets = [0, 111], sizes = [16, 768], strides = [1, 1]} : vector<16x1024xf32> to vector<16x768xf32>
    %19 = arith.truncf %18 : vector<16x768xf32> to vector<16x768xbf16>
    %c32 = arith.constant 32 : index
    %c0_16 = arith.constant 0 : index
    %20 = vector.load %arg7[%c32, %c0_16] : memref<288x768xbf16, #tpu.memory_space<vmem>>, vector<16x768xbf16>
    tpu.vector_store %arg7[%c32, %c0_16], %19 {strides = array<i32>} : memref<288x768xbf16, #tpu.memory_space<vmem>>, vector<16x768xbf16>,
    %21 = vector.extract_strided_slice %11 {offsets = [0, 127], sizes = [16, 768], strides = [1, 1]} : vector<16x1024xf32> to vector<16x768xf32>
    %22 = arith.truncf %21 : vector<16x768xf32> to vector<16x768xbf16>
    %c48 = arith.constant 48 : index
    %c0_17 = arith.constant 0 : index
    %23 = vector.load %arg7[%c48, %c0_17] : memref<288x768xbf16, #tpu.memory_space<vmem>>, vector<16x768xbf16>
    tpu.vector_store %arg7[%c48, %c0_17], %22 {strides = array<i32>} : memref<288x768xbf16, #tpu.memory_space<vmem>>, vector<16x768xbf16>,
    %24 = vector.extract_strided_slice %11 {offsets = [0, 128], sizes = [16, 768], strides = [1, 1]} : vector<16x1024xf32> to vector<16x768xf32>
    %25 = arith.truncf %24 : vector<16x768xf32> to vector<16x768xbf16>
    %c64 = arith.constant 64 : index
    %c0_18 = arith.constant 0 : index
    %26 = vector.load %arg7[%c64, %c0_18] : memref<288x768xbf16, #tpu.memory_space<vmem>>, vector<16x768xbf16>
    tpu.vector_store %arg7[%c64, %c0_18], %25 {strides = array<i32>} : memref<288x768xbf16, #tpu.memory_space<vmem>>, vector<16x768xbf16>,
    %27 = vector.extract_strided_slice %11 {offsets = [0, 129], sizes = [16, 768], strides = [1, 1]} : vector<16x1024xf32> to vector<16x768xf32>
    %28 = arith.truncf %27 : vector<16x768xf32> to vector<16x768xbf16>
    %c80 = arith.constant 80 : index
    %c0_19 = arith.constant 0 : index
    %29 = vector.load %arg7[%c80, %c0_19] : memref<288x768xbf16, #tpu.memory_space<vmem>>, vector<16x768xbf16>
    tpu.vector_store %arg7[%c80, %c0_19], %28 {strides = array<i32>} : memref<288x768xbf16, #tpu.memory_space<vmem>>, vector<16x768xbf16>,
    %30 = vector.extract_strided_slice %11 {offsets = [0, 145], sizes = [16, 768], strides = [1, 1]} : vector<16x1024xf32> to vector<16x768xf32>
    %31 = arith.truncf %30 : vector<16x768xf32> to vector<16x768xbf16>
    %c96 = arith.constant 96 : index
    %c0_20 = arith.constant 0 : index
    %32 = vector.load %arg7[%c96, %c0_20] : memref<288x768xbf16, #tpu.memory_space<vmem>>, vector<16x768xbf16>
    tpu.vector_store %arg7[%c96, %c0_20], %31 {strides = array<i32>} : memref<288x768xbf16, #tpu.memory_space<vmem>>, vector<16x768xbf16>,
    %33 = vector.extract_strided_slice %11 {offsets = [0, 146], sizes = [16, 768], strides = [1, 1]} : vector<16x1024xf32> to vector<16x768xf32>
    %34 = arith.truncf %33 : vector<16x768xf32> to vector<16x768xbf16>
    %c112 = arith.constant 112 : index
    %c0_21 = arith.constant 0 : index
    %35 = vector.load %arg7[%c112, %c0_21] : memref<288x768xbf16, #tpu.memory_space<vmem>>, vector<16x768xbf16>
    tpu.vector_store %arg7[%c112, %c0_21], %34 {strides = array<i32>} : memref<288x768xbf16, #tpu.memory_space<vmem>>, vector<16x768xbf16>,
    %36 = vector.extract_strided_slice %11 {offsets = [0, 147], sizes = [16, 768], strides = [1, 1]} : vector<16x1024xf32> to vector<16x768xf32>
    %37 = arith.truncf %36 : vector<16x768xf32> to vector<16x768xbf16>
    %c128 = arith.constant 128 : index
    %c0_22 = arith.constant 0 : index
    %38 = vector.load %arg7[%c128, %c0_22] : memref<288x768xbf16, #tpu.memory_space<vmem>>, vector<16x768xbf16>
    tpu.vector_store %arg7[%c128, %c0_22], %37 {strides = array<i32>} : memref<288x768xbf16, #tpu.memory_space<vmem>>, vector<16x768xbf16>,
    %c0_23 = arith.constant 0 : index
    %c0_24 = arith.constant 0 : index
    %39 = vector.load %arg2[%c0_23, %c0_24] : memref<256x288xbf16, #tpu.memory_space<vmem>>, vector<16x144xbf16>
    %c0_25 = arith.constant 0 : index
    %c0_26 = arith.constant 0 : index
    %40 = vector.load %arg7[%c0_25, %c0_26] : memref<288x768xbf16, #tpu.memory_space<vmem>>, vector<144x768xbf16>
    %cst_27 = arith.constant dense<0.000000e+00> : vector<16x768xf32>
    %41 = tpu.matmul %39, %40, %cst_27 {dimension_numbers = #tpu.dot_dimension_numbers<[1], [0], [0], [1], [0, 0, 1, 1], [], []>} : vector<16x144xbf16>, vector<144x768xbf16>, vector<16x768xf32> -> vector<16x768xf32>
    %c0_28 = arith.constant 0 : index
    %c0_29 = arith.constant 0 : index
    %42 = vector.load %arg3[%c0_28, %c0_29] : memref<264x32xf32, #tpu.memory_space<vmem>>, vector<16x1xf32>
    %43 = vector.broadcast %42 : vector<16x1xf32> to vector<16x768xf32>
    %44 = arith.addf %41, %43 : vector<16x768xf32>
    %cst_30 = arith.constant 0.000000e+00 : f32
    %cst_31 = arith.constant 6.000000e+00 : f32
    %45 = vector.broadcast %cst_30 : f32 to vector<16x768xf32>
    %46 = arith.maximumf %45, %44 : vector<16x768xf32>
    %47 = vector.broadcast %cst_31 : f32 to vector<16x768xf32>
    %48 = arith.minimumf %47, %46 : vector<16x768xf32>
    %49 = vector.broadcast %9 : vector<1x768xf32> to vector<16x768xf32>
    %50 = arith.mulf %48, %49 : vector<16x768xf32>
    %c0_32 = arith.constant 0 : index
    %c128_33 = arith.constant 128 : index
    %51 = vector.load %arg5[%c0_32, %c128_33] : memref<32x1024xf32, #tpu.memory_space<vmem>>, vector<16x768xf32>
    tpu.vector_store %arg5[%c0_32, %c128_33], %50 {strides = array<i32>} : memref<32x1024xf32, #tpu.memory_space<vmem>>, vector<16x768xf32>,
    %c0_34 = arith.constant 0 : index
    %c0_35 = arith.constant 0 : index
    %52 = vector.load %arg5[%c0_34, %c0_35] : memref<32x1024xf32, #tpu.memory_space<vmem>>, vector<16x1024xf32>
    %53 = vector.extract_strided_slice %52 {offsets = [0, 109], sizes = [16, 768], strides = [1, 1]} : vector<16x1024xf32> to vector<16x768xf32>
    %54 = arith.truncf %53 : vector<16x768xf32> to vector<16x768xbf16>
    %c0_36 = arith.constant 0 : index
    %c0_37 = arith.constant 0 : index
    %55 = vector.load %arg7[%c0_36, %c0_37] : memref<288x768xbf16, #tpu.memory_space<vmem>>, vector<16x768xbf16>
    tpu.vector_store %arg7[%c0_36, %c0_37], %54 {strides = array<i32>} : memref<288x768xbf16, #tpu.memory_space<vmem>>, vector<16x768xbf16>,
    %56 = vector.extract_strided_slice %52 {offsets = [0, 110], sizes = [16, 768], strides = [1, 1]} : vector<16x1024xf32> to vector<16x768xf32>
    %57 = arith.truncf %56 : vector<16x768xf32> to vector<16x768xbf16>
    %c16_38 = arith.constant 16 : index
    %c0_39 = arith.constant 0 : index
    %58 = vector.load %arg7[%c16_38, %c0_39] : memref<288x768xbf16, #tpu.memory_space<vmem>>, vector<16x768xbf16>
    tpu.vector_store %arg7[%c16_38, %c0_39], %57 {strides = array<i32>} : memref<288x768xbf16, #tpu.memory_space<vmem>>, vector<16x768xbf16>,
    %59 = vector.extract_strided_slice %52 {offsets = [0, 111], sizes = [16, 768], strides = [1, 1]} : vector<16x1024xf32> to vector<16x768xf32>
    %60 = arith.truncf %59 : vector<16x768xf32> to vector<16x768xbf16>
    %c32_40 = arith.constant 32 : index
    %c0_41 = arith.constant 0 : index
    %61 = vector.load %arg7[%c32_40, %c0_41] : memref<288x768xbf16, #tpu.memory_space<vmem>>, vector<16x768xbf16>
    tpu.vector_store %arg7[%c32_40, %c0_41], %60 {strides = array<i32>} : memref<288x768xbf16, #tpu.memory_space<vmem>>, vector<16x768xbf16>,
    %62 = vector.extract_strided_slice %52 {offsets = [0, 127], sizes = [16, 768], strides = [1, 1]} : vector<16x1024xf32> to vector<16x768xf32>
    %63 = arith.truncf %62 : vector<16x768xf32> to vector<16x768xbf16>
    %c48_42 = arith.constant 48 : index
    %c0_43 = arith.constant 0 : index
    %64 = vector.load %arg7[%c48_42, %c0_43] : memref<288x768xbf16, #tpu.memory_space<vmem>>, vector<16x768xbf16>
    tpu.vector_store %arg7[%c48_42, %c0_43], %63 {strides = array<i32>} : memref<288x768xbf16, #tpu.memory_space<vmem>>, vector<16x768xbf16>,
    %65 = vector.extract_strided_slice %52 {offsets = [0, 128], sizes = [16, 768], strides = [1, 1]} : vector<16x1024xf32> to vector<16x768xf32>
    %66 = arith.truncf %65 : vector<16x768xf32> to vector<16x768xbf16>
    %c64_44 = arith.constant 64 : index
    %c0_45 = arith.constant 0 : index
    %67 = vector.load %arg7[%c64_44, %c0_45] : memref<288x768xbf16, #tpu.memory_space<vmem>>, vector<16x768xbf16>
    tpu.vector_store %arg7[%c64_44, %c0_45], %66 {strides = array<i32>} : memref<288x768xbf16, #tpu.memory_space<vmem>>, vector<16x768xbf16>,
    %68 = vector.extract_strided_slice %52 {offsets = [0, 129], sizes = [16, 768], strides = [1, 1]} : vector<16x1024xf32> to vector<16x768xf32>
    %69 = arith.truncf %68 : vector<16x768xf32> to vector<16x768xbf16>
    %c80_46 = arith.constant 80 : index
    %c0_47 = arith.constant 0 : index
    %70 = vector.load %arg7[%c80_46, %c0_47] : memref<288x768xbf16, #tpu.memory_space<vmem>>, vector<16x768xbf16>
    tpu.vector_store %arg7[%c80_46, %c0_47], %69 {strides = array<i32>} : memref<288x768xbf16, #tpu.memory_space<vmem>>, vector<16x768xbf16>,
    %71 = vector.extract_strided_slice %52 {offsets = [0, 145], sizes = [16, 768], strides = [1, 1]} : vector<16x1024xf32> to vector<16x768xf32>
    %72 = arith.truncf %71 : vector<16x768xf32> to vector<16x768xbf16>
    %c96_48 = arith.constant 96 : index
    %c0_49 = arith.constant 0 : index
    %73 = vector.load %arg7[%c96_48, %c0_49] : memref<288x768xbf16, #tpu.memory_space<vmem>>, vector<16x768xbf16>
    tpu.vector_store %arg7[%c96_48, %c0_49], %72 {strides = array<i32>} : memref<288x768xbf16, #tpu.memory_space<vmem>>, vector<16x768xbf16>,
    %74 = vector.extract_strided_slice %52 {offsets = [0, 146], sizes = [16, 768], strides = [1, 1]} : vector<16x1024xf32> to vector<16x768xf32>
    %75 = arith.truncf %74 : vector<16x768xf32> to vector<16x768xbf16>
    %c112_50 = arith.constant 112 : index
    %c0_51 = arith.constant 0 : index
    %76 = vector.load %arg7[%c112_50, %c0_51] : memref<288x768xbf16, #tpu.memory_space<vmem>>, vector<16x768xbf16>
    tpu.vector_store %arg7[%c112_50, %c0_51], %75 {strides = array<i32>} : memref<288x768xbf16, #tpu.memory_space<vmem>>, vector<16x768xbf16>,
    %77 = vector.extract_strided_slice %52 {offsets = [0, 147], sizes = [16, 768], strides = [1, 1]} : vector<16x1024xf32> to vector<16x768xf32>
    %78 = arith.truncf %77 : vector<16x768xf32> to vector<16x768xbf16>
    %c128_52 = arith.constant 128 : index
    %c0_53 = arith.constant 0 : index
    %79 = vector.load %arg7[%c128_52, %c0_53] : memref<288x768xbf16, #tpu.memory_space<vmem>>, vector<16x768xbf16>
    tpu.vector_store %arg7[%c128_52, %c0_53], %78 {strides = array<i32>} : memref<288x768xbf16, #tpu.memory_space<vmem>>, vector<16x768xbf16>,
    %c16_54 = arith.constant 16 : index
    %c0_55 = arith.constant 0 : index
    %80 = vector.load %arg2[%c16_54, %c0_55] : memref<256x288xbf16, #tpu.memory_space<vmem>>, vector<16x144xbf16>
    %c0_56 = arith.constant 0 : index
    %c0_57 = arith.constant 0 : index
    %81 = vector.load %arg7[%c0_56, %c0_57] : memref<288x768xbf16, #tpu.memory_space<vmem>>, vector<144x768xbf16>
    %cst_58 = arith.constant dense<0.000000e+00> : vector<16x768xf32>
    %82 = tpu.matmul %80, %81, %cst_58 {dimension_numbers = #tpu.dot_dimension_numbers<[1], [0], [0], [1], [0, 0, 1, 1], [], []>} : vector<16x144xbf16>, vector<144x768xbf16>, vector<16x768xf32> -> vector<16x768xf32>
    %c16_59 = arith.constant 16 : index
    %c0_60 = arith.constant 0 : index
    %83 = vector.load %arg3[%c16_59, %c0_60] : memref<264x32xf32, #tpu.memory_space<vmem>>, vector<16x1xf32>
    %84 = vector.broadcast %83 : vector<16x1xf32> to vector<16x768xf32>
    %85 = arith.addf %82, %84 : vector<16x768xf32>
    %cst_61 = arith.constant 0.000000e+00 : f32
    %86 = vector.broadcast %cst_61 : f32 to vector<16x768xf32>
    %87 = arith.maximumf %85, %86 : vector<16x768xf32>
    %88 = vector.broadcast %9 : vector<1x768xf32> to vector<16x768xf32>
    %89 = arith.mulf %87, %88 : vector<16x768xf32>
    %c0_62 = arith.constant 0 : index
    %c128_63 = arith.constant 128 : index
    %90 = vector.load %arg6[%c0_62, %c128_63] : memref<32x1024xf32, #tpu.memory_space<vmem>>, vector<16x768xf32>
    tpu.vector_store %arg6[%c0_62, %c128_63], %89 {strides = array<i32>} : memref<32x1024xf32, #tpu.memory_space<vmem>>, vector<16x768xf32>,
    %c0_64 = arith.constant 0 : index
    %c128_65 = arith.constant 128 : index
    %91 = vector.load %arg5[%c0_64, %c128_65] : memref<32x1024xf32, #tpu.memory_space<vmem>>, vector<16x768xf32>
    %92 = arith.truncf %91 : vector<16x768xf32> to vector<16x768xbf16>
    %c208 = arith.constant 208 : index
    %c0_66 = arith.constant 0 : index
    %93 = vector.load %arg2[%c208, %c0_66] : memref<256x288xbf16, #tpu.memory_space<vmem>>, vector<16x16xbf16>
    %cst_67 = arith.constant dense<0.000000e+00> : vector<16x768xf32>
    %94 = tpu.matmul %93, %92, %cst_67 {dimension_numbers = #tpu.dot_dimension_numbers<[1], [0], [0], [1], [0, 0, 1, 1], [], []>} : vector<16x16xbf16>, vector<16x768xbf16>, vector<16x768xf32> -> vector<16x768xf32>
    %c208_68 = arith.constant 208 : index
    %c0_69 = arith.constant 0 : index
    %95 = vector.load %arg3[%c208_68, %c0_69] : memref<264x32xf32, #tpu.memory_space<vmem>>, vector<16x1xf32>
    %96 = vector.broadcast %95 : vector<16x1xf32> to vector<16x768xf32>
    %97 = arith.addf %94, %96 : vector<16x768xf32>
    %c0_70 = arith.constant 0 : index
    %c0_71 = arith.constant 0 : index
    %98 = vector.load %arg6[%c0_70, %c0_71] : memref<32x1024xf32, #tpu.memory_space<vmem>>, vector<16x1024xf32>
    %99 = vector.extract_strided_slice %98 {offsets = [0, 109], sizes = [16, 768], strides = [1, 1]} : vector<16x1024xf32> to vector<16x768xf32>
    %100 = arith.truncf %99 : vector<16x768xf32> to vector<16x768xbf16>
    %c0_72 = arith.constant 0 : index
    %c0_73 = arith.constant 0 : index
    %101 = vector.load %arg7[%c0_72, %c0_73] : memref<288x768xbf16, #tpu.memory_space<vmem>>, vector<16x768xbf16>
    tpu.vector_store %arg7[%c0_72, %c0_73], %100 {strides = array<i32>} : memref<288x768xbf16, #tpu.memory_space<vmem>>, vector<16x768xbf16>,
    %102 = vector.extract_strided_slice %98 {offsets = [0, 110], sizes = [16, 768], strides = [1, 1]} : vector<16x1024xf32> to vector<16x768xf32>
    %103 = arith.truncf %102 : vector<16x768xf32> to vector<16x768xbf16>
    %c16_74 = arith.constant 16 : index
    %c0_75 = arith.constant 0 : index
    %104 = vector.load %arg7[%c16_74, %c0_75] : memref<288x768xbf16, #tpu.memory_space<vmem>>, vector<16x768xbf16>
    tpu.vector_store %arg7[%c16_74, %c0_75], %103 {strides = array<i32>} : memref<288x768xbf16, #tpu.memory_space<vmem>>, vector<16x768xbf16>,
    %105 = vector.extract_strided_slice %98 {offsets = [0, 111], sizes = [16, 768], strides = [1, 1]} : vector<16x1024xf32> to vector<16x768xf32>
    %106 = arith.truncf %105 : vector<16x768xf32> to vector<16x768xbf16>
    %c32_76 = arith.constant 32 : index
    %c0_77 = arith.constant 0 : index
    %107 = vector.load %arg7[%c32_76, %c0_77] : memref<288x768xbf16, #tpu.memory_space<vmem>>, vector<16x768xbf16>
    tpu.vector_store %arg7[%c32_76, %c0_77], %106 {strides = array<i32>} : memref<288x768xbf16, #tpu.memory_space<vmem>>, vector<16x768xbf16>,
    %108 = vector.extract_strided_slice %98 {offsets = [0, 127], sizes = [16, 768], strides = [1, 1]} : vector<16x1024xf32> to vector<16x768xf32>
    %109 = arith.truncf %108 : vector<16x768xf32> to vector<16x768xbf16>
    %c48_78 = arith.constant 48 : index
    %c0_79 = arith.constant 0 : index
    %110 = vector.load %arg7[%c48_78, %c0_79] : memref<288x768xbf16, #tpu.memory_space<vmem>>, vector<16x768xbf16>
    tpu.vector_store %arg7[%c48_78, %c0_79], %109 {strides = array<i32>} : memref<288x768xbf16, #tpu.memory_space<vmem>>, vector<16x768xbf16>,
    %111 = vector.extract_strided_slice %98 {offsets = [0, 128], sizes = [16, 768], strides = [1, 1]} : vector<16x1024xf32> to vector<16x768xf32>
    %112 = arith.truncf %111 : vector<16x768xf32> to vector<16x768xbf16>
    %c64_80 = arith.constant 64 : index
    %c0_81 = arith.constant 0 : index
    %113 = vector.load %arg7[%c64_80, %c0_81] : memref<288x768xbf16, #tpu.memory_space<vmem>>, vector<16x768xbf16>
    tpu.vector_store %arg7[%c64_80, %c0_81], %112 {strides = array<i32>} : memref<288x768xbf16, #tpu.memory_space<vmem>>, vector<16x768xbf16>,
    %114 = vector.extract_strided_slice %98 {offsets = [0, 129], sizes = [16, 768], strides = [1, 1]} : vector<16x1024xf32> to vector<16x768xf32>
    %115 = arith.truncf %114 : vector<16x768xf32> to vector<16x768xbf16>
    %c80_82 = arith.constant 80 : index
    %c0_83 = arith.constant 0 : index
    %116 = vector.load %arg7[%c80_82, %c0_83] : memref<288x768xbf16, #tpu.memory_space<vmem>>, vector<16x768xbf16>
    tpu.vector_store %arg7[%c80_82, %c0_83], %115 {strides = array<i32>} : memref<288x768xbf16, #tpu.memory_space<vmem>>, vector<16x768xbf16>,
    %117 = vector.extract_strided_slice %98 {offsets = [0, 145], sizes = [16, 768], strides = [1, 1]} : vector<16x1024xf32> to vector<16x768xf32>
    %118 = arith.truncf %117 : vector<16x768xf32> to vector<16x768xbf16>
    %c96_84 = arith.constant 96 : index
    %c0_85 = arith.constant 0 : index
    %119 = vector.load %arg7[%c96_84, %c0_85] : memref<288x768xbf16, #tpu.memory_space<vmem>>, vector<16x768xbf16>
    tpu.vector_store %arg7[%c96_84, %c0_85], %118 {strides = array<i32>} : memref<288x768xbf16, #tpu.memory_space<vmem>>, vector<16x768xbf16>,
    %120 = vector.extract_strided_slice %98 {offsets = [0, 146], sizes = [16, 768], strides = [1, 1]} : vector<16x1024xf32> to vector<16x768xf32>
    %121 = arith.truncf %120 : vector<16x768xf32> to vector<16x768xbf16>
    %c112_86 = arith.constant 112 : index
    %c0_87 = arith.constant 0 : index
    %122 = vector.load %arg7[%c112_86, %c0_87] : memref<288x768xbf16, #tpu.memory_space<vmem>>, vector<16x768xbf16>
    tpu.vector_store %arg7[%c112_86, %c0_87], %121 {strides = array<i32>} : memref<288x768xbf16, #tpu.memory_space<vmem>>, vector<16x768xbf16>,
    %123 = vector.extract_strided_slice %98 {offsets = [0, 147], sizes = [16, 768], strides = [1, 1]} : vector<16x1024xf32> to vector<16x768xf32>
    %124 = arith.truncf %123 : vector<16x768xf32> to vector<16x768xbf16>
    %c128_88 = arith.constant 128 : index
    %c0_89 = arith.constant 0 : index
    %125 = vector.load %arg7[%c128_88, %c0_89] : memref<288x768xbf16, #tpu.memory_space<vmem>>, vector<16x768xbf16>
    tpu.vector_store %arg7[%c128_88, %c0_89], %124 {strides = array<i32>} : memref<288x768xbf16, #tpu.memory_space<vmem>>, vector<16x768xbf16>,
    %c32_90 = arith.constant 32 : index
    %c0_91 = arith.constant 0 : index
    %126 = vector.load %arg2[%c32_90, %c0_91] : memref<256x288xbf16, #tpu.memory_space<vmem>>, vector<16x144xbf16>
    %c0_92 = arith.constant 0 : index
    %c0_93 = arith.constant 0 : index
    %127 = vector.load %arg7[%c0_92, %c0_93] : memref<288x768xbf16, #tpu.memory_space<vmem>>, vector<144x768xbf16>
    %cst_94 = arith.constant dense<0.000000e+00> : vector<16x768xf32>
    %128 = tpu.matmul %126, %127, %cst_94 {dimension_numbers = #tpu.dot_dimension_numbers<[1], [0], [0], [1], [0, 0, 1, 1], [], []>} : vector<16x144xbf16>, vector<144x768xbf16>, vector<16x768xf32> -> vector<16x768xf32>
    %c32_95 = arith.constant 32 : index
    %c0_96 = arith.constant 0 : index
    %129 = vector.load %arg3[%c32_95, %c0_96] : memref<264x32xf32, #tpu.memory_space<vmem>>, vector<16x1xf32>
    %130 = vector.broadcast %129 : vector<16x1xf32> to vector<16x768xf32>
    %131 = arith.addf %128, %130 : vector<16x768xf32>
    %132 = arith.addf %131, %97 : vector<16x768xf32>
    %cst_97 = arith.constant 0.000000e+00 : f32
    %133 = vector.broadcast %cst_97 : f32 to vector<16x768xf32>
    %134 = arith.maximumf %132, %133 : vector<16x768xf32>
    %135 = vector.broadcast %9 : vector<1x768xf32> to vector<16x768xf32>
    %136 = arith.mulf %134, %135 : vector<16x768xf32>
    %c0_98 = arith.constant 0 : index
    %c128_99 = arith.constant 128 : index
    %137 = vector.load %arg5[%c0_98, %c128_99] : memref<32x1024xf32, #tpu.memory_space<vmem>>, vector<16x768xf32>
    tpu.vector_store %arg5[%c0_98, %c128_99], %136 {strides = array<i32>} : memref<32x1024xf32, #tpu.memory_space<vmem>>, vector<16x768xf32>,
    %c0_100 = arith.constant 0 : index
    %c0_101 = arith.constant 0 : index
    %138 = vector.load %arg5[%c0_100, %c0_101] : memref<32x1024xf32, #tpu.memory_space<vmem>>, vector<16x1024xf32>
    %139 = vector.extract_strided_slice %138 {offsets = [0, 109], sizes = [16, 768], strides = [1, 1]} : vector<16x1024xf32> to vector<16x768xf32>
    %140 = arith.truncf %139 : vector<16x768xf32> to vector<16x768xbf16>
    %c0_102 = arith.constant 0 : index
    %c0_103 = arith.constant 0 : index
    %141 = vector.load %arg7[%c0_102, %c0_103] : memref<288x768xbf16, #tpu.memory_space<vmem>>, vector<16x768xbf16>
    tpu.vector_store %arg7[%c0_102, %c0_103], %140 {strides = array<i32>} : memref<288x768xbf16, #tpu.memory_space<vmem>>, vector<16x768xbf16>,
    %142 = vector.extract_strided_slice %138 {offsets = [0, 110], sizes = [16, 768], strides = [1, 1]} : vector<16x1024xf32> to vector<16x768xf32>
    %143 = arith.truncf %142 : vector<16x768xf32> to vector<16x768xbf16>
    %c16_104 = arith.constant 16 : index
    %c0_105 = arith.constant 0 : index
    %144 = vector.load %arg7[%c16_104, %c0_105] : memref<288x768xbf16, #tpu.memory_space<vmem>>, vector<16x768xbf16>
    tpu.vector_store %arg7[%c16_104, %c0_105], %143 {strides = array<i32>} : memref<288x768xbf16, #tpu.memory_space<vmem>>, vector<16x768xbf16>,
    %145 = vector.extract_strided_slice %138 {offsets = [0, 111], sizes = [16, 768], strides = [1, 1]} : vector<16x1024xf32> to vector<16x768xf32>
    %146 = arith.truncf %145 : vector<16x768xf32> to vector<16x768xbf16>
    %c32_106 = arith.constant 32 : index
    %c0_107 = arith.constant 0 : index
    %147 = vector.load %arg7[%c32_106, %c0_107] : memref<288x768xbf16, #tpu.memory_space<vmem>>, vector<16x768xbf16>
    tpu.vector_store %arg7[%c32_106, %c0_107], %146 {strides = array<i32>} : memref<288x768xbf16, #tpu.memory_space<vmem>>, vector<16x768xbf16>,
    %148 = vector.extract_strided_slice %138 {offsets = [0, 127], sizes = [16, 768], strides = [1, 1]} : vector<16x1024xf32> to vector<16x768xf32>
    %149 = arith.truncf %148 : vector<16x768xf32> to vector<16x768xbf16>
    %c48_108 = arith.constant 48 : index
    %c0_109 = arith.constant 0 : index
    %150 = vector.load %arg7[%c48_108, %c0_109] : memref<288x768xbf16, #tpu.memory_space<vmem>>, vector<16x768xbf16>
    tpu.vector_store %arg7[%c48_108, %c0_109], %149 {strides = array<i32>} : memref<288x768xbf16, #tpu.memory_space<vmem>>, vector<16x768xbf16>,
    %151 = vector.extract_strided_slice %138 {offsets = [0, 128], sizes = [16, 768], strides = [1, 1]} : vector<16x1024xf32> to vector<16x768xf32>
    %152 = arith.truncf %151 : vector<16x768xf32> to vector<16x768xbf16>
    %c64_110 = arith.constant 64 : index
    %c0_111 = arith.constant 0 : index
    %153 = vector.load %arg7[%c64_110, %c0_111] : memref<288x768xbf16, #tpu.memory_space<vmem>>, vector<16x768xbf16>
    tpu.vector_store %arg7[%c64_110, %c0_111], %152 {strides = array<i32>} : memref<288x768xbf16, #tpu.memory_space<vmem>>, vector<16x768xbf16>,
    %154 = vector.extract_strided_slice %138 {offsets = [0, 129], sizes = [16, 768], strides = [1, 1]} : vector<16x1024xf32> to vector<16x768xf32>
    %155 = arith.truncf %154 : vector<16x768xf32> to vector<16x768xbf16>
    %c80_112 = arith.constant 80 : index
    %c0_113 = arith.constant 0 : index
    %156 = vector.load %arg7[%c80_112, %c0_113] : memref<288x768xbf16, #tpu.memory_space<vmem>>, vector<16x768xbf16>
    tpu.vector_store %arg7[%c80_112, %c0_113], %155 {strides = array<i32>} : memref<288x768xbf16, #tpu.memory_space<vmem>>, vector<16x768xbf16>,
    %157 = vector.extract_strided_slice %138 {offsets = [0, 145], sizes = [16, 768], strides = [1, 1]} : vector<16x1024xf32> to vector<16x768xf32>
    %158 = arith.truncf %157 : vector<16x768xf32> to vector<16x768xbf16>
    %c96_114 = arith.constant 96 : index
    %c0_115 = arith.constant 0 : index
    %159 = vector.load %arg7[%c96_114, %c0_115] : memref<288x768xbf16, #tpu.memory_space<vmem>>, vector<16x768xbf16>
    tpu.vector_store %arg7[%c96_114, %c0_115], %158 {strides = array<i32>} : memref<288x768xbf16, #tpu.memory_space<vmem>>, vector<16x768xbf16>,
    %160 = vector.extract_strided_slice %138 {offsets = [0, 146], sizes = [16, 768], strides = [1, 1]} : vector<16x1024xf32> to vector<16x768xf32>
    %161 = arith.truncf %160 : vector<16x768xf32> to vector<16x768xbf16>
    %c112_116 = arith.constant 112 : index
    %c0_117 = arith.constant 0 : index
    %162 = vector.load %arg7[%c112_116, %c0_117] : memref<288x768xbf16, #tpu.memory_space<vmem>>, vector<16x768xbf16>
    tpu.vector_store %arg7[%c112_116, %c0_117], %161 {strides = array<i32>} : memref<288x768xbf16, #tpu.memory_space<vmem>>, vector<16x768xbf16>,
    %163 = vector.extract_strided_slice %138 {offsets = [0, 147], sizes = [16, 768], strides = [1, 1]} : vector<16x1024xf32> to vector<16x768xf32>
    %164 = arith.truncf %163 : vector<16x768xf32> to vector<16x768xbf16>
    %c128_118 = arith.constant 128 : index
    %c0_119 = arith.constant 0 : index
    %165 = vector.load %arg7[%c128_118, %c0_119] : memref<288x768xbf16, #tpu.memory_space<vmem>>, vector<16x768xbf16>
    tpu.vector_store %arg7[%c128_118, %c0_119], %164 {strides = array<i32>} : memref<288x768xbf16, #tpu.memory_space<vmem>>, vector<16x768xbf16>,
    %c48_120 = arith.constant 48 : index
    %c0_121 = arith.constant 0 : index
    %166 = vector.load %arg2[%c48_120, %c0_121] : memref<256x288xbf16, #tpu.memory_space<vmem>>, vector<16x144xbf16>
    %c0_122 = arith.constant 0 : index
    %c0_123 = arith.constant 0 : index
    %167 = vector.load %arg7[%c0_122, %c0_123] : memref<288x768xbf16, #tpu.memory_space<vmem>>, vector<144x768xbf16>
    %cst_124 = arith.constant dense<0.000000e+00> : vector<16x768xf32>
    %168 = tpu.matmul %166, %167, %cst_124 {dimension_numbers = #tpu.dot_dimension_numbers<[1], [0], [0], [1], [0, 0, 1, 1], [], []>} : vector<16x144xbf16>, vector<144x768xbf16>, vector<16x768xf32> -> vector<16x768xf32>
    %c48_125 = arith.constant 48 : index
    %c0_126 = arith.constant 0 : index
    %169 = vector.load %arg3[%c48_125, %c0_126] : memref<264x32xf32, #tpu.memory_space<vmem>>, vector<16x1xf32>
    %170 = vector.broadcast %169 : vector<16x1xf32> to vector<16x768xf32>
    %171 = arith.addf %168, %170 : vector<16x768xf32>
    %cst_127 = arith.constant 0.000000e+00 : f32
    %172 = vector.broadcast %cst_127 : f32 to vector<16x768xf32>
    %173 = arith.maximumf %171, %172 : vector<16x768xf32>
    %174 = vector.broadcast %9 : vector<1x768xf32> to vector<16x768xf32>
    %175 = arith.mulf %173, %174 : vector<16x768xf32>
    %c0_128 = arith.constant 0 : index
    %c128_129 = arith.constant 128 : index
    %176 = vector.load %arg6[%c0_128, %c128_129] : memref<32x1024xf32, #tpu.memory_space<vmem>>, vector<16x768xf32>
    tpu.vector_store %arg6[%c0_128, %c128_129], %175 {strides = array<i32>} : memref<32x1024xf32, #tpu.memory_space<vmem>>, vector<16x768xf32>,
    %c0_130 = arith.constant 0 : index
    %c128_131 = arith.constant 128 : index
    %177 = vector.load %arg5[%c0_130, %c128_131] : memref<32x1024xf32, #tpu.memory_space<vmem>>, vector<16x768xf32>
    %c0_132 = arith.constant 0 : index
    %c0_133 = arith.constant 0 : index
    %178 = vector.load %arg6[%c0_132, %c0_133] : memref<32x1024xf32, #tpu.memory_space<vmem>>, vector<16x1024xf32>
    %179 = vector.extract_strided_slice %178 {offsets = [0, 109], sizes = [16, 768], strides = [1, 1]} : vector<16x1024xf32> to vector<16x768xf32>
    %180 = arith.truncf %179 : vector<16x768xf32> to vector<16x768xbf16>
    %c0_134 = arith.constant 0 : index
    %c0_135 = arith.constant 0 : index
    %181 = vector.load %arg7[%c0_134, %c0_135] : memref<288x768xbf16, #tpu.memory_space<vmem>>, vector<16x768xbf16>
    tpu.vector_store %arg7[%c0_134, %c0_135], %180 {strides = array<i32>} : memref<288x768xbf16, #tpu.memory_space<vmem>>, vector<16x768xbf16>,
    %182 = vector.extract_strided_slice %178 {offsets = [0, 110], sizes = [16, 768], strides = [1, 1]} : vector<16x1024xf32> to vector<16x768xf32>
    %183 = arith.truncf %182 : vector<16x768xf32> to vector<16x768xbf16>
    %c16_136 = arith.constant 16 : index
    %c0_137 = arith.constant 0 : index
    %184 = vector.load %arg7[%c16_136, %c0_137] : memref<288x768xbf16, #tpu.memory_space<vmem>>, vector<16x768xbf16>
    tpu.vector_store %arg7[%c16_136, %c0_137], %183 {strides = array<i32>} : memref<288x768xbf16, #tpu.memory_space<vmem>>, vector<16x768xbf16>,
    %185 = vector.extract_strided_slice %178 {offsets = [0, 111], sizes = [16, 768], strides = [1, 1]} : vector<16x1024xf32> to vector<16x768xf32>
    %186 = arith.truncf %185 : vector<16x768xf32> to vector<16x768xbf16>
    %c32_138 = arith.constant 32 : index
    %c0_139 = arith.constant 0 : index
    %187 = vector.load %arg7[%c32_138, %c0_139] : memref<288x768xbf16, #tpu.memory_space<vmem>>, vector<16x768xbf16>
    tpu.vector_store %arg7[%c32_138, %c0_139], %186 {strides = array<i32>} : memref<288x768xbf16, #tpu.memory_space<vmem>>, vector<16x768xbf16>,
    %188 = vector.extract_strided_slice %178 {offsets = [0, 127], sizes = [16, 768], strides = [1, 1]} : vector<16x1024xf32> to vector<16x768xf32>
    %189 = arith.truncf %188 : vector<16x768xf32> to vector<16x768xbf16>
    %c48_140 = arith.constant 48 : index
    %c0_141 = arith.constant 0 : index
    %190 = vector.load %arg7[%c48_140, %c0_141] : memref<288x768xbf16, #tpu.memory_space<vmem>>, vector<16x768xbf16>
    tpu.vector_store %arg7[%c48_140, %c0_141], %189 {strides = array<i32>} : memref<288x768xbf16, #tpu.memory_space<vmem>>, vector<16x768xbf16>,
    %191 = vector.extract_strided_slice %178 {offsets = [0, 128], sizes = [16, 768], strides = [1, 1]} : vector<16x1024xf32> to vector<16x768xf32>
    %192 = arith.truncf %191 : vector<16x768xf32> to vector<16x768xbf16>
    %c64_142 = arith.constant 64 : index
    %c0_143 = arith.constant 0 : index
    %193 = vector.load %arg7[%c64_142, %c0_143] : memref<288x768xbf16, #tpu.memory_space<vmem>>, vector<16x768xbf16>
    tpu.vector_store %arg7[%c64_142, %c0_143], %192 {strides = array<i32>} : memref<288x768xbf16, #tpu.memory_space<vmem>>, vector<16x768xbf16>,
    %194 = vector.extract_strided_slice %178 {offsets = [0, 129], sizes = [16, 768], strides = [1, 1]} : vector<16x1024xf32> to vector<16x768xf32>
    %195 = arith.truncf %194 : vector<16x768xf32> to vector<16x768xbf16>
    %c80_144 = arith.constant 80 : index
    %c0_145 = arith.constant 0 : index
    %196 = vector.load %arg7[%c80_144, %c0_145] : memref<288x768xbf16, #tpu.memory_space<vmem>>, vector<16x768xbf16>
    tpu.vector_store %arg7[%c80_144, %c0_145], %195 {strides = array<i32>} : memref<288x768xbf16, #tpu.memory_space<vmem>>, vector<16x768xbf16>,
    %197 = vector.extract_strided_slice %178 {offsets = [0, 145], sizes = [16, 768], strides = [1, 1]} : vector<16x1024xf32> to vector<16x768xf32>
    %198 = arith.truncf %197 : vector<16x768xf32> to vector<16x768xbf16>
    %c96_146 = arith.constant 96 : index
    %c0_147 = arith.constant 0 : index
    %199 = vector.load %arg7[%c96_146, %c0_147] : memref<288x768xbf16, #tpu.memory_space<vmem>>, vector<16x768xbf16>
    tpu.vector_store %arg7[%c96_146, %c0_147], %198 {strides = array<i32>} : memref<288x768xbf16, #tpu.memory_space<vmem>>, vector<16x768xbf16>,
    %200 = vector.extract_strided_slice %178 {offsets = [0, 146], sizes = [16, 768], strides = [1, 1]} : vector<16x1024xf32> to vector<16x768xf32>
    %201 = arith.truncf %200 : vector<16x768xf32> to vector<16x768xbf16>
    %c112_148 = arith.constant 112 : index
    %c0_149 = arith.constant 0 : index
    %202 = vector.load %arg7[%c112_148, %c0_149] : memref<288x768xbf16, #tpu.memory_space<vmem>>, vector<16x768xbf16>
    tpu.vector_store %arg7[%c112_148, %c0_149], %201 {strides = array<i32>} : memref<288x768xbf16, #tpu.memory_space<vmem>>, vector<16x768xbf16>,
    %203 = vector.extract_strided_slice %178 {offsets = [0, 147], sizes = [16, 768], strides = [1, 1]} : vector<16x1024xf32> to vector<16x768xf32>
    %204 = arith.truncf %203 : vector<16x768xf32> to vector<16x768xbf16>
    %c128_150 = arith.constant 128 : index
    %c0_151 = arith.constant 0 : index
    %205 = vector.load %arg7[%c128_150, %c0_151] : memref<288x768xbf16, #tpu.memory_space<vmem>>, vector<16x768xbf16>
    tpu.vector_store %arg7[%c128_150, %c0_151], %204 {strides = array<i32>} : memref<288x768xbf16, #tpu.memory_space<vmem>>, vector<16x768xbf16>,
    %c64_152 = arith.constant 64 : index
    %c0_153 = arith.constant 0 : index
    %206 = vector.load %arg2[%c64_152, %c0_153] : memref<256x288xbf16, #tpu.memory_space<vmem>>, vector<16x144xbf16>
    %c0_154 = arith.constant 0 : index
    %c0_155 = arith.constant 0 : index
    %207 = vector.load %arg7[%c0_154, %c0_155] : memref<288x768xbf16, #tpu.memory_space<vmem>>, vector<144x768xbf16>
    %cst_156 = arith.constant dense<0.000000e+00> : vector<16x768xf32>
    %208 = tpu.matmul %206, %207, %cst_156 {dimension_numbers = #tpu.dot_dimension_numbers<[1], [0], [0], [1], [0, 0, 1, 1], [], []>} : vector<16x144xbf16>, vector<144x768xbf16>, vector<16x768xf32> -> vector<16x768xf32>
    %c64_157 = arith.constant 64 : index
    %c0_158 = arith.constant 0 : index
    %209 = vector.load %arg3[%c64_157, %c0_158] : memref<264x32xf32, #tpu.memory_space<vmem>>, vector<16x1xf32>
    %210 = vector.broadcast %209 : vector<16x1xf32> to vector<16x768xf32>
    %211 = arith.addf %208, %210 : vector<16x768xf32>
    %212 = arith.addf %211, %177 : vector<16x768xf32>
    %cst_159 = arith.constant 0.000000e+00 : f32
    %213 = vector.broadcast %cst_159 : f32 to vector<16x768xf32>
    %214 = arith.maximumf %212, %213 : vector<16x768xf32>
    %215 = vector.broadcast %9 : vector<1x768xf32> to vector<16x768xf32>
    %216 = arith.mulf %214, %215 : vector<16x768xf32>
    %c0_160 = arith.constant 0 : index
    %c128_161 = arith.constant 128 : index
    %217 = vector.load %arg5[%c0_160, %c128_161] : memref<32x1024xf32, #tpu.memory_space<vmem>>, vector<16x768xf32>
    tpu.vector_store %arg5[%c0_160, %c128_161], %216 {strides = array<i32>} : memref<32x1024xf32, #tpu.memory_space<vmem>>, vector<16x768xf32>,
    %c0_162 = arith.constant 0 : index
    %c0_163 = arith.constant 0 : index
    %218 = vector.load %arg5[%c0_162, %c0_163] : memref<32x1024xf32, #tpu.memory_space<vmem>>, vector<16x1024xf32>
    %219 = vector.extract_strided_slice %218 {offsets = [0, 109], sizes = [16, 768], strides = [1, 1]} : vector<16x1024xf32> to vector<16x768xf32>
    %220 = arith.truncf %219 : vector<16x768xf32> to vector<16x768xbf16>
    %c0_164 = arith.constant 0 : index
    %c0_165 = arith.constant 0 : index
    %221 = vector.load %arg7[%c0_164, %c0_165] : memref<288x768xbf16, #tpu.memory_space<vmem>>, vector<16x768xbf16>
    tpu.vector_store %arg7[%c0_164, %c0_165], %220 {strides = array<i32>} : memref<288x768xbf16, #tpu.memory_space<vmem>>, vector<16x768xbf16>,
    %222 = vector.extract_strided_slice %218 {offsets = [0, 110], sizes = [16, 768], strides = [1, 1]} : vector<16x1024xf32> to vector<16x768xf32>
    %223 = arith.truncf %222 : vector<16x768xf32> to vector<16x768xbf16>
    %c16_166 = arith.constant 16 : index
    %c0_167 = arith.constant 0 : index
    %224 = vector.load %arg7[%c16_166, %c0_167] : memref<288x768xbf16, #tpu.memory_space<vmem>>, vector<16x768xbf16>
    tpu.vector_store %arg7[%c16_166, %c0_167], %223 {strides = array<i32>} : memref<288x768xbf16, #tpu.memory_space<vmem>>, vector<16x768xbf16>,
    %225 = vector.extract_strided_slice %218 {offsets = [0, 111], sizes = [16, 768], strides = [1, 1]} : vector<16x1024xf32> to vector<16x768xf32>
    %226 = arith.truncf %225 : vector<16x768xf32> to vector<16x768xbf16>
    %c32_168 = arith.constant 32 : index
    %c0_169 = arith.constant 0 : index
    %227 = vector.load %arg7[%c32_168, %c0_169] : memref<288x768xbf16, #tpu.memory_space<vmem>>, vector<16x768xbf16>
    tpu.vector_store %arg7[%c32_168, %c0_169], %226 {strides = array<i32>} : memref<288x768xbf16, #tpu.memory_space<vmem>>, vector<16x768xbf16>,
    %228 = vector.extract_strided_slice %218 {offsets = [0, 127], sizes = [16, 768], strides = [1, 1]} : vector<16x1024xf32> to vector<16x768xf32>
    %229 = arith.truncf %228 : vector<16x768xf32> to vector<16x768xbf16>
    %c48_170 = arith.constant 48 : index
    %c0_171 = arith.constant 0 : index
    %230 = vector.load %arg7[%c48_170, %c0_171] : memref<288x768xbf16, #tpu.memory_space<vmem>>, vector<16x768xbf16>
    tpu.vector_store %arg7[%c48_170, %c0_171], %229 {strides = array<i32>} : memref<288x768xbf16, #tpu.memory_space<vmem>>, vector<16x768xbf16>,
    %231 = vector.extract_strided_slice %218 {offsets = [0, 128], sizes = [16, 768], strides = [1, 1]} : vector<16x1024xf32> to vector<16x768xf32>
    %232 = arith.truncf %231 : vector<16x768xf32> to vector<16x768xbf16>
    %c64_172 = arith.constant 64 : index
    %c0_173 = arith.constant 0 : index
    %233 = vector.load %arg7[%c64_172, %c0_173] : memref<288x768xbf16, #tpu.memory_space<vmem>>, vector<16x768xbf16>
    tpu.vector_store %arg7[%c64_172, %c0_173], %232 {strides = array<i32>} : memref<288x768xbf16, #tpu.memory_space<vmem>>, vector<16x768xbf16>,
    %234 = vector.extract_strided_slice %218 {offsets = [0, 129], sizes = [16, 768], strides = [1, 1]} : vector<16x1024xf32> to vector<16x768xf32>
    %235 = arith.truncf %234 : vector<16x768xf32> to vector<16x768xbf16>
    %c80_174 = arith.constant 80 : index
    %c0_175 = arith.constant 0 : index
    %236 = vector.load %arg7[%c80_174, %c0_175] : memref<288x768xbf16, #tpu.memory_space<vmem>>, vector<16x768xbf16>
    tpu.vector_store %arg7[%c80_174, %c0_175], %235 {strides = array<i32>} : memref<288x768xbf16, #tpu.memory_space<vmem>>, vector<16x768xbf16>,
    %237 = vector.extract_strided_slice %218 {offsets = [0, 145], sizes = [16, 768], strides = [1, 1]} : vector<16x1024xf32> to vector<16x768xf32>
    %238 = arith.truncf %237 : vector<16x768xf32> to vector<16x768xbf16>
    %c96_176 = arith.constant 96 : index
    %c0_177 = arith.constant 0 : index
    %239 = vector.load %arg7[%c96_176, %c0_177] : memref<288x768xbf16, #tpu.memory_space<vmem>>, vector<16x768xbf16>
    tpu.vector_store %arg7[%c96_176, %c0_177], %238 {strides = array<i32>} : memref<288x768xbf16, #tpu.memory_space<vmem>>, vector<16x768xbf16>,
    %240 = vector.extract_strided_slice %218 {offsets = [0, 146], sizes = [16, 768], strides = [1, 1]} : vector<16x1024xf32> to vector<16x768xf32>
    %241 = arith.truncf %240 : vector<16x768xf32> to vector<16x768xbf16>
    %c112_178 = arith.constant 112 : index
    %c0_179 = arith.constant 0 : index
    %242 = vector.load %arg7[%c112_178, %c0_179] : memref<288x768xbf16, #tpu.memory_space<vmem>>, vector<16x768xbf16>
    tpu.vector_store %arg7[%c112_178, %c0_179], %241 {strides = array<i32>} : memref<288x768xbf16, #tpu.memory_space<vmem>>, vector<16x768xbf16>,
    %243 = vector.extract_strided_slice %218 {offsets = [0, 147], sizes = [16, 768], strides = [1, 1]} : vector<16x1024xf32> to vector<16x768xf32>
    %244 = arith.truncf %243 : vector<16x768xf32> to vector<16x768xbf16>
    %c128_180 = arith.constant 128 : index
    %c0_181 = arith.constant 0 : index
    %245 = vector.load %arg7[%c128_180, %c0_181] : memref<288x768xbf16, #tpu.memory_space<vmem>>, vector<16x768xbf16>
    tpu.vector_store %arg7[%c128_180, %c0_181], %244 {strides = array<i32>} : memref<288x768xbf16, #tpu.memory_space<vmem>>, vector<16x768xbf16>,
    %c80_182 = arith.constant 80 : index
    %c0_183 = arith.constant 0 : index
    %246 = vector.load %arg2[%c80_182, %c0_183] : memref<256x288xbf16, #tpu.memory_space<vmem>>, vector<32x144xbf16>
    %c0_184 = arith.constant 0 : index
    %c0_185 = arith.constant 0 : index
    %247 = vector.load %arg7[%c0_184, %c0_185] : memref<288x768xbf16, #tpu.memory_space<vmem>>, vector<144x768xbf16>
    %cst_186 = arith.constant dense<0.000000e+00> : vector<32x768xf32>
    %248 = tpu.matmul %246, %247, %cst_186 {dimension_numbers = #tpu.dot_dimension_numbers<[1], [0], [0], [1], [0, 0, 1, 1], [], []>} : vector<32x144xbf16>, vector<144x768xbf16>, vector<32x768xf32> -> vector<32x768xf32>
    %c80_187 = arith.constant 80 : index
    %c0_188 = arith.constant 0 : index
    %249 = vector.load %arg3[%c80_187, %c0_188] : memref<264x32xf32, #tpu.memory_space<vmem>>, vector<32x1xf32>
    %250 = vector.broadcast %249 : vector<32x1xf32> to vector<32x768xf32>
    %251 = arith.addf %248, %250 : vector<32x768xf32>
    %cst_189 = arith.constant 0.000000e+00 : f32
    %252 = vector.broadcast %cst_189 : f32 to vector<32x768xf32>
    %253 = arith.maximumf %251, %252 : vector<32x768xf32>
    %254 = vector.broadcast %10 : vector<1x768xf32> to vector<32x768xf32>
    %255 = arith.mulf %253, %254 : vector<32x768xf32>
    %c0_190 = arith.constant 0 : index
    %c128_191 = arith.constant 128 : index
    %256 = vector.load %arg6[%c0_190, %c128_191] : memref<32x1024xf32, #tpu.memory_space<vmem>>, vector<32x768xf32>
    tpu.vector_store %arg6[%c0_190, %c128_191], %255 {strides = array<i32>} : memref<32x1024xf32, #tpu.memory_space<vmem>>, vector<32x768xf32>,
    %c0_192 = arith.constant 0 : index
    %c128_193 = arith.constant 128 : index
    %257 = vector.load %arg5[%c0_192, %c128_193] : memref<32x1024xf32, #tpu.memory_space<vmem>>, vector<16x768xf32>
    %258 = arith.truncf %257 : vector<16x768xf32> to vector<16x768xbf16>
    %c224 = arith.constant 224 : index
    %c0_194 = arith.constant 0 : index
    %259 = vector.load %arg2[%c224, %c0_194] : memref<256x288xbf16, #tpu.memory_space<vmem>>, vector<32x16xbf16>
    %cst_195 = arith.constant dense<0.000000e+00> : vector<32x768xf32>
    %260 = tpu.matmul %259, %258, %cst_195 {dimension_numbers = #tpu.dot_dimension_numbers<[1], [0], [0], [1], [0, 0, 1, 1], [], []>} : vector<32x16xbf16>, vector<16x768xbf16>, vector<32x768xf32> -> vector<32x768xf32>
    %c224_196 = arith.constant 224 : index
    %c0_197 = arith.constant 0 : index
    %261 = vector.load %arg3[%c224_196, %c0_197] : memref<264x32xf32, #tpu.memory_space<vmem>>, vector<32x1xf32>
    %262 = vector.broadcast %261 : vector<32x1xf32> to vector<32x768xf32>
    %263 = arith.addf %260, %262 : vector<32x768xf32>
    %c0_198 = arith.constant 0 : index
    %c0_199 = arith.constant 0 : index
    %264 = vector.load %arg6[%c0_198, %c0_199] : memref<32x1024xf32, #tpu.memory_space<vmem>>, vector<32x1024xf32>
    %265 = vector.extract_strided_slice %264 {offsets = [0, 90], sizes = [32, 768], strides = [1, 1]} : vector<32x1024xf32> to vector<32x768xf32>
    %266 = arith.truncf %265 : vector<32x768xf32> to vector<32x768xbf16>
    %c0_200 = arith.constant 0 : index
    %c0_201 = arith.constant 0 : index
    %267 = vector.load %arg7[%c0_200, %c0_201] : memref<288x768xbf16, #tpu.memory_space<vmem>>, vector<32x768xbf16>
    tpu.vector_store %arg7[%c0_200, %c0_201], %266 {strides = array<i32>} : memref<288x768xbf16, #tpu.memory_space<vmem>>, vector<32x768xbf16>,
    %268 = vector.extract_strided_slice %264 {offsets = [0, 92], sizes = [32, 768], strides = [1, 1]} : vector<32x1024xf32> to vector<32x768xf32>
    %269 = arith.truncf %268 : vector<32x768xf32> to vector<32x768xbf16>
    %c32_202 = arith.constant 32 : index
    %c0_203 = arith.constant 0 : index
    %270 = vector.load %arg7[%c32_202, %c0_203] : memref<288x768xbf16, #tpu.memory_space<vmem>>, vector<32x768xbf16>
    tpu.vector_store %arg7[%c32_202, %c0_203], %269 {strides = array<i32>} : memref<288x768xbf16, #tpu.memory_space<vmem>>, vector<32x768xbf16>,
    %271 = vector.extract_strided_slice %264 {offsets = [0, 94], sizes = [32, 768], strides = [1, 1]} : vector<32x1024xf32> to vector<32x768xf32>
    %272 = arith.truncf %271 : vector<32x768xf32> to vector<32x768xbf16>
    %c64_204 = arith.constant 64 : index
    %c0_205 = arith.constant 0 : index
    %273 = vector.load %arg7[%c64_204, %c0_205] : memref<288x768xbf16, #tpu.memory_space<vmem>>, vector<32x768xbf16>
    tpu.vector_store %arg7[%c64_204, %c0_205], %272 {strides = array<i32>} : memref<288x768xbf16, #tpu.memory_space<vmem>>, vector<32x768xbf16>,
    %274 = vector.extract_strided_slice %264 {offsets = [0, 126], sizes = [32, 768], strides = [1, 1]} : vector<32x1024xf32> to vector<32x768xf32>
    %275 = arith.truncf %274 : vector<32x768xf32> to vector<32x768xbf16>
    %c96_206 = arith.constant 96 : index
    %c0_207 = arith.constant 0 : index
    %276 = vector.load %arg7[%c96_206, %c0_207] : memref<288x768xbf16, #tpu.memory_space<vmem>>, vector<32x768xbf16>
    tpu.vector_store %arg7[%c96_206, %c0_207], %275 {strides = array<i32>} : memref<288x768xbf16, #tpu.memory_space<vmem>>, vector<32x768xbf16>,
    %277 = vector.extract_strided_slice %264 {offsets = [0, 128], sizes = [32, 768], strides = [1, 1]} : vector<32x1024xf32> to vector<32x768xf32>
    %278 = arith.truncf %277 : vector<32x768xf32> to vector<32x768xbf16>
    %c128_208 = arith.constant 128 : index
    %c0_209 = arith.constant 0 : index
    %279 = vector.load %arg7[%c128_208, %c0_209] : memref<288x768xbf16, #tpu.memory_space<vmem>>, vector<32x768xbf16>
    tpu.vector_store %arg7[%c128_208, %c0_209], %278 {strides = array<i32>} : memref<288x768xbf16, #tpu.memory_space<vmem>>, vector<32x768xbf16>,
    %280 = vector.extract_strided_slice %264 {offsets = [0, 130], sizes = [32, 768], strides = [1, 1]} : vector<32x1024xf32> to vector<32x768xf32>
    %281 = arith.truncf %280 : vector<32x768xf32> to vector<32x768xbf16>
    %c160 = arith.constant 160 : index
    %c0_210 = arith.constant 0 : index
    %282 = vector.load %arg7[%c160, %c0_210] : memref<288x768xbf16, #tpu.memory_space<vmem>>, vector<32x768xbf16>
    tpu.vector_store %arg7[%c160, %c0_210], %281 {strides = array<i32>} : memref<288x768xbf16, #tpu.memory_space<vmem>>, vector<32x768xbf16>,
    %283 = vector.extract_strided_slice %264 {offsets = [0, 162], sizes = [32, 768], strides = [1, 1]} : vector<32x1024xf32> to vector<32x768xf32>
    %284 = arith.truncf %283 : vector<32x768xf32> to vector<32x768xbf16>
    %c192 = arith.constant 192 : index
    %c0_211 = arith.constant 0 : index
    %285 = vector.load %arg7[%c192, %c0_211] : memref<288x768xbf16, #tpu.memory_space<vmem>>, vector<32x768xbf16>
    tpu.vector_store %arg7[%c192, %c0_211], %284 {strides = array<i32>} : memref<288x768xbf16, #tpu.memory_space<vmem>>, vector<32x768xbf16>,
    %286 = vector.extract_strided_slice %264 {offsets = [0, 164], sizes = [32, 768], strides = [1, 1]} : vector<32x1024xf32> to vector<32x768xf32>
    %287 = arith.truncf %286 : vector<32x768xf32> to vector<32x768xbf16>
    %c224_212 = arith.constant 224 : index
    %c0_213 = arith.constant 0 : index
    %288 = vector.load %arg7[%c224_212, %c0_213] : memref<288x768xbf16, #tpu.memory_space<vmem>>, vector<32x768xbf16>
    tpu.vector_store %arg7[%c224_212, %c0_213], %287 {strides = array<i32>} : memref<288x768xbf16, #tpu.memory_space<vmem>>, vector<32x768xbf16>,
    %289 = vector.extract_strided_slice %264 {offsets = [0, 166], sizes = [32, 768], strides = [1, 1]} : vector<32x1024xf32> to vector<32x768xf32>
    %290 = arith.truncf %289 : vector<32x768xf32> to vector<32x768xbf16>
    %c256 = arith.constant 256 : index
    %c0_214 = arith.constant 0 : index
    %291 = vector.load %arg7[%c256, %c0_214] : memref<288x768xbf16, #tpu.memory_space<vmem>>, vector<32x768xbf16>
    tpu.vector_store %arg7[%c256, %c0_214], %290 {strides = array<i32>} : memref<288x768xbf16, #tpu.memory_space<vmem>>, vector<32x768xbf16>,
    %c112_215 = arith.constant 112 : index
    %c0_216 = arith.constant 0 : index
    %292 = vector.load %arg2[%c112_215, %c0_216] : memref<256x288xbf16, #tpu.memory_space<vmem>>, vector<32x288xbf16>
    %c0_217 = arith.constant 0 : index
    %c0_218 = arith.constant 0 : index
    %293 = vector.load %arg7[%c0_217, %c0_218] : memref<288x768xbf16, #tpu.memory_space<vmem>>, vector<288x768xbf16>
    %cst_219 = arith.constant dense<0.000000e+00> : vector<32x768xf32>
    %294 = tpu.matmul %292, %293, %cst_219 {dimension_numbers = #tpu.dot_dimension_numbers<[1], [0], [0], [1], [0, 0, 1, 1], [], []>} : vector<32x288xbf16>, vector<288x768xbf16>, vector<32x768xf32> -> vector<32x768xf32>
    %c112_220 = arith.constant 112 : index
    %c0_221 = arith.constant 0 : index
    %295 = vector.load %arg3[%c112_220, %c0_221] : memref<264x32xf32, #tpu.memory_space<vmem>>, vector<32x1xf32>
    %296 = vector.broadcast %295 : vector<32x1xf32> to vector<32x768xf32>
    %297 = arith.addf %294, %296 : vector<32x768xf32>
    %298 = arith.addf %297, %263 : vector<32x768xf32>
    %cst_222 = arith.constant 0.000000e+00 : f32
    %299 = vector.broadcast %cst_222 : f32 to vector<32x768xf32>
    %300 = arith.maximumf %298, %299 : vector<32x768xf32>
    %301 = vector.broadcast %10 : vector<1x768xf32> to vector<32x768xf32>
    %302 = arith.mulf %300, %301 : vector<32x768xf32>
    %c0_223 = arith.constant 0 : index
    %c128_224 = arith.constant 128 : index
    %303 = vector.load %arg5[%c0_223, %c128_224] : memref<32x1024xf32, #tpu.memory_space<vmem>>, vector<32x768xf32>
    tpu.vector_store %arg5[%c0_223, %c128_224], %302 {strides = array<i32>} : memref<32x1024xf32, #tpu.memory_space<vmem>>, vector<32x768xf32>,
    %c0_225 = arith.constant 0 : index
    %c0_226 = arith.constant 0 : index
    %304 = vector.load %arg5[%c0_225, %c0_226] : memref<32x1024xf32, #tpu.memory_space<vmem>>, vector<32x1024xf32>
    %305 = vector.extract_strided_slice %304 {offsets = [0, 90], sizes = [32, 768], strides = [1, 1]} : vector<32x1024xf32> to vector<32x768xf32>
    %306 = arith.truncf %305 : vector<32x768xf32> to vector<32x768xbf16>
    %c0_227 = arith.constant 0 : index
    %c0_228 = arith.constant 0 : index
    %307 = vector.load %arg7[%c0_227, %c0_228] : memref<288x768xbf16, #tpu.memory_space<vmem>>, vector<32x768xbf16>
    tpu.vector_store %arg7[%c0_227, %c0_228], %306 {strides = array<i32>} : memref<288x768xbf16, #tpu.memory_space<vmem>>, vector<32x768xbf16>,
    %308 = vector.extract_strided_slice %304 {offsets = [0, 92], sizes = [32, 768], strides = [1, 1]} : vector<32x1024xf32> to vector<32x768xf32>
    %309 = arith.truncf %308 : vector<32x768xf32> to vector<32x768xbf16>
    %c32_229 = arith.constant 32 : index
    %c0_230 = arith.constant 0 : index
    %310 = vector.load %arg7[%c32_229, %c0_230] : memref<288x768xbf16, #tpu.memory_space<vmem>>, vector<32x768xbf16>
    tpu.vector_store %arg7[%c32_229, %c0_230], %309 {strides = array<i32>} : memref<288x768xbf16, #tpu.memory_space<vmem>>, vector<32x768xbf16>,
    %311 = vector.extract_strided_slice %304 {offsets = [0, 94], sizes = [32, 768], strides = [1, 1]} : vector<32x1024xf32> to vector<32x768xf32>
    %312 = arith.truncf %311 : vector<32x768xf32> to vector<32x768xbf16>
    %c64_231 = arith.constant 64 : index
    %c0_232 = arith.constant 0 : index
    %313 = vector.load %arg7[%c64_231, %c0_232] : memref<288x768xbf16, #tpu.memory_space<vmem>>, vector<32x768xbf16>
    tpu.vector_store %arg7[%c64_231, %c0_232], %312 {strides = array<i32>} : memref<288x768xbf16, #tpu.memory_space<vmem>>, vector<32x768xbf16>,
    %314 = vector.extract_strided_slice %304 {offsets = [0, 126], sizes = [32, 768], strides = [1, 1]} : vector<32x1024xf32> to vector<32x768xf32>
    %315 = arith.truncf %314 : vector<32x768xf32> to vector<32x768xbf16>
    %c96_233 = arith.constant 96 : index
    %c0_234 = arith.constant 0 : index
    %316 = vector.load %arg7[%c96_233, %c0_234] : memref<288x768xbf16, #tpu.memory_space<vmem>>, vector<32x768xbf16>
    tpu.vector_store %arg7[%c96_233, %c0_234], %315 {strides = array<i32>} : memref<288x768xbf16, #tpu.memory_space<vmem>>, vector<32x768xbf16>,
    %317 = vector.extract_strided_slice %304 {offsets = [0, 128], sizes = [32, 768], strides = [1, 1]} : vector<32x1024xf32> to vector<32x768xf32>
    %318 = arith.truncf %317 : vector<32x768xf32> to vector<32x768xbf16>
    %c128_235 = arith.constant 128 : index
    %c0_236 = arith.constant 0 : index
    %319 = vector.load %arg7[%c128_235, %c0_236] : memref<288x768xbf16, #tpu.memory_space<vmem>>, vector<32x768xbf16>
    tpu.vector_store %arg7[%c128_235, %c0_236], %318 {strides = array<i32>} : memref<288x768xbf16, #tpu.memory_space<vmem>>, vector<32x768xbf16>,
    %320 = vector.extract_strided_slice %304 {offsets = [0, 130], sizes = [32, 768], strides = [1, 1]} : vector<32x1024xf32> to vector<32x768xf32>
    %321 = arith.truncf %320 : vector<32x768xf32> to vector<32x768xbf16>
    %c160_237 = arith.constant 160 : index
    %c0_238 = arith.constant 0 : index
    %322 = vector.load %arg7[%c160_237, %c0_238] : memref<288x768xbf16, #tpu.memory_space<vmem>>, vector<32x768xbf16>
    tpu.vector_store %arg7[%c160_237, %c0_238], %321 {strides = array<i32>} : memref<288x768xbf16, #tpu.memory_space<vmem>>, vector<32x768xbf16>,
    %323 = vector.extract_strided_slice %304 {offsets = [0, 162], sizes = [32, 768], strides = [1, 1]} : vector<32x1024xf32> to vector<32x768xf32>
    %324 = arith.truncf %323 : vector<32x768xf32> to vector<32x768xbf16>
    %c192_239 = arith.constant 192 : index
    %c0_240 = arith.constant 0 : index
    %325 = vector.load %arg7[%c192_239, %c0_240] : memref<288x768xbf16, #tpu.memory_space<vmem>>, vector<32x768xbf16>
    tpu.vector_store %arg7[%c192_239, %c0_240], %324 {strides = array<i32>} : memref<288x768xbf16, #tpu.memory_space<vmem>>, vector<32x768xbf16>,
    %326 = vector.extract_strided_slice %304 {offsets = [0, 164], sizes = [32, 768], strides = [1, 1]} : vector<32x1024xf32> to vector<32x768xf32>
    %327 = arith.truncf %326 : vector<32x768xf32> to vector<32x768xbf16>
    %c224_241 = arith.constant 224 : index
    %c0_242 = arith.constant 0 : index
    %328 = vector.load %arg7[%c224_241, %c0_242] : memref<288x768xbf16, #tpu.memory_space<vmem>>, vector<32x768xbf16>
    tpu.vector_store %arg7[%c224_241, %c0_242], %327 {strides = array<i32>} : memref<288x768xbf16, #tpu.memory_space<vmem>>, vector<32x768xbf16>,
    %329 = vector.extract_strided_slice %304 {offsets = [0, 166], sizes = [32, 768], strides = [1, 1]} : vector<32x1024xf32> to vector<32x768xf32>
    %330 = arith.truncf %329 : vector<32x768xf32> to vector<32x768xbf16>
    %c256_243 = arith.constant 256 : index
    %c0_244 = arith.constant 0 : index
    %331 = vector.load %arg7[%c256_243, %c0_244] : memref<288x768xbf16, #tpu.memory_space<vmem>>, vector<32x768xbf16>
    tpu.vector_store %arg7[%c256_243, %c0_244], %330 {strides = array<i32>} : memref<288x768xbf16, #tpu.memory_space<vmem>>, vector<32x768xbf16>,
    %c144 = arith.constant 144 : index
    %c0_245 = arith.constant 0 : index
    %332 = vector.load %arg2[%c144, %c0_245] : memref<256x288xbf16, #tpu.memory_space<vmem>>, vector<32x288xbf16>
    %c0_246 = arith.constant 0 : index
    %c0_247 = arith.constant 0 : index
    %333 = vector.load %arg7[%c0_246, %c0_247] : memref<288x768xbf16, #tpu.memory_space<vmem>>, vector<288x768xbf16>
    %cst_248 = arith.constant dense<0.000000e+00> : vector<32x768xf32>
    %334 = tpu.matmul %332, %333, %cst_248 {dimension_numbers = #tpu.dot_dimension_numbers<[1], [0], [0], [1], [0, 0, 1, 1], [], []>} : vector<32x288xbf16>, vector<288x768xbf16>, vector<32x768xf32> -> vector<32x768xf32>
    %c144_249 = arith.constant 144 : index
    %c0_250 = arith.constant 0 : index
    %335 = vector.load %arg3[%c144_249, %c0_250] : memref<264x32xf32, #tpu.memory_space<vmem>>, vector<32x1xf32>
    %336 = vector.broadcast %335 : vector<32x1xf32> to vector<32x768xf32>
    %337 = arith.addf %334, %336 : vector<32x768xf32>
    %cst_251 = arith.constant 0.000000e+00 : f32
    %338 = vector.broadcast %cst_251 : f32 to vector<32x768xf32>
    %339 = arith.maximumf %337, %338 : vector<32x768xf32>
    %340 = vector.broadcast %10 : vector<1x768xf32> to vector<32x768xf32>
    %341 = arith.mulf %339, %340 : vector<32x768xf32>
    %c0_252 = arith.constant 0 : index
    %c128_253 = arith.constant 128 : index
    %342 = vector.load %arg6[%c0_252, %c128_253] : memref<32x1024xf32, #tpu.memory_space<vmem>>, vector<32x768xf32>
    tpu.vector_store %arg6[%c0_252, %c128_253], %341 {strides = array<i32>} : memref<32x1024xf32, #tpu.memory_space<vmem>>, vector<32x768xf32>,
    %c0_254 = arith.constant 0 : index
    %c128_255 = arith.constant 128 : index
    %343 = vector.load %arg5[%c0_254, %c128_255] : memref<32x1024xf32, #tpu.memory_space<vmem>>, vector<32x768xf32>
    %c0_256 = arith.constant 0 : index
    %c0_257 = arith.constant 0 : index
    %344 = vector.load %arg6[%c0_256, %c0_257] : memref<32x1024xf32, #tpu.memory_space<vmem>>, vector<32x1024xf32>
    %345 = vector.extract_strided_slice %344 {offsets = [0, 90], sizes = [32, 768], strides = [1, 1]} : vector<32x1024xf32> to vector<32x768xf32>
    %346 = arith.truncf %345 : vector<32x768xf32> to vector<32x768xbf16>
    %c0_258 = arith.constant 0 : index
    %c0_259 = arith.constant 0 : index
    %347 = vector.load %arg7[%c0_258, %c0_259] : memref<288x768xbf16, #tpu.memory_space<vmem>>, vector<32x768xbf16>
    tpu.vector_store %arg7[%c0_258, %c0_259], %346 {strides = array<i32>} : memref<288x768xbf16, #tpu.memory_space<vmem>>, vector<32x768xbf16>,
    %348 = vector.extract_strided_slice %344 {offsets = [0, 92], sizes = [32, 768], strides = [1, 1]} : vector<32x1024xf32> to vector<32x768xf32>
    %349 = arith.truncf %348 : vector<32x768xf32> to vector<32x768xbf16>
    %c32_260 = arith.constant 32 : index
    %c0_261 = arith.constant 0 : index
    %350 = vector.load %arg7[%c32_260, %c0_261] : memref<288x768xbf16, #tpu.memory_space<vmem>>, vector<32x768xbf16>
    tpu.vector_store %arg7[%c32_260, %c0_261], %349 {strides = array<i32>} : memref<288x768xbf16, #tpu.memory_space<vmem>>, vector<32x768xbf16>,
    %351 = vector.extract_strided_slice %344 {offsets = [0, 94], sizes = [32, 768], strides = [1, 1]} : vector<32x1024xf32> to vector<32x768xf32>
    %352 = arith.truncf %351 : vector<32x768xf32> to vector<32x768xbf16>
    %c64_262 = arith.constant 64 : index
    %c0_263 = arith.constant 0 : index
    %353 = vector.load %arg7[%c64_262, %c0_263] : memref<288x768xbf16, #tpu.memory_space<vmem>>, vector<32x768xbf16>
    tpu.vector_store %arg7[%c64_262, %c0_263], %352 {strides = array<i32>} : memref<288x768xbf16, #tpu.memory_space<vmem>>, vector<32x768xbf16>,
    %354 = vector.extract_strided_slice %344 {offsets = [0, 126], sizes = [32, 768], strides = [1, 1]} : vector<32x1024xf32> to vector<32x768xf32>
    %355 = arith.truncf %354 : vector<32x768xf32> to vector<32x768xbf16>
    %c96_264 = arith.constant 96 : index
    %c0_265 = arith.constant 0 : index
    %356 = vector.load %arg7[%c96_264, %c0_265] : memref<288x768xbf16, #tpu.memory_space<vmem>>, vector<32x768xbf16>
    tpu.vector_store %arg7[%c96_264, %c0_265], %355 {strides = array<i32>} : memref<288x768xbf16, #tpu.memory_space<vmem>>, vector<32x768xbf16>,
    %357 = vector.extract_strided_slice %344 {offsets = [0, 128], sizes = [32, 768], strides = [1, 1]} : vector<32x1024xf32> to vector<32x768xf32>
    %358 = arith.truncf %357 : vector<32x768xf32> to vector<32x768xbf16>
    %c128_266 = arith.constant 128 : index
    %c0_267 = arith.constant 0 : index
    %359 = vector.load %arg7[%c128_266, %c0_267] : memref<288x768xbf16, #tpu.memory_space<vmem>>, vector<32x768xbf16>
    tpu.vector_store %arg7[%c128_266, %c0_267], %358 {strides = array<i32>} : memref<288x768xbf16, #tpu.memory_space<vmem>>, vector<32x768xbf16>,
    %360 = vector.extract_strided_slice %344 {offsets = [0, 130], sizes = [32, 768], strides = [1, 1]} : vector<32x1024xf32> to vector<32x768xf32>
    %361 = arith.truncf %360 : vector<32x768xf32> to vector<32x768xbf16>
    %c160_268 = arith.constant 160 : index
    %c0_269 = arith.constant 0 : index
    %362 = vector.load %arg7[%c160_268, %c0_269] : memref<288x768xbf16, #tpu.memory_space<vmem>>, vector<32x768xbf16>
    tpu.vector_store %arg7[%c160_268, %c0_269], %361 {strides = array<i32>} : memref<288x768xbf16, #tpu.memory_space<vmem>>, vector<32x768xbf16>,
    %363 = vector.extract_strided_slice %344 {offsets = [0, 162], sizes = [32, 768], strides = [1, 1]} : vector<32x1024xf32> to vector<32x768xf32>
    %364 = arith.truncf %363 : vector<32x768xf32> to vector<32x768xbf16>
    %c192_270 = arith.constant 192 : index
    %c0_271 = arith.constant 0 : index
    %365 = vector.load %arg7[%c192_270, %c0_271] : memref<288x768xbf16, #tpu.memory_space<vmem>>, vector<32x768xbf16>
    tpu.vector_store %arg7[%c192_270, %c0_271], %364 {strides = array<i32>} : memref<288x768xbf16, #tpu.memory_space<vmem>>, vector<32x768xbf16>,
    %366 = vector.extract_strided_slice %344 {offsets = [0, 164], sizes = [32, 768], strides = [1, 1]} : vector<32x1024xf32> to vector<32x768xf32>
    %367 = arith.truncf %366 : vector<32x768xf32> to vector<32x768xbf16>
    %c224_272 = arith.constant 224 : index
    %c0_273 = arith.constant 0 : index
    %368 = vector.load %arg7[%c224_272, %c0_273] : memref<288x768xbf16, #tpu.memory_space<vmem>>, vector<32x768xbf16>
    tpu.vector_store %arg7[%c224_272, %c0_273], %367 {strides = array<i32>} : memref<288x768xbf16, #tpu.memory_space<vmem>>, vector<32x768xbf16>,
    %369 = vector.extract_strided_slice %344 {offsets = [0, 166], sizes = [32, 768], strides = [1, 1]} : vector<32x1024xf32> to vector<32x768xf32>
    %370 = arith.truncf %369 : vector<32x768xf32> to vector<32x768xbf16>
    %c256_274 = arith.constant 256 : index
    %c0_275 = arith.constant 0 : index
    %371 = vector.load %arg7[%c256_274, %c0_275] : memref<288x768xbf16, #tpu.memory_space<vmem>>, vector<32x768xbf16>
    tpu.vector_store %arg7[%c256_274, %c0_275], %370 {strides = array<i32>} : memref<288x768xbf16, #tpu.memory_space<vmem>>, vector<32x768xbf16>,
    %c176 = arith.constant 176 : index
    %c0_276 = arith.constant 0 : index
    %372 = vector.load %arg2[%c176, %c0_276] : memref<256x288xbf16, #tpu.memory_space<vmem>>, vector<32x288xbf16>
    %c0_277 = arith.constant 0 : index
    %c0_278 = arith.constant 0 : index
    %373 = vector.load %arg7[%c0_277, %c0_278] : memref<288x768xbf16, #tpu.memory_space<vmem>>, vector<288x768xbf16>
    %cst_279 = arith.constant dense<0.000000e+00> : vector<32x768xf32>
    %374 = tpu.matmul %372, %373, %cst_279 {dimension_numbers = #tpu.dot_dimension_numbers<[1], [0], [0], [1], [0, 0, 1, 1], [], []>} : vector<32x288xbf16>, vector<288x768xbf16>, vector<32x768xf32> -> vector<32x768xf32>
    %c176_280 = arith.constant 176 : index
    %c0_281 = arith.constant 0 : index
    %375 = vector.load %arg3[%c176_280, %c0_281] : memref<264x32xf32, #tpu.memory_space<vmem>>, vector<32x1xf32>
    %376 = vector.broadcast %375 : vector<32x1xf32> to vector<32x768xf32>
    %377 = arith.addf %374, %376 : vector<32x768xf32>
    %378 = arith.addf %377, %343 : vector<32x768xf32>
    %cst_282 = arith.constant 0.000000e+00 : f32
    %379 = vector.broadcast %cst_282 : f32 to vector<32x768xf32>
    %380 = arith.maximumf %378, %379 : vector<32x768xf32>
    %381 = vector.broadcast %10 : vector<1x768xf32> to vector<32x768xf32>
    %382 = arith.mulf %380, %381 : vector<32x768xf32>
    %c256_283 = arith.constant 256 : index
    %c0_284 = arith.constant 0 : index
    %383 = vector.load %arg3[%c256_283, %c0_284] : memref<264x32xf32, #tpu.memory_space<vmem>>, vector<8x32xf32>
    %384 = vector.extract_strided_slice %383 {offsets = [0, 0], sizes = [1, 32], strides = [1, 1]} : vector<8x32xf32> to vector<1x32xf32>
    %385 = vector.extract_strided_slice %383 {offsets = [1, 0], sizes = [1, 1], strides = [1, 1]} : vector<8x32xf32> to vector<1x1xf32>
    %cst_285 = arith.constant dense<0.000000e+00> : vector<1x768xf32>
    %386 = tpu.matmul %384, %382, %cst_285 {dimension_numbers = #tpu.dot_dimension_numbers<[1], [0], [0], [1], [0, 0, 1, 1], [], []>} : vector<1x32xf32>, vector<32x768xf32>, vector<1x768xf32> -> vector<1x768xf32>
    %387 = vector.broadcast %385 : vector<1x1xf32> to vector<1x768xf32>
    %388 = arith.addf %386, %387 : vector<1x768xf32>
    %c0_286 = arith.constant 0 : index
    %c0_287 = arith.constant 0 : index
    %389 = vector.load %arg4[%c0_286, %c0_287] : memref<1x768xf32, #tpu.memory_space<vmem>>, vector<1x768xf32>
    tpu.vector_store %arg4[%c0_286, %c0_287], %388 {strides = array<i32>} : memref<1x768xf32, #tpu.memory_space<vmem>>, vector<1x768xf32>,
    return
  }
}

</mosaic_0001>

<llo_original>
// kernel: res_net_forward.1
$region0: #{res_net_forward.1}
  #allocation0 [shape = 'u32[]', space=smem, size = 0x4, offset = 0x4, fixed_abs, tag = 'smem constant byte address 0x4 - core index']
  #allocation1 [shape = 'u32[144,128]{1,0:T(1,128)}', space=vmem, size = 0x12000, scoped, tag = 'internal scratch']
  #allocation2 [shape = 'f32[32,1024]{1,0:T(8,128)}', space=vmem, size = 0x20000, scoped, tag = 'scratch operand']
  #allocation3 [shape = 'f32[32,1024]{1,0:T(8,128)}', space=vmem, size = 0x20000, scoped, tag = 'scratch operand']
  #allocation4 [shape = 'bf16[288,768]{1,0:T(16,128)(2,1)}', space=vmem, size = 0x6c000, scoped, tag = 'scratch operand']
  %s0 = inlined_call_operand.vmem [shape: f32[16,1024], index: 0, kind: input, shape index: {}]
  %s1 = inlined_call_operand.vmem [shape: f32[8,768], index: 1, kind: input, shape index: {}]
  %s2 = inlined_call_operand.vmem [shape: bf16[256,288], index: 2, kind: input, shape index: {}]
  %s3 = inlined_call_operand.vmem [shape: f32[264,32], index: 3, kind: input, shape index: {}]
  %s4 = inlined_call_operand.vmem [shape: f32[1,768], index: 4, kind: output, shape index: {}]
  %s5 = sld [smem:[#allocation0]]
  $region26: #{res_net_forward.1} parent=0
    _
  %s7 = ssub.s32 1, %s5
  %s8 = scalar_select 0, %s7, %s5
  // Predicated region
  $region2: #{res_net_forward.1} parent=0 // pred_check
    _
  $region3: #{res_net_forward.1} parent=0 // pred_check_branch
    %10 = sbr.rel (0) target = $region5
  $region4: #{res_net_forward.1} parent=0 // pred_region
    _
  $region5: #{res_net_forward.1} parent=0 // pred_fallthru
    _
  // Predicated region
  $region6: #{res_net_forward.1} parent=0 // pred_check
    _
  $region7: #{res_net_forward.1} parent=0 // pred_check_branch
    %12 = sbr.rel (0) target = $region9
  $region8: #{res_net_forward.1} parent=0 // pred_region
    _
  $region9: #{res_net_forward.1} parent=0 // pred_fallthru
    _
  // Predicated region
  $region10: #{res_net_forward.1} parent=0 // pred_check
    _
  $region11: #{res_net_forward.1} parent=0 // pred_check_branch
    %14 = sbr.rel (0) target = $region13
  $region12: #{res_net_forward.1} parent=0 // pred_region
    _
  $region13: #{res_net_forward.1} parent=0 // pred_fallthru
    _
  // Predicated region
  $region14: #{res_net_forward.1} parent=0 // pred_check
    _
  $region15: #{res_net_forward.1} parent=0 // pred_check_branch
    %16 = sbr.rel (0) target = $region17
  $region16: #{res_net_forward.1} parent=0 // pred_region
    _
  $region17: #{res_net_forward.1} parent=0 // pred_fallthru
    _
  %18 = vst [vmem:[#allocation2] sm:$0xff] 0.0
  %19 = vst [vmem:[#allocation2 + $0x40] sm:$0xff] 0.0
  %20 = vst [vmem:[#allocation2 + $0x80] sm:$0xff] 0.0
  %21 = vst [vmem:[#allocation2 + $0xc0] sm:$0xff] 0.0
  %22 = vst [vmem:[#allocation2 + $0x38] sm:$0xff] 0.0
  %23 = vst [vmem:[#allocation2 + $0x78] sm:$0xff] 0.0
  %24 = vst [vmem:[#allocation2 + $0xb8] sm:$0xff] 0.0
  %25 = vst [vmem:[#allocation2 + $0xf8] sm:$0xff] 0.0
  %26 = vst [vmem:[#allocation3] sm:$0xff] 0.0
  %27 = vst [vmem:[#allocation3 + $0x40] sm:$0xff] 0.0
  %28 = vst [vmem:[#allocation3 + $0x80] sm:$0xff] 0.0
  %29 = vst [vmem:[#allocation3 + $0xc0] sm:$0xff] 0.0
  %30 = vst [vmem:[#allocation3 + $0x38] sm:$0xff] 0.0
  %31 = vst [vmem:[#allocation3 + $0x78] sm:$0xff] 0.0
  %32 = vst [vmem:[#allocation3 + $0xb8] sm:$0xff] 0.0
  %33 = vst [vmem:[#allocation3 + $0xf8] sm:$0xff] 0.0
  %v34 = vld [vmem:[%s1] sm:$0xff]
  %v35 = vld [vmem:[%s1 + $0x8] sm:$0xff]
  %v36 = vld [vmem:[%s1 + $0x10] sm:$0xff]
  %v37 = vld [vmem:[%s1 + $0x18] sm:$0xff]
  %v38 = vld [vmem:[%s1 + $0x20] sm:$0xff]
  %v39 = vld [vmem:[%s1 + $0x28] sm:$0xff]
  %v40 = vld [vmem:[%s0] sm:$0xff]
  %v41 = vld [vmem:[%s0 + $0x8] sm:$0xff]
  %v42 = vld [vmem:[%s0 + $0x10] sm:$0xff]
  %v43 = vld [vmem:[%s0 + $0x18] sm:$0xff]
  %v44 = vld [vmem:[%s0 + $0x20] sm:$0xff]
  %v45 = vld [vmem:[%s0 + $0x28] sm:$0xff]
  %v46 = vld [vmem:[%s0 + $0x30] sm:$0xff]
  %v47 = vld [vmem:[%s0 + $0x38] sm:$0xff]
  %v48 = vld [vmem:[%s0 + $0x40] sm:$0xff]
  %v49 = vld [vmem:[%s0 + $0x48] sm:$0xff]
  %v50 = vld [vmem:[%s0 + $0x50] sm:$0xff]
  %v51 = vld [vmem:[%s0 + $0x58] sm:$0xff]
  %v52 = vld [vmem:[%s0 + $0x60] sm:$0xff]
  %v53 = vld [vmem:[%s0 + $0x68] sm:$0xff]
  %v54 = vld [vmem:[%s0 + $0x70] sm:$0xff]
  %v55 = vld [vmem:[%s0 + $0x78] sm:$0xff]
  %v56 = vpack.c.bf16 %v48, %v40
  %v57 = vpack.c.bf16 %v49, %v41
  %v58 = vpack.c.bf16 %v50, %v42
  %v59 = vpack.c.bf16 %v51, %v43
  %v60 = vpack.c.bf16 %v52, %v44
  %v61 = vpack.c.bf16 %v53, %v45
  %v62 = vpack.c.bf16 %v54, %v46
  %70 = vrot.lane.b32.xlu0 %v56, 19
  %v71 = vpop.permute.xlu0 %70
  %72 = vrot.lane.b32.xlu0 %v57, 19
  %v73 = vpop.permute.xlu0 %72
  %74 = vrot.lane.b32.xlu0 %v58, 19
  %v75 = vpop.permute.xlu0 %74
  %76 = vrot.lane.b32.xlu0 %v59, 19
  %v77 = vpop.permute.xlu0 %76
  %78 = vrot.lane.b32.xlu0 %v60, 19
  %v79 = vpop.permute.xlu0 %78
  %80 = vrot.lane.b32.xlu0 %v61, 19
  %v81 = vpop.permute.xlu0 %80
  %82 = vrot.lane.b32.xlu0 %v62, 19
  %v83 = vpop.permute.xlu0 %82
  %vm84 = vcmask 154624
  %v85 = vsel %vm84, %v71, %v73
  %v86 = vsel %vm84, %v73, %v75
  %v87 = vsel %vm84, %v75, %v77
  %v88 = vsel %vm84, %v77, %v79
  %v89 = vsel %vm84, %v79, %v81
  %v90 = vsel %vm84, %v81, %v83
  %97 = vst [vmem:[#allocation4] sm:$0xff] %v85
  %98 = vst [vmem:[#allocation4 + $0x8] sm:$0xff] %v86
  %99 = vst [vmem:[#allocation4 + $0x10] sm:$0xff] %v87
  %100 = vst [vmem:[#allocation4 + $0x18] sm:$0xff] %v88
  %101 = vst [vmem:[#allocation4 + $0x20] sm:$0xff] %v89
  %102 = vst [vmem:[#allocation4 + $0x28] sm:$0xff] %v90
  %103 = vrot.lane.b32.xlu0 %v56, 18
  %v104 = vpop.permute.xlu0 %103
  %105 = vrot.lane.b32.xlu0 %v57, 18
  %v106 = vpop.permute.xlu0 %105
  %107 = vrot.lane.b32.xlu0 %v58, 18
  %v108 = vpop.permute.xlu0 %107
  %109 = vrot.lane.b32.xlu0 %v59, 18
  %v110 = vpop.permute.xlu0 %109
  %111 = vrot.lane.b32.xlu0 %v60, 18
  %v112 = vpop.permute.xlu0 %111
  %113 = vrot.lane.b32.xlu0 %v61, 18
  %v114 = vpop.permute.xlu0 %113
  %115 = vrot.lane.b32.xlu0 %v62, 18
  %v116 = vpop.permute.xlu0 %115
  %vm117 = vcmask 146432
  %v118 = vsel %vm117, %v104, %v106
  %v119 = vsel %vm117, %v106, %v108
  %v120 = vsel %vm117, %v108, %v110
  %v121 = vsel %vm117, %v110, %v112
  %v122 = vsel %vm117, %v112, %v114
  %v123 = vsel %vm117, %v114, %v116
  %130 = vst [vmem:[#allocation4 + $0x30] sm:$0xff] %v118
  %131 = vst [vmem:[#allocation4 + $0x38] sm:$0xff] %v119
  %132 = vst [vmem:[#allocation4 + $0x40] sm:$0xff] %v120
  %133 = vst [vmem:[#allocation4 + $0x48] sm:$0xff] %v121
  %134 = vst [vmem:[#allocation4 + $0x50] sm:$0xff] %v122
  %135 = vst [vmem:[#allocation4 + $0x58] sm:$0xff] %v123
  %136 = vrot.lane.b32.xlu0 %v56, 17
  %v137 = vpop.permute.xlu0 %136
  %138 = vrot.lane.b32.xlu0 %v57, 17
  %v139 = vpop.permute.xlu0 %138
  %140 = vrot.lane.b32.xlu0 %v58, 17
  %v141 = vpop.permute.xlu0 %140
  %142 = vrot.lane.b32.xlu0 %v59, 17
  %v143 = vpop.permute.xlu0 %142
  %144 = vrot.lane.b32.xlu0 %v60, 17
  %v145 = vpop.permute.xlu0 %144
  %146 = vrot.lane.b32.xlu0 %v61, 17
  %v147 = vpop.permute.xlu0 %146
  %148 = vrot.lane.b32.xlu0 %v62, 17
  %v149 = vpop.permute.xlu0 %148
  %vm150 = vcmask 138240
  %v151 = vsel %vm150, %v137, %v139
  %v152 = vsel %vm150, %v139, %v141
  %v153 = vsel %vm150, %v141, %v143
  %v154 = vsel %vm150, %v143, %v145
  %v155 = vsel %vm150, %v145, %v147
  %v156 = vsel %vm150, %v147, %v149
  %163 = vst [vmem:[#allocation4 + $0x60] sm:$0xff] %v151
  %164 = vst [vmem:[#allocation4 + $0x68] sm:$0xff] %v152
  %165 = vst [vmem:[#allocation4 + $0x70] sm:$0xff] %v153
  %166 = vst [vmem:[#allocation4 + $0x78] sm:$0xff] %v154
  %167 = vst [vmem:[#allocation4 + $0x80] sm:$0xff] %v155
  %168 = vst [vmem:[#allocation4 + $0x88] sm:$0xff] %v156
  %169 = vrot.lane.b32.xlu0 %v56, 1
  %v170 = vpop.permute.xlu0 %169
  %171 = vrot.lane.b32.xlu0 %v57, 1
  %v172 = vpop.permute.xlu0 %171
  %173 = vrot.lane.b32.xlu0 %v58, 1
  %v174 = vpop.permute.xlu0 %173
  %175 = vrot.lane.b32.xlu0 %v59, 1
  %v176 = vpop.permute.xlu0 %175
  %177 = vrot.lane.b32.xlu0 %v60, 1
  %v178 = vpop.permute.xlu0 %177
  %179 = vrot.lane.b32.xlu0 %v61, 1
  %v180 = vpop.permute.xlu0 %179
  %181 = vrot.lane.b32.xlu0 %v62, 1
  %v182 = vpop.permute.xlu0 %181
  %vm183 = vcmask 7168
  %v184 = vsel %vm183, %v170, %v172
  %v185 = vsel %vm183, %v172, %v174
  %v186 = vsel %vm183, %v174, %v176
  %v187 = vsel %vm183, %v176, %v178
  %v188 = vsel %vm183, %v178, %v180
  %v189 = vsel %vm183, %v180, %v182
  %196 = vst [vmem:[#allocation4 + $0x90] sm:$0xff] %v184
  %197 = vst [vmem:[#allocation4 + $0x98] sm:$0xff] %v185
  %198 = vst [vmem:[#allocation4 + $0xa0] sm:$0xff] %v186
  %199 = vst [vmem:[#allocation4 + $0xa8] sm:$0xff] %v187
  %200 = vst [vmem:[#allocation4 + $0xb0] sm:$0xff] %v188
  %201 = vst [vmem:[#allocation4 + $0xb8] sm:$0xff] %v189
  %202 = vst [vmem:[#allocation4 + $0xc0] sm:$0xff] %v57
  %203 = vst [vmem:[#allocation4 + $0xc8] sm:$0xff] %v58
  %204 = vst [vmem:[#allocation4 + $0xd0] sm:$0xff] %v59
  %205 = vst [vmem:[#allocation4 + $0xd8] sm:$0xff] %v60
  %206 = vst [vmem:[#allocation4 + $0xe0] sm:$0xff] %v61
  %207 = vst [vmem:[#allocation4 + $0xe8] sm:$0xff] %v62
  %v208 = vpack.c.bf16 %v55, %v47
  %210 = vrot.lane.b32.xlu0 %v57, 127
  %v211 = vpop.permute.xlu0 %210
  %212 = vrot.lane.b32.xlu0 %v58, 127
  %v213 = vpop.permute.xlu0 %212
  %214 = vrot.lane.b32.xlu0 %v59, 127
  %v215 = vpop.permute.xlu0 %214
  %216 = vrot.lane.b32.xlu0 %v60, 127
  %v217 = vpop.permute.xlu0 %216
  %218 = vrot.lane.b32.xlu0 %v61, 127
  %v219 = vpop.permute.xlu0 %218
  %220 = vrot.lane.b32.xlu0 %v62, 127
  %v221 = vpop.permute.xlu0 %220
  %222 = vrot.lane.b32.xlu0 %v208, 127
  %v223 = vpop.permute.xlu0 %222
  %vm224 = vcmask 1039360
  %v225 = vsel %vm224, %v211, %v213
  %v226 = vsel %vm224, %v213, %v215
  %v227 = vsel %vm224, %v215, %v217
  %v228 = vsel %vm224, %v217, %v219
  %v229 = vsel %vm224, %v219, %v221
  %v230 = vsel %vm224, %v221, %v223
  %237 = vst [vmem:[#allocation4 + $0xf0] sm:$0xff] %v225
  %238 = vst [vmem:[#allocation4 + $0xf8] sm:$0xff] %v226
  %239 = vst [vmem:[#allocation4 + $0x100] sm:$0xff] %v227
  %240 = vst [vmem:[#allocation4 + $0x108] sm:$0xff] %v228
  %241 = vst [vmem:[#allocation4 + $0x110] sm:$0xff] %v229
  %242 = vst [vmem:[#allocation4 + $0x118] sm:$0xff] %v230
  %243 = vrot.lane.b32.xlu0 %v57, 111
  %v244 = vpop.permute.xlu0 %243
  %245 = vrot.lane.b32.xlu0 %v58, 111
  %v246 = vpop.permute.xlu0 %245
  %247 = vrot.lane.b32.xlu0 %v59, 111
  %v248 = vpop.permute.xlu0 %247
  %249 = vrot.lane.b32.xlu0 %v60, 111
  %v250 = vpop.permute.xlu0 %249
  %251 = vrot.lane.b32.xlu0 %v61, 111
  %v252 = vpop.permute.xlu0 %251
  %253 = vrot.lane.b32.xlu0 %v62, 111
  %v254 = vpop.permute.xlu0 %253
  %255 = vrot.lane.b32.xlu0 %v208, 111
  %v256 = vpop.permute.xlu0 %255
  %vm257 = vcmask 908288
  %v258 = vsel %vm257, %v244, %v246
  %v259 = vsel %vm257, %v246, %v248
  %v260 = vsel %vm257, %v248, %v250
  %v261 = vsel %vm257, %v250, %v252
  %v262 = vsel %vm257, %v252, %v254
  %v263 = vsel %vm257, %v254, %v256
  %270 = vst [vmem:[#allocation4 + $0x120] sm:$0xff] %v258
  %271 = vst [vmem:[#allocation4 + $0x128] sm:$0xff] %v259
  %272 = vst [vmem:[#allocation4 + $0x130] sm:$0xff] %v260
  %273 = vst [vmem:[#allocation4 + $0x138] sm:$0xff] %v261
  %274 = vst [vmem:[#allocation4 + $0x140] sm:$0xff] %v262
  %275 = vst [vmem:[#allocation4 + $0x148] sm:$0xff] %v263
  %276 = vrot.lane.b32.xlu0 %v57, 110
  %v277 = vpop.permute.xlu0 %276
  %278 = vrot.lane.b32.xlu0 %v58, 110
  %v279 = vpop.permute.xlu0 %278
  %280 = vrot.lane.b32.xlu0 %v59, 110
  %v281 = vpop.permute.xlu0 %280
  %282 = vrot.lane.b32.xlu0 %v60, 110
  %v283 = vpop.permute.xlu0 %282
  %284 = vrot.lane.b32.xlu0 %v61, 110
  %v285 = vpop.permute.xlu0 %284
  %286 = vrot.lane.b32.xlu0 %v62, 110
  %v287 = vpop.permute.xlu0 %286
  %288 = vrot.lane.b32.xlu0 %v208, 110
  %v289 = vpop.permute.xlu0 %288
  %vm290 = vcmask 900096
  %v291 = vsel %vm290, %v277, %v279
  %v292 = vsel %vm290, %v279, %v281
  %v293 = vsel %vm290, %v281, %v283
  %v294 = vsel %vm290, %v283, %v285
  %v295 = vsel %vm290, %v285, %v287
  %v296 = vsel %vm290, %v287, %v289
  %303 = vst [vmem:[#allocation4 + $0x150] sm:$0xff] %v291
  %304 = vst [vmem:[#allocation4 + $0x158] sm:$0xff] %v292
  %305 = vst [vmem:[#allocation4 + $0x160] sm:$0xff] %v293
  %306 = vst [vmem:[#allocation4 + $0x168] sm:$0xff] %v294
  %307 = vst [vmem:[#allocation4 + $0x170] sm:$0xff] %v295
  %308 = vst [vmem:[#allocation4 + $0x178] sm:$0xff] %v296
  %309 = vrot.lane.b32.xlu0 %v57, 109
  %v310 = vpop.permute.xlu0 %309
  %311 = vrot.lane.b32.xlu0 %v58, 109
  %v312 = vpop.permute.xlu0 %311
  %313 = vrot.lane.b32.xlu0 %v59, 109
  %v314 = vpop.permute.xlu0 %313
  %315 = vrot.lane.b32.xlu0 %v60, 109
  %v316 = vpop.permute.xlu0 %315
  %317 = vrot.lane.b32.xlu0 %v61, 109
  %v318 = vpop.permute.xlu0 %317
  %319 = vrot.lane.b32.xlu0 %v62, 109
  %v320 = vpop.permute.xlu0 %319
  %321 = vrot.lane.b32.xlu0 %v208, 109
  %v322 = vpop.permute.xlu0 %321
  %vm323 = vcmask 891904
  %v324 = vsel %vm323, %v310, %v312
  %v325 = vsel %vm323, %v312, %v314
  %v326 = vsel %vm323, %v314, %v316
  %v327 = vsel %vm323, %v316, %v318
  %v328 = vsel %vm323, %v318, %v320
  %v329 = vsel %vm323, %v320, %v322
  %336 = vst [vmem:[#allocation4 + $0x180] sm:$0xff] %v324
  %337 = vst [vmem:[#allocation4 + $0x188] sm:$0xff] %v325
  %338 = vst [vmem:[#allocation4 + $0x190] sm:$0xff] %v326
  %339 = vst [vmem:[#allocation4 + $0x198] sm:$0xff] %v327
  %340 = vst [vmem:[#allocation4 + $0x1a0] sm:$0xff] %v328
  %341 = vst [vmem:[#allocation4 + $0x1a8] sm:$0xff] %v329
  %v342 = vld [vmem:[%s2] sm:$0xff]
  %v343 = vld [vmem:[%s2 + $0xc] sm:$0xff]
  %v344 = vld [vmem:[#allocation4] sm:$0xff]
  %v345 = vld [vmem:[#allocation4 + $0x8] sm:$0xff]
  %v346 = vld [vmem:[#allocation4 + $0x10] sm:$0xff]
  %v347 = vld [vmem:[#allocation4 + $0x18] sm:$0xff]
  %v348 = vld [vmem:[#allocation4 + $0x20] sm:$0xff]
  %v349 = vld [vmem:[#allocation4 + $0x28] sm:$0xff]
  %v350 = vld [vmem:[#allocation4 + $0x30] sm:$0xff]
  %v351 = vld [vmem:[#allocation4 + $0x38] sm:$0xff]
  %v352 = vld [vmem:[#allocation4 + $0x40] sm:$0xff]
  %v353 = vld [vmem:[#allocation4 + $0x48] sm:$0xff]
  %v354 = vld [vmem:[#allocation4 + $0x50] sm:$0xff]
  %v355 = vld [vmem:[#allocation4 + $0x58] sm:$0xff]
  %v356 = vld [vmem:[#allocation4 + $0x60] sm:$0xff]
  %v357 = vld [vmem:[#allocation4 + $0x68] sm:$0xff]
  %v358 = vld [vmem:[#allocation4 + $0x70] sm:$0xff]
  %v359 = vld [vmem:[#allocation4 + $0x78] sm:$0xff]
  %v360 = vld [vmem:[#allocation4 + $0x80] sm:$0xff]
  %v361 = vld [vmem:[#allocation4 + $0x88] sm:$0xff]
  %v362 = vld [vmem:[#allocation4 + $0x90] sm:$0xff]
  %v363 = vld [vmem:[#allocation4 + $0x98] sm:$0xff]
  %v364 = vld [vmem:[#allocation4 + $0xa0] sm:$0xff]
  %v365 = vld [vmem:[#allocation4 + $0xa8] sm:$0xff]
  %v366 = vld [vmem:[#allocation4 + $0xb0] sm:$0xff]
  %v367 = vld [vmem:[#allocation4 + $0xb8] sm:$0xff]
  %v368 = vld [vmem:[#allocation4 + $0xc0] sm:$0xff]
  %v369 = vld [vmem:[#allocation4 + $0xc8] sm:$0xff]
  %v370 = vld [vmem:[#allocation4 + $0xd0] sm:$0xff]
  %v371 = vld [vmem:[#allocation4 + $0xd8] sm:$0xff]
  %v372 = vld [vmem:[#allocation4 + $0xe0] sm:$0xff]
  %v373 = vld [vmem:[#allocation4 + $0xe8] sm:$0xff]
  %v374 = vld [vmem:[#allocation4 + $0xf0] sm:$0xff]
  %v375 = vld [vmem:[#allocation4 + $0xf8] sm:$0xff]
  %v376 = vld [vmem:[#allocation4 + $0x100] sm:$0xff]
  %v377 = vld [vmem:[#allocation4 + $0x108] sm:$0xff]
  %v378 = vld [vmem:[#allocation4 + $0x110] sm:$0xff]
  %v379 = vld [vmem:[#allocation4 + $0x118] sm:$0xff]
  %v380 = vld [vmem:[#allocation4 + $0x120] sm:$0xff]
  %v381 = vld [vmem:[#allocation4 + $0x128] sm:$0xff]
  %v382 = vld [vmem:[#allocation4 + $0x130] sm:$0xff]
  %v383 = vld [vmem:[#allocation4 + $0x138] sm:$0xff]
  %v384 = vld [vmem:[#allocation4 + $0x140] sm:$0xff]
  %v385 = vld [vmem:[#allocation4 + $0x148] sm:$0xff]
  %v386 = vld [vmem:[#allocation4 + $0x150] sm:$0xff]
  %v387 = vld [vmem:[#allocation4 + $0x158] sm:$0xff]
  %v388 = vld [vmem:[#allocation4 + $0x160] sm:$0xff]
  %v389 = vld [vmem:[#allocation4 + $0x168] sm:$0xff]
  %v390 = vld [vmem:[#allocation4 + $0x170] sm:$0xff]
  %v391 = vld [vmem:[#allocation4 + $0x178] sm:$0xff]
  %v392 = vld [vmem:[#allocation4 + $0x180] sm:$0xff]
  %v393 = vld [vmem:[#allocation4 + $0x188] sm:$0xff]
  %v394 = vld [vmem:[#allocation4 + $0x190] sm:$0xff]
  %v395 = vld [vmem:[#allocation4 + $0x198] sm:$0xff]
  %v396 = vld [vmem:[#allocation4 + $0x1a0] sm:$0xff]
  %v397 = vld [vmem:[#allocation4 + $0x1a8] sm:$0xff]
  %v398 = vld [vmem:[%s3] sm:$0xff]
  %v399 = vld [vmem:[%s3 + $0x8] sm:$0xff]
  %401 = vset.pattern.permute.xlu0 0
  %402 = vperm.xlu0 %401, %v398
  %v403 = vpop.permute.xlu0 %402
  %406 = vset.pattern.permute.xlu0 0
  %407 = vperm.xlu0 %406, %v399
  %v408 = vpop.permute.xlu0 %407
  %v412 = vunpack.c.l.b16 %v342
  %v413 = vunpack.c.h.b16 %v342
  %v414 = vunpack.c.l.b16 %v343
  %v415 = vunpack.c.h.b16 %v343
  %v416 = vpack.c.b16 %v414, %v412
  %v417 = vpack.c.b16 %v415, %v413
  %vm419 = vcmask 130048
  %v421 = vsel %vm419, %v417, 0
  %423 = vmatprep.subr.bf16.mxu0 %v345
  %424 = vmatpush1.bf16.msra.mxu0 %v344
  %425 = vmatprep.subr.bf16.mxu0 %v351
  %426 = vmatpush1.bf16.msra.mxu0 %v350
  %427 = vmatprep.subr.bf16.mxu0 %v357
  %428 = vmatpush1.bf16.msra.mxu0 %v356
  %429 = vmatprep.subr.bf16.mxu0 %v363
  %430 = vmatpush1.bf16.msra.mxu0 %v362
  %431 = vmatprep.subr.bf16.mxu0 %v369
  %432 = vmatpush1.bf16.msra.mxu0 %v368
  %433 = vmatprep.subr.bf16.mxu0 %v375
  %434 = vmatpush1.bf16.msra.mxu0 %v374
  %435 = vmatprep.subr.bf16.mxu0 %v381
  %436 = vmatpush1.bf16.msra.mxu0 %v380
  %437 = vmatprep.subr.bf16.mxu0 %v387
  %438 = vmatpush1.bf16.msra.mxu0 %v386
  %439 = vmatprep.subr.bf16.mxu0 %v393
  %440 = vmatpush1.bf16.msra.mxu0 %v392
  %441 = vmatprep.subr.bf16.mxu0 0
  %442 = vmatpush1.bf16.msra.mxu0 0
  %443 = vmatprep.subr.bf16.mxu0 0
  %444 = vmatpush1.bf16.msra.mxu0 0
  %445 = vmatprep.subr.bf16.mxu0 0
  %446 = vmatpush1.bf16.msra.mxu0 0
  %447 = vmatprep.subr.bf16.mxu0 0
  %448 = vmatpush1.bf16.msra.mxu0 0
  %449 = vmatprep.subr.bf16.mxu0 0
  %450 = vmatpush1.bf16.msra.mxu0 0
  %451 = vmatprep.subr.bf16.mxu0 0
  %452 = vmatpush1.bf16.msra.mxu0 0
  %453 = vmatprep.subr.bf16.mxu0 0
  %454 = vmatpush1.bf16.msra.mxu0 0
  %455 = vmatprep.mubr.bf16.mxu0 %v421
  %456 = vmatmul.mubr.bf16.gmra.mrb[0].mxu0 %v416
  %v457 = vpop.f32.mrb[0].mxu0
  %v458 = vadd.f32 %v403, %v457
  %v459 = vpop.f32.mrb[0].mxu0
  %v460 = vadd.f32 %v403, %v459
  %v461 = vpop.f32.mrb[0].mxu0
  %v462 = vadd.f32 %v408, %v461
  %v463 = vpop.f32.mrb[0].mxu0
  %v464 = vadd.f32 %v408, %v463
  %465 = vdwg.mxu0
  %466 = vmatprep.subr.bf16.mxu0 %v347
  %467 = vmatpush1.bf16.msra.mxu0 %v346
  %468 = vmatprep.subr.bf16.mxu0 %v353
  %469 = vmatpush1.bf16.msra.mxu0 %v352
  %470 = vmatprep.subr.bf16.mxu0 %v359
  %471 = vmatpush1.bf16.msra.mxu0 %v358
  %472 = vmatprep.subr.bf16.mxu0 %v365
  %473 = vmatpush1.bf16.msra.mxu0 %v364
  %474 = vmatprep.subr.bf16.mxu0 %v371
  %475 = vmatpush1.bf16.msra.mxu0 %v370
  %476 = vmatprep.subr.bf16.mxu0 %v377
  %477 = vmatpush1.bf16.msra.mxu0 %v376
  %478 = vmatprep.subr.bf16.mxu0 %v383
  %479 = vmatpush1.bf16.msra.mxu0 %v382
  %480 = vmatprep.subr.bf16.mxu0 %v389
  %481 = vmatpush1.bf16.msra.mxu0 %v388
  %482 = vmatprep.subr.bf16.mxu0 %v395
  %483 = vmatpush1.bf16.msra.mxu0 %v394
  %484 = vmatprep.subr.bf16.mxu0 0
  %485 = vmatpush1.bf16.msra.mxu0 0
  %486 = vmatprep.subr.bf16.mxu0 0
  %487 = vmatpush1.bf16.msra.mxu0 0
  %488 = vmatprep.subr.bf16.mxu0 0
  %489 = vmatpush1.bf16.msra.mxu0 0
  %490 = vmatprep.subr.bf16.mxu0 0
  %491 = vmatpush1.bf16.msra.mxu0 0
  %492 = vmatprep.subr.bf16.mxu0 0
  %493 = vmatpush1.bf16.msra.mxu0 0
  %494 = vmatprep.subr.bf16.mxu0 0
  %495 = vmatpush1.bf16.msra.mxu0 0
  %496 = vmatprep.subr.bf16.mxu0 0
  %497 = vmatpush1.bf16.msra.mxu0 0
  %498 = vmatprep.mubr.bf16.mxu0 %v421
  %499 = vmatmul.mubr.bf16.gmra.mrb[0].mxu0 %v416
  %v500 = vpop.f32.mrb[0].mxu0
  %v501 = vadd.f32 %v403, %v500
  %v502 = vpop.f32.mrb[0].mxu0
  %v503 = vadd.f32 %v403, %v502
  %v504 = vpop.f32.mrb[0].mxu0
  %v505 = vadd.f32 %v408, %v504
  %v506 = vpop.f32.mrb[0].mxu0
  %v507 = vadd.f32 %v408, %v506
  %508 = vdwg.mxu0
  %509 = vmatprep.subr.bf16.mxu0 %v349
  %510 = vmatpush1.bf16.msra.mxu0 %v348
  %511 = vmatprep.subr.bf16.mxu0 %v355
  %512 = vmatpush1.bf16.msra.mxu0 %v354
  %513 = vmatprep.subr.bf16.mxu0 %v361
  %514 = vmatpush1.bf16.msra.mxu0 %v360
  %515 = vmatprep.subr.bf16.mxu0 %v367
  %516 = vmatpush1.bf16.msra.mxu0 %v366
  %517 = vmatprep.subr.bf16.mxu0 %v373
  %518 = vmatpush1.bf16.msra.mxu0 %v372
  %519 = vmatprep.subr.bf16.mxu0 %v379
  %520 = vmatpush1.bf16.msra.mxu0 %v378
  %521 = vmatprep.subr.bf16.mxu0 %v385
  %522 = vmatpush1.bf16.msra.mxu0 %v384
  %523 = vmatprep.subr.bf16.mxu0 %v391
  %524 = vmatpush1.bf16.msra.mxu0 %v390
  %525 = vmatprep.subr.bf16.mxu0 %v397
  %526 = vmatpush1.bf16.msra.mxu0 %v396
  %527 = vmatprep.subr.bf16.mxu0 0
  %528 = vmatpush1.bf16.msra.mxu0 0
  %529 = vmatprep.subr.bf16.mxu0 0
  %530 = vmatpush1.bf16.msra.mxu0 0
  %531 = vmatprep.subr.bf16.mxu0 0
  %532 = vmatpush1.bf16.msra.mxu0 0
  %533 = vmatprep.subr.bf16.mxu0 0
  %534 = vmatpush1.bf16.msra.mxu0 0
  %535 = vmatprep.subr.bf16.mxu0 0
  %536 = vmatpush1.bf16.msra.mxu0 0
  %537 = vmatprep.subr.bf16.mxu0 0
  %538 = vmatpush1.bf16.msra.mxu0 0
  %539 = vmatprep.subr.bf16.mxu0 0
  %540 = vmatpush1.bf16.msra.mxu0 0
  %541 = vmatprep.mubr.bf16.mxu0 %v421
  %542 = vmatmul.mubr.bf16.gmra.mrb[0].mxu0 %v416
  %v543 = vpop.f32.mrb[0].mxu0
  %v544 = vadd.f32 %v403, %v543
  %v545 = vpop.f32.mrb[0].mxu0
  %v546 = vadd.f32 %v403, %v545
  %v547 = vpop.f32.mrb[0].mxu0
  %v548 = vadd.f32 %v408, %v547
  %v549 = vpop.f32.mrb[0].mxu0
  %v550 = vadd.f32 %v408, %v549
  %551 = vdwg.mxu0
  %v552 = vmax.f32 %v458, 0.0
  %v553 = vmax.f32 %v460, 0.0
  %v554 = vmax.f32 %v501, 0.0
  %v555 = vmax.f32 %v503, 0.0
  %v556 = vmax.f32 %v544, 0.0
  %v557 = vmax.f32 %v546, 0.0
  %v558 = vmax.f32 %v462, 0.0
  %v559 = vmax.f32 %v464, 0.0
  %v560 = vmax.f32 %v505, 0.0
  %v561 = vmax.f32 %v507, 0.0
  %v562 = vmax.f32 %v548, 0.0
  %v563 = vmax.f32 %v550, 0.0
  %v564 = vmin.f32 %v552, 6.0
  %v565 = vmin.f32 %v553, 6.0
  %v566 = vmin.f32 %v554, 6.0
  %v567 = vmin.f32 %v555, 6.0
  %v568 = vmin.f32 %v556, 6.0
  %v569 = vmin.f32 %v557, 6.0
  %v570 = vmin.f32 %v558, 6.0
  %v571 = vmin.f32 %v559, 6.0
  %v572 = vmin.f32 %v560, 6.0
  %v573 = vmin.f32 %v561, 6.0
  %v574 = vmin.f32 %v562, 6.0
  %v575 = vmin.f32 %v563, 6.0
  %v576 = vlaneseq
  %v577 = vshrl.u32 %v576, 7
  %v578 = vsub.s32 0, %v577
  %v579 = vrot.slane %v34, %v578
  %v580 = vlaneseq
  %v581 = vshrl.u32 %v580, 7
  %v582 = vsub.s32 0, %v581
  %v583 = vrot.slane %v35, %v582
  %v584 = vlaneseq
  %v585 = vshrl.u32 %v584, 7
  %v586 = vsub.s32 0, %v585
  %v587 = vrot.slane %v36, %v586
  %v588 = vlaneseq
  %v589 = vshrl.u32 %v588, 7
  %v590 = vsub.s32 0, %v589
  %v591 = vrot.slane %v37, %v590
  %v592 = vlaneseq
  %v593 = vshrl.u32 %v592, 7
  %v594 = vsub.s32 0, %v593
  %v595 = vrot.slane %v38, %v594
  %v596 = vlaneseq
  %v597 = vshrl.u32 %v596, 7
  %v598 = vsub.s32 0, %v597
  %v599 = vrot.slane %v39, %v598
  %v600 = vmul.f32 %v564, %v579
  %v601 = vmul.f32 %v565, %v583
  %v602 = vmul.f32 %v566, %v587
  %v603 = vmul.f32 %v567, %v591
  %v604 = vmul.f32 %v568, %v595
  %v605 = vmul.f32 %v569, %v599
  %v606 = vmul.f32 %v570, %v579
  %v607 = vmul.f32 %v571, %v583
  %v608 = vmul.f32 %v572, %v587
  %v609 = vmul.f32 %v573, %v591
  %v610 = vmul.f32 %v574, %v595
  %v611 = vmul.f32 %v575, %v599
  %612 = vst [vmem:[#allocation2 + $0x8] sm:$0xff] %v600
  %613 = vst [vmem:[#allocation2 + $0x10] sm:$0xff] %v601
  %614 = vst [vmem:[#allocation2 + $0x18] sm:$0xff] %v602
  %615 = vst [vmem:[#allocation2 + $0x20] sm:$0xff] %v603
  %616 = vst [vmem:[#allocation2 + $0x28] sm:$0xff] %v604
  %617 = vst [vmem:[#allocation2 + $0x30] sm:$0xff] %v605
  %618 = vst [vmem:[#allocation2 + $0x48] sm:$0xff] %v606
  %619 = vst [vmem:[#allocation2 + $0x50] sm:$0xff] %v607
  %620 = vst [vmem:[#allocation2 + $0x58] sm:$0xff] %v608
  %621 = vst [vmem:[#allocation2 + $0x60] sm:$0xff] %v609
  %622 = vst [vmem:[#allocation2 + $0x68] sm:$0xff] %v610
  %623 = vst [vmem:[#allocation2 + $0x70] sm:$0xff] %v611
  %v624 = vld [vmem:[#allocation2] sm:$0xff]
  %v625 = vld [vmem:[#allocation2 + $0x8] sm:$0xff]
  %v626 = vld [vmem:[#allocation2 + $0x10] sm:$0xff]
  %v627 = vld [vmem:[#allocation2 + $0x18] sm:$0xff]
  %v628 = vld [vmem:[#allocation2 + $0x20] sm:$0xff]
  %v629 = vld [vmem:[#allocation2 + $0x28] sm:$0xff]
  %v630 = vld [vmem:[#allocation2 + $0x30] sm:$0xff]
  %v631 = vld [vmem:[#allocation2 + $0x38] sm:$0xff]
  %v632 = vld [vmem:[#allocation2 + $0x40] sm:$0xff]
  %v633 = vld [vmem:[#allocation2 + $0x48] sm:$0xff]
  %v634 = vld [vmem:[#allocation2 + $0x50] sm:$0xff]
  %v635 = vld [vmem:[#allocation2 + $0x58] sm:$0xff]
  %v636 = vld [vmem:[#allocation2 + $0x60] sm:$0xff]
  %v637 = vld [vmem:[#allocation2 + $0x68] sm:$0xff]
  %v638 = vld [vmem:[#allocation2 + $0x70] sm:$0xff]
  %v639 = vld [vmem:[#allocation2 + $0x78] sm:$0xff]
  %v640 = vpack.c.bf16 %v632, %v624
  %v641 = vpack.c.bf16 %v633, %v625
  %v642 = vpack.c.bf16 %v634, %v626
  %v643 = vpack.c.bf16 %v635, %v627
  %v644 = vpack.c.bf16 %v636, %v628
  %v645 = vpack.c.bf16 %v637, %v629
  %v646 = vpack.c.bf16 %v638, %v630
  %654 = vrot.lane.b32.xlu0 %v640, 19
  %v655 = vpop.permute.xlu0 %654
  %656 = vrot.lane.b32.xlu0 %v641, 19
  %v657 = vpop.permute.xlu0 %656
  %658 = vrot.lane.b32.xlu0 %v642, 19
  %v659 = vpop.permute.xlu0 %658
  %660 = vrot.lane.b32.xlu0 %v643, 19
  %v661 = vpop.permute.xlu0 %660
  %662 = vrot.lane.b32.xlu0 %v644, 19
  %v663 = vpop.permute.xlu0 %662
  %664 = vrot.lane.b32.xlu0 %v645, 19
  %v665 = vpop.permute.xlu0 %664
  %666 = vrot.lane.b32.xlu0 %v646, 19
  %v667 = vpop.permute.xlu0 %666
  %v668 = vsel %vm84, %v655, %v657
  %v669 = vsel %vm84, %v657, %v659
  %v670 = vsel %vm84, %v659, %v661
  %v671 = vsel %vm84, %v661, %v663
  %v672 = vsel %vm84, %v663, %v665
  %v673 = vsel %vm84, %v665, %v667
  %680 = vst [vmem:[#allocation4] sm:$0xff] %v668
  %681 = vst [vmem:[#allocation4 + $0x8] sm:$0xff] %v669
  %682 = vst [vmem:[#allocation4 + $0x10] sm:$0xff] %v670
  %683 = vst [vmem:[#allocation4 + $0x18] sm:$0xff] %v671
  %684 = vst [vmem:[#allocation4 + $0x20] sm:$0xff] %v672
  %685 = vst [vmem:[#allocation4 + $0x28] sm:$0xff] %v673
  %686 = vrot.lane.b32.xlu0 %v640, 18
  %v687 = vpop.permute.xlu0 %686
  %688 = vrot.lane.b32.xlu0 %v641, 18
  %v689 = vpop.permute.xlu0 %688
  %690 = vrot.lane.b32.xlu0 %v642, 18
  %v691 = vpop.permute.xlu0 %690
  %692 = vrot.lane.b32.xlu0 %v643, 18
  %v693 = vpop.permute.xlu0 %692
  %694 = vrot.lane.b32.xlu0 %v644, 18
  %v695 = vpop.permute.xlu0 %694
  %696 = vrot.lane.b32.xlu0 %v645, 18
  %v697 = vpop.permute.xlu0 %696
  %698 = vrot.lane.b32.xlu0 %v646, 18
  %v699 = vpop.permute.xlu0 %698
  %v700 = vsel %vm117, %v687, %v689
  %v701 = vsel %vm117, %v689, %v691
  %v702 = vsel %vm117, %v691, %v693
  %v703 = vsel %vm117, %v693, %v695
  %v704 = vsel %vm117, %v695, %v697
  %v705 = vsel %vm117, %v697, %v699
  %712 = vst [vmem:[#allocation4 + $0x30] sm:$0xff] %v700
  %713 = vst [vmem:[#allocation4 + $0x38] sm:$0xff] %v701
  %714 = vst [vmem:[#allocation4 + $0x40] sm:$0xff] %v702
  %715 = vst [vmem:[#allocation4 + $0x48] sm:$0xff] %v703
  %716 = vst [vmem:[#allocation4 + $0x50] sm:$0xff] %v704
  %717 = vst [vmem:[#allocation4 + $0x58] sm:$0xff] %v705
  %718 = vrot.lane.b32.xlu0 %v640, 17
  %v719 = vpop.permute.xlu0 %718
  %720 = vrot.lane.b32.xlu0 %v641, 17
  %v721 = vpop.permute.xlu0 %720
  %722 = vrot.lane.b32.xlu0 %v642, 17
  %v723 = vpop.permute.xlu0 %722
  %724 = vrot.lane.b32.xlu0 %v643, 17
  %v725 = vpop.permute.xlu0 %724
  %726 = vrot.lane.b32.xlu0 %v644, 17
  %v727 = vpop.permute.xlu0 %726
  %728 = vrot.lane.b32.xlu0 %v645, 17
  %v729 = vpop.permute.xlu0 %728
  %730 = vrot.lane.b32.xlu0 %v646, 17
  %v731 = vpop.permute.xlu0 %730
  %v732 = vsel %vm150, %v719, %v721
  %v733 = vsel %vm150, %v721, %v723
  %v734 = vsel %vm150, %v723, %v725
  %v735 = vsel %vm150, %v725, %v727
  %v736 = vsel %vm150, %v727, %v729
  %v737 = vsel %vm150, %v729, %v731
  %744 = vst [vmem:[#allocation4 + $0x60] sm:$0xff] %v732
  %745 = vst [vmem:[#allocation4 + $0x68] sm:$0xff] %v733
  %746 = vst [vmem:[#allocation4 + $0x70] sm:$0xff] %v734
  %747 = vst [vmem:[#allocation4 + $0x78] sm:$0xff] %v735
  %748 = vst [vmem:[#allocation4 + $0x80] sm:$0xff] %v736
  %749 = vst [vmem:[#allocation4 + $0x88] sm:$0xff] %v737
  %750 = vrot.lane.b32.xlu0 %v640, 1
  %v751 = vpop.permute.xlu0 %750
  %752 = vrot.lane.b32.xlu0 %v641, 1
  %v753 = vpop.permute.xlu0 %752
  %754 = vrot.lane.b32.xlu0 %v642, 1
  %v755 = vpop.permute.xlu0 %754
  %756 = vrot.lane.b32.xlu0 %v643, 1
  %v757 = vpop.permute.xlu0 %756
  %758 = vrot.lane.b32.xlu0 %v644, 1
  %v759 = vpop.permute.xlu0 %758
  %760 = vrot.lane.b32.xlu0 %v645, 1
  %v761 = vpop.permute.xlu0 %760
  %762 = vrot.lane.b32.xlu0 %v646, 1
  %v763 = vpop.permute.xlu0 %762
  %v764 = vsel %vm183, %v751, %v753
  %v765 = vsel %vm183, %v753, %v755
  %v766 = vsel %vm183, %v755, %v757
  %v767 = vsel %vm183, %v757, %v759
  %v768 = vsel %vm183, %v759, %v761
  %v769 = vsel %vm183, %v761, %v763
  %776 = vst [vmem:[#allocation4 + $0x90] sm:$0xff] %v764
  %777 = vst [vmem:[#allocation4 + $0x98] sm:$0xff] %v765
  %778 = vst [vmem:[#allocation4 + $0xa0] sm:$0xff] %v766
  %779 = vst [vmem:[#allocation4 + $0xa8] sm:$0xff] %v767
  %780 = vst [vmem:[#allocation4 + $0xb0] sm:$0xff] %v768
  %781 = vst [vmem:[#allocation4 + $0xb8] sm:$0xff] %v769
  %782 = vst [vmem:[#allocation4 + $0xc0] sm:$0xff] %v641
  %783 = vst [vmem:[#allocation4 + $0xc8] sm:$0xff] %v642
  %784 = vst [vmem:[#allocation4 + $0xd0] sm:$0xff] %v643
  %785 = vst [vmem:[#allocation4 + $0xd8] sm:$0xff] %v644
  %786 = vst [vmem:[#allocation4 + $0xe0] sm:$0xff] %v645
  %787 = vst [vmem:[#allocation4 + $0xe8] sm:$0xff] %v646
  %v788 = vpack.c.bf16 %v639, %v631
  %790 = vrot.lane.b32.xlu0 %v641, 127
  %v791 = vpop.permute.xlu0 %790
  %792 = vrot.lane.b32.xlu0 %v642, 127
  %v793 = vpop.permute.xlu0 %792
  %794 = vrot.lane.b32.xlu0 %v643, 127
  %v795 = vpop.permute.xlu0 %794
  %796 = vrot.lane.b32.xlu0 %v644, 127
  %v797 = vpop.permute.xlu0 %796
  %798 = vrot.lane.b32.xlu0 %v645, 127
  %v799 = vpop.permute.xlu0 %798
  %800 = vrot.lane.b32.xlu0 %v646, 127
  %v801 = vpop.permute.xlu0 %800
  %802 = vrot.lane.b32.xlu0 %v788, 127
  %v803 = vpop.permute.xlu0 %802
  %v804 = vsel %vm224, %v791, %v793
  %v805 = vsel %vm224, %v793, %v795
  %v806 = vsel %vm224, %v795, %v797
  %v807 = vsel %vm224, %v797, %v799
  %v808 = vsel %vm224, %v799, %v801
  %v809 = vsel %vm224, %v801, %v803
  %816 = vst [vmem:[#allocation4 + $0xf0] sm:$0xff] %v804
  %817 = vst [vmem:[#allocation4 + $0xf8] sm:$0xff] %v805
  %818 = vst [vmem:[#allocation4 + $0x100] sm:$0xff] %v806
  %819 = vst [vmem:[#allocation4 + $0x108] sm:$0xff] %v807
  %820 = vst [vmem:[#allocation4 + $0x110] sm:$0xff] %v808
  %821 = vst [vmem:[#allocation4 + $0x118] sm:$0xff] %v809
  %822 = vrot.lane.b32.xlu0 %v641, 111
  %v823 = vpop.permute.xlu0 %822
  %824 = vrot.lane.b32.xlu0 %v642, 111
  %v825 = vpop.permute.xlu0 %824
  %826 = vrot.lane.b32.xlu0 %v643, 111
  %v827 = vpop.permute.xlu0 %826
  %828 = vrot.lane.b32.xlu0 %v644, 111
  %v829 = vpop.permute.xlu0 %828
  %830 = vrot.lane.b32.xlu0 %v645, 111
  %v831 = vpop.permute.xlu0 %830
  %832 = vrot.lane.b32.xlu0 %v646, 111
  %v833 = vpop.permute.xlu0 %832
  %834 = vrot.lane.b32.xlu0 %v788, 111
  %v835 = vpop.permute.xlu0 %834
  %v836 = vsel %vm257, %v823, %v825
  %v837 = vsel %vm257, %v825, %v827
  %v838 = vsel %vm257, %v827, %v829
  %v839 = vsel %vm257, %v829, %v831
  %v840 = vsel %vm257, %v831, %v833
  %v841 = vsel %vm257, %v833, %v835
  %848 = vst [vmem:[#allocation4 + $0x120] sm:$0xff] %v836
  %849 = vst [vmem:[#allocation4 + $0x128] sm:$0xff] %v837
  %850 = vst [vmem:[#allocation4 + $0x130] sm:$0xff] %v838
  %851 = vst [vmem:[#allocation4 + $0x138] sm:$0xff] %v839
  %852 = vst [vmem:[#allocation4 + $0x140] sm:$0xff] %v840
  %853 = vst [vmem:[#allocation4 + $0x148] sm:$0xff] %v841
  %854 = vrot.lane.b32.xlu0 %v641, 110
  %v855 = vpop.permute.xlu0 %854
  %856 = vrot.lane.b32.xlu0 %v642, 110
  %v857 = vpop.permute.xlu0 %856
  %858 = vrot.lane.b32.xlu0 %v643, 110
  %v859 = vpop.permute.xlu0 %858
  %860 = vrot.lane.b32.xlu0 %v644, 110
  %v861 = vpop.permute.xlu0 %860
  %862 = vrot.lane.b32.xlu0 %v645, 110
  %v863 = vpop.permute.xlu0 %862
  %864 = vrot.lane.b32.xlu0 %v646, 110
  %v865 = vpop.permute.xlu0 %864
  %866 = vrot.lane.b32.xlu0 %v788, 110
  %v867 = vpop.permute.xlu0 %866
  %v868 = vsel %vm290, %v855, %v857
  %v869 = vsel %vm290, %v857, %v859
  %v870 = vsel %vm290, %v859, %v861
  %v871 = vsel %vm290, %v861, %v863
  %v872 = vsel %vm290, %v863, %v865
  %v873 = vsel %vm290, %v865, %v867
  %880 = vst [vmem:[#allocation4 + $0x150] sm:$0xff] %v868
  %881 = vst [vmem:[#allocation4 + $0x158] sm:$0xff] %v869
  %882 = vst [vmem:[#allocation4 + $0x160] sm:$0xff] %v870
  %883 = vst [vmem:[#allocation4 + $0x168] sm:$0xff] %v871
  %884 = vst [vmem:[#allocation4 + $0x170] sm:$0xff] %v872
  %885 = vst [vmem:[#allocation4 + $0x178] sm:$0xff] %v873
  %886 = vrot.lane.b32.xlu0 %v641, 109
  %v887 = vpop.permute.xlu0 %886
  %888 = vrot.lane.b32.xlu0 %v642, 109
  %v889 = vpop.permute.xlu0 %888
  %890 = vrot.lane.b32.xlu0 %v643, 109
  %v891 = vpop.permute.xlu0 %890
  %892 = vrot.lane.b32.xlu0 %v644, 109
  %v893 = vpop.permute.xlu0 %892
  %894 = vrot.lane.b32.xlu0 %v645, 109
  %v895 = vpop.permute.xlu0 %894
  %896 = vrot.lane.b32.xlu0 %v646, 109
  %v897 = vpop.permute.xlu0 %896
  %898 = vrot.lane.b32.xlu0 %v788, 109
  %v899 = vpop.permute.xlu0 %898
  %v900 = vsel %vm323, %v887, %v889
  %v901 = vsel %vm323, %v889, %v891
  %v902 = vsel %vm323, %v891, %v893
  %v903 = vsel %vm323, %v893, %v895
  %v904 = vsel %vm323, %v895, %v897
  %v905 = vsel %vm323, %v897, %v899
  %912 = vst [vmem:[#allocation4 + $0x180] sm:$0xff] %v900
  %913 = vst [vmem:[#allocation4 + $0x188] sm:$0xff] %v901
  %914 = vst [vmem:[#allocation4 + $0x190] sm:$0xff] %v902
  %915 = vst [vmem:[#allocation4 + $0x198] sm:$0xff] %v903
  %916 = vst [vmem:[#allocation4 + $0x1a0] sm:$0xff] %v904
  %917 = vst [vmem:[#allocation4 + $0x1a8] sm:$0xff] %v905
  %v918 = vld [vmem:[%s2 + $0x18] sm:$0xff]
  %v919 = vld [vmem:[%s2 + $0x24] sm:$0xff]
  %v920 = vld [vmem:[#allocation4] sm:$0xff]
  %v921 = vld [vmem:[#allocation4 + $0x8] sm:$0xff]
  %v922 = vld [vmem:[#allocation4 + $0x10] sm:$0xff]
  %v923 = vld [vmem:[#allocation4 + $0x18] sm:$0xff]
  %v924 = vld [vmem:[#allocation4 + $0x20] sm:$0xff]
  %v925 = vld [vmem:[#allocation4 + $0x28] sm:$0xff]
  %v926 = vld [vmem:[#allocation4 + $0x30] sm:$0xff]
  %v927 = vld [vmem:[#allocation4 + $0x38] sm:$0xff]
  %v928 = vld [vmem:[#allocation4 + $0x40] sm:$0xff]
  %v929 = vld [vmem:[#allocation4 + $0x48] sm:$0xff]
  %v930 = vld [vmem:[#allocation4 + $0x50] sm:$0xff]
  %v931 = vld [vmem:[#allocation4 + $0x58] sm:$0xff]
  %v932 = vld [vmem:[#allocation4 + $0x60] sm:$0xff]
  %v933 = vld [vmem:[#allocation4 + $0x68] sm:$0xff]
  %v934 = vld [vmem:[#allocation4 + $0x70] sm:$0xff]
  %v935 = vld [vmem:[#allocation4 + $0x78] sm:$0xff]
  %v936 = vld [vmem:[#allocation4 + $0x80] sm:$0xff]
  %v937 = vld [vmem:[#allocation4 + $0x88] sm:$0xff]
  %v938 = vld [vmem:[#allocation4 + $0x90] sm:$0xff]
  %v939 = vld [vmem:[#allocation4 + $0x98] sm:$0xff]
  %v940 = vld [vmem:[#allocation4 + $0xa0] sm:$0xff]
  %v941 = vld [vmem:[#allocation4 + $0xa8] sm:$0xff]
  %v942 = vld [vmem:[#allocation4 + $0xb0] sm:$0xff]
  %v943 = vld [vmem:[#allocation4 + $0xb8] sm:$0xff]
  %v944 = vld [vmem:[#allocation4 + $0xc0] sm:$0xff]
  %v945 = vld [vmem:[#allocation4 + $0xc8] sm:$0xff]
  %v946 = vld [vmem:[#allocation4 + $0xd0] sm:$0xff]
  %v947 = vld [vmem:[#allocation4 + $0xd8] sm:$0xff]
  %v948 = vld [vmem:[#allocation4 + $0xe0] sm:$0xff]
  %v949 = vld [vmem:[#allocation4 + $0xe8] sm:$0xff]
  %v950 = vld [vmem:[#allocation4 + $0xf0] sm:$0xff]
  %v951 = vld [vmem:[#allocation4 + $0xf8] sm:$0xff]
  %v952 = vld [vmem:[#allocation4 + $0x100] sm:$0xff]
  %v953 = vld [vmem:[#allocation4 + $0x108] sm:$0xff]
  %v954 = vld [vmem:[#allocation4 + $0x110] sm:$0xff]
  %v955 = vld [vmem:[#allocation4 + $0x118] sm:$0xff]
  %v956 = vld [vmem:[#allocation4 + $0x120] sm:$0xff]
  %v957 = vld [vmem:[#allocation4 + $0x128] sm:$0xff]
  %v958 = vld [vmem:[#allocation4 + $0x130] sm:$0xff]
  %v959 = vld [vmem:[#allocation4 + $0x138] sm:$0xff]
  %v960 = vld [vmem:[#allocation4 + $0x140] sm:$0xff]
  %v961 = vld [vmem:[#allocation4 + $0x148] sm:$0xff]
  %v962 = vld [vmem:[#allocation4 + $0x150] sm:$0xff]
  %v963 = vld [vmem:[#allocation4 + $0x158] sm:$0xff]
  %v964 = vld [vmem:[#allocation4 + $0x160] sm:$0xff]
  %v965 = vld [vmem:[#allocation4 + $0x168] sm:$0xff]
  %v966 = vld [vmem:[#allocation4 + $0x170] sm:$0xff]
  %v967 = vld [vmem:[#allocation4 + $0x178] sm:$0xff]
  %v968 = vld [vmem:[#allocation4 + $0x180] sm:$0xff]
  %v969 = vld [vmem:[#allocation4 + $0x188] sm:$0xff]
  %v970 = vld [vmem:[#allocation4 + $0x190] sm:$0xff]
  %v971 = vld [vmem:[#allocation4 + $0x198] sm:$0xff]
  %v972 = vld [vmem:[#allocation4 + $0x1a0] sm:$0xff]
  %v973 = vld [vmem:[#allocation4 + $0x1a8] sm:$0xff]
  %v974 = vld [vmem:[%s3 + $0x10] sm:$0xff]
  %v975 = vld [vmem:[%s3 + $0x18] sm:$0xff]
  %977 = vset.pattern.permute.xlu0 0
  %978 = vperm.xlu0 %977, %v974
  %v979 = vpop.permute.xlu0 %978
  %982 = vset.pattern.permute.xlu0 0
  %983 = vperm.xlu0 %982, %v975
  %v984 = vpop.permute.xlu0 %983
  %v988 = vunpack.c.l.b16 %v918
  %v989 = vunpack.c.h.b16 %v918
  %v990 = vunpack.c.l.b16 %v919
  %v991 = vunpack.c.h.b16 %v919
  %v992 = vpack.c.b16 %v990, %v988
  %v993 = vpack.c.b16 %v991, %v989
  %v996 = vsel %vm419, %v993, 0
  %998 = vmatprep.subr.bf16.mxu0 %v921
  %999 = vmatpush1.bf16.msra.mxu0 %v920
  %1000 = vmatprep.subr.bf16.mxu0 %v927
  %1001 = vmatpush1.bf16.msra.mxu0 %v926
  %1002 = vmatprep.subr.bf16.mxu0 %v933
  %1003 = vmatpush1.bf16.msra.mxu0 %v932
  %1004 = vmatprep.subr.bf16.mxu0 %v939
  %1005 = vmatpush1.bf16.msra.mxu0 %v938
  %1006 = vmatprep.subr.bf16.mxu0 %v945
  %1007 = vmatpush1.bf16.msra.mxu0 %v944
  %1008 = vmatprep.subr.bf16.mxu0 %v951
  %1009 = vmatpush1.bf16.msra.mxu0 %v950
  %1010 = vmatprep.subr.bf16.mxu0 %v957
  %1011 = vmatpush1.bf16.msra.mxu0 %v956
  %1012 = vmatprep.subr.bf16.mxu0 %v963
  %1013 = vmatpush1.bf16.msra.mxu0 %v962
  %1014 = vmatprep.subr.bf16.mxu0 %v969
  %1015 = vmatpush1.bf16.msra.mxu0 %v968
  %1016 = vmatprep.subr.bf16.mxu0 0
  %1017 = vmatpush1.bf16.msra.mxu0 0
  %1018 = vmatprep.subr.bf16.mxu0 0
  %1019 = vmatpush1.bf16.msra.mxu0 0
  %1020 = vmatprep.subr.bf16.mxu0 0
  %1021 = vmatpush1.bf16.msra.mxu0 0
  %1022 = vmatprep.subr.bf16.mxu0 0
  %1023 = vmatpush1.bf16.msra.mxu0 0
  %1024 = vmatprep.subr.bf16.mxu0 0
  %1025 = vmatpush1.bf16.msra.mxu0 0
  %1026 = vmatprep.subr.bf16.mxu0 0
  %1027 = vmatpush1.bf16.msra.mxu0 0
  %1028 = vmatprep.subr.bf16.mxu0 0
  %1029 = vmatpush1.bf16.msra.mxu0 0
  %1030 = vmatprep.mubr.bf16.mxu0 %v996
  %1031 = vmatmul.mubr.bf16.gmra.mrb[0].mxu0 %v992
  %v1032 = vpop.f32.mrb[0].mxu0
  %v1033 = vadd.f32 %v979, %v1032
  %v1034 = vpop.f32.mrb[0].mxu0
  %v1035 = vadd.f32 %v979, %v1034
  %v1036 = vpop.f32.mrb[0].mxu0
  %v1037 = vadd.f32 %v984, %v1036
  %v1038 = vpop.f32.mrb[0].mxu0
  %v1039 = vadd.f32 %v984, %v1038
  %1040 = vdwg.mxu0
  %1041 = vmatprep.subr.bf16.mxu0 %v923
  %1042 = vmatpush1.bf16.msra.mxu0 %v922
  %1043 = vmatprep.subr.bf16.mxu0 %v929
  %1044 = vmatpush1.bf16.msra.mxu0 %v928
  %1045 = vmatprep.subr.bf16.mxu0 %v935
  %1046 = vmatpush1.bf16.msra.mxu0 %v934
  %1047 = vmatprep.subr.bf16.mxu0 %v941
  %1048 = vmatpush1.bf16.msra.mxu0 %v940
  %1049 = vmatprep.subr.bf16.mxu0 %v947
  %1050 = vmatpush1.bf16.msra.mxu0 %v946
  %1051 = vmatprep.subr.bf16.mxu0 %v953
  %1052 = vmatpush1.bf16.msra.mxu0 %v952
  %1053 = vmatprep.subr.bf16.mxu0 %v959
  %1054 = vmatpush1.bf16.msra.mxu0 %v958
  %1055 = vmatprep.subr.bf16.mxu0 %v965
  %1056 = vmatpush1.bf16.msra.mxu0 %v964
  %1057 = vmatprep.subr.bf16.mxu0 %v971
  %1058 = vmatpush1.bf16.msra.mxu0 %v970
  %1059 = vmatprep.subr.bf16.mxu0 0
  %1060 = vmatpush1.bf16.msra.mxu0 0
  %1061 = vmatprep.subr.bf16.mxu0 0
  %1062 = vmatpush1.bf16.msra.mxu0 0
  %1063 = vmatprep.subr.bf16.mxu0 0
  %1064 = vmatpush1.bf16.msra.mxu0 0
  %1065 = vmatprep.subr.bf16.mxu0 0
  %1066 = vmatpush1.bf16.msra.mxu0 0
  %1067 = vmatprep.subr.bf16.mxu0 0
  %1068 = vmatpush1.bf16.msra.mxu0 0
  %1069 = vmatprep.subr.bf16.mxu0 0
  %1070 = vmatpush1.bf16.msra.mxu0 0
  %1071 = vmatprep.subr.bf16.mxu0 0
  %1072 = vmatpush1.bf16.msra.mxu0 0
  %1073 = vmatprep.mubr.bf16.mxu0 %v996
  %1074 = vmatmul.mubr.bf16.gmra.mrb[0].mxu0 %v992
  %v1075 = vpop.f32.mrb[0].mxu0
  %v1076 = vadd.f32 %v979, %v1075
  %v1077 = vpop.f32.mrb[0].mxu0
  %v1078 = vadd.f32 %v979, %v1077
  %v1079 = vpop.f32.mrb[0].mxu0
  %v1080 = vadd.f32 %v984, %v1079
  %v1081 = vpop.f32.mrb[0].mxu0
  %v1082 = vadd.f32 %v984, %v1081
  %1083 = vdwg.mxu0
  %1084 = vmatprep.subr.bf16.mxu0 %v925
  %1085 = vmatpush1.bf16.msra.mxu0 %v924
  %1086 = vmatprep.subr.bf16.mxu0 %v931
  %1087 = vmatpush1.bf16.msra.mxu0 %v930
  %1088 = vmatprep.subr.bf16.mxu0 %v937
  %1089 = vmatpush1.bf16.msra.mxu0 %v936
  %1090 = vmatprep.subr.bf16.mxu0 %v943
  %1091 = vmatpush1.bf16.msra.mxu0 %v942
  %1092 = vmatprep.subr.bf16.mxu0 %v949
  %1093 = vmatpush1.bf16.msra.mxu0 %v948
  %1094 = vmatprep.subr.bf16.mxu0 %v955
  %1095 = vmatpush1.bf16.msra.mxu0 %v954
  %1096 = vmatprep.subr.bf16.mxu0 %v961
  %1097 = vmatpush1.bf16.msra.mxu0 %v960
  %1098 = vmatprep.subr.bf16.mxu0 %v967
  %1099 = vmatpush1.bf16.msra.mxu0 %v966
  %1100 = vmatprep.subr.bf16.mxu0 %v973
  %1101 = vmatpush1.bf16.msra.mxu0 %v972
  %1102 = vmatprep.subr.bf16.mxu0 0
  %1103 = vmatpush1.bf16.msra.mxu0 0
  %1104 = vmatprep.subr.bf16.mxu0 0
  %1105 = vmatpush1.bf16.msra.mxu0 0
  %1106 = vmatprep.subr.bf16.mxu0 0
  %1107 = vmatpush1.bf16.msra.mxu0 0
  %1108 = vmatprep.subr.bf16.mxu0 0
  %1109 = vmatpush1.bf16.msra.mxu0 0
  %1110 = vmatprep.subr.bf16.mxu0 0
  %1111 = vmatpush1.bf16.msra.mxu0 0
  %1112 = vmatprep.subr.bf16.mxu0 0
  %1113 = vmatpush1.bf16.msra.mxu0 0
  %1114 = vmatprep.subr.bf16.mxu0 0
  %1115 = vmatpush1.bf16.msra.mxu0 0
  %1116 = vmatprep.mubr.bf16.mxu0 %v996
  %1117 = vmatmul.mubr.bf16.gmra.mrb[0].mxu0 %v992
  %v1118 = vpop.f32.mrb[0].mxu0
  %v1119 = vadd.f32 %v979, %v1118
  %v1120 = vpop.f32.mrb[0].mxu0
  %v1121 = vadd.f32 %v979, %v1120
  %v1122 = vpop.f32.mrb[0].mxu0
  %v1123 = vadd.f32 %v984, %v1122
  %v1124 = vpop.f32.mrb[0].mxu0
  %v1125 = vadd.f32 %v984, %v1124
  %1126 = vdwg.mxu0
  %v1127 = vmax.f32 %v1033, 0.0
  %v1128 = vmax.f32 %v1035, 0.0
  %v1129 = vmax.f32 %v1076, 0.0
  %v1130 = vmax.f32 %v1078, 0.0
  %v1131 = vmax.f32 %v1119, 0.0
  %v1132 = vmax.f32 %v1121, 0.0
  %v1133 = vmax.f32 %v1037, 0.0
  %v1134 = vmax.f32 %v1039, 0.0
  %v1135 = vmax.f32 %v1080, 0.0
  %v1136 = vmax.f32 %v1082, 0.0
  %v1137 = vmax.f32 %v1123, 0.0
  %v1138 = vmax.f32 %v1125, 0.0
  %v1139 = vmul.f32 %v1127, %v579
  %v1140 = vmul.f32 %v1128, %v583
  %v1141 = vmul.f32 %v1129, %v587
  %v1142 = vmul.f32 %v1130, %v591
  %v1143 = vmul.f32 %v1131, %v595
  %v1144 = vmul.f32 %v1132, %v599
  %v1145 = vmul.f32 %v1133, %v579
  %v1146 = vmul.f32 %v1134, %v583
  %v1147 = vmul.f32 %v1135, %v587
  %v1148 = vmul.f32 %v1136, %v591
  %v1149 = vmul.f32 %v1137, %v595
  %v1150 = vmul.f32 %v1138, %v599
  %1151 = vst [vmem:[#allocation3 + $0x8] sm:$0xff] %v1139
  %1152 = vst [vmem:[#allocation3 + $0x10] sm:$0xff] %v1140
  %1153 = vst [vmem:[#allocation3 + $0x18] sm:$0xff] %v1141
  %1154 = vst [vmem:[#allocation3 + $0x20] sm:$0xff] %v1142
  %1155 = vst [vmem:[#allocation3 + $0x28] sm:$0xff] %v1143
  %1156 = vst [vmem:[#allocation3 + $0x30] sm:$0xff] %v1144
  %1157 = vst [vmem:[#allocation3 + $0x48] sm:$0xff] %v1145
  %1158 = vst [vmem:[#allocation3 + $0x50] sm:$0xff] %v1146
  %1159 = vst [vmem:[#allocation3 + $0x58] sm:$0xff] %v1147
  %1160 = vst [vmem:[#allocation3 + $0x60] sm:$0xff] %v1148
  %1161 = vst [vmem:[#allocation3 + $0x68] sm:$0xff] %v1149
  %1162 = vst [vmem:[#allocation3 + $0x70] sm:$0xff] %v1150
  %v1163 = vld [vmem:[#allocation2 + $0x8] sm:$0xff]
  %v1164 = vld [vmem:[#allocation2 + $0x10] sm:$0xff]
  %v1165 = vld [vmem:[#allocation2 + $0x18] sm:$0xff]
  %v1166 = vld [vmem:[#allocation2 + $0x20] sm:$0xff]
  %v1167 = vld [vmem:[#allocation2 + $0x28] sm:$0xff]
  %v1168 = vld [vmem:[#allocation2 + $0x30] sm:$0xff]
  %v1169 = vld [vmem:[#allocation2 + $0x48] sm:$0xff]
  %v1170 = vld [vmem:[#allocation2 + $0x50] sm:$0xff]
  %v1171 = vld [vmem:[#allocation2 + $0x58] sm:$0xff]
  %v1172 = vld [vmem:[#allocation2 + $0x60] sm:$0xff]
  %v1173 = vld [vmem:[#allocation2 + $0x68] sm:$0xff]
  %v1174 = vld [vmem:[#allocation2 + $0x70] sm:$0xff]
  %v1175 = vpack.c.bf16 %v1169, %v1163
  %v1176 = vpack.c.bf16 %v1170, %v1164
  %v1177 = vpack.c.bf16 %v1171, %v1165
  %v1178 = vpack.c.bf16 %v1172, %v1166
  %v1179 = vpack.c.bf16 %v1173, %v1167
  %v1180 = vpack.c.bf16 %v1174, %v1168
  %v1181 = vld [vmem:[%s2 + $0x138] sm:$0xf]
  %v1182 = vld [vmem:[%s2 + $0x144] sm:$0xf]
  %v1183 = vld [vmem:[%s3 + $0xd0] sm:$0xff]
  %v1184 = vld [vmem:[%s3 + $0xd8] sm:$0xff]
  %1186 = vset.pattern.permute.xlu0 0
  %1187 = vperm.xlu0 %1186, %v1183
  %v1188 = vpop.permute.xlu0 %1187
  %1191 = vset.pattern.permute.xlu0 0
  %1192 = vperm.xlu0 %1191, %v1184
  %v1193 = vpop.permute.xlu0 %1192
  %v1197 = vunpack.c.l.b16 %v1181
  %v1198 = vunpack.c.l.b16 %v1182
  %v1199 = vpack.c.b16 %v1198, %v1197
  %v1201 = vsel %vm419, %v1199, 0
  %1203 = vmatprep.subr.bf16.mxu0 %v1176
  %1204 = vmatpush1.bf16.msra.mxu0 %v1175
  %1205 = vmatprep.subr.bf16.mxu0 0
  %1206 = vmatpush1.bf16.msra.mxu0 0
  %1207 = vmatprep.subr.bf16.mxu0 0
  %1208 = vmatpush1.bf16.msra.mxu0 0
  %1209 = vmatprep.subr.bf16.mxu0 0
  %1210 = vmatpush1.bf16.msra.mxu0 0
  %1211 = vmatprep.subr.bf16.mxu0 0
  %1212 = vmatpush1.bf16.msra.mxu0 0
  %1213 = vmatprep.subr.bf16.mxu0 0
  %1214 = vmatpush1.bf16.msra.mxu0 0
  %1215 = vmatprep.subr.bf16.mxu0 0
  %1216 = vmatpush1.bf16.msra.mxu0 0
  %1217 = vmatprep.subr.bf16.mxu0 0
  %1218 = vmatpush1.bf16.msra.mxu0 0
  %1219 = vmatprep.subr.bf16.mxu0 0
  %1220 = vmatpush1.bf16.msra.mxu0 0
  %1221 = vmatprep.subr.bf16.mxu0 0
  %1222 = vmatpush1.bf16.msra.mxu0 0
  %1223 = vmatprep.subr.bf16.mxu0 0
  %1224 = vmatpush1.bf16.msra.mxu0 0
  %1225 = vmatprep.subr.bf16.mxu0 0
  %1226 = vmatpush1.bf16.msra.mxu0 0
  %1227 = vmatprep.subr.bf16.mxu0 0
  %1228 = vmatpush1.bf16.msra.mxu0 0
  %1229 = vmatprep.subr.bf16.mxu0 0
  %1230 = vmatpush1.bf16.msra.mxu0 0
  %1231 = vmatprep.subr.bf16.mxu0 0
  %1232 = vmatpush1.bf16.msra.mxu0 0
  %1233 = vmatprep.subr.bf16.mxu0 0
  %1234 = vmatpush1.bf16.msra.mxu0 0
  %1235 = vmatprep.mubr.bf16.mxu0 0
  %1236 = vmatmul.mubr.bf16.gmra.mrb[0].mxu0 %v1201
  %v1237 = vpop.f32.mrb[0].mxu0
  %v1238 = vadd.f32 %v1188, %v1237
  %v1239 = vpop.f32.mrb[0].mxu0
  %v1240 = vadd.f32 %v1188, %v1239
  %v1241 = vpop.f32.mrb[0].mxu0
  %v1242 = vadd.f32 %v1193, %v1241
  %v1243 = vpop.f32.mrb[0].mxu0
  %v1244 = vadd.f32 %v1193, %v1243
  %1245 = vdwg.mxu0
  %1246 = vmatprep.subr.bf16.mxu0 %v1178
  %1247 = vmatpush1.bf16.msra.mxu0 %v1177
  %1248 = vmatprep.subr.bf16.mxu0 0
  %1249 = vmatpush1.bf16.msra.mxu0 0
  %1250 = vmatprep.subr.bf16.mxu0 0
  %1251 = vmatpush1.bf16.msra.mxu0 0
  %1252 = vmatprep.subr.bf16.mxu0 0
  %1253 = vmatpush1.bf16.msra.mxu0 0
  %1254 = vmatprep.subr.bf16.mxu0 0
  %1255 = vmatpush1.bf16.msra.mxu0 0
  %1256 = vmatprep.subr.bf16.mxu0 0
  %1257 = vmatpush1.bf16.msra.mxu0 0
  %1258 = vmatprep.subr.bf16.mxu0 0
  %1259 = vmatpush1.bf16.msra.mxu0 0
  %1260 = vmatprep.subr.bf16.mxu0 0
  %1261 = vmatpush1.bf16.msra.mxu0 0
  %1262 = vmatprep.subr.bf16.mxu0 0
  %1263 = vmatpush1.bf16.msra.mxu0 0
  %1264 = vmatprep.subr.bf16.mxu0 0
  %1265 = vmatpush1.bf16.msra.mxu0 0
  %1266 = vmatprep.subr.bf16.mxu0 0
  %1267 = vmatpush1.bf16.msra.mxu0 0
  %1268 = vmatprep.subr.bf16.mxu0 0
  %1269 = vmatpush1.bf16.msra.mxu0 0
  %1270 = vmatprep.subr.bf16.mxu0 0
  %1271 = vmatpush1.bf16.msra.mxu0 0
  %1272 = vmatprep.subr.bf16.mxu0 0
  %1273 = vmatpush1.bf16.msra.mxu0 0
  %1274 = vmatprep.subr.bf16.mxu0 0
  %1275 = vmatpush1.bf16.msra.mxu0 0
  %1276 = vmatprep.subr.bf16.mxu0 0
  %1277 = vmatpush1.bf16.msra.mxu0 0
  %1278 = vmatprep.mubr.bf16.mxu0 0
  %1279 = vmatmul.mubr.bf16.gmra.mrb[0].mxu0 %v1201
  %v1280 = vpop.f32.mrb[0].mxu0
  %v1281 = vadd.f32 %v1188, %v1280
  %v1282 = vpop.f32.mrb[0].mxu0
  %v1283 = vadd.f32 %v1188, %v1282
  %v1284 = vpop.f32.mrb[0].mxu0
  %v1285 = vadd.f32 %v1193, %v1284
  %v1286 = vpop.f32.mrb[0].mxu0
  %v1287 = vadd.f32 %v1193, %v1286
  %1288 = vdwg.mxu0
  %1289 = vmatprep.subr.bf16.mxu0 %v1180
  %1290 = vmatpush1.bf16.msra.mxu0 %v1179
  %1291 = vmatprep.subr.bf16.mxu0 0
  %1292 = vmatpush1.bf16.msra.mxu0 0
  %1293 = vmatprep.subr.bf16.mxu0 0
  %1294 = vmatpush1.bf16.msra.mxu0 0
  %1295 = vmatprep.subr.bf16.mxu0 0
  %1296 = vmatpush1.bf16.msra.mxu0 0
  %1297 = vmatprep.subr.bf16.mxu0 0
  %1298 = vmatpush1.bf16.msra.mxu0 0
  %1299 = vmatprep.subr.bf16.mxu0 0
  %1300 = vmatpush1.bf16.msra.mxu0 0
  %1301 = vmatprep.subr.bf16.mxu0 0
  %1302 = vmatpush1.bf16.msra.mxu0 0
  %1303 = vmatprep.subr.bf16.mxu0 0
  %1304 = vmatpush1.bf16.msra.mxu0 0
  %1305 = vmatprep.subr.bf16.mxu0 0
  %1306 = vmatpush1.bf16.msra.mxu0 0
  %1307 = vmatprep.subr.bf16.mxu0 0
  %1308 = vmatpush1.bf16.msra.mxu0 0
  %1309 = vmatprep.subr.bf16.mxu0 0
  %1310 = vmatpush1.bf16.msra.mxu0 0
  %1311 = vmatprep.subr.bf16.mxu0 0
  %1312 = vmatpush1.bf16.msra.mxu0 0
  %1313 = vmatprep.subr.bf16.mxu0 0
  %1314 = vmatpush1.bf16.msra.mxu0 0
  %1315 = vmatprep.subr.bf16.mxu0 0
  %1316 = vmatpush1.bf16.msra.mxu0 0
  %1317 = vmatprep.subr.bf16.mxu0 0
  %1318 = vmatpush1.bf16.msra.mxu0 0
  %1319 = vmatprep.subr.bf16.mxu0 0
  %1320 = vmatpush1.bf16.msra.mxu0 0
  %1321 = vmatprep.mubr.bf16.mxu0 0
  %1322 = vmatmul.mubr.bf16.gmra.mrb[0].mxu0 %v1201
  %v1323 = vpop.f32.mrb[0].mxu0
  %v1324 = vadd.f32 %v1188, %v1323
  %v1325 = vpop.f32.mrb[0].mxu0
  %v1326 = vadd.f32 %v1188, %v1325
  %v1327 = vpop.f32.mrb[0].mxu0
  %v1328 = vadd.f32 %v1193, %v1327
  %v1329 = vpop.f32.mrb[0].mxu0
  %v1330 = vadd.f32 %v1193, %v1329
  %1331 = vdwg.mxu0
  %v1332 = vld [vmem:[#allocation3] sm:$0xff]
  %v1333 = vld [vmem:[#allocation3 + $0x8] sm:$0xff]
  %v1334 = vld [vmem:[#allocation3 + $0x10] sm:$0xff]
  %v1335 = vld [vmem:[#allocation3 + $0x18] sm:$0xff]
  %v1336 = vld [vmem:[#allocation3 + $0x20] sm:$0xff]
  %v1337 = vld [vmem:[#allocation3 + $0x28] sm:$0xff]
  %v1338 = vld [vmem:[#allocation3 + $0x30] sm:$0xff]
  %v1339 = vld [vmem:[#allocation3 + $0x38] sm:$0xff]
  %v1340 = vld [vmem:[#allocation3 + $0x40] sm:$0xff]
  %v1341 = vld [vmem:[#allocation3 + $0x48] sm:$0xff]
  %v1342 = vld [vmem:[#allocation3 + $0x50] sm:$0xff]
  %v1343 = vld [vmem:[#allocation3 + $0x58] sm:$0xff]
  %v1344 = vld [vmem:[#allocation3 + $0x60] sm:$0xff]
  %v1345 = vld [vmem:[#allocation3 + $0x68] sm:$0xff]
  %v1346 = vld [vmem:[#allocation3 + $0x70] sm:$0xff]
  %v1347 = vld [vmem:[#allocation3 + $0x78] sm:$0xff]
  %v1348 = vpack.c.bf16 %v1340, %v1332
  %v1349 = vpack.c.bf16 %v1341, %v1333
  %v1350 = vpack.c.bf16 %v1342, %v1334
  %v1351 = vpack.c.bf16 %v1343, %v1335
  %v1352 = vpack.c.bf16 %v1344, %v1336
  %v1353 = vpack.c.bf16 %v1345, %v1337
  %v1354 = vpack.c.bf16 %v1346, %v1338
  %1362 = vrot.lane.b32.xlu0 %v1348, 19
  %v1363 = vpop.permute.xlu0 %1362
  %1364 = vrot.lane.b32.xlu0 %v1349, 19
  %v1365 = vpop.permute.xlu0 %1364
  %1366 = vrot.lane.b32.xlu0 %v1350, 19
  %v1367 = vpop.permute.xlu0 %1366
  %1368 = vrot.lane.b32.xlu0 %v1351, 19
  %v1369 = vpop.permute.xlu0 %1368
  %1370 = vrot.lane.b32.xlu0 %v1352, 19
  %v1371 = vpop.permute.xlu0 %1370
  %1372 = vrot.lane.b32.xlu0 %v1353, 19
  %v1373 = vpop.permute.xlu0 %1372
  %1374 = vrot.lane.b32.xlu0 %v1354, 19
  %v1375 = vpop.permute.xlu0 %1374
  %v1376 = vsel %vm84, %v1363, %v1365
  %v1377 = vsel %vm84, %v1365, %v1367
  %v1378 = vsel %vm84, %v1367, %v1369
  %v1379 = vsel %vm84, %v1369, %v1371
  %v1380 = vsel %vm84, %v1371, %v1373
  %v1381 = vsel %vm84, %v1373, %v1375
  %1388 = vst [vmem:[#allocation4] sm:$0xff] %v1376
  %1389 = vst [vmem:[#allocation4 + $0x8] sm:$0xff] %v1377
  %1390 = vst [vmem:[#allocation4 + $0x10] sm:$0xff] %v1378
  %1391 = vst [vmem:[#allocation4 + $0x18] sm:$0xff] %v1379
  %1392 = vst [vmem:[#allocation4 + $0x20] sm:$0xff] %v1380
  %1393 = vst [vmem:[#allocation4 + $0x28] sm:$0xff] %v1381
  %1394 = vrot.lane.b32.xlu0 %v1348, 18
  %v1395 = vpop.permute.xlu0 %1394
  %1396 = vrot.lane.b32.xlu0 %v1349, 18
  %v1397 = vpop.permute.xlu0 %1396
  %1398 = vrot.lane.b32.xlu0 %v1350, 18
  %v1399 = vpop.permute.xlu0 %1398
  %1400 = vrot.lane.b32.xlu0 %v1351, 18
  %v1401 = vpop.permute.xlu0 %1400
  %1402 = vrot.lane.b32.xlu0 %v1352, 18
  %v1403 = vpop.permute.xlu0 %1402
  %1404 = vrot.lane.b32.xlu0 %v1353, 18
  %v1405 = vpop.permute.xlu0 %1404
  %1406 = vrot.lane.b32.xlu0 %v1354, 18
  %v1407 = vpop.permute.xlu0 %1406
  %v1408 = vsel %vm117, %v1395, %v1397
  %v1409 = vsel %vm117, %v1397, %v1399
  %v1410 = vsel %vm117, %v1399, %v1401
  %v1411 = vsel %vm117, %v1401, %v1403
  %v1412 = vsel %vm117, %v1403, %v1405
  %v1413 = vsel %vm117, %v1405, %v1407
  %1420 = vst [vmem:[#allocation4 + $0x30] sm:$0xff] %v1408
  %1421 = vst [vmem:[#allocation4 + $0x38] sm:$0xff] %v1409
  %1422 = vst [vmem:[#allocation4 + $0x40] sm:$0xff] %v1410
  %1423 = vst [vmem:[#allocation4 + $0x48] sm:$0xff] %v1411
  %1424 = vst [vmem:[#allocation4 + $0x50] sm:$0xff] %v1412
  %1425 = vst [vmem:[#allocation4 + $0x58] sm:$0xff] %v1413
  %1426 = vrot.lane.b32.xlu0 %v1348, 17
  %v1427 = vpop.permute.xlu0 %1426
  %1428 = vrot.lane.b32.xlu0 %v1349, 17
  %v1429 = vpop.permute.xlu0 %1428
  %1430 = vrot.lane.b32.xlu0 %v1350, 17
  %v1431 = vpop.permute.xlu0 %1430
  %1432 = vrot.lane.b32.xlu0 %v1351, 17
  %v1433 = vpop.permute.xlu0 %1432
  %1434 = vrot.lane.b32.xlu0 %v1352, 17
  %v1435 = vpop.permute.xlu0 %1434
  %1436 = vrot.lane.b32.xlu0 %v1353, 17
  %v1437 = vpop.permute.xlu0 %1436
  %1438 = vrot.lane.b32.xlu0 %v1354, 17
  %v1439 = vpop.permute.xlu0 %1438
  %v1440 = vsel %vm150, %v1427, %v1429
  %v1441 = vsel %vm150, %v1429, %v1431
  %v1442 = vsel %vm150, %v1431, %v1433
  %v1443 = vsel %vm150, %v1433, %v1435
  %v1444 = vsel %vm150, %v1435, %v1437
  %v1445 = vsel %vm150, %v1437, %v1439
  %1452 = vst [vmem:[#allocation4 + $0x60] sm:$0xff] %v1440
  %1453 = vst [vmem:[#allocation4 + $0x68] sm:$0xff] %v1441
  %1454 = vst [vmem:[#allocation4 + $0x70] sm:$0xff] %v1442
  %1455 = vst [vmem:[#allocation4 + $0x78] sm:$0xff] %v1443
  %1456 = vst [vmem:[#allocation4 + $0x80] sm:$0xff] %v1444
  %1457 = vst [vmem:[#allocation4 + $0x88] sm:$0xff] %v1445
  %1458 = vrot.lane.b32.xlu0 %v1348, 1
  %v1459 = vpop.permute.xlu0 %1458
  %1460 = vrot.lane.b32.xlu0 %v1349, 1
  %v1461 = vpop.permute.xlu0 %1460
  %1462 = vrot.lane.b32.xlu0 %v1350, 1
  %v1463 = vpop.permute.xlu0 %1462
  %1464 = vrot.lane.b32.xlu0 %v1351, 1
  %v1465 = vpop.permute.xlu0 %1464
  %1466 = vrot.lane.b32.xlu0 %v1352, 1
  %v1467 = vpop.permute.xlu0 %1466
  %1468 = vrot.lane.b32.xlu0 %v1353, 1
  %v1469 = vpop.permute.xlu0 %1468
  %1470 = vrot.lane.b32.xlu0 %v1354, 1
  %v1471 = vpop.permute.xlu0 %1470
  %v1472 = vsel %vm183, %v1459, %v1461
  %v1473 = vsel %vm183, %v1461, %v1463
  %v1474 = vsel %vm183, %v1463, %v1465
  %v1475 = vsel %vm183, %v1465, %v1467
  %v1476 = vsel %vm183, %v1467, %v1469
  %v1477 = vsel %vm183, %v1469, %v1471
  %1484 = vst [vmem:[#allocation4 + $0x90] sm:$0xff] %v1472
  %1485 = vst [vmem:[#allocation4 + $0x98] sm:$0xff] %v1473
  %1486 = vst [vmem:[#allocation4 + $0xa0] sm:$0xff] %v1474
  %1487 = vst [vmem:[#allocation4 + $0xa8] sm:$0xff] %v1475
  %1488 = vst [vmem:[#allocation4 + $0xb0] sm:$0xff] %v1476
  %1489 = vst [vmem:[#allocation4 + $0xb8] sm:$0xff] %v1477
  %1490 = vst [vmem:[#allocation4 + $0xc0] sm:$0xff] %v1349
  %1491 = vst [vmem:[#allocation4 + $0xc8] sm:$0xff] %v1350
  %1492 = vst [vmem:[#allocation4 + $0xd0] sm:$0xff] %v1351
  %1493 = vst [vmem:[#allocation4 + $0xd8] sm:$0xff] %v1352
  %1494 = vst [vmem:[#allocation4 + $0xe0] sm:$0xff] %v1353
  %1495 = vst [vmem:[#allocation4 + $0xe8] sm:$0xff] %v1354
  %v1496 = vpack.c.bf16 %v1347, %v1339
  %1498 = vrot.lane.b32.xlu0 %v1349, 127
  %v1499 = vpop.permute.xlu0 %1498
  %1500 = vrot.lane.b32.xlu0 %v1350, 127
  %v1501 = vpop.permute.xlu0 %1500
  %1502 = vrot.lane.b32.xlu0 %v1351, 127
  %v1503 = vpop.permute.xlu0 %1502
  %1504 = vrot.lane.b32.xlu0 %v1352, 127
  %v1505 = vpop.permute.xlu0 %1504
  %1506 = vrot.lane.b32.xlu0 %v1353, 127
  %v1507 = vpop.permute.xlu0 %1506
  %1508 = vrot.lane.b32.xlu0 %v1354, 127
  %v1509 = vpop.permute.xlu0 %1508
  %1510 = vrot.lane.b32.xlu0 %v1496, 127
  %v1511 = vpop.permute.xlu0 %1510
  %v1512 = vsel %vm224, %v1499, %v1501
  %v1513 = vsel %vm224, %v1501, %v1503
  %v1514 = vsel %vm224, %v1503, %v1505
  %v1515 = vsel %vm224, %v1505, %v1507
  %v1516 = vsel %vm224, %v1507, %v1509
  %v1517 = vsel %vm224, %v1509, %v1511
  %1524 = vst [vmem:[#allocation4 + $0xf0] sm:$0xff] %v1512
  %1525 = vst [vmem:[#allocation4 + $0xf8] sm:$0xff] %v1513
  %1526 = vst [vmem:[#allocation4 + $0x100] sm:$0xff] %v1514
  %1527 = vst [vmem:[#allocation4 + $0x108] sm:$0xff] %v1515
  %1528 = vst [vmem:[#allocation4 + $0x110] sm:$0xff] %v1516
  %1529 = vst [vmem:[#allocation4 + $0x118] sm:$0xff] %v1517
  %1530 = vrot.lane.b32.xlu0 %v1349, 111
  %v1531 = vpop.permute.xlu0 %1530
  %1532 = vrot.lane.b32.xlu0 %v1350, 111
  %v1533 = vpop.permute.xlu0 %1532
  %1534 = vrot.lane.b32.xlu0 %v1351, 111
  %v1535 = vpop.permute.xlu0 %1534
  %1536 = vrot.lane.b32.xlu0 %v1352, 111
  %v1537 = vpop.permute.xlu0 %1536
  %1538 = vrot.lane.b32.xlu0 %v1353, 111
  %v1539 = vpop.permute.xlu0 %1538
  %1540 = vrot.lane.b32.xlu0 %v1354, 111
  %v1541 = vpop.permute.xlu0 %1540
  %1542 = vrot.lane.b32.xlu0 %v1496, 111
  %v1543 = vpop.permute.xlu0 %1542
  %v1544 = vsel %vm257, %v1531, %v1533
  %v1545 = vsel %vm257, %v1533, %v1535
  %v1546 = vsel %vm257, %v1535, %v1537
  %v1547 = vsel %vm257, %v1537, %v1539
  %v1548 = vsel %vm257, %v1539, %v1541
  %v1549 = vsel %vm257, %v1541, %v1543
  %1556 = vst [vmem:[#allocation4 + $0x120] sm:$0xff] %v1544
  %1557 = vst [vmem:[#allocation4 + $0x128] sm:$0xff] %v1545
  %1558 = vst [vmem:[#allocation4 + $0x130] sm:$0xff] %v1546
  %1559 = vst [vmem:[#allocation4 + $0x138] sm:$0xff] %v1547
  %1560 = vst [vmem:[#allocation4 + $0x140] sm:$0xff] %v1548
  %1561 = vst [vmem:[#allocation4 + $0x148] sm:$0xff] %v1549
  %1562 = vrot.lane.b32.xlu0 %v1349, 110
  %v1563 = vpop.permute.xlu0 %1562
  %1564 = vrot.lane.b32.xlu0 %v1350, 110
  %v1565 = vpop.permute.xlu0 %1564
  %1566 = vrot.lane.b32.xlu0 %v1351, 110
  %v1567 = vpop.permute.xlu0 %1566
  %1568 = vrot.lane.b32.xlu0 %v1352, 110
  %v1569 = vpop.permute.xlu0 %1568
  %1570 = vrot.lane.b32.xlu0 %v1353, 110
  %v1571 = vpop.permute.xlu0 %1570
  %1572 = vrot.lane.b32.xlu0 %v1354, 110
  %v1573 = vpop.permute.xlu0 %1572
  %1574 = vrot.lane.b32.xlu0 %v1496, 110
  %v1575 = vpop.permute.xlu0 %1574
  %v1576 = vsel %vm290, %v1563, %v1565
  %v1577 = vsel %vm290, %v1565, %v1567
  %v1578 = vsel %vm290, %v1567, %v1569
  %v1579 = vsel %vm290, %v1569, %v1571
  %v1580 = vsel %vm290, %v1571, %v1573
  %v1581 = vsel %vm290, %v1573, %v1575
  %1588 = vst [vmem:[#allocation4 + $0x150] sm:$0xff] %v1576
  %1589 = vst [vmem:[#allocation4 + $0x158] sm:$0xff] %v1577
  %1590 = vst [vmem:[#allocation4 + $0x160] sm:$0xff] %v1578
  %1591 = vst [vmem:[#allocation4 + $0x168] sm:$0xff] %v1579
  %1592 = vst [vmem:[#allocation4 + $0x170] sm:$0xff] %v1580
  %1593 = vst [vmem:[#allocation4 + $0x178] sm:$0xff] %v1581
  %1594 = vrot.lane.b32.xlu0 %v1349, 109
  %v1595 = vpop.permute.xlu0 %1594
  %1596 = vrot.lane.b32.xlu0 %v1350, 109
  %v1597 = vpop.permute.xlu0 %1596
  %1598 = vrot.lane.b32.xlu0 %v1351, 109
  %v1599 = vpop.permute.xlu0 %1598
  %1600 = vrot.lane.b32.xlu0 %v1352, 109
  %v1601 = vpop.permute.xlu0 %1600
  %1602 = vrot.lane.b32.xlu0 %v1353, 109
  %v1603 = vpop.permute.xlu0 %1602
  %1604 = vrot.lane.b32.xlu0 %v1354, 109
  %v1605 = vpop.permute.xlu0 %1604
  %1606 = vrot.lane.b32.xlu0 %v1496, 109
  %v1607 = vpop.permute.xlu0 %1606
  %v1608 = vsel %vm323, %v1595, %v1597
  %v1609 = vsel %vm323, %v1597, %v1599
  %v1610 = vsel %vm323, %v1599, %v1601
  %v1611 = vsel %vm323, %v1601, %v1603
  %v1612 = vsel %vm323, %v1603, %v1605
  %v1613 = vsel %vm323, %v1605, %v1607
  %1620 = vst [vmem:[#allocation4 + $0x180] sm:$0xff] %v1608
  %1621 = vst [vmem:[#allocation4 + $0x188] sm:$0xff] %v1609
  %1622 = vst [vmem:[#allocation4 + $0x190] sm:$0xff] %v1610
  %1623 = vst [vmem:[#allocation4 + $0x198] sm:$0xff] %v1611
  %1624 = vst [vmem:[#allocation4 + $0x1a0] sm:$0xff] %v1612
  %1625 = vst [vmem:[#allocation4 + $0x1a8] sm:$0xff] %v1613
  %v1626 = vld [vmem:[%s2 + $0x30] sm:$0xff]
  %v1627 = vld [vmem:[%s2 + $0x3c] sm:$0xff]
  %v1628 = vld [vmem:[#allocation4] sm:$0xff]
  %v1629 = vld [vmem:[#allocation4 + $0x8] sm:$0xff]
  %v1630 = vld [vmem:[#allocation4 + $0x10] sm:$0xff]
  %v1631 = vld [vmem:[#allocation4 + $0x18] sm:$0xff]
  %v1632 = vld [vmem:[#allocation4 + $0x20] sm:$0xff]
  %v1633 = vld [vmem:[#allocation4 + $0x28] sm:$0xff]
  %v1634 = vld [vmem:[#allocation4 + $0x30] sm:$0xff]
  %v1635 = vld [vmem:[#allocation4 + $0x38] sm:$0xff]
  %v1636 = vld [vmem:[#allocation4 + $0x40] sm:$0xff]
  %v1637 = vld [vmem:[#allocation4 + $0x48] sm:$0xff]
  %v1638 = vld [vmem:[#allocation4 + $0x50] sm:$0xff]
  %v1639 = vld [vmem:[#allocation4 + $0x58] sm:$0xff]
  %v1640 = vld [vmem:[#allocation4 + $0x60] sm:$0xff]
  %v1641 = vld [vmem:[#allocation4 + $0x68] sm:$0xff]
  %v1642 = vld [vmem:[#allocation4 + $0x70] sm:$0xff]
  %v1643 = vld [vmem:[#allocation4 + $0x78] sm:$0xff]
  %v1644 = vld [vmem:[#allocation4 + $0x80] sm:$0xff]
  %v1645 = vld [vmem:[#allocation4 + $0x88] sm:$0xff]
  %v1646 = vld [vmem:[#allocation4 + $0x90] sm:$0xff]
  %v1647 = vld [vmem:[#allocation4 + $0x98] sm:$0xff]
  %v1648 = vld [vmem:[#allocation4 + $0xa0] sm:$0xff]
  %v1649 = vld [vmem:[#allocation4 + $0xa8] sm:$0xff]
  %v1650 = vld [vmem:[#allocation4 + $0xb0] sm:$0xff]
  %v1651 = vld [vmem:[#allocation4 + $0xb8] sm:$0xff]
  %v1652 = vld [vmem:[#allocation4 + $0xc0] sm:$0xff]
  %v1653 = vld [vmem:[#allocation4 + $0xc8] sm:$0xff]
  %v1654 = vld [vmem:[#allocation4 + $0xd0] sm:$0xff]
  %v1655 = vld [vmem:[#allocation4 + $0xd8] sm:$0xff]
  %v1656 = vld [vmem:[#allocation4 + $0xe0] sm:$0xff]
  %v1657 = vld [vmem:[#allocation4 + $0xe8] sm:$0xff]
  %v1658 = vld [vmem:[#allocation4 + $0xf0] sm:$0xff]
  %v1659 = vld [vmem:[#allocation4 + $0xf8] sm:$0xff]
  %v1660 = vld [vmem:[#allocation4 + $0x100] sm:$0xff]
  %v1661 = vld [vmem:[#allocation4 + $0x108] sm:$0xff]
  %v1662 = vld [vmem:[#allocation4 + $0x110] sm:$0xff]
  %v1663 = vld [vmem:[#allocation4 + $0x118] sm:$0xff]
  %v1664 = vld [vmem:[#allocation4 + $0x120] sm:$0xff]
  %v1665 = vld [vmem:[#allocation4 + $0x128] sm:$0xff]
  %v1666 = vld [vmem:[#allocation4 + $0x130] sm:$0xff]
  %v1667 = vld [vmem:[#allocation4 + $0x138] sm:$0xff]
  %v1668 = vld [vmem:[#allocation4 + $0x140] sm:$0xff]
  %v1669 = vld [vmem:[#allocation4 + $0x148] sm:$0xff]
  %v1670 = vld [vmem:[#allocation4 + $0x150] sm:$0xff]
  %v1671 = vld [vmem:[#allocation4 + $0x158] sm:$0xff]
  %v1672 = vld [vmem:[#allocation4 + $0x160] sm:$0xff]
  %v1673 = vld [vmem:[#allocation4 + $0x168] sm:$0xff]
  %v1674 = vld [vmem:[#allocation4 + $0x170] sm:$0xff]
  %v1675 = vld [vmem:[#allocation4 + $0x178] sm:$0xff]
  %v1676 = vld [vmem:[#allocation4 + $0x180] sm:$0xff]
  %v1677 = vld [vmem:[#allocation4 + $0x188] sm:$0xff]
  %v1678 = vld [vmem:[#allocation4 + $0x190] sm:$0xff]
  %v1679 = vld [vmem:[#allocation4 + $0x198] sm:$0xff]
  %v1680 = vld [vmem:[#allocation4 + $0x1a0] sm:$0xff]
  %v1681 = vld [vmem:[#allocation4 + $0x1a8] sm:$0xff]
  %v1682 = vld [vmem:[%s3 + $0x20] sm:$0xff]
  %v1683 = vld [vmem:[%s3 + $0x28] sm:$0xff]
  %1685 = vset.pattern.permute.xlu0 0
  %1686 = vperm.xlu0 %1685, %v1682
  %v1687 = vpop.permute.xlu0 %1686
  %1690 = vset.pattern.permute.xlu0 0
  %1691 = vperm.xlu0 %1690, %v1683
  %v1692 = vpop.permute.xlu0 %1691
  %v1696 = vunpack.c.l.b16 %v1626
  %v1697 = vunpack.c.h.b16 %v1626
  %v1698 = vunpack.c.l.b16 %v1627
  %v1699 = vunpack.c.h.b16 %v1627
  %v1700 = vpack.c.b16 %v1698, %v1696
  %v1701 = vpack.c.b16 %v1699, %v1697
  %v1704 = vsel %vm419, %v1701, 0
  %1706 = vmatprep.subr.bf16.mxu0 %v1629
  %1707 = vmatpush1.bf16.msra.mxu0 %v1628
  %1708 = vmatprep.subr.bf16.mxu0 %v1635
  %1709 = vmatpush1.bf16.msra.mxu0 %v1634
  %1710 = vmatprep.subr.bf16.mxu0 %v1641
  %1711 = vmatpush1.bf16.msra.mxu0 %v1640
  %1712 = vmatprep.subr.bf16.mxu0 %v1647
  %1713 = vmatpush1.bf16.msra.mxu0 %v1646
  %1714 = vmatprep.subr.bf16.mxu0 %v1653
  %1715 = vmatpush1.bf16.msra.mxu0 %v1652
  %1716 = vmatprep.subr.bf16.mxu0 %v1659
  %1717 = vmatpush1.bf16.msra.mxu0 %v1658
  %1718 = vmatprep.subr.bf16.mxu0 %v1665
  %1719 = vmatpush1.bf16.msra.mxu0 %v1664
  %1720 = vmatprep.subr.bf16.mxu0 %v1671
  %1721 = vmatpush1.bf16.msra.mxu0 %v1670
  %1722 = vmatprep.subr.bf16.mxu0 %v1677
  %1723 = vmatpush1.bf16.msra.mxu0 %v1676
  %1724 = vmatprep.subr.bf16.mxu0 0
  %1725 = vmatpush1.bf16.msra.mxu0 0
  %1726 = vmatprep.subr.bf16.mxu0 0
  %1727 = vmatpush1.bf16.msra.mxu0 0
  %1728 = vmatprep.subr.bf16.mxu0 0
  %1729 = vmatpush1.bf16.msra.mxu0 0
  %1730 = vmatprep.subr.bf16.mxu0 0
  %1731 = vmatpush1.bf16.msra.mxu0 0
  %1732 = vmatprep.subr.bf16.mxu0 0
  %1733 = vmatpush1.bf16.msra.mxu0 0
  %1734 = vmatprep.subr.bf16.mxu0 0
  %1735 = vmatpush1.bf16.msra.mxu0 0
  %1736 = vmatprep.subr.bf16.mxu0 0
  %1737 = vmatpush1.bf16.msra.mxu0 0
  %1738 = vmatprep.mubr.bf16.mxu0 %v1704
  %1739 = vmatmul.mubr.bf16.gmra.mrb[0].mxu0 %v1700
  %v1740 = vpop.f32.mrb[0].mxu0
  %v1741 = vadd.f32 %v1687, %v1740
  %v1742 = vpop.f32.mrb[0].mxu0
  %v1743 = vadd.f32 %v1687, %v1742
  %v1744 = vpop.f32.mrb[0].mxu0
  %v1745 = vadd.f32 %v1692, %v1744
  %v1746 = vpop.f32.mrb[0].mxu0
  %v1747 = vadd.f32 %v1692, %v1746
  %1748 = vdwg.mxu0
  %1749 = vmatprep.subr.bf16.mxu0 %v1631
  %1750 = vmatpush1.bf16.msra.mxu0 %v1630
  %1751 = vmatprep.subr.bf16.mxu0 %v1637
  %1752 = vmatpush1.bf16.msra.mxu0 %v1636
  %1753 = vmatprep.subr.bf16.mxu0 %v1643
  %1754 = vmatpush1.bf16.msra.mxu0 %v1642
  %1755 = vmatprep.subr.bf16.mxu0 %v1649
  %1756 = vmatpush1.bf16.msra.mxu0 %v1648
  %1757 = vmatprep.subr.bf16.mxu0 %v1655
  %1758 = vmatpush1.bf16.msra.mxu0 %v1654
  %1759 = vmatprep.subr.bf16.mxu0 %v1661
  %1760 = vmatpush1.bf16.msra.mxu0 %v1660
  %1761 = vmatprep.subr.bf16.mxu0 %v1667
  %1762 = vmatpush1.bf16.msra.mxu0 %v1666
  %1763 = vmatprep.subr.bf16.mxu0 %v1673
  %1764 = vmatpush1.bf16.msra.mxu0 %v1672
  %1765 = vmatprep.subr.bf16.mxu0 %v1679
  %1766 = vmatpush1.bf16.msra.mxu0 %v1678
  %1767 = vmatprep.subr.bf16.mxu0 0
  %1768 = vmatpush1.bf16.msra.mxu0 0
  %1769 = vmatprep.subr.bf16.mxu0 0
  %1770 = vmatpush1.bf16.msra.mxu0 0
  %1771 = vmatprep.subr.bf16.mxu0 0
  %1772 = vmatpush1.bf16.msra.mxu0 0
  %1773 = vmatprep.subr.bf16.mxu0 0
  %1774 = vmatpush1.bf16.msra.mxu0 0
  %1775 = vmatprep.subr.bf16.mxu0 0
  %1776 = vmatpush1.bf16.msra.mxu0 0
  %1777 = vmatprep.subr.bf16.mxu0 0
  %1778 = vmatpush1.bf16.msra.mxu0 0
  %1779 = vmatprep.subr.bf16.mxu0 0
  %1780 = vmatpush1.bf16.msra.mxu0 0
  %1781 = vmatprep.mubr.bf16.mxu0 %v1704
  %1782 = vmatmul.mubr.bf16.gmra.mrb[0].mxu0 %v1700
  %v1783 = vpop.f32.mrb[0].mxu0
  %v1784 = vadd.f32 %v1687, %v1783
  %v1785 = vpop.f32.mrb[0].mxu0
  %v1786 = vadd.f32 %v1687, %v1785
  %v1787 = vpop.f32.mrb[0].mxu0
  %v1788 = vadd.f32 %v1692, %v1787
  %v1789 = vpop.f32.mrb[0].mxu0
  %v1790 = vadd.f32 %v1692, %v1789
  %1791 = vdwg.mxu0
  %1792 = vmatprep.subr.bf16.mxu0 %v1633
  %1793 = vmatpush1.bf16.msra.mxu0 %v1632
  %1794 = vmatprep.subr.bf16.mxu0 %v1639
  %1795 = vmatpush1.bf16.msra.mxu0 %v1638
  %1796 = vmatprep.subr.bf16.mxu0 %v1645
  %1797 = vmatpush1.bf16.msra.mxu0 %v1644
  %1798 = vmatprep.subr.bf16.mxu0 %v1651
  %1799 = vmatpush1.bf16.msra.mxu0 %v1650
  %1800 = vmatprep.subr.bf16.mxu0 %v1657
  %1801 = vmatpush1.bf16.msra.mxu0 %v1656
  %1802 = vmatprep.subr.bf16.mxu0 %v1663
  %1803 = vmatpush1.bf16.msra.mxu0 %v1662
  %1804 = vmatprep.subr.bf16.mxu0 %v1669
  %1805 = vmatpush1.bf16.msra.mxu0 %v1668
  %1806 = vmatprep.subr.bf16.mxu0 %v1675
  %1807 = vmatpush1.bf16.msra.mxu0 %v1674
  %1808 = vmatprep.subr.bf16.mxu0 %v1681
  %1809 = vmatpush1.bf16.msra.mxu0 %v1680
  %1810 = vmatprep.subr.bf16.mxu0 0
  %1811 = vmatpush1.bf16.msra.mxu0 0
  %1812 = vmatprep.subr.bf16.mxu0 0
  %1813 = vmatpush1.bf16.msra.mxu0 0
  %1814 = vmatprep.subr.bf16.mxu0 0
  %1815 = vmatpush1.bf16.msra.mxu0 0
  %1816 = vmatprep.subr.bf16.mxu0 0
  %1817 = vmatpush1.bf16.msra.mxu0 0
  %1818 = vmatprep.subr.bf16.mxu0 0
  %1819 = vmatpush1.bf16.msra.mxu0 0
  %1820 = vmatprep.subr.bf16.mxu0 0
  %1821 = vmatpush1.bf16.msra.mxu0 0
  %1822 = vmatprep.subr.bf16.mxu0 0
  %1823 = vmatpush1.bf16.msra.mxu0 0
  %1824 = vmatprep.mubr.bf16.mxu0 %v1704
  %1825 = vmatmul.mubr.bf16.gmra.mrb[0].mxu0 %v1700
  %v1826 = vpop.f32.mrb[0].mxu0
  %v1827 = vadd.f32 %v1687, %v1826
  %v1828 = vpop.f32.mrb[0].mxu0
  %v1829 = vadd.f32 %v1687, %v1828
  %v1830 = vpop.f32.mrb[0].mxu0
  %v1831 = vadd.f32 %v1692, %v1830
  %v1832 = vpop.f32.mrb[0].mxu0
  %v1833 = vadd.f32 %v1692, %v1832
  %1834 = vdwg.mxu0
  %v1835 = vadd.f32 %v1741, %v1238
  %v1836 = vadd.f32 %v1743, %v1240
  %v1837 = vadd.f32 %v1784, %v1281
  %v1838 = vadd.f32 %v1786, %v1283
  %v1839 = vadd.f32 %v1827, %v1324
  %v1840 = vadd.f32 %v1829, %v1326
  %v1841 = vadd.f32 %v1745, %v1242
  %v1842 = vadd.f32 %v1747, %v1244
  %v1843 = vadd.f32 %v1788, %v1285
  %v1844 = vadd.f32 %v1790, %v1287
  %v1845 = vadd.f32 %v1831, %v1328
  %v1846 = vadd.f32 %v1833, %v1330
  %v1847 = vmax.f32 %v1835, 0.0
  %v1848 = vmax.f32 %v1836, 0.0
  %v1849 = vmax.f32 %v1837, 0.0
  %v1850 = vmax.f32 %v1838, 0.0
  %v1851 = vmax.f32 %v1839, 0.0
  %v1852 = vmax.f32 %v1840, 0.0
  %v1853 = vmax.f32 %v1841, 0.0
  %v1854 = vmax.f32 %v1842, 0.0
  %v1855 = vmax.f32 %v1843, 0.0
  %v1856 = vmax.f32 %v1844, 0.0
  %v1857 = vmax.f32 %v1845, 0.0
  %v1858 = vmax.f32 %v1846, 0.0
  %v1859 = vmul.f32 %v1847, %v579
  %v1860 = vmul.f32 %v1848, %v583
  %v1861 = vmul.f32 %v1849, %v587
  %v1862 = vmul.f32 %v1850, %v591
  %v1863 = vmul.f32 %v1851, %v595
  %v1864 = vmul.f32 %v1852, %v599
  %v1865 = vmul.f32 %v1853, %v579
  %v1866 = vmul.f32 %v1854, %v583
  %v1867 = vmul.f32 %v1855, %v587
  %v1868 = vmul.f32 %v1856, %v591
  %v1869 = vmul.f32 %v1857, %v595
  %v1870 = vmul.f32 %v1858, %v599
  %1871 = vst [vmem:[#allocation2 + $0x8] sm:$0xff] %v1859
  %1872 = vst [vmem:[#allocation2 + $0x10] sm:$0xff] %v1860
  %1873 = vst [vmem:[#allocation2 + $0x18] sm:$0xff] %v1861
  %1874 = vst [vmem:[#allocation2 + $0x20] sm:$0xff] %v1862
  %1875 = vst [vmem:[#allocation2 + $0x28] sm:$0xff] %v1863
  %1876 = vst [vmem:[#allocation2 + $0x30] sm:$0xff] %v1864
  %1877 = vst [vmem:[#allocation2 + $0x48] sm:$0xff] %v1865
  %1878 = vst [vmem:[#allocation2 + $0x50] sm:$0xff] %v1866
  %1879 = vst [vmem:[#allocation2 + $0x58] sm:$0xff] %v1867
  %1880 = vst [vmem:[#allocation2 + $0x60] sm:$0xff] %v1868
  %1881 = vst [vmem:[#allocation2 + $0x68] sm:$0xff] %v1869
  %1882 = vst [vmem:[#allocation2 + $0x70] sm:$0xff] %v1870
  %v1883 = vld [vmem:[#allocation2] sm:$0xff]
  %v1884 = vld [vmem:[#allocation2 + $0x8] sm:$0xff]
  %v1885 = vld [vmem:[#allocation2 + $0x10] sm:$0xff]
  %v1886 = vld [vmem:[#allocation2 + $0x18] sm:$0xff]
  %v1887 = vld [vmem:[#allocation2 + $0x20] sm:$0xff]
  %v1888 = vld [vmem:[#allocation2 + $0x28] sm:$0xff]
  %v1889 = vld [vmem:[#allocation2 + $0x30] sm:$0xff]
  %v1890 = vld [vmem:[#allocation2 + $0x38] sm:$0xff]
  %v1891 = vld [vmem:[#allocation2 + $0x40] sm:$0xff]
  %v1892 = vld [vmem:[#allocation2 + $0x48] sm:$0xff]
  %v1893 = vld [vmem:[#allocation2 + $0x50] sm:$0xff]
  %v1894 = vld [vmem:[#allocation2 + $0x58] sm:$0xff]
  %v1895 = vld [vmem:[#allocation2 + $0x60] sm:$0xff]
  %v1896 = vld [vmem:[#allocation2 + $0x68] sm:$0xff]
  %v1897 = vld [vmem:[#allocation2 + $0x70] sm:$0xff]
  %v1898 = vld [vmem:[#allocation2 + $0x78] sm:$0xff]
  %v1899 = vpack.c.bf16 %v1891, %v1883
  %v1900 = vpack.c.bf16 %v1892, %v1884
  %v1901 = vpack.c.bf16 %v1893, %v1885
  %v1902 = vpack.c.bf16 %v1894, %v1886
  %v1903 = vpack.c.bf16 %v1895, %v1887
  %v1904 = vpack.c.bf16 %v1896, %v1888
  %v1905 = vpack.c.bf16 %v1897, %v1889
  %1913 = vrot.lane.b32.xlu0 %v1899, 19
  %v1914 = vpop.permute.xlu0 %1913
  %1915 = vrot.lane.b32.xlu0 %v1900, 19
  %v1916 = vpop.permute.xlu0 %1915
  %1917 = vrot.lane.b32.xlu0 %v1901, 19
  %v1918 = vpop.permute.xlu0 %1917
  %1919 = vrot.lane.b32.xlu0 %v1902, 19
  %v1920 = vpop.permute.xlu0 %1919
  %1921 = vrot.lane.b32.xlu0 %v1903, 19
  %v1922 = vpop.permute.xlu0 %1921
  %1923 = vrot.lane.b32.xlu0 %v1904, 19
  %v1924 = vpop.permute.xlu0 %1923
  %1925 = vrot.lane.b32.xlu0 %v1905, 19
  %v1926 = vpop.permute.xlu0 %1925
  %v1927 = vsel %vm84, %v1914, %v1916
  %v1928 = vsel %vm84, %v1916, %v1918
  %v1929 = vsel %vm84, %v1918, %v1920
  %v1930 = vsel %vm84, %v1920, %v1922
  %v1931 = vsel %vm84, %v1922, %v1924
  %v1932 = vsel %vm84, %v1924, %v1926
  %1939 = vst [vmem:[#allocation4] sm:$0xff] %v1927
  %1940 = vst [vmem:[#allocation4 + $0x8] sm:$0xff] %v1928
  %1941 = vst [vmem:[#allocation4 + $0x10] sm:$0xff] %v1929
  %1942 = vst [vmem:[#allocation4 + $0x18] sm:$0xff] %v1930
  %1943 = vst [vmem:[#allocation4 + $0x20] sm:$0xff] %v1931
  %1944 = vst [vmem:[#allocation4 + $0x28] sm:$0xff] %v1932
  %1945 = vrot.lane.b32.xlu0 %v1899, 18
  %v1946 = vpop.permute.xlu0 %1945
  %1947 = vrot.lane.b32.xlu0 %v1900, 18
  %v1948 = vpop.permute.xlu0 %1947
  %1949 = vrot.lane.b32.xlu0 %v1901, 18
  %v1950 = vpop.permute.xlu0 %1949
  %1951 = vrot.lane.b32.xlu0 %v1902, 18
  %v1952 = vpop.permute.xlu0 %1951
  %1953 = vrot.lane.b32.xlu0 %v1903, 18
  %v1954 = vpop.permute.xlu0 %1953
  %1955 = vrot.lane.b32.xlu0 %v1904, 18
  %v1956 = vpop.permute.xlu0 %1955
  %1957 = vrot.lane.b32.xlu0 %v1905, 18
  %v1958 = vpop.permute.xlu0 %1957
  %v1959 = vsel %vm117, %v1946, %v1948
  %v1960 = vsel %vm117, %v1948, %v1950
  %v1961 = vsel %vm117, %v1950, %v1952
  %v1962 = vsel %vm117, %v1952, %v1954
  %v1963 = vsel %vm117, %v1954, %v1956
  %v1964 = vsel %vm117, %v1956, %v1958
  %1971 = vst [vmem:[#allocation4 + $0x30] sm:$0xff] %v1959
  %1972 = vst [vmem:[#allocation4 + $0x38] sm:$0xff] %v1960
  %1973 = vst [vmem:[#allocation4 + $0x40] sm:$0xff] %v1961
  %1974 = vst [vmem:[#allocation4 + $0x48] sm:$0xff] %v1962
  %1975 = vst [vmem:[#allocation4 + $0x50] sm:$0xff] %v1963
  %1976 = vst [vmem:[#allocation4 + $0x58] sm:$0xff] %v1964
  %1977 = vrot.lane.b32.xlu0 %v1899, 17
  %v1978 = vpop.permute.xlu0 %1977
  %1979 = vrot.lane.b32.xlu0 %v1900, 17
  %v1980 = vpop.permute.xlu0 %1979
  %1981 = vrot.lane.b32.xlu0 %v1901, 17
  %v1982 = vpop.permute.xlu0 %1981
  %1983 = vrot.lane.b32.xlu0 %v1902, 17
  %v1984 = vpop.permute.xlu0 %1983
  %1985 = vrot.lane.b32.xlu0 %v1903, 17
  %v1986 = vpop.permute.xlu0 %1985
  %1987 = vrot.lane.b32.xlu0 %v1904, 17
  %v1988 = vpop.permute.xlu0 %1987
  %1989 = vrot.lane.b32.xlu0 %v1905, 17
  %v1990 = vpop.permute.xlu0 %1989
  %v1991 = vsel %vm150, %v1978, %v1980
  %v1992 = vsel %vm150, %v1980, %v1982
  %v1993 = vsel %vm150, %v1982, %v1984
  %v1994 = vsel %vm150, %v1984, %v1986
  %v1995 = vsel %vm150, %v1986, %v1988
  %v1996 = vsel %vm150, %v1988, %v1990
  %2003 = vst [vmem:[#allocation4 + $0x60] sm:$0xff] %v1991
  %2004 = vst [vmem:[#allocation4 + $0x68] sm:$0xff] %v1992
  %2005 = vst [vmem:[#allocation4 + $0x70] sm:$0xff] %v1993
  %2006 = vst [vmem:[#allocation4 + $0x78] sm:$0xff] %v1994
  %2007 = vst [vmem:[#allocation4 + $0x80] sm:$0xff] %v1995
  %2008 = vst [vmem:[#allocation4 + $0x88] sm:$0xff] %v1996
  %2009 = vrot.lane.b32.xlu0 %v1899, 1
  %v2010 = vpop.permute.xlu0 %2009
  %2011 = vrot.lane.b32.xlu0 %v1900, 1
  %v2012 = vpop.permute.xlu0 %2011
  %2013 = vrot.lane.b32.xlu0 %v1901, 1
  %v2014 = vpop.permute.xlu0 %2013
  %2015 = vrot.lane.b32.xlu0 %v1902, 1
  %v2016 = vpop.permute.xlu0 %2015
  %2017 = vrot.lane.b32.xlu0 %v1903, 1
  %v2018 = vpop.permute.xlu0 %2017
  %2019 = vrot.lane.b32.xlu0 %v1904, 1
  %v2020 = vpop.permute.xlu0 %2019
  %2021 = vrot.lane.b32.xlu0 %v1905, 1
  %v2022 = vpop.permute.xlu0 %2021
  %v2023 = vsel %vm183, %v2010, %v2012
  %v2024 = vsel %vm183, %v2012, %v2014
  %v2025 = vsel %vm183, %v2014, %v2016
  %v2026 = vsel %vm183, %v2016, %v2018
  %v2027 = vsel %vm183, %v2018, %v2020
  %v2028 = vsel %vm183, %v2020, %v2022
  %2035 = vst [vmem:[#allocation4 + $0x90] sm:$0xff] %v2023
  %2036 = vst [vmem:[#allocation4 + $0x98] sm:$0xff] %v2024
  %2037 = vst [vmem:[#allocation4 + $0xa0] sm:$0xff] %v2025
  %2038 = vst [vmem:[#allocation4 + $0xa8] sm:$0xff] %v2026
  %2039 = vst [vmem:[#allocation4 + $0xb0] sm:$0xff] %v2027
  %2040 = vst [vmem:[#allocation4 + $0xb8] sm:$0xff] %v2028
  %2041 = vst [vmem:[#allocation4 + $0xc0] sm:$0xff] %v1900
  %2042 = vst [vmem:[#allocation4 + $0xc8] sm:$0xff] %v1901
  %2043 = vst [vmem:[#allocation4 + $0xd0] sm:$0xff] %v1902
  %2044 = vst [vmem:[#allocation4 + $0xd8] sm:$0xff] %v1903
  %2045 = vst [vmem:[#allocation4 + $0xe0] sm:$0xff] %v1904
  %2046 = vst [vmem:[#allocation4 + $0xe8] sm:$0xff] %v1905
  %v2047 = vpack.c.bf16 %v1898, %v1890
  %2049 = vrot.lane.b32.xlu0 %v1900, 127
  %v2050 = vpop.permute.xlu0 %2049
  %2051 = vrot.lane.b32.xlu0 %v1901, 127
  %v2052 = vpop.permute.xlu0 %2051
  %2053 = vrot.lane.b32.xlu0 %v1902, 127
  %v2054 = vpop.permute.xlu0 %2053
  %2055 = vrot.lane.b32.xlu0 %v1903, 127
  %v2056 = vpop.permute.xlu0 %2055
  %2057 = vrot.lane.b32.xlu0 %v1904, 127
  %v2058 = vpop.permute.xlu0 %2057
  %2059 = vrot.lane.b32.xlu0 %v1905, 127
  %v2060 = vpop.permute.xlu0 %2059
  %2061 = vrot.lane.b32.xlu0 %v2047, 127
  %v2062 = vpop.permute.xlu0 %2061
  %v2063 = vsel %vm224, %v2050, %v2052
  %v2064 = vsel %vm224, %v2052, %v2054
  %v2065 = vsel %vm224, %v2054, %v2056
  %v2066 = vsel %vm224, %v2056, %v2058
  %v2067 = vsel %vm224, %v2058, %v2060
  %v2068 = vsel %vm224, %v2060, %v2062
  %2075 = vst [vmem:[#allocation4 + $0xf0] sm:$0xff] %v2063
  %2076 = vst [vmem:[#allocation4 + $0xf8] sm:$0xff] %v2064
  %2077 = vst [vmem:[#allocation4 + $0x100] sm:$0xff] %v2065
  %2078 = vst [vmem:[#allocation4 + $0x108] sm:$0xff] %v2066
  %2079 = vst [vmem:[#allocation4 + $0x110] sm:$0xff] %v2067
  %2080 = vst [vmem:[#allocation4 + $0x118] sm:$0xff] %v2068
  %2081 = vrot.lane.b32.xlu0 %v1900, 111
  %v2082 = vpop.permute.xlu0 %2081
  %2083 = vrot.lane.b32.xlu0 %v1901, 111
  %v2084 = vpop.permute.xlu0 %2083
  %2085 = vrot.lane.b32.xlu0 %v1902, 111
  %v2086 = vpop.permute.xlu0 %2085
  %2087 = vrot.lane.b32.xlu0 %v1903, 111
  %v2088 = vpop.permute.xlu0 %2087
  %2089 = vrot.lane.b32.xlu0 %v1904, 111
  %v2090 = vpop.permute.xlu0 %2089
  %2091 = vrot.lane.b32.xlu0 %v1905, 111
  %v2092 = vpop.permute.xlu0 %2091
  %2093 = vrot.lane.b32.xlu0 %v2047, 111
  %v2094 = vpop.permute.xlu0 %2093
  %v2095 = vsel %vm257, %v2082, %v2084
  %v2096 = vsel %vm257, %v2084, %v2086
  %v2097 = vsel %vm257, %v2086, %v2088
  %v2098 = vsel %vm257, %v2088, %v2090
  %v2099 = vsel %vm257, %v2090, %v2092
  %v2100 = vsel %vm257, %v2092, %v2094
  %2107 = vst [vmem:[#allocation4 + $0x120] sm:$0xff] %v2095
  %2108 = vst [vmem:[#allocation4 + $0x128] sm:$0xff] %v2096
  %2109 = vst [vmem:[#allocation4 + $0x130] sm:$0xff] %v2097
  %2110 = vst [vmem:[#allocation4 + $0x138] sm:$0xff] %v2098
  %2111 = vst [vmem:[#allocation4 + $0x140] sm:$0xff] %v2099
  %2112 = vst [vmem:[#allocation4 + $0x148] sm:$0xff] %v2100
  %2113 = vrot.lane.b32.xlu0 %v1900, 110
  %v2114 = vpop.permute.xlu0 %2113
  %2115 = vrot.lane.b32.xlu0 %v1901, 110
  %v2116 = vpop.permute.xlu0 %2115
  %2117 = vrot.lane.b32.xlu0 %v1902, 110
  %v2118 = vpop.permute.xlu0 %2117
  %2119 = vrot.lane.b32.xlu0 %v1903, 110
  %v2120 = vpop.permute.xlu0 %2119
  %2121 = vrot.lane.b32.xlu0 %v1904, 110
  %v2122 = vpop.permute.xlu0 %2121
  %2123 = vrot.lane.b32.xlu0 %v1905, 110
  %v2124 = vpop.permute.xlu0 %2123
  %2125 = vrot.lane.b32.xlu0 %v2047, 110
  %v2126 = vpop.permute.xlu0 %2125
  %v2127 = vsel %vm290, %v2114, %v2116
  %v2128 = vsel %vm290, %v2116, %v2118
  %v2129 = vsel %vm290, %v2118, %v2120
  %v2130 = vsel %vm290, %v2120, %v2122
  %v2131 = vsel %vm290, %v2122, %v2124
  %v2132 = vsel %vm290, %v2124, %v2126
  %2139 = vst [vmem:[#allocation4 + $0x150] sm:$0xff] %v2127
  %2140 = vst [vmem:[#allocation4 + $0x158] sm:$0xff] %v2128
  %2141 = vst [vmem:[#allocation4 + $0x160] sm:$0xff] %v2129
  %2142 = vst [vmem:[#allocation4 + $0x168] sm:$0xff] %v2130
  %2143 = vst [vmem:[#allocation4 + $0x170] sm:$0xff] %v2131
  %2144 = vst [vmem:[#allocation4 + $0x178] sm:$0xff] %v2132
  %2145 = vrot.lane.b32.xlu0 %v1900, 109
  %v2146 = vpop.permute.xlu0 %2145
  %2147 = vrot.lane.b32.xlu0 %v1901, 109
  %v2148 = vpop.permute.xlu0 %2147
  %2149 = vrot.lane.b32.xlu0 %v1902, 109
  %v2150 = vpop.permute.xlu0 %2149
  %2151 = vrot.lane.b32.xlu0 %v1903, 109
  %v2152 = vpop.permute.xlu0 %2151
  %2153 = vrot.lane.b32.xlu0 %v1904, 109
  %v2154 = vpop.permute.xlu0 %2153
  %2155 = vrot.lane.b32.xlu0 %v1905, 109
  %v2156 = vpop.permute.xlu0 %2155
  %2157 = vrot.lane.b32.xlu0 %v2047, 109
  %v2158 = vpop.permute.xlu0 %2157
  %v2159 = vsel %vm323, %v2146, %v2148
  %v2160 = vsel %vm323, %v2148, %v2150
  %v2161 = vsel %vm323, %v2150, %v2152
  %v2162 = vsel %vm323, %v2152, %v2154
  %v2163 = vsel %vm323, %v2154, %v2156
  %v2164 = vsel %vm323, %v2156, %v2158
  %2171 = vst [vmem:[#allocation4 + $0x180] sm:$0xff] %v2159
  %2172 = vst [vmem:[#allocation4 + $0x188] sm:$0xff] %v2160
  %2173 = vst [vmem:[#allocation4 + $0x190] sm:$0xff] %v2161
  %2174 = vst [vmem:[#allocation4 + $0x198] sm:$0xff] %v2162
  %2175 = vst [vmem:[#allocation4 + $0x1a0] sm:$0xff] %v2163
  %2176 = vst [vmem:[#allocation4 + $0x1a8] sm:$0xff] %v2164
  %v2177 = vld [vmem:[%s2 + $0x48] sm:$0xff]
  %v2178 = vld [vmem:[%s2 + $0x54] sm:$0xff]
  %v2179 = vld [vmem:[#allocation4] sm:$0xff]
  %v2180 = vld [vmem:[#allocation4 + $0x8] sm:$0xff]
  %v2181 = vld [vmem:[#allocation4 + $0x10] sm:$0xff]
  %v2182 = vld [vmem:[#allocation4 + $0x18] sm:$0xff]
  %v2183 = vld [vmem:[#allocation4 + $0x20] sm:$0xff]
  %v2184 = vld [vmem:[#allocation4 + $0x28] sm:$0xff]
  %v2185 = vld [vmem:[#allocation4 + $0x30] sm:$0xff]
  %v2186 = vld [vmem:[#allocation4 + $0x38] sm:$0xff]
  %v2187 = vld [vmem:[#allocation4 + $0x40] sm:$0xff]
  %v2188 = vld [vmem:[#allocation4 + $0x48] sm:$0xff]
  %v2189 = vld [vmem:[#allocation4 + $0x50] sm:$0xff]
  %v2190 = vld [vmem:[#allocation4 + $0x58] sm:$0xff]
  %v2191 = vld [vmem:[#allocation4 + $0x60] sm:$0xff]
  %v2192 = vld [vmem:[#allocation4 + $0x68] sm:$0xff]
  %v2193 = vld [vmem:[#allocation4 + $0x70] sm:$0xff]
  %v2194 = vld [vmem:[#allocation4 + $0x78] sm:$0xff]
  %v2195 = vld [vmem:[#allocation4 + $0x80] sm:$0xff]
  %v2196 = vld [vmem:[#allocation4 + $0x88] sm:$0xff]
  %v2197 = vld [vmem:[#allocation4 + $0x90] sm:$0xff]
  %v2198 = vld [vmem:[#allocation4 + $0x98] sm:$0xff]
  %v2199 = vld [vmem:[#allocation4 + $0xa0] sm:$0xff]
  %v2200 = vld [vmem:[#allocation4 + $0xa8] sm:$0xff]
  %v2201 = vld [vmem:[#allocation4 + $0xb0] sm:$0xff]
  %v2202 = vld [vmem:[#allocation4 + $0xb8] sm:$0xff]
  %v2203 = vld [vmem:[#allocation4 + $0xc0] sm:$0xff]
  %v2204 = vld [vmem:[#allocation4 + $0xc8] sm:$0xff]
  %v2205 = vld [vmem:[#allocation4 + $0xd0] sm:$0xff]
  %v2206 = vld [vmem:[#allocation4 + $0xd8] sm:$0xff]
  %v2207 = vld [vmem:[#allocation4 + $0xe0] sm:$0xff]
  %v2208 = vld [vmem:[#allocation4 + $0xe8] sm:$0xff]
  %v2209 = vld [vmem:[#allocation4 + $0xf0] sm:$0xff]
  %v2210 = vld [vmem:[#allocation4 + $0xf8] sm:$0xff]
  %v2211 = vld [vmem:[#allocation4 + $0x100] sm:$0xff]
  %v2212 = vld [vmem:[#allocation4 + $0x108] sm:$0xff]
  %v2213 = vld [vmem:[#allocation4 + $0x110] sm:$0xff]
  %v2214 = vld [vmem:[#allocation4 + $0x118] sm:$0xff]
  %v2215 = vld [vmem:[#allocation4 + $0x120] sm:$0xff]
  %v2216 = vld [vmem:[#allocation4 + $0x128] sm:$0xff]
  %v2217 = vld [vmem:[#allocation4 + $0x130] sm:$0xff]
  %v2218 = vld [vmem:[#allocation4 + $0x138] sm:$0xff]
  %v2219 = vld [vmem:[#allocation4 + $0x140] sm:$0xff]
  %v2220 = vld [vmem:[#allocation4 + $0x148] sm:$0xff]
  %v2221 = vld [vmem:[#allocation4 + $0x150] sm:$0xff]
  %v2222 = vld [vmem:[#allocation4 + $0x158] sm:$0xff]
  %v2223 = vld [vmem:[#allocation4 + $0x160] sm:$0xff]
  %v2224 = vld [vmem:[#allocation4 + $0x168] sm:$0xff]
  %v2225 = vld [vmem:[#allocation4 + $0x170] sm:$0xff]
  %v2226 = vld [vmem:[#allocation4 + $0x178] sm:$0xff]
  %v2227 = vld [vmem:[#allocation4 + $0x180] sm:$0xff]
  %v2228 = vld [vmem:[#allocation4 + $0x188] sm:$0xff]
  %v2229 = vld [vmem:[#allocation4 + $0x190] sm:$0xff]
  %v2230 = vld [vmem:[#allocation4 + $0x198] sm:$0xff]
  %v2231 = vld [vmem:[#allocation4 + $0x1a0] sm:$0xff]
  %v2232 = vld [vmem:[#allocation4 + $0x1a8] sm:$0xff]
  %v2233 = vld [vmem:[%s3 + $0x30] sm:$0xff]
  %v2234 = vld [vmem:[%s3 + $0x38] sm:$0xff]
  %2236 = vset.pattern.permute.xlu0 0
  %2237 = vperm.xlu0 %2236, %v2233
  %v2238 = vpop.permute.xlu0 %2237
  %2241 = vset.pattern.permute.xlu0 0
  %2242 = vperm.xlu0 %2241, %v2234
  %v2243 = vpop.permute.xlu0 %2242
  %v2247 = vunpack.c.l.b16 %v2177
  %v2248 = vunpack.c.h.b16 %v2177
  %v2249 = vunpack.c.l.b16 %v2178
  %v2250 = vunpack.c.h.b16 %v2178
  %v2251 = vpack.c.b16 %v2249, %v2247
  %v2252 = vpack.c.b16 %v2250, %v2248
  %v2255 = vsel %vm419, %v2252, 0
  %2257 = vmatprep.subr.bf16.mxu0 %v2180
  %2258 = vmatpush1.bf16.msra.mxu0 %v2179
  %2259 = vmatprep.subr.bf16.mxu0 %v2186
  %2260 = vmatpush1.bf16.msra.mxu0 %v2185
  %2261 = vmatprep.subr.bf16.mxu0 %v2192
  %2262 = vmatpush1.bf16.msra.mxu0 %v2191
  %2263 = vmatprep.subr.bf16.mxu0 %v2198
  %2264 = vmatpush1.bf16.msra.mxu0 %v2197
  %2265 = vmatprep.subr.bf16.mxu0 %v2204
  %2266 = vmatpush1.bf16.msra.mxu0 %v2203
  %2267 = vmatprep.subr.bf16.mxu0 %v2210
  %2268 = vmatpush1.bf16.msra.mxu0 %v2209
  %2269 = vmatprep.subr.bf16.mxu0 %v2216
  %2270 = vmatpush1.bf16.msra.mxu0 %v2215
  %2271 = vmatprep.subr.bf16.mxu0 %v2222
  %2272 = vmatpush1.bf16.msra.mxu0 %v2221
  %2273 = vmatprep.subr.bf16.mxu0 %v2228
  %2274 = vmatpush1.bf16.msra.mxu0 %v2227
  %2275 = vmatprep.subr.bf16.mxu0 0
  %2276 = vmatpush1.bf16.msra.mxu0 0
  %2277 = vmatprep.subr.bf16.mxu0 0
  %2278 = vmatpush1.bf16.msra.mxu0 0
  %2279 = vmatprep.subr.bf16.mxu0 0
  %2280 = vmatpush1.bf16.msra.mxu0 0
  %2281 = vmatprep.subr.bf16.mxu0 0
  %2282 = vmatpush1.bf16.msra.mxu0 0
  %2283 = vmatprep.subr.bf16.mxu0 0
  %2284 = vmatpush1.bf16.msra.mxu0 0
  %2285 = vmatprep.subr.bf16.mxu0 0
  %2286 = vmatpush1.bf16.msra.mxu0 0
  %2287 = vmatprep.subr.bf16.mxu0 0
  %2288 = vmatpush1.bf16.msra.mxu0 0
  %2289 = vmatprep.mubr.bf16.mxu0 %v2255
  %2290 = vmatmul.mubr.bf16.gmra.mrb[0].mxu0 %v2251
  %v2291 = vpop.f32.mrb[0].mxu0
  %v2292 = vadd.f32 %v2238, %v2291
  %v2293 = vpop.f32.mrb[0].mxu0
  %v2294 = vadd.f32 %v2238, %v2293
  %v2295 = vpop.f32.mrb[0].mxu0
  %v2296 = vadd.f32 %v2243, %v2295
  %v2297 = vpop.f32.mrb[0].mxu0
  %v2298 = vadd.f32 %v2243, %v2297
  %2299 = vdwg.mxu0
  %2300 = vmatprep.subr.bf16.mxu0 %v2182
  %2301 = vmatpush1.bf16.msra.mxu0 %v2181
  %2302 = vmatprep.subr.bf16.mxu0 %v2188
  %2303 = vmatpush1.bf16.msra.mxu0 %v2187
  %2304 = vmatprep.subr.bf16.mxu0 %v2194
  %2305 = vmatpush1.bf16.msra.mxu0 %v2193
  %2306 = vmatprep.subr.bf16.mxu0 %v2200
  %2307 = vmatpush1.bf16.msra.mxu0 %v2199
  %2308 = vmatprep.subr.bf16.mxu0 %v2206
  %2309 = vmatpush1.bf16.msra.mxu0 %v2205
  %2310 = vmatprep.subr.bf16.mxu0 %v2212
  %2311 = vmatpush1.bf16.msra.mxu0 %v2211
  %2312 = vmatprep.subr.bf16.mxu0 %v2218
  %2313 = vmatpush1.bf16.msra.mxu0 %v2217
  %2314 = vmatprep.subr.bf16.mxu0 %v2224
  %2315 = vmatpush1.bf16.msra.mxu0 %v2223
  %2316 = vmatprep.subr.bf16.mxu0 %v2230
  %2317 = vmatpush1.bf16.msra.mxu0 %v2229
  %2318 = vmatprep.subr.bf16.mxu0 0
  %2319 = vmatpush1.bf16.msra.mxu0 0
  %2320 = vmatprep.subr.bf16.mxu0 0
  %2321 = vmatpush1.bf16.msra.mxu0 0
  %2322 = vmatprep.subr.bf16.mxu0 0
  %2323 = vmatpush1.bf16.msra.mxu0 0
  %2324 = vmatprep.subr.bf16.mxu0 0
  %2325 = vmatpush1.bf16.msra.mxu0 0
  %2326 = vmatprep.subr.bf16.mxu0 0
  %2327 = vmatpush1.bf16.msra.mxu0 0
  %2328 = vmatprep.subr.bf16.mxu0 0
  %2329 = vmatpush1.bf16.msra.mxu0 0
  %2330 = vmatprep.subr.bf16.mxu0 0
  %2331 = vmatpush1.bf16.msra.mxu0 0
  %2332 = vmatprep.mubr.bf16.mxu0 %v2255
  %2333 = vmatmul.mubr.bf16.gmra.mrb[0].mxu0 %v2251
  %v2334 = vpop.f32.mrb[0].mxu0
  %v2335 = vadd.f32 %v2238, %v2334
  %v2336 = vpop.f32.mrb[0].mxu0
  %v2337 = vadd.f32 %v2238, %v2336
  %v2338 = vpop.f32.mrb[0].mxu0
  %v2339 = vadd.f32 %v2243, %v2338
  %v2340 = vpop.f32.mrb[0].mxu0
  %v2341 = vadd.f32 %v2243, %v2340
  %2342 = vdwg.mxu0
  %2343 = vmatprep.subr.bf16.mxu0 %v2184
  %2344 = vmatpush1.bf16.msra.mxu0 %v2183
  %2345 = vmatprep.subr.bf16.mxu0 %v2190
  %2346 = vmatpush1.bf16.msra.mxu0 %v2189
  %2347 = vmatprep.subr.bf16.mxu0 %v2196
  %2348 = vmatpush1.bf16.msra.mxu0 %v2195
  %2349 = vmatprep.subr.bf16.mxu0 %v2202
  %2350 = vmatpush1.bf16.msra.mxu0 %v2201
  %2351 = vmatprep.subr.bf16.mxu0 %v2208
  %2352 = vmatpush1.bf16.msra.mxu0 %v2207
  %2353 = vmatprep.subr.bf16.mxu0 %v2214
  %2354 = vmatpush1.bf16.msra.mxu0 %v2213
  %2355 = vmatprep.subr.bf16.mxu0 %v2220
  %2356 = vmatpush1.bf16.msra.mxu0 %v2219
  %2357 = vmatprep.subr.bf16.mxu0 %v2226
  %2358 = vmatpush1.bf16.msra.mxu0 %v2225
  %2359 = vmatprep.subr.bf16.mxu0 %v2232
  %2360 = vmatpush1.bf16.msra.mxu0 %v2231
  %2361 = vmatprep.subr.bf16.mxu0 0
  %2362 = vmatpush1.bf16.msra.mxu0 0
  %2363 = vmatprep.subr.bf16.mxu0 0
  %2364 = vmatpush1.bf16.msra.mxu0 0
  %2365 = vmatprep.subr.bf16.mxu0 0
  %2366 = vmatpush1.bf16.msra.mxu0 0
  %2367 = vmatprep.subr.bf16.mxu0 0
  %2368 = vmatpush1.bf16.msra.mxu0 0
  %2369 = vmatprep.subr.bf16.mxu0 0
  %2370 = vmatpush1.bf16.msra.mxu0 0
  %2371 = vmatprep.subr.bf16.mxu0 0
  %2372 = vmatpush1.bf16.msra.mxu0 0
  %2373 = vmatprep.subr.bf16.mxu0 0
  %2374 = vmatpush1.bf16.msra.mxu0 0
  %2375 = vmatprep.mubr.bf16.mxu0 %v2255
  %2376 = vmatmul.mubr.bf16.gmra.mrb[0].mxu0 %v2251
  %v2377 = vpop.f32.mrb[0].mxu0
  %v2378 = vadd.f32 %v2238, %v2377
  %v2379 = vpop.f32.mrb[0].mxu0
  %v2380 = vadd.f32 %v2238, %v2379
  %v2381 = vpop.f32.mrb[0].mxu0
  %v2382 = vadd.f32 %v2243, %v2381
  %v2383 = vpop.f32.mrb[0].mxu0
  %v2384 = vadd.f32 %v2243, %v2383
  %2385 = vdwg.mxu0
  %v2386 = vmax.f32 %v2292, 0.0
  %v2387 = vmax.f32 %v2294, 0.0
  %v2388 = vmax.f32 %v2335, 0.0
  %v2389 = vmax.f32 %v2337, 0.0
  %v2390 = vmax.f32 %v2378, 0.0
  %v2391 = vmax.f32 %v2380, 0.0
  %v2392 = vmax.f32 %v2296, 0.0
  %v2393 = vmax.f32 %v2298, 0.0
  %v2394 = vmax.f32 %v2339, 0.0
  %v2395 = vmax.f32 %v2341, 0.0
  %v2396 = vmax.f32 %v2382, 0.0
  %v2397 = vmax.f32 %v2384, 0.0
  %v2398 = vmul.f32 %v2386, %v579
  %v2399 = vmul.f32 %v2387, %v583
  %v2400 = vmul.f32 %v2388, %v587
  %v2401 = vmul.f32 %v2389, %v591
  %v2402 = vmul.f32 %v2390, %v595
  %v2403 = vmul.f32 %v2391, %v599
  %v2404 = vmul.f32 %v2392, %v579
  %v2405 = vmul.f32 %v2393, %v583
  %v2406 = vmul.f32 %v2394, %v587
  %v2407 = vmul.f32 %v2395, %v591
  %v2408 = vmul.f32 %v2396, %v595
  %v2409 = vmul.f32 %v2397, %v599
  %2410 = vst [vmem:[#allocation3 + $0x8] sm:$0xff] %v2398
  %2411 = vst [vmem:[#allocation3 + $0x10] sm:$0xff] %v2399
  %2412 = vst [vmem:[#allocation3 + $0x18] sm:$0xff] %v2400
  %2413 = vst [vmem:[#allocation3 + $0x20] sm:$0xff] %v2401
  %2414 = vst [vmem:[#allocation3 + $0x28] sm:$0xff] %v2402
  %2415 = vst [vmem:[#allocation3 + $0x30] sm:$0xff] %v2403
  %2416 = vst [vmem:[#allocation3 + $0x48] sm:$0xff] %v2404
  %2417 = vst [vmem:[#allocation3 + $0x50] sm:$0xff] %v2405
  %2418 = vst [vmem:[#allocation3 + $0x58] sm:$0xff] %v2406
  %2419 = vst [vmem:[#allocation3 + $0x60] sm:$0xff] %v2407
  %2420 = vst [vmem:[#allocation3 + $0x68] sm:$0xff] %v2408
  %2421 = vst [vmem:[#allocation3 + $0x70] sm:$0xff] %v2409
  %v2422 = vld [vmem:[#allocation2 + $0x8] sm:$0xff]
  %v2423 = vld [vmem:[#allocation2 + $0x10] sm:$0xff]
  %v2424 = vld [vmem:[#allocation2 + $0x18] sm:$0xff]
  %v2425 = vld [vmem:[#allocation2 + $0x20] sm:$0xff]
  %v2426 = vld [vmem:[#allocation2 + $0x28] sm:$0xff]
  %v2427 = vld [vmem:[#allocation2 + $0x30] sm:$0xff]
  %v2428 = vld [vmem:[#allocation2 + $0x48] sm:$0xff]
  %v2429 = vld [vmem:[#allocation2 + $0x50] sm:$0xff]
  %v2430 = vld [vmem:[#allocation2 + $0x58] sm:$0xff]
  %v2431 = vld [vmem:[#allocation2 + $0x60] sm:$0xff]
  %v2432 = vld [vmem:[#allocation2 + $0x68] sm:$0xff]
  %v2433 = vld [vmem:[#allocation2 + $0x70] sm:$0xff]
  %v2434 = vld [vmem:[#allocation3] sm:$0xff]
  %v2435 = vld [vmem:[#allocation3 + $0x8] sm:$0xff]
  %v2436 = vld [vmem:[#allocation3 + $0x10] sm:$0xff]
  %v2437 = vld [vmem:[#allocation3 + $0x18] sm:$0xff]
  %v2438 = vld [vmem:[#allocation3 + $0x20] sm:$0xff]
  %v2439 = vld [vmem:[#allocation3 + $0x28] sm:$0xff]
  %v2440 = vld [vmem:[#allocation3 + $0x30] sm:$0xff]
  %v2441 = vld [vmem:[#allocation3 + $0x38] sm:$0xff]
  %v2442 = vld [vmem:[#allocation3 + $0x40] sm:$0xff]
  %v2443 = vld [vmem:[#allocation3 + $0x48] sm:$0xff]
  %v2444 = vld [vmem:[#allocation3 + $0x50] sm:$0xff]
  %v2445 = vld [vmem:[#allocation3 + $0x58] sm:$0xff]
  %v2446 = vld [vmem:[#allocation3 + $0x60] sm:$0xff]
  %v2447 = vld [vmem:[#allocation3 + $0x68] sm:$0xff]
  %v2448 = vld [vmem:[#allocation3 + $0x70] sm:$0xff]
  %v2449 = vld [vmem:[#allocation3 + $0x78] sm:$0xff]
  %v2450 = vpack.c.bf16 %v2442, %v2434
  %v2451 = vpack.c.bf16 %v2443, %v2435
  %v2452 = vpack.c.bf16 %v2444, %v2436
  %v2453 = vpack.c.bf16 %v2445, %v2437
  %v2454 = vpack.c.bf16 %v2446, %v2438
  %v2455 = vpack.c.bf16 %v2447, %v2439
  %v2456 = vpack.c.bf16 %v2448, %v2440
  %2464 = vrot.lane.b32.xlu0 %v2450, 19
  %v2465 = vpop.permute.xlu0 %2464
  %2466 = vrot.lane.b32.xlu0 %v2451, 19
  %v2467 = vpop.permute.xlu0 %2466
  %2468 = vrot.lane.b32.xlu0 %v2452, 19
  %v2469 = vpop.permute.xlu0 %2468
  %2470 = vrot.lane.b32.xlu0 %v2453, 19
  %v2471 = vpop.permute.xlu0 %2470
  %2472 = vrot.lane.b32.xlu0 %v2454, 19
  %v2473 = vpop.permute.xlu0 %2472
  %2474 = vrot.lane.b32.xlu0 %v2455, 19
  %v2475 = vpop.permute.xlu0 %2474
  %2476 = vrot.lane.b32.xlu0 %v2456, 19
  %v2477 = vpop.permute.xlu0 %2476
  %v2478 = vsel %vm84, %v2465, %v2467
  %v2479 = vsel %vm84, %v2467, %v2469
  %v2480 = vsel %vm84, %v2469, %v2471
  %v2481 = vsel %vm84, %v2471, %v2473
  %v2482 = vsel %vm84, %v2473, %v2475
  %v2483 = vsel %vm84, %v2475, %v2477
  %2490 = vst [vmem:[#allocation4] sm:$0xff] %v2478
  %2491 = vst [vmem:[#allocation4 + $0x8] sm:$0xff] %v2479
  %2492 = vst [vmem:[#allocation4 + $0x10] sm:$0xff] %v2480
  %2493 = vst [vmem:[#allocation4 + $0x18] sm:$0xff] %v2481
  %2494 = vst [vmem:[#allocation4 + $0x20] sm:$0xff] %v2482
  %2495 = vst [vmem:[#allocation4 + $0x28] sm:$0xff] %v2483
  %2496 = vrot.lane.b32.xlu0 %v2450, 18
  %v2497 = vpop.permute.xlu0 %2496
  %2498 = vrot.lane.b32.xlu0 %v2451, 18
  %v2499 = vpop.permute.xlu0 %2498
  %2500 = vrot.lane.b32.xlu0 %v2452, 18
  %v2501 = vpop.permute.xlu0 %2500
  %2502 = vrot.lane.b32.xlu0 %v2453, 18
  %v2503 = vpop.permute.xlu0 %2502
  %2504 = vrot.lane.b32.xlu0 %v2454, 18
  %v2505 = vpop.permute.xlu0 %2504
  %2506 = vrot.lane.b32.xlu0 %v2455, 18
  %v2507 = vpop.permute.xlu0 %2506
  %2508 = vrot.lane.b32.xlu0 %v2456, 18
  %v2509 = vpop.permute.xlu0 %2508
  %v2510 = vsel %vm117, %v2497, %v2499
  %v2511 = vsel %vm117, %v2499, %v2501
  %v2512 = vsel %vm117, %v2501, %v2503
  %v2513 = vsel %vm117, %v2503, %v2505
  %v2514 = vsel %vm117, %v2505, %v2507
  %v2515 = vsel %vm117, %v2507, %v2509
  %2522 = vst [vmem:[#allocation4 + $0x30] sm:$0xff] %v2510
  %2523 = vst [vmem:[#allocation4 + $0x38] sm:$0xff] %v2511
  %2524 = vst [vmem:[#allocation4 + $0x40] sm:$0xff] %v2512
  %2525 = vst [vmem:[#allocation4 + $0x48] sm:$0xff] %v2513
  %2526 = vst [vmem:[#allocation4 + $0x50] sm:$0xff] %v2514
  %2527 = vst [vmem:[#allocation4 + $0x58] sm:$0xff] %v2515
  %2528 = vrot.lane.b32.xlu0 %v2450, 17
  %v2529 = vpop.permute.xlu0 %2528
  %2530 = vrot.lane.b32.xlu0 %v2451, 17
  %v2531 = vpop.permute.xlu0 %2530
  %2532 = vrot.lane.b32.xlu0 %v2452, 17
  %v2533 = vpop.permute.xlu0 %2532
  %2534 = vrot.lane.b32.xlu0 %v2453, 17
  %v2535 = vpop.permute.xlu0 %2534
  %2536 = vrot.lane.b32.xlu0 %v2454, 17
  %v2537 = vpop.permute.xlu0 %2536
  %2538 = vrot.lane.b32.xlu0 %v2455, 17
  %v2539 = vpop.permute.xlu0 %2538
  %2540 = vrot.lane.b32.xlu0 %v2456, 17
  %v2541 = vpop.permute.xlu0 %2540
  %v2542 = vsel %vm150, %v2529, %v2531
  %v2543 = vsel %vm150, %v2531, %v2533
  %v2544 = vsel %vm150, %v2533, %v2535
  %v2545 = vsel %vm150, %v2535, %v2537
  %v2546 = vsel %vm150, %v2537, %v2539
  %v2547 = vsel %vm150, %v2539, %v2541
  %2554 = vst [vmem:[#allocation4 + $0x60] sm:$0xff] %v2542
  %2555 = vst [vmem:[#allocation4 + $0x68] sm:$0xff] %v2543
  %2556 = vst [vmem:[#allocation4 + $0x70] sm:$0xff] %v2544
  %2557 = vst [vmem:[#allocation4 + $0x78] sm:$0xff] %v2545
  %2558 = vst [vmem:[#allocation4 + $0x80] sm:$0xff] %v2546
  %2559 = vst [vmem:[#allocation4 + $0x88] sm:$0xff] %v2547
  %2560 = vrot.lane.b32.xlu0 %v2450, 1
  %v2561 = vpop.permute.xlu0 %2560
  %2562 = vrot.lane.b32.xlu0 %v2451, 1
  %v2563 = vpop.permute.xlu0 %2562
  %2564 = vrot.lane.b32.xlu0 %v2452, 1
  %v2565 = vpop.permute.xlu0 %2564
  %2566 = vrot.lane.b32.xlu0 %v2453, 1
  %v2567 = vpop.permute.xlu0 %2566
  %2568 = vrot.lane.b32.xlu0 %v2454, 1
  %v2569 = vpop.permute.xlu0 %2568
  %2570 = vrot.lane.b32.xlu0 %v2455, 1
  %v2571 = vpop.permute.xlu0 %2570
  %2572 = vrot.lane.b32.xlu0 %v2456, 1
  %v2573 = vpop.permute.xlu0 %2572
  %v2574 = vsel %vm183, %v2561, %v2563
  %v2575 = vsel %vm183, %v2563, %v2565
  %v2576 = vsel %vm183, %v2565, %v2567
  %v2577 = vsel %vm183, %v2567, %v2569
  %v2578 = vsel %vm183, %v2569, %v2571
  %v2579 = vsel %vm183, %v2571, %v2573
  %2586 = vst [vmem:[#allocation4 + $0x90] sm:$0xff] %v2574
  %2587 = vst [vmem:[#allocation4 + $0x98] sm:$0xff] %v2575
  %2588 = vst [vmem:[#allocation4 + $0xa0] sm:$0xff] %v2576
  %2589 = vst [vmem:[#allocation4 + $0xa8] sm:$0xff] %v2577
  %2590 = vst [vmem:[#allocation4 + $0xb0] sm:$0xff] %v2578
  %2591 = vst [vmem:[#allocation4 + $0xb8] sm:$0xff] %v2579
  %2592 = vst [vmem:[#allocation4 + $0xc0] sm:$0xff] %v2451
  %2593 = vst [vmem:[#allocation4 + $0xc8] sm:$0xff] %v2452
  %2594 = vst [vmem:[#allocation4 + $0xd0] sm:$0xff] %v2453
  %2595 = vst [vmem:[#allocation4 + $0xd8] sm:$0xff] %v2454
  %2596 = vst [vmem:[#allocation4 + $0xe0] sm:$0xff] %v2455
  %2597 = vst [vmem:[#allocation4 + $0xe8] sm:$0xff] %v2456
  %v2598 = vpack.c.bf16 %v2449, %v2441
  %2600 = vrot.lane.b32.xlu0 %v2451, 127
  %v2601 = vpop.permute.xlu0 %2600
  %2602 = vrot.lane.b32.xlu0 %v2452, 127
  %v2603 = vpop.permute.xlu0 %2602
  %2604 = vrot.lane.b32.xlu0 %v2453, 127
  %v2605 = vpop.permute.xlu0 %2604
  %2606 = vrot.lane.b32.xlu0 %v2454, 127
  %v2607 = vpop.permute.xlu0 %2606
  %2608 = vrot.lane.b32.xlu0 %v2455, 127
  %v2609 = vpop.permute.xlu0 %2608
  %2610 = vrot.lane.b32.xlu0 %v2456, 127
  %v2611 = vpop.permute.xlu0 %2610
  %2612 = vrot.lane.b32.xlu0 %v2598, 127
  %v2613 = vpop.permute.xlu0 %2612
  %v2614 = vsel %vm224, %v2601, %v2603
  %v2615 = vsel %vm224, %v2603, %v2605
  %v2616 = vsel %vm224, %v2605, %v2607
  %v2617 = vsel %vm224, %v2607, %v2609
  %v2618 = vsel %vm224, %v2609, %v2611
  %v2619 = vsel %vm224, %v2611, %v2613
  %2626 = vst [vmem:[#allocation4 + $0xf0] sm:$0xff] %v2614
  %2627 = vst [vmem:[#allocation4 + $0xf8] sm:$0xff] %v2615
  %2628 = vst [vmem:[#allocation4 + $0x100] sm:$0xff] %v2616
  %2629 = vst [vmem:[#allocation4 + $0x108] sm:$0xff] %v2617
  %2630 = vst [vmem:[#allocation4 + $0x110] sm:$0xff] %v2618
  %2631 = vst [vmem:[#allocation4 + $0x118] sm:$0xff] %v2619
  %2632 = vrot.lane.b32.xlu0 %v2451, 111
  %v2633 = vpop.permute.xlu0 %2632
  %2634 = vrot.lane.b32.xlu0 %v2452, 111
  %v2635 = vpop.permute.xlu0 %2634
  %2636 = vrot.lane.b32.xlu0 %v2453, 111
  %v2637 = vpop.permute.xlu0 %2636
  %2638 = vrot.lane.b32.xlu0 %v2454, 111
  %v2639 = vpop.permute.xlu0 %2638
  %2640 = vrot.lane.b32.xlu0 %v2455, 111
  %v2641 = vpop.permute.xlu0 %2640
  %2642 = vrot.lane.b32.xlu0 %v2456, 111
  %v2643 = vpop.permute.xlu0 %2642
  %2644 = vrot.lane.b32.xlu0 %v2598, 111
  %v2645 = vpop.permute.xlu0 %2644
  %v2646 = vsel %vm257, %v2633, %v2635
  %v2647 = vsel %vm257, %v2635, %v2637
  %v2648 = vsel %vm257, %v2637, %v2639
  %v2649 = vsel %vm257, %v2639, %v2641
  %v2650 = vsel %vm257, %v2641, %v2643
  %v2651 = vsel %vm257, %v2643, %v2645
  %2658 = vst [vmem:[#allocation4 + $0x120] sm:$0xff] %v2646
  %2659 = vst [vmem:[#allocation4 + $0x128] sm:$0xff] %v2647
  %2660 = vst [vmem:[#allocation4 + $0x130] sm:$0xff] %v2648
  %2661 = vst [vmem:[#allocation4 + $0x138] sm:$0xff] %v2649
  %2662 = vst [vmem:[#allocation4 + $0x140] sm:$0xff] %v2650
  %2663 = vst [vmem:[#allocation4 + $0x148] sm:$0xff] %v2651
  %2664 = vrot.lane.b32.xlu0 %v2451, 110
  %v2665 = vpop.permute.xlu0 %2664
  %2666 = vrot.lane.b32.xlu0 %v2452, 110
  %v2667 = vpop.permute.xlu0 %2666
  %2668 = vrot.lane.b32.xlu0 %v2453, 110
  %v2669 = vpop.permute.xlu0 %2668
  %2670 = vrot.lane.b32.xlu0 %v2454, 110
  %v2671 = vpop.permute.xlu0 %2670
  %2672 = vrot.lane.b32.xlu0 %v2455, 110
  %v2673 = vpop.permute.xlu0 %2672
  %2674 = vrot.lane.b32.xlu0 %v2456, 110
  %v2675 = vpop.permute.xlu0 %2674
  %2676 = vrot.lane.b32.xlu0 %v2598, 110
  %v2677 = vpop.permute.xlu0 %2676
  %v2678 = vsel %vm290, %v2665, %v2667
  %v2679 = vsel %vm290, %v2667, %v2669
  %v2680 = vsel %vm290, %v2669, %v2671
  %v2681 = vsel %vm290, %v2671, %v2673
  %v2682 = vsel %vm290, %v2673, %v2675
  %v2683 = vsel %vm290, %v2675, %v2677
  %2690 = vst [vmem:[#allocation4 + $0x150] sm:$0xff] %v2678
  %2691 = vst [vmem:[#allocation4 + $0x158] sm:$0xff] %v2679
  %2692 = vst [vmem:[#allocation4 + $0x160] sm:$0xff] %v2680
  %2693 = vst [vmem:[#allocation4 + $0x168] sm:$0xff] %v2681
  %2694 = vst [vmem:[#allocation4 + $0x170] sm:$0xff] %v2682
  %2695 = vst [vmem:[#allocation4 + $0x178] sm:$0xff] %v2683
  %2696 = vrot.lane.b32.xlu0 %v2451, 109
  %v2697 = vpop.permute.xlu0 %2696
  %2698 = vrot.lane.b32.xlu0 %v2452, 109
  %v2699 = vpop.permute.xlu0 %2698
  %2700 = vrot.lane.b32.xlu0 %v2453, 109
  %v2701 = vpop.permute.xlu0 %2700
  %2702 = vrot.lane.b32.xlu0 %v2454, 109
  %v2703 = vpop.permute.xlu0 %2702
  %2704 = vrot.lane.b32.xlu0 %v2455, 109
  %v2705 = vpop.permute.xlu0 %2704
  %2706 = vrot.lane.b32.xlu0 %v2456, 109
  %v2707 = vpop.permute.xlu0 %2706
  %2708 = vrot.lane.b32.xlu0 %v2598, 109
  %v2709 = vpop.permute.xlu0 %2708
  %v2710 = vsel %vm323, %v2697, %v2699
  %v2711 = vsel %vm323, %v2699, %v2701
  %v2712 = vsel %vm323, %v2701, %v2703
  %v2713 = vsel %vm323, %v2703, %v2705
  %v2714 = vsel %vm323, %v2705, %v2707
  %v2715 = vsel %vm323, %v2707, %v2709
  %2722 = vst [vmem:[#allocation4 + $0x180] sm:$0xff] %v2710
  %2723 = vst [vmem:[#allocation4 + $0x188] sm:$0xff] %v2711
  %2724 = vst [vmem:[#allocation4 + $0x190] sm:$0xff] %v2712
  %2725 = vst [vmem:[#allocation4 + $0x198] sm:$0xff] %v2713
  %2726 = vst [vmem:[#allocation4 + $0x1a0] sm:$0xff] %v2714
  %2727 = vst [vmem:[#allocation4 + $0x1a8] sm:$0xff] %v2715
  %v2728 = vld [vmem:[%s2 + $0x60] sm:$0xff]
  %v2729 = vld [vmem:[%s2 + $0x6c] sm:$0xff]
  %v2730 = vld [vmem:[#allocation4] sm:$0xff]
  %v2731 = vld [vmem:[#allocation4 + $0x8] sm:$0xff]
  %v2732 = vld [vmem:[#allocation4 + $0x10] sm:$0xff]
  %v2733 = vld [vmem:[#allocation4 + $0x18] sm:$0xff]
  %v2734 = vld [vmem:[#allocation4 + $0x20] sm:$0xff]
  %v2735 = vld [vmem:[#allocation4 + $0x28] sm:$0xff]
  %v2736 = vld [vmem:[#allocation4 + $0x30] sm:$0xff]
  %v2737 = vld [vmem:[#allocation4 + $0x38] sm:$0xff]
  %v2738 = vld [vmem:[#allocation4 + $0x40] sm:$0xff]
  %v2739 = vld [vmem:[#allocation4 + $0x48] sm:$0xff]
  %v2740 = vld [vmem:[#allocation4 + $0x50] sm:$0xff]
  %v2741 = vld [vmem:[#allocation4 + $0x58] sm:$0xff]
  %v2742 = vld [vmem:[#allocation4 + $0x60] sm:$0xff]
  %v2743 = vld [vmem:[#allocation4 + $0x68] sm:$0xff]
  %v2744 = vld [vmem:[#allocation4 + $0x70] sm:$0xff]
  %v2745 = vld [vmem:[#allocation4 + $0x78] sm:$0xff]
  %v2746 = vld [vmem:[#allocation4 + $0x80] sm:$0xff]
  %v2747 = vld [vmem:[#allocation4 + $0x88] sm:$0xff]
  %v2748 = vld [vmem:[#allocation4 + $0x90] sm:$0xff]
  %v2749 = vld [vmem:[#allocation4 + $0x98] sm:$0xff]
  %v2750 = vld [vmem:[#allocation4 + $0xa0] sm:$0xff]
  %v2751 = vld [vmem:[#allocation4 + $0xa8] sm:$0xff]
  %v2752 = vld [vmem:[#allocation4 + $0xb0] sm:$0xff]
  %v2753 = vld [vmem:[#allocation4 + $0xb8] sm:$0xff]
  %v2754 = vld [vmem:[#allocation4 + $0xc0] sm:$0xff]
  %v2755 = vld [vmem:[#allocation4 + $0xc8] sm:$0xff]
  %v2756 = vld [vmem:[#allocation4 + $0xd0] sm:$0xff]
  %v2757 = vld [vmem:[#allocation4 + $0xd8] sm:$0xff]
  %v2758 = vld [vmem:[#allocation4 + $0xe0] sm:$0xff]
  %v2759 = vld [vmem:[#allocation4 + $0xe8] sm:$0xff]
  %v2760 = vld [vmem:[#allocation4 + $0xf0] sm:$0xff]
  %v2761 = vld [vmem:[#allocation4 + $0xf8] sm:$0xff]
  %v2762 = vld [vmem:[#allocation4 + $0x100] sm:$0xff]
  %v2763 = vld [vmem:[#allocation4 + $0x108] sm:$0xff]
  %v2764 = vld [vmem:[#allocation4 + $0x110] sm:$0xff]
  %v2765 = vld [vmem:[#allocation4 + $0x118] sm:$0xff]
  %v2766 = vld [vmem:[#allocation4 + $0x120] sm:$0xff]
  %v2767 = vld [vmem:[#allocation4 + $0x128] sm:$0xff]
  %v2768 = vld [vmem:[#allocation4 + $0x130] sm:$0xff]
  %v2769 = vld [vmem:[#allocation4 + $0x138] sm:$0xff]
  %v2770 = vld [vmem:[#allocation4 + $0x140] sm:$0xff]
  %v2771 = vld [vmem:[#allocation4 + $0x148] sm:$0xff]
  %v2772 = vld [vmem:[#allocation4 + $0x150] sm:$0xff]
  %v2773 = vld [vmem:[#allocation4 + $0x158] sm:$0xff]
  %v2774 = vld [vmem:[#allocation4 + $0x160] sm:$0xff]
  %v2775 = vld [vmem:[#allocation4 + $0x168] sm:$0xff]
  %v2776 = vld [vmem:[#allocation4 + $0x170] sm:$0xff]
  %v2777 = vld [vmem:[#allocation4 + $0x178] sm:$0xff]
  %v2778 = vld [vmem:[#allocation4 + $0x180] sm:$0xff]
  %v2779 = vld [vmem:[#allocation4 + $0x188] sm:$0xff]
  %v2780 = vld [vmem:[#allocation4 + $0x190] sm:$0xff]
  %v2781 = vld [vmem:[#allocation4 + $0x198] sm:$0xff]
  %v2782 = vld [vmem:[#allocation4 + $0x1a0] sm:$0xff]
  %v2783 = vld [vmem:[#allocation4 + $0x1a8] sm:$0xff]
  %v2784 = vld [vmem:[%s3 + $0x40] sm:$0xff]
  %v2785 = vld [vmem:[%s3 + $0x48] sm:$0xff]
  %2787 = vset.pattern.permute.xlu0 0
  %2788 = vperm.xlu0 %2787, %v2784
  %v2789 = vpop.permute.xlu0 %2788
  %2792 = vset.pattern.permute.xlu0 0
  %2793 = vperm.xlu0 %2792, %v2785
  %v2794 = vpop.permute.xlu0 %2793
  %v2798 = vunpack.c.l.b16 %v2728
  %v2799 = vunpack.c.h.b16 %v2728
  %v2800 = vunpack.c.l.b16 %v2729
  %v2801 = vunpack.c.h.b16 %v2729
  %v2802 = vpack.c.b16 %v2800, %v2798
  %v2803 = vpack.c.b16 %v2801, %v2799
  %v2806 = vsel %vm419, %v2803, 0
  %2808 = vmatprep.subr.bf16.mxu0 %v2731
  %2809 = vmatpush1.bf16.msra.mxu0 %v2730
  %2810 = vmatprep.subr.bf16.mxu0 %v2737
  %2811 = vmatpush1.bf16.msra.mxu0 %v2736
  %2812 = vmatprep.subr.bf16.mxu0 %v2743
  %2813 = vmatpush1.bf16.msra.mxu0 %v2742
  %2814 = vmatprep.subr.bf16.mxu0 %v2749
  %2815 = vmatpush1.bf16.msra.mxu0 %v2748
  %2816 = vmatprep.subr.bf16.mxu0 %v2755
  %2817 = vmatpush1.bf16.msra.mxu0 %v2754
  %2818 = vmatprep.subr.bf16.mxu0 %v2761
  %2819 = vmatpush1.bf16.msra.mxu0 %v2760
  %2820 = vmatprep.subr.bf16.mxu0 %v2767
  %2821 = vmatpush1.bf16.msra.mxu0 %v2766
  %2822 = vmatprep.subr.bf16.mxu0 %v2773
  %2823 = vmatpush1.bf16.msra.mxu0 %v2772
  %2824 = vmatprep.subr.bf16.mxu0 %v2779
  %2825 = vmatpush1.bf16.msra.mxu0 %v2778
  %2826 = vmatprep.subr.bf16.mxu0 0
  %2827 = vmatpush1.bf16.msra.mxu0 0
  %2828 = vmatprep.subr.bf16.mxu0 0
  %2829 = vmatpush1.bf16.msra.mxu0 0
  %2830 = vmatprep.subr.bf16.mxu0 0
  %2831 = vmatpush1.bf16.msra.mxu0 0
  %2832 = vmatprep.subr.bf16.mxu0 0
  %2833 = vmatpush1.bf16.msra.mxu0 0
  %2834 = vmatprep.subr.bf16.mxu0 0
  %2835 = vmatpush1.bf16.msra.mxu0 0
  %2836 = vmatprep.subr.bf16.mxu0 0
  %2837 = vmatpush1.bf16.msra.mxu0 0
  %2838 = vmatprep.subr.bf16.mxu0 0
  %2839 = vmatpush1.bf16.msra.mxu0 0
  %2840 = vmatprep.mubr.bf16.mxu0 %v2806
  %2841 = vmatmul.mubr.bf16.gmra.mrb[0].mxu0 %v2802
  %v2842 = vpop.f32.mrb[0].mxu0
  %v2843 = vadd.f32 %v2789, %v2842
  %v2844 = vpop.f32.mrb[0].mxu0
  %v2845 = vadd.f32 %v2789, %v2844
  %v2846 = vpop.f32.mrb[0].mxu0
  %v2847 = vadd.f32 %v2794, %v2846
  %v2848 = vpop.f32.mrb[0].mxu0
  %v2849 = vadd.f32 %v2794, %v2848
  %2850 = vdwg.mxu0
  %2851 = vmatprep.subr.bf16.mxu0 %v2733
  %2852 = vmatpush1.bf16.msra.mxu0 %v2732
  %2853 = vmatprep.subr.bf16.mxu0 %v2739
  %2854 = vmatpush1.bf16.msra.mxu0 %v2738
  %2855 = vmatprep.subr.bf16.mxu0 %v2745
  %2856 = vmatpush1.bf16.msra.mxu0 %v2744
  %2857 = vmatprep.subr.bf16.mxu0 %v2751
  %2858 = vmatpush1.bf16.msra.mxu0 %v2750
  %2859 = vmatprep.subr.bf16.mxu0 %v2757
  %2860 = vmatpush1.bf16.msra.mxu0 %v2756
  %2861 = vmatprep.subr.bf16.mxu0 %v2763
  %2862 = vmatpush1.bf16.msra.mxu0 %v2762
  %2863 = vmatprep.subr.bf16.mxu0 %v2769
  %2864 = vmatpush1.bf16.msra.mxu0 %v2768
  %2865 = vmatprep.subr.bf16.mxu0 %v2775
  %2866 = vmatpush1.bf16.msra.mxu0 %v2774
  %2867 = vmatprep.subr.bf16.mxu0 %v2781
  %2868 = vmatpush1.bf16.msra.mxu0 %v2780
  %2869 = vmatprep.subr.bf16.mxu0 0
  %2870 = vmatpush1.bf16.msra.mxu0 0
  %2871 = vmatprep.subr.bf16.mxu0 0
  %2872 = vmatpush1.bf16.msra.mxu0 0
  %2873 = vmatprep.subr.bf16.mxu0 0
  %2874 = vmatpush1.bf16.msra.mxu0 0
  %2875 = vmatprep.subr.bf16.mxu0 0
  %2876 = vmatpush1.bf16.msra.mxu0 0
  %2877 = vmatprep.subr.bf16.mxu0 0
  %2878 = vmatpush1.bf16.msra.mxu0 0
  %2879 = vmatprep.subr.bf16.mxu0 0
  %2880 = vmatpush1.bf16.msra.mxu0 0
  %2881 = vmatprep.subr.bf16.mxu0 0
  %2882 = vmatpush1.bf16.msra.mxu0 0
  %2883 = vmatprep.mubr.bf16.mxu0 %v2806
  %2884 = vmatmul.mubr.bf16.gmra.mrb[0].mxu0 %v2802
  %v2885 = vpop.f32.mrb[0].mxu0
  %v2886 = vadd.f32 %v2789, %v2885
  %v2887 = vpop.f32.mrb[0].mxu0
  %v2888 = vadd.f32 %v2789, %v2887
  %v2889 = vpop.f32.mrb[0].mxu0
  %v2890 = vadd.f32 %v2794, %v2889
  %v2891 = vpop.f32.mrb[0].mxu0
  %v2892 = vadd.f32 %v2794, %v2891
  %2893 = vdwg.mxu0
  %2894 = vmatprep.subr.bf16.mxu0 %v2735
  %2895 = vmatpush1.bf16.msra.mxu0 %v2734
  %2896 = vmatprep.subr.bf16.mxu0 %v2741
  %2897 = vmatpush1.bf16.msra.mxu0 %v2740
  %2898 = vmatprep.subr.bf16.mxu0 %v2747
  %2899 = vmatpush1.bf16.msra.mxu0 %v2746
  %2900 = vmatprep.subr.bf16.mxu0 %v2753
  %2901 = vmatpush1.bf16.msra.mxu0 %v2752
  %2902 = vmatprep.subr.bf16.mxu0 %v2759
  %2903 = vmatpush1.bf16.msra.mxu0 %v2758
  %2904 = vmatprep.subr.bf16.mxu0 %v2765
  %2905 = vmatpush1.bf16.msra.mxu0 %v2764
  %2906 = vmatprep.subr.bf16.mxu0 %v2771
  %2907 = vmatpush1.bf16.msra.mxu0 %v2770
  %2908 = vmatprep.subr.bf16.mxu0 %v2777
  %2909 = vmatpush1.bf16.msra.mxu0 %v2776
  %2910 = vmatprep.subr.bf16.mxu0 %v2783
  %2911 = vmatpush1.bf16.msra.mxu0 %v2782
  %2912 = vmatprep.subr.bf16.mxu0 0
  %2913 = vmatpush1.bf16.msra.mxu0 0
  %2914 = vmatprep.subr.bf16.mxu0 0
  %2915 = vmatpush1.bf16.msra.mxu0 0
  %2916 = vmatprep.subr.bf16.mxu0 0
  %2917 = vmatpush1.bf16.msra.mxu0 0
  %2918 = vmatprep.subr.bf16.mxu0 0
  %2919 = vmatpush1.bf16.msra.mxu0 0
  %2920 = vmatprep.subr.bf16.mxu0 0
  %2921 = vmatpush1.bf16.msra.mxu0 0
  %2922 = vmatprep.subr.bf16.mxu0 0
  %2923 = vmatpush1.bf16.msra.mxu0 0
  %2924 = vmatprep.subr.bf16.mxu0 0
  %2925 = vmatpush1.bf16.msra.mxu0 0
  %2926 = vmatprep.mubr.bf16.mxu0 %v2806
  %2927 = vmatmul.mubr.bf16.gmra.mrb[0].mxu0 %v2802
  %v2928 = vpop.f32.mrb[0].mxu0
  %v2929 = vadd.f32 %v2789, %v2928
  %v2930 = vpop.f32.mrb[0].mxu0
  %v2931 = vadd.f32 %v2789, %v2930
  %v2932 = vpop.f32.mrb[0].mxu0
  %v2933 = vadd.f32 %v2794, %v2932
  %v2934 = vpop.f32.mrb[0].mxu0
  %v2935 = vadd.f32 %v2794, %v2934
  %2936 = vdwg.mxu0
  %v2937 = vadd.f32 %v2843, %v2422
  %v2938 = vadd.f32 %v2845, %v2423
  %v2939 = vadd.f32 %v2886, %v2424
  %v2940 = vadd.f32 %v2888, %v2425
  %v2941 = vadd.f32 %v2929, %v2426
  %v2942 = vadd.f32 %v2931, %v2427
  %v2943 = vadd.f32 %v2847, %v2428
  %v2944 = vadd.f32 %v2849, %v2429
  %v2945 = vadd.f32 %v2890, %v2430
  %v2946 = vadd.f32 %v2892, %v2431
  %v2947 = vadd.f32 %v2933, %v2432
  %v2948 = vadd.f32 %v2935, %v2433
  %v2949 = vmax.f32 %v2937, 0.0
  %v2950 = vmax.f32 %v2938, 0.0
  %v2951 = vmax.f32 %v2939, 0.0
  %v2952 = vmax.f32 %v2940, 0.0
  %v2953 = vmax.f32 %v2941, 0.0
  %v2954 = vmax.f32 %v2942, 0.0
  %v2955 = vmax.f32 %v2943, 0.0
  %v2956 = vmax.f32 %v2944, 0.0
  %v2957 = vmax.f32 %v2945, 0.0
  %v2958 = vmax.f32 %v2946, 0.0
  %v2959 = vmax.f32 %v2947, 0.0
  %v2960 = vmax.f32 %v2948, 0.0
  %v2961 = vmul.f32 %v2949, %v579
  %v2962 = vmul.f32 %v2950, %v583
  %v2963 = vmul.f32 %v2951, %v587
  %v2964 = vmul.f32 %v2952, %v591
  %v2965 = vmul.f32 %v2953, %v595
  %v2966 = vmul.f32 %v2954, %v599
  %v2967 = vmul.f32 %v2955, %v579
  %v2968 = vmul.f32 %v2956, %v583
  %v2969 = vmul.f32 %v2957, %v587
  %v2970 = vmul.f32 %v2958, %v591
  %v2971 = vmul.f32 %v2959, %v595
  %v2972 = vmul.f32 %v2960, %v599
  %2973 = vst [vmem:[#allocation2 + $0x8] sm:$0xff] %v2961
  %2974 = vst [vmem:[#allocation2 + $0x10] sm:$0xff] %v2962
  %2975 = vst [vmem:[#allocation2 + $0x18] sm:$0xff] %v2963
  %2976 = vst [vmem:[#allocation2 + $0x20] sm:$0xff] %v2964
  %2977 = vst [vmem:[#allocation2 + $0x28] sm:$0xff] %v2965
  %2978 = vst [vmem:[#allocation2 + $0x30] sm:$0xff] %v2966
  %2979 = vst [vmem:[#allocation2 + $0x48] sm:$0xff] %v2967
  %2980 = vst [vmem:[#allocation2 + $0x50] sm:$0xff] %v2968
  %2981 = vst [vmem:[#allocation2 + $0x58] sm:$0xff] %v2969
  %2982 = vst [vmem:[#allocation2 + $0x60] sm:$0xff] %v2970
  %2983 = vst [vmem:[#allocation2 + $0x68] sm:$0xff] %v2971
  %2984 = vst [vmem:[#allocation2 + $0x70] sm:$0xff] %v2972
  %v2985 = vld [vmem:[#allocation2] sm:$0xff]
  %v2986 = vld [vmem:[#allocation2 + $0x8] sm:$0xff]
  %v2987 = vld [vmem:[#allocation2 + $0x10] sm:$0xff]
  %v2988 = vld [vmem:[#allocation2 + $0x18] sm:$0xff]
  %v2989 = vld [vmem:[#allocation2 + $0x20] sm:$0xff]
  %v2990 = vld [vmem:[#allocation2 + $0x28] sm:$0xff]
  %v2991 = vld [vmem:[#allocation2 + $0x30] sm:$0xff]
  %v2992 = vld [vmem:[#allocation2 + $0x38] sm:$0xff]
  %v2993 = vld [vmem:[#allocation2 + $0x40] sm:$0xff]
  %v2994 = vld [vmem:[#allocation2 + $0x48] sm:$0xff]
  %v2995 = vld [vmem:[#allocation2 + $0x50] sm:$0xff]
  %v2996 = vld [vmem:[#allocation2 + $0x58] sm:$0xff]
  %v2997 = vld [vmem:[#allocation2 + $0x60] sm:$0xff]
  %v2998 = vld [vmem:[#allocation2 + $0x68] sm:$0xff]
  %v2999 = vld [vmem:[#allocation2 + $0x70] sm:$0xff]
  %v3000 = vld [vmem:[#allocation2 + $0x78] sm:$0xff]
  %v3001 = vpack.c.bf16 %v2993, %v2985
  %v3002 = vpack.c.bf16 %v2994, %v2986
  %v3003 = vpack.c.bf16 %v2995, %v2987
  %v3004 = vpack.c.bf16 %v2996, %v2988
  %v3005 = vpack.c.bf16 %v2997, %v2989
  %v3006 = vpack.c.bf16 %v2998, %v2990
  %v3007 = vpack.c.bf16 %v2999, %v2991
  %3015 = vrot.lane.b32.xlu0 %v3001, 19
  %v3016 = vpop.permute.xlu0 %3015
  %3017 = vrot.lane.b32.xlu0 %v3002, 19
  %v3018 = vpop.permute.xlu0 %3017
  %3019 = vrot.lane.b32.xlu0 %v3003, 19
  %v3020 = vpop.permute.xlu0 %3019
  %3021 = vrot.lane.b32.xlu0 %v3004, 19
  %v3022 = vpop.permute.xlu0 %3021
  %3023 = vrot.lane.b32.xlu0 %v3005, 19
  %v3024 = vpop.permute.xlu0 %3023
  %3025 = vrot.lane.b32.xlu0 %v3006, 19
  %v3026 = vpop.permute.xlu0 %3025
  %3027 = vrot.lane.b32.xlu0 %v3007, 19
  %v3028 = vpop.permute.xlu0 %3027
  %v3029 = vsel %vm84, %v3016, %v3018
  %v3030 = vsel %vm84, %v3018, %v3020
  %v3031 = vsel %vm84, %v3020, %v3022
  %v3032 = vsel %vm84, %v3022, %v3024
  %v3033 = vsel %vm84, %v3024, %v3026
  %v3034 = vsel %vm84, %v3026, %v3028
  %3041 = vst [vmem:[#allocation4] sm:$0xff] %v3029
  %3042 = vst [vmem:[#allocation4 + $0x8] sm:$0xff] %v3030
  %3043 = vst [vmem:[#allocation4 + $0x10] sm:$0xff] %v3031
  %3044 = vst [vmem:[#allocation4 + $0x18] sm:$0xff] %v3032
  %3045 = vst [vmem:[#allocation4 + $0x20] sm:$0xff] %v3033
  %3046 = vst [vmem:[#allocation4 + $0x28] sm:$0xff] %v3034
  %3047 = vrot.lane.b32.xlu0 %v3001, 18
  %v3048 = vpop.permute.xlu0 %3047
  %3049 = vrot.lane.b32.xlu0 %v3002, 18
  %v3050 = vpop.permute.xlu0 %3049
  %3051 = vrot.lane.b32.xlu0 %v3003, 18
  %v3052 = vpop.permute.xlu0 %3051
  %3053 = vrot.lane.b32.xlu0 %v3004, 18
  %v3054 = vpop.permute.xlu0 %3053
  %3055 = vrot.lane.b32.xlu0 %v3005, 18
  %v3056 = vpop.permute.xlu0 %3055
  %3057 = vrot.lane.b32.xlu0 %v3006, 18
  %v3058 = vpop.permute.xlu0 %3057
  %3059 = vrot.lane.b32.xlu0 %v3007, 18
  %v3060 = vpop.permute.xlu0 %3059
  %v3061 = vsel %vm117, %v3048, %v3050
  %v3062 = vsel %vm117, %v3050, %v3052
  %v3063 = vsel %vm117, %v3052, %v3054
  %v3064 = vsel %vm117, %v3054, %v3056
  %v3065 = vsel %vm117, %v3056, %v3058
  %v3066 = vsel %vm117, %v3058, %v3060
  %3073 = vst [vmem:[#allocation4 + $0x30] sm:$0xff] %v3061
  %3074 = vst [vmem:[#allocation4 + $0x38] sm:$0xff] %v3062
  %3075 = vst [vmem:[#allocation4 + $0x40] sm:$0xff] %v3063
  %3076 = vst [vmem:[#allocation4 + $0x48] sm:$0xff] %v3064
  %3077 = vst [vmem:[#allocation4 + $0x50] sm:$0xff] %v3065
  %3078 = vst [vmem:[#allocation4 + $0x58] sm:$0xff] %v3066
  %3079 = vrot.lane.b32.xlu0 %v3001, 17
  %v3080 = vpop.permute.xlu0 %3079
  %3081 = vrot.lane.b32.xlu0 %v3002, 17
  %v3082 = vpop.permute.xlu0 %3081
  %3083 = vrot.lane.b32.xlu0 %v3003, 17
  %v3084 = vpop.permute.xlu0 %3083
  %3085 = vrot.lane.b32.xlu0 %v3004, 17
  %v3086 = vpop.permute.xlu0 %3085
  %3087 = vrot.lane.b32.xlu0 %v3005, 17
  %v3088 = vpop.permute.xlu0 %3087
  %3089 = vrot.lane.b32.xlu0 %v3006, 17
  %v3090 = vpop.permute.xlu0 %3089
  %3091 = vrot.lane.b32.xlu0 %v3007, 17
  %v3092 = vpop.permute.xlu0 %3091
  %v3093 = vsel %vm150, %v3080, %v3082
  %v3094 = vsel %vm150, %v3082, %v3084
  %v3095 = vsel %vm150, %v3084, %v3086
  %v3096 = vsel %vm150, %v3086, %v3088
  %v3097 = vsel %vm150, %v3088, %v3090
  %v3098 = vsel %vm150, %v3090, %v3092
  %3105 = vst [vmem:[#allocation4 + $0x60] sm:$0xff] %v3093
  %3106 = vst [vmem:[#allocation4 + $0x68] sm:$0xff] %v3094
  %3107 = vst [vmem:[#allocation4 + $0x70] sm:$0xff] %v3095
  %3108 = vst [vmem:[#allocation4 + $0x78] sm:$0xff] %v3096
  %3109 = vst [vmem:[#allocation4 + $0x80] sm:$0xff] %v3097
  %3110 = vst [vmem:[#allocation4 + $0x88] sm:$0xff] %v3098
  %3111 = vrot.lane.b32.xlu0 %v3001, 1
  %v3112 = vpop.permute.xlu0 %3111
  %3113 = vrot.lane.b32.xlu0 %v3002, 1
  %v3114 = vpop.permute.xlu0 %3113
  %3115 = vrot.lane.b32.xlu0 %v3003, 1
  %v3116 = vpop.permute.xlu0 %3115
  %3117 = vrot.lane.b32.xlu0 %v3004, 1
  %v3118 = vpop.permute.xlu0 %3117
  %3119 = vrot.lane.b32.xlu0 %v3005, 1
  %v3120 = vpop.permute.xlu0 %3119
  %3121 = vrot.lane.b32.xlu0 %v3006, 1
  %v3122 = vpop.permute.xlu0 %3121
  %3123 = vrot.lane.b32.xlu0 %v3007, 1
  %v3124 = vpop.permute.xlu0 %3123
  %v3125 = vsel %vm183, %v3112, %v3114
  %v3126 = vsel %vm183, %v3114, %v3116
  %v3127 = vsel %vm183, %v3116, %v3118
  %v3128 = vsel %vm183, %v3118, %v3120
  %v3129 = vsel %vm183, %v3120, %v3122
  %v3130 = vsel %vm183, %v3122, %v3124
  %3137 = vst [vmem:[#allocation4 + $0x90] sm:$0xff] %v3125
  %3138 = vst [vmem:[#allocation4 + $0x98] sm:$0xff] %v3126
  %3139 = vst [vmem:[#allocation4 + $0xa0] sm:$0xff] %v3127
  %3140 = vst [vmem:[#allocation4 + $0xa8] sm:$0xff] %v3128
  %3141 = vst [vmem:[#allocation4 + $0xb0] sm:$0xff] %v3129
  %3142 = vst [vmem:[#allocation4 + $0xb8] sm:$0xff] %v3130
  %3143 = vst [vmem:[#allocation4 + $0xc0] sm:$0xff] %v3002
  %3144 = vst [vmem:[#allocation4 + $0xc8] sm:$0xff] %v3003
  %3145 = vst [vmem:[#allocation4 + $0xd0] sm:$0xff] %v3004
  %3146 = vst [vmem:[#allocation4 + $0xd8] sm:$0xff] %v3005
  %3147 = vst [vmem:[#allocation4 + $0xe0] sm:$0xff] %v3006
  %3148 = vst [vmem:[#allocation4 + $0xe8] sm:$0xff] %v3007
  %v3149 = vpack.c.bf16 %v3000, %v2992
  %3151 = vrot.lane.b32.xlu0 %v3002, 127
  %v3152 = vpop.permute.xlu0 %3151
  %3153 = vrot.lane.b32.xlu0 %v3003, 127
  %v3154 = vpop.permute.xlu0 %3153
  %3155 = vrot.lane.b32.xlu0 %v3004, 127
  %v3156 = vpop.permute.xlu0 %3155
  %3157 = vrot.lane.b32.xlu0 %v3005, 127
  %v3158 = vpop.permute.xlu0 %3157
  %3159 = vrot.lane.b32.xlu0 %v3006, 127
  %v3160 = vpop.permute.xlu0 %3159
  %3161 = vrot.lane.b32.xlu0 %v3007, 127
  %v3162 = vpop.permute.xlu0 %3161
  %3163 = vrot.lane.b32.xlu0 %v3149, 127
  %v3164 = vpop.permute.xlu0 %3163
  %v3165 = vsel %vm224, %v3152, %v3154
  %v3166 = vsel %vm224, %v3154, %v3156
  %v3167 = vsel %vm224, %v3156, %v3158
  %v3168 = vsel %vm224, %v3158, %v3160
  %v3169 = vsel %vm224, %v3160, %v3162
  %v3170 = vsel %vm224, %v3162, %v3164
  %3177 = vst [vmem:[#allocation4 + $0xf0] sm:$0xff] %v3165
  %3178 = vst [vmem:[#allocation4 + $0xf8] sm:$0xff] %v3166
  %3179 = vst [vmem:[#allocation4 + $0x100] sm:$0xff] %v3167
  %3180 = vst [vmem:[#allocation4 + $0x108] sm:$0xff] %v3168
  %3181 = vst [vmem:[#allocation4 + $0x110] sm:$0xff] %v3169
  %3182 = vst [vmem:[#allocation4 + $0x118] sm:$0xff] %v3170
  %3183 = vrot.lane.b32.xlu0 %v3002, 111
  %v3184 = vpop.permute.xlu0 %3183
  %3185 = vrot.lane.b32.xlu0 %v3003, 111
  %v3186 = vpop.permute.xlu0 %3185
  %3187 = vrot.lane.b32.xlu0 %v3004, 111
  %v3188 = vpop.permute.xlu0 %3187
  %3189 = vrot.lane.b32.xlu0 %v3005, 111
  %v3190 = vpop.permute.xlu0 %3189
  %3191 = vrot.lane.b32.xlu0 %v3006, 111
  %v3192 = vpop.permute.xlu0 %3191
  %3193 = vrot.lane.b32.xlu0 %v3007, 111
  %v3194 = vpop.permute.xlu0 %3193
  %3195 = vrot.lane.b32.xlu0 %v3149, 111
  %v3196 = vpop.permute.xlu0 %3195
  %v3197 = vsel %vm257, %v3184, %v3186
  %v3198 = vsel %vm257, %v3186, %v3188
  %v3199 = vsel %vm257, %v3188, %v3190
  %v3200 = vsel %vm257, %v3190, %v3192
  %v3201 = vsel %vm257, %v3192, %v3194
  %v3202 = vsel %vm257, %v3194, %v3196
  %3209 = vst [vmem:[#allocation4 + $0x120] sm:$0xff] %v3197
  %3210 = vst [vmem:[#allocation4 + $0x128] sm:$0xff] %v3198
  %3211 = vst [vmem:[#allocation4 + $0x130] sm:$0xff] %v3199
  %3212 = vst [vmem:[#allocation4 + $0x138] sm:$0xff] %v3200
  %3213 = vst [vmem:[#allocation4 + $0x140] sm:$0xff] %v3201
  %3214 = vst [vmem:[#allocation4 + $0x148] sm:$0xff] %v3202
  %3215 = vrot.lane.b32.xlu0 %v3002, 110
  %v3216 = vpop.permute.xlu0 %3215
  %3217 = vrot.lane.b32.xlu0 %v3003, 110
  %v3218 = vpop.permute.xlu0 %3217
  %3219 = vrot.lane.b32.xlu0 %v3004, 110
  %v3220 = vpop.permute.xlu0 %3219
  %3221 = vrot.lane.b32.xlu0 %v3005, 110
  %v3222 = vpop.permute.xlu0 %3221
  %3223 = vrot.lane.b32.xlu0 %v3006, 110
  %v3224 = vpop.permute.xlu0 %3223
  %3225 = vrot.lane.b32.xlu0 %v3007, 110
  %v3226 = vpop.permute.xlu0 %3225
  %3227 = vrot.lane.b32.xlu0 %v3149, 110
  %v3228 = vpop.permute.xlu0 %3227
  %v3229 = vsel %vm290, %v3216, %v3218
  %v3230 = vsel %vm290, %v3218, %v3220
  %v3231 = vsel %vm290, %v3220, %v3222
  %v3232 = vsel %vm290, %v3222, %v3224
  %v3233 = vsel %vm290, %v3224, %v3226
  %v3234 = vsel %vm290, %v3226, %v3228
  %3241 = vst [vmem:[#allocation4 + $0x150] sm:$0xff] %v3229
  %3242 = vst [vmem:[#allocation4 + $0x158] sm:$0xff] %v3230
  %3243 = vst [vmem:[#allocation4 + $0x160] sm:$0xff] %v3231
  %3244 = vst [vmem:[#allocation4 + $0x168] sm:$0xff] %v3232
  %3245 = vst [vmem:[#allocation4 + $0x170] sm:$0xff] %v3233
  %3246 = vst [vmem:[#allocation4 + $0x178] sm:$0xff] %v3234
  %3247 = vrot.lane.b32.xlu0 %v3002, 109
  %v3248 = vpop.permute.xlu0 %3247
  %3249 = vrot.lane.b32.xlu0 %v3003, 109
  %v3250 = vpop.permute.xlu0 %3249
  %3251 = vrot.lane.b32.xlu0 %v3004, 109
  %v3252 = vpop.permute.xlu0 %3251
  %3253 = vrot.lane.b32.xlu0 %v3005, 109
  %v3254 = vpop.permute.xlu0 %3253
  %3255 = vrot.lane.b32.xlu0 %v3006, 109
  %v3256 = vpop.permute.xlu0 %3255
  %3257 = vrot.lane.b32.xlu0 %v3007, 109
  %v3258 = vpop.permute.xlu0 %3257
  %3259 = vrot.lane.b32.xlu0 %v3149, 109
  %v3260 = vpop.permute.xlu0 %3259
  %v3261 = vsel %vm323, %v3248, %v3250
  %v3262 = vsel %vm323, %v3250, %v3252
  %v3263 = vsel %vm323, %v3252, %v3254
  %v3264 = vsel %vm323, %v3254, %v3256
  %v3265 = vsel %vm323, %v3256, %v3258
  %v3266 = vsel %vm323, %v3258, %v3260
  %3273 = vst [vmem:[#allocation4 + $0x180] sm:$0xff] %v3261
  %3274 = vst [vmem:[#allocation4 + $0x188] sm:$0xff] %v3262
  %3275 = vst [vmem:[#allocation4 + $0x190] sm:$0xff] %v3263
  %3276 = vst [vmem:[#allocation4 + $0x198] sm:$0xff] %v3264
  %3277 = vst [vmem:[#allocation4 + $0x1a0] sm:$0xff] %v3265
  %3278 = vst [vmem:[#allocation4 + $0x1a8] sm:$0xff] %v3266
  %v3279 = vld [vmem:[%s2 + $0x78] sm:$0xff]
  %v3280 = vld [vmem:[%s2 + $0x84] sm:$0xff]
  %v3281 = vld [vmem:[%s2 + $0x90] sm:$0xff]
  %v3282 = vld [vmem:[%s2 + $0x9c] sm:$0xff]
  %v3283 = vld [vmem:[#allocation4] sm:$0xff]
  %v3284 = vld [vmem:[#allocation4 + $0x8] sm:$0xff]
  %v3285 = vld [vmem:[#allocation4 + $0x10] sm:$0xff]
  %v3286 = vld [vmem:[#allocation4 + $0x18] sm:$0xff]
  %v3287 = vld [vmem:[#allocation4 + $0x20] sm:$0xff]
  %v3288 = vld [vmem:[#allocation4 + $0x28] sm:$0xff]
  %v3289 = vld [vmem:[#allocation4 + $0x30] sm:$0xff]
  %v3290 = vld [vmem:[#allocation4 + $0x38] sm:$0xff]
  %v3291 = vld [vmem:[#allocation4 + $0x40] sm:$0xff]
  %v3292 = vld [vmem:[#allocation4 + $0x48] sm:$0xff]
  %v3293 = vld [vmem:[#allocation4 + $0x50] sm:$0xff]
  %v3294 = vld [vmem:[#allocation4 + $0x58] sm:$0xff]
  %v3295 = vld [vmem:[#allocation4 + $0x60] sm:$0xff]
  %v3296 = vld [vmem:[#allocation4 + $0x68] sm:$0xff]
  %v3297 = vld [vmem:[#allocation4 + $0x70] sm:$0xff]
  %v3298 = vld [vmem:[#allocation4 + $0x78] sm:$0xff]
  %v3299 = vld [vmem:[#allocation4 + $0x80] sm:$0xff]
  %v3300 = vld [vmem:[#allocation4 + $0x88] sm:$0xff]
  %v3301 = vld [vmem:[#allocation4 + $0x90] sm:$0xff]
  %v3302 = vld [vmem:[#allocation4 + $0x98] sm:$0xff]
  %v3303 = vld [vmem:[#allocation4 + $0xa0] sm:$0xff]
  %v3304 = vld [vmem:[#allocation4 + $0xa8] sm:$0xff]
  %v3305 = vld [vmem:[#allocation4 + $0xb0] sm:$0xff]
  %v3306 = vld [vmem:[#allocation4 + $0xb8] sm:$0xff]
  %v3307 = vld [vmem:[#allocation4 + $0xc0] sm:$0xff]
  %v3308 = vld [vmem:[#allocation4 + $0xc8] sm:$0xff]
  %v3309 = vld [vmem:[#allocation4 + $0xd0] sm:$0xff]
  %v3310 = vld [vmem:[#allocation4 + $0xd8] sm:$0xff]
  %v3311 = vld [vmem:[#allocation4 + $0xe0] sm:$0xff]
  %v3312 = vld [vmem:[#allocation4 + $0xe8] sm:$0xff]
  %v3313 = vld [vmem:[#allocation4 + $0xf0] sm:$0xff]
  %v3314 = vld [vmem:[#allocation4 + $0xf8] sm:$0xff]
  %v3315 = vld [vmem:[#allocation4 + $0x100] sm:$0xff]
  %v3316 = vld [vmem:[#allocation4 + $0x108] sm:$0xff]
  %v3317 = vld [vmem:[#allocation4 + $0x110] sm:$0xff]
  %v3318 = vld [vmem:[#allocation4 + $0x118] sm:$0xff]
  %v3319 = vld [vmem:[#allocation4 + $0x120] sm:$0xff]
  %v3320 = vld [vmem:[#allocation4 + $0x128] sm:$0xff]
  %v3321 = vld [vmem:[#allocation4 + $0x130] sm:$0xff]
  %v3322 = vld [vmem:[#allocation4 + $0x138] sm:$0xff]
  %v3323 = vld [vmem:[#allocation4 + $0x140] sm:$0xff]
  %v3324 = vld [vmem:[#allocation4 + $0x148] sm:$0xff]
  %v3325 = vld [vmem:[#allocation4 + $0x150] sm:$0xff]
  %v3326 = vld [vmem:[#allocation4 + $0x158] sm:$0xff]
  %v3327 = vld [vmem:[#allocation4 + $0x160] sm:$0xff]
  %v3328 = vld [vmem:[#allocation4 + $0x168] sm:$0xff]
  %v3329 = vld [vmem:[#allocation4 + $0x170] sm:$0xff]
  %v3330 = vld [vmem:[#allocation4 + $0x178] sm:$0xff]
  %v3331 = vld [vmem:[#allocation4 + $0x180] sm:$0xff]
  %v3332 = vld [vmem:[#allocation4 + $0x188] sm:$0xff]
  %v3333 = vld [vmem:[#allocation4 + $0x190] sm:$0xff]
  %v3334 = vld [vmem:[#allocation4 + $0x198] sm:$0xff]
  %v3335 = vld [vmem:[#allocation4 + $0x1a0] sm:$0xff]
  %v3336 = vld [vmem:[#allocation4 + $0x1a8] sm:$0xff]
  %v3337 = vld [vmem:[%s3 + $0x50] sm:$0xff]
  %v3338 = vld [vmem:[%s3 + $0x58] sm:$0xff]
  %v3339 = vld [vmem:[%s3 + $0x60] sm:$0xff]
  %v3340 = vld [vmem:[%s3 + $0x68] sm:$0xff]
  %3342 = vset.pattern.permute.xlu0 0
  %3343 = vperm.xlu0 %3342, %v3337
  %v3344 = vpop.permute.xlu0 %3343
  %3347 = vset.pattern.permute.xlu0 0
  %3348 = vperm.xlu0 %3347, %v3338
  %v3349 = vpop.permute.xlu0 %3348
  %3352 = vset.pattern.permute.xlu0 0
  %3353 = vperm.xlu0 %3352, %v3339
  %v3354 = vpop.permute.xlu0 %3353
  %3357 = vset.pattern.permute.xlu0 0
  %3358 = vperm.xlu0 %3357, %v3340
  %v3359 = vpop.permute.xlu0 %3358
  %v3365 = vunpack.c.l.b16 %v3279
  %v3366 = vunpack.c.h.b16 %v3279
  %v3367 = vunpack.c.l.b16 %v3280
  %v3368 = vunpack.c.h.b16 %v3280
  %v3369 = vunpack.c.l.b16 %v3281
  %v3370 = vunpack.c.h.b16 %v3281
  %v3371 = vunpack.c.l.b16 %v3282
  %v3372 = vunpack.c.h.b16 %v3282
  %v3373 = vpack.c.b16 %v3367, %v3365
  %v3374 = vpack.c.b16 %v3368, %v3366
  %v3375 = vpack.c.b16 %v3371, %v3369
  %v3376 = vpack.c.b16 %v3372, %v3370
  %v3380 = vsel %vm419, %v3374, 0
  %v3383 = vsel %vm419, %v3376, 0
  %3385 = vmatprep.subr.bf16.mxu0 %v3284
  %3386 = vmatpush1.bf16.msra.mxu0 %v3283
  %3387 = vmatprep.subr.bf16.mxu0 %v3290
  %3388 = vmatpush1.bf16.msra.mxu0 %v3289
  %3389 = vmatprep.subr.bf16.mxu0 %v3296
  %3390 = vmatpush1.bf16.msra.mxu0 %v3295
  %3391 = vmatprep.subr.bf16.mxu0 %v3302
  %3392 = vmatpush1.bf16.msra.mxu0 %v3301
  %3393 = vmatprep.subr.bf16.mxu0 %v3308
  %3394 = vmatpush1.bf16.msra.mxu0 %v3307
  %3395 = vmatprep.subr.bf16.mxu0 %v3314
  %3396 = vmatpush1.bf16.msra.mxu0 %v3313
  %3397 = vmatprep.subr.bf16.mxu0 %v3320
  %3398 = vmatpush1.bf16.msra.mxu0 %v3319
  %3399 = vmatprep.subr.bf16.mxu0 %v3326
  %3400 = vmatpush1.bf16.msra.mxu0 %v3325
  %3401 = vmatprep.subr.bf16.mxu0 %v3332
  %3402 = vmatpush1.bf16.msra.mxu0 %v3331
  %3403 = vmatprep.subr.bf16.mxu0 0
  %3404 = vmatpush1.bf16.msra.mxu0 0
  %3405 = vmatprep.subr.bf16.mxu0 0
  %3406 = vmatpush1.bf16.msra.mxu0 0
  %3407 = vmatprep.subr.bf16.mxu0 0
  %3408 = vmatpush1.bf16.msra.mxu0 0
  %3409 = vmatprep.subr.bf16.mxu0 0
  %3410 = vmatpush1.bf16.msra.mxu0 0
  %3411 = vmatprep.subr.bf16.mxu0 0
  %3412 = vmatpush1.bf16.msra.mxu0 0
  %3413 = vmatprep.subr.bf16.mxu0 0
  %3414 = vmatpush1.bf16.msra.mxu0 0
  %3415 = vmatprep.subr.bf16.mxu0 0
  %3416 = vmatpush1.bf16.msra.mxu0 0
  %3417 = vmatprep.mubr.bf16.mxu0 %v3380
  %3418 = vmatmul.mubr.bf16.gmra.mrb[0].mxu0 %v3373
  %v3419 = vpop.f32.mrb[0].mxu0
  %v3420 = vadd.f32 %v3344, %v3419
  %v3421 = vpop.f32.mrb[0].mxu0
  %v3422 = vadd.f32 %v3344, %v3421
  %v3423 = vpop.f32.mrb[0].mxu0
  %v3424 = vadd.f32 %v3349, %v3423
  %v3425 = vpop.f32.mrb[0].mxu0
  %v3426 = vadd.f32 %v3349, %v3425
  %3427 = vmatprep.mubr.bf16.mxu0 %v3383
  %3428 = vmatmul.mubr.bf16.gmra.mrb[0].mxu0 %v3375
  %v3429 = vpop.f32.mrb[0].mxu0
  %v3430 = vadd.f32 %v3354, %v3429
  %v3431 = vpop.f32.mrb[0].mxu0
  %v3432 = vadd.f32 %v3354, %v3431
  %v3433 = vpop.f32.mrb[0].mxu0
  %v3434 = vadd.f32 %v3359, %v3433
  %v3435 = vpop.f32.mrb[0].mxu0
  %v3436 = vadd.f32 %v3359, %v3435
  %3437 = vdwg.mxu0
  %3438 = vmatprep.subr.bf16.mxu0 %v3286
  %3439 = vmatpush1.bf16.msra.mxu0 %v3285
  %3440 = vmatprep.subr.bf16.mxu0 %v3292
  %3441 = vmatpush1.bf16.msra.mxu0 %v3291
  %3442 = vmatprep.subr.bf16.mxu0 %v3298
  %3443 = vmatpush1.bf16.msra.mxu0 %v3297
  %3444 = vmatprep.subr.bf16.mxu0 %v3304
  %3445 = vmatpush1.bf16.msra.mxu0 %v3303
  %3446 = vmatprep.subr.bf16.mxu0 %v3310
  %3447 = vmatpush1.bf16.msra.mxu0 %v3309
  %3448 = vmatprep.subr.bf16.mxu0 %v3316
  %3449 = vmatpush1.bf16.msra.mxu0 %v3315
  %3450 = vmatprep.subr.bf16.mxu0 %v3322
  %3451 = vmatpush1.bf16.msra.mxu0 %v3321
  %3452 = vmatprep.subr.bf16.mxu0 %v3328
  %3453 = vmatpush1.bf16.msra.mxu0 %v3327
  %3454 = vmatprep.subr.bf16.mxu0 %v3334
  %3455 = vmatpush1.bf16.msra.mxu0 %v3333
  %3456 = vmatprep.subr.bf16.mxu0 0
  %3457 = vmatpush1.bf16.msra.mxu0 0
  %3458 = vmatprep.subr.bf16.mxu0 0
  %3459 = vmatpush1.bf16.msra.mxu0 0
  %3460 = vmatprep.subr.bf16.mxu0 0
  %3461 = vmatpush1.bf16.msra.mxu0 0
  %3462 = vmatprep.subr.bf16.mxu0 0
  %3463 = vmatpush1.bf16.msra.mxu0 0
  %3464 = vmatprep.subr.bf16.mxu0 0
  %3465 = vmatpush1.bf16.msra.mxu0 0
  %3466 = vmatprep.subr.bf16.mxu0 0
  %3467 = vmatpush1.bf16.msra.mxu0 0
  %3468 = vmatprep.subr.bf16.mxu0 0
  %3469 = vmatpush1.bf16.msra.mxu0 0
  %3470 = vmatprep.mubr.bf16.mxu0 %v3380
  %3471 = vmatmul.mubr.bf16.gmra.mrb[0].mxu0 %v3373
  %v3472 = vpop.f32.mrb[0].mxu0
  %v3473 = vadd.f32 %v3344, %v3472
  %v3474 = vpop.f32.mrb[0].mxu0
  %v3475 = vadd.f32 %v3344, %v3474
  %v3476 = vpop.f32.mrb[0].mxu0
  %v3477 = vadd.f32 %v3349, %v3476
  %v3478 = vpop.f32.mrb[0].mxu0
  %v3479 = vadd.f32 %v3349, %v3478
  %3480 = vmatprep.mubr.bf16.mxu0 %v3383
  %3481 = vmatmul.mubr.bf16.gmra.mrb[0].mxu0 %v3375
  %v3482 = vpop.f32.mrb[0].mxu0
  %v3483 = vadd.f32 %v3354, %v3482
  %v3484 = vpop.f32.mrb[0].mxu0
  %v3485 = vadd.f32 %v3354, %v3484
  %v3486 = vpop.f32.mrb[0].mxu0
  %v3487 = vadd.f32 %v3359, %v3486
  %v3488 = vpop.f32.mrb[0].mxu0
  %v3489 = vadd.f32 %v3359, %v3488
  %3490 = vdwg.mxu0
  %3491 = vmatprep.subr.bf16.mxu0 %v3288
  %3492 = vmatpush1.bf16.msra.mxu0 %v3287
  %3493 = vmatprep.subr.bf16.mxu0 %v3294
  %3494 = vmatpush1.bf16.msra.mxu0 %v3293
  %3495 = vmatprep.subr.bf16.mxu0 %v3300
  %3496 = vmatpush1.bf16.msra.mxu0 %v3299
  %3497 = vmatprep.subr.bf16.mxu0 %v3306
  %3498 = vmatpush1.bf16.msra.mxu0 %v3305
  %3499 = vmatprep.subr.bf16.mxu0 %v3312
  %3500 = vmatpush1.bf16.msra.mxu0 %v3311
  %3501 = vmatprep.subr.bf16.mxu0 %v3318
  %3502 = vmatpush1.bf16.msra.mxu0 %v3317
  %3503 = vmatprep.subr.bf16.mxu0 %v3324
  %3504 = vmatpush1.bf16.msra.mxu0 %v3323
  %3505 = vmatprep.subr.bf16.mxu0 %v3330
  %3506 = vmatpush1.bf16.msra.mxu0 %v3329
  %3507 = vmatprep.subr.bf16.mxu0 %v3336
  %3508 = vmatpush1.bf16.msra.mxu0 %v3335
  %3509 = vmatprep.subr.bf16.mxu0 0
  %3510 = vmatpush1.bf16.msra.mxu0 0
  %3511 = vmatprep.subr.bf16.mxu0 0
  %3512 = vmatpush1.bf16.msra.mxu0 0
  %3513 = vmatprep.subr.bf16.mxu0 0
  %3514 = vmatpush1.bf16.msra.mxu0 0
  %3515 = vmatprep.subr.bf16.mxu0 0
  %3516 = vmatpush1.bf16.msra.mxu0 0
  %3517 = vmatprep.subr.bf16.mxu0 0
  %3518 = vmatpush1.bf16.msra.mxu0 0
  %3519 = vmatprep.subr.bf16.mxu0 0
  %3520 = vmatpush1.bf16.msra.mxu0 0
  %3521 = vmatprep.subr.bf16.mxu0 0
  %3522 = vmatpush1.bf16.msra.mxu0 0
  %3523 = vmatprep.mubr.bf16.mxu0 %v3380
  %3524 = vmatmul.mubr.bf16.gmra.mrb[0].mxu0 %v3373
  %v3525 = vpop.f32.mrb[0].mxu0
  %v3526 = vadd.f32 %v3344, %v3525
  %v3527 = vpop.f32.mrb[0].mxu0
  %v3528 = vadd.f32 %v3344, %v3527
  %v3529 = vpop.f32.mrb[0].mxu0
  %v3530 = vadd.f32 %v3349, %v3529
  %v3531 = vpop.f32.mrb[0].mxu0
  %v3532 = vadd.f32 %v3349, %v3531
  %3533 = vmatprep.mubr.bf16.mxu0 %v3383
  %3534 = vmatmul.mubr.bf16.gmra.mrb[0].mxu0 %v3375
  %v3535 = vpop.f32.mrb[0].mxu0
  %v3536 = vadd.f32 %v3354, %v3535
  %v3537 = vpop.f32.mrb[0].mxu0
  %v3538 = vadd.f32 %v3354, %v3537
  %v3539 = vpop.f32.mrb[0].mxu0
  %v3540 = vadd.f32 %v3359, %v3539
  %v3541 = vpop.f32.mrb[0].mxu0
  %v3542 = vadd.f32 %v3359, %v3541
  %3543 = vdwg.mxu0
  %v3544 = vmax.f32 %v3420, 0.0
  %v3545 = vmax.f32 %v3422, 0.0
  %v3546 = vmax.f32 %v3473, 0.0
  %v3547 = vmax.f32 %v3475, 0.0
  %v3548 = vmax.f32 %v3526, 0.0
  %v3549 = vmax.f32 %v3528, 0.0
  %v3550 = vmax.f32 %v3424, 0.0
  %v3551 = vmax.f32 %v3426, 0.0
  %v3552 = vmax.f32 %v3477, 0.0
  %v3553 = vmax.f32 %v3479, 0.0
  %v3554 = vmax.f32 %v3530, 0.0
  %v3555 = vmax.f32 %v3532, 0.0
  %v3556 = vmax.f32 %v3430, 0.0
  %v3557 = vmax.f32 %v3432, 0.0
  %v3558 = vmax.f32 %v3483, 0.0
  %v3559 = vmax.f32 %v3485, 0.0
  %v3560 = vmax.f32 %v3536, 0.0
  %v3561 = vmax.f32 %v3538, 0.0
  %v3562 = vmax.f32 %v3434, 0.0
  %v3563 = vmax.f32 %v3436, 0.0
  %v3564 = vmax.f32 %v3487, 0.0
  %v3565 = vmax.f32 %v3489, 0.0
  %v3566 = vmax.f32 %v3540, 0.0
  %v3567 = vmax.f32 %v3542, 0.0
  %v3568 = vlaneseq
  %v3569 = vshrl.u32 %v3568, 7
  %v3570 = vsub.s32 1, %v3569
  %v3571 = vrot.slane %v34, %v3570
  %v3572 = vlaneseq
  %v3573 = vshrl.u32 %v3572, 7
  %v3574 = vsub.s32 1, %v3573
  %v3575 = vrot.slane %v35, %v3574
  %v3576 = vlaneseq
  %v3577 = vshrl.u32 %v3576, 7
  %v3578 = vsub.s32 1, %v3577
  %v3579 = vrot.slane %v36, %v3578
  %v3580 = vlaneseq
  %v3581 = vshrl.u32 %v3580, 7
  %v3582 = vsub.s32 1, %v3581
  %v3583 = vrot.slane %v37, %v3582
  %v3584 = vlaneseq
  %v3585 = vshrl.u32 %v3584, 7
  %v3586 = vsub.s32 1, %v3585
  %v3587 = vrot.slane %v38, %v3586
  %v3588 = vlaneseq
  %v3589 = vshrl.u32 %v3588, 7
  %v3590 = vsub.s32 1, %v3589
  %v3591 = vrot.slane %v39, %v3590
  %v3592 = vmul.f32 %v3544, %v3571
  %v3593 = vmul.f32 %v3545, %v3575
  %v3594 = vmul.f32 %v3546, %v3579
  %v3595 = vmul.f32 %v3547, %v3583
  %v3596 = vmul.f32 %v3548, %v3587
  %v3597 = vmul.f32 %v3549, %v3591
  %v3598 = vmul.f32 %v3550, %v3571
  %v3599 = vmul.f32 %v3551, %v3575
  %v3600 = vmul.f32 %v3552, %v3579
  %v3601 = vmul.f32 %v3553, %v3583
  %v3602 = vmul.f32 %v3554, %v3587
  %v3603 = vmul.f32 %v3555, %v3591
  %v3604 = vmul.f32 %v3556, %v3571
  %v3605 = vmul.f32 %v3557, %v3575
  %v3606 = vmul.f32 %v3558, %v3579
  %v3607 = vmul.f32 %v3559, %v3583
  %v3608 = vmul.f32 %v3560, %v3587
  %v3609 = vmul.f32 %v3561, %v3591
  %v3610 = vmul.f32 %v3562, %v3571
  %v3611 = vmul.f32 %v3563, %v3575
  %v3612 = vmul.f32 %v3564, %v3579
  %v3613 = vmul.f32 %v3565, %v3583
  %v3614 = vmul.f32 %v3566, %v3587
  %v3615 = vmul.f32 %v3567, %v3591
  %3616 = vst [vmem:[#allocation3 + $0x8] sm:$0xff] %v3592
  %3617 = vst [vmem:[#allocation3 + $0x10] sm:$0xff] %v3593
  %3618 = vst [vmem:[#allocation3 + $0x18] sm:$0xff] %v3594
  %3619 = vst [vmem:[#allocation3 + $0x20] sm:$0xff] %v3595
  %3620 = vst [vmem:[#allocation3 + $0x28] sm:$0xff] %v3596
  %3621 = vst [vmem:[#allocation3 + $0x30] sm:$0xff] %v3597
  %3622 = vst [vmem:[#allocation3 + $0x48] sm:$0xff] %v3598
  %3623 = vst [vmem:[#allocation3 + $0x50] sm:$0xff] %v3599
  %3624 = vst [vmem:[#allocation3 + $0x58] sm:$0xff] %v3600
  %3625 = vst [vmem:[#allocation3 + $0x60] sm:$0xff] %v3601
  %3626 = vst [vmem:[#allocation3 + $0x68] sm:$0xff] %v3602
  %3627 = vst [vmem:[#allocation3 + $0x70] sm:$0xff] %v3603
  %3628 = vst [vmem:[#allocation3 + $0x88] sm:$0xff] %v3604
  %3629 = vst [vmem:[#allocation3 + $0x90] sm:$0xff] %v3605
  %3630 = vst [vmem:[#allocation3 + $0x98] sm:$0xff] %v3606
  %3631 = vst [vmem:[#allocation3 + $0xa0] sm:$0xff] %v3607
  %3632 = vst [vmem:[#allocation3 + $0xa8] sm:$0xff] %v3608
  %3633 = vst [vmem:[#allocation3 + $0xb0] sm:$0xff] %v3609
  %3634 = vst [vmem:[#allocation3 + $0xc8] sm:$0xff] %v3610
  %3635 = vst [vmem:[#allocation3 + $0xd0] sm:$0xff] %v3611
  %3636 = vst [vmem:[#allocation3 + $0xd8] sm:$0xff] %v3612
  %3637 = vst [vmem:[#allocation3 + $0xe0] sm:$0xff] %v3613
  %3638 = vst [vmem:[#allocation3 + $0xe8] sm:$0xff] %v3614
  %3639 = vst [vmem:[#allocation3 + $0xf0] sm:$0xff] %v3615
  %v3640 = vld [vmem:[#allocation2 + $0x8] sm:$0xff]
  %v3641 = vld [vmem:[#allocation2 + $0x10] sm:$0xff]
  %v3642 = vld [vmem:[#allocation2 + $0x18] sm:$0xff]
  %v3643 = vld [vmem:[#allocation2 + $0x20] sm:$0xff]
  %v3644 = vld [vmem:[#allocation2 + $0x28] sm:$0xff]
  %v3645 = vld [vmem:[#allocation2 + $0x30] sm:$0xff]
  %v3646 = vld [vmem:[#allocation2 + $0x48] sm:$0xff]
  %v3647 = vld [vmem:[#allocation2 + $0x50] sm:$0xff]
  %v3648 = vld [vmem:[#allocation2 + $0x58] sm:$0xff]
  %v3649 = vld [vmem:[#allocation2 + $0x60] sm:$0xff]
  %v3650 = vld [vmem:[#allocation2 + $0x68] sm:$0xff]
  %v3651 = vld [vmem:[#allocation2 + $0x70] sm:$0xff]
  %v3652 = vpack.c.bf16 %v3646, %v3640
  %v3653 = vpack.c.bf16 %v3647, %v3641
  %v3654 = vpack.c.bf16 %v3648, %v3642
  %v3655 = vpack.c.bf16 %v3649, %v3643
  %v3656 = vpack.c.bf16 %v3650, %v3644
  %v3657 = vpack.c.bf16 %v3651, %v3645
  %v3658 = vld [vmem:[%s2 + $0x150] sm:$0xf]
  %v3659 = vld [vmem:[%s2 + $0x15c] sm:$0xf]
  %v3660 = vld [vmem:[%s2 + $0x168] sm:$0xf]
  %v3661 = vld [vmem:[%s2 + $0x174] sm:$0xf]
  %v3662 = vld [vmem:[%s3 + $0xe0] sm:$0xff]
  %v3663 = vld [vmem:[%s3 + $0xe8] sm:$0xff]
  %v3664 = vld [vmem:[%s3 + $0xf0] sm:$0xff]
  %v3665 = vld [vmem:[%s3 + $0xf8] sm:$0xff]
  %3667 = vset.pattern.permute.xlu0 0
  %3668 = vperm.xlu0 %3667, %v3662
  %v3669 = vpop.permute.xlu0 %3668
  %3672 = vset.pattern.permute.xlu0 0
  %3673 = vperm.xlu0 %3672, %v3663
  %v3674 = vpop.permute.xlu0 %3673
  %3677 = vset.pattern.permute.xlu0 0
  %3678 = vperm.xlu0 %3677, %v3664
  %v3679 = vpop.permute.xlu0 %3678
  %3682 = vset.pattern.permute.xlu0 0
  %3683 = vperm.xlu0 %3682, %v3665
  %v3684 = vpop.permute.xlu0 %3683
  %v3690 = vunpack.c.l.b16 %v3658
  %v3691 = vunpack.c.l.b16 %v3659
  %v3692 = vunpack.c.l.b16 %v3660
  %v3693 = vunpack.c.l.b16 %v3661
  %v3694 = vpack.c.b16 %v3691, %v3690
  %v3695 = vpack.c.b16 %v3693, %v3692
  %v3697 = vsel %vm419, %v3694, 0
  %v3700 = vsel %vm419, %v3695, 0
  %3702 = vmatprep.subr.bf16.mxu0 %v3653
  %3703 = vmatpush1.bf16.msra.mxu0 %v3652
  %3704 = vmatprep.subr.bf16.mxu0 0
  %3705 = vmatpush1.bf16.msra.mxu0 0
  %3706 = vmatprep.subr.bf16.mxu0 0
  %3707 = vmatpush1.bf16.msra.mxu0 0
  %3708 = vmatprep.subr.bf16.mxu0 0
  %3709 = vmatpush1.bf16.msra.mxu0 0
  %3710 = vmatprep.subr.bf16.mxu0 0
  %3711 = vmatpush1.bf16.msra.mxu0 0
  %3712 = vmatprep.subr.bf16.mxu0 0
  %3713 = vmatpush1.bf16.msra.mxu0 0
  %3714 = vmatprep.subr.bf16.mxu0 0
  %3715 = vmatpush1.bf16.msra.mxu0 0
  %3716 = vmatprep.subr.bf16.mxu0 0
  %3717 = vmatpush1.bf16.msra.mxu0 0
  %3718 = vmatprep.subr.bf16.mxu0 0
  %3719 = vmatpush1.bf16.msra.mxu0 0
  %3720 = vmatprep.subr.bf16.mxu0 0
  %3721 = vmatpush1.bf16.msra.mxu0 0
  %3722 = vmatprep.subr.bf16.mxu0 0
  %3723 = vmatpush1.bf16.msra.mxu0 0
  %3724 = vmatprep.subr.bf16.mxu0 0
  %3725 = vmatpush1.bf16.msra.mxu0 0
  %3726 = vmatprep.subr.bf16.mxu0 0
  %3727 = vmatpush1.bf16.msra.mxu0 0
  %3728 = vmatprep.subr.bf16.mxu0 0
  %3729 = vmatpush1.bf16.msra.mxu0 0
  %3730 = vmatprep.subr.bf16.mxu0 0
  %3731 = vmatpush1.bf16.msra.mxu0 0
  %3732 = vmatprep.subr.bf16.mxu0 0
  %3733 = vmatpush1.bf16.msra.mxu0 0
  %3734 = vmatprep.mubr.bf16.mxu0 0
  %3735 = vmatmul.mubr.bf16.gmra.mrb[0].mxu0 %v3697
  %v3736 = vpop.f32.mrb[0].mxu0
  %v3737 = vadd.f32 %v3669, %v3736
  %v3738 = vpop.f32.mrb[0].mxu0
  %v3739 = vadd.f32 %v3669, %v3738
  %v3740 = vpop.f32.mrb[0].mxu0
  %v3741 = vadd.f32 %v3674, %v3740
  %v3742 = vpop.f32.mrb[0].mxu0
  %v3743 = vadd.f32 %v3674, %v3742
  %3744 = vmatprep.mubr.bf16.mxu0 0
  %3745 = vmatmul.mubr.bf16.gmra.mrb[0].mxu0 %v3700
  %v3746 = vpop.f32.mrb[0].mxu0
  %v3747 = vadd.f32 %v3679, %v3746
  %v3748 = vpop.f32.mrb[0].mxu0
  %v3749 = vadd.f32 %v3679, %v3748
  %v3750 = vpop.f32.mrb[0].mxu0
  %v3751 = vadd.f32 %v3684, %v3750
  %v3752 = vpop.f32.mrb[0].mxu0
  %v3753 = vadd.f32 %v3684, %v3752
  %3754 = vdwg.mxu0
  %3755 = vmatprep.subr.bf16.mxu0 %v3655
  %3756 = vmatpush1.bf16.msra.mxu0 %v3654
  %3757 = vmatprep.subr.bf16.mxu0 0
  %3758 = vmatpush1.bf16.msra.mxu0 0
  %3759 = vmatprep.subr.bf16.mxu0 0
  %3760 = vmatpush1.bf16.msra.mxu0 0
  %3761 = vmatprep.subr.bf16.mxu0 0
  %3762 = vmatpush1.bf16.msra.mxu0 0
  %3763 = vmatprep.subr.bf16.mxu0 0
  %3764 = vmatpush1.bf16.msra.mxu0 0
  %3765 = vmatprep.subr.bf16.mxu0 0
  %3766 = vmatpush1.bf16.msra.mxu0 0
  %3767 = vmatprep.subr.bf16.mxu0 0
  %3768 = vmatpush1.bf16.msra.mxu0 0
  %3769 = vmatprep.subr.bf16.mxu0 0
  %3770 = vmatpush1.bf16.msra.mxu0 0
  %3771 = vmatprep.subr.bf16.mxu0 0
  %3772 = vmatpush1.bf16.msra.mxu0 0
  %3773 = vmatprep.subr.bf16.mxu0 0
  %3774 = vmatpush1.bf16.msra.mxu0 0
  %3775 = vmatprep.subr.bf16.mxu0 0
  %3776 = vmatpush1.bf16.msra.mxu0 0
  %3777 = vmatprep.subr.bf16.mxu0 0
  %3778 = vmatpush1.bf16.msra.mxu0 0
  %3779 = vmatprep.subr.bf16.mxu0 0
  %3780 = vmatpush1.bf16.msra.mxu0 0
  %3781 = vmatprep.subr.bf16.mxu0 0
  %3782 = vmatpush1.bf16.msra.mxu0 0
  %3783 = vmatprep.subr.bf16.mxu0 0
  %3784 = vmatpush1.bf16.msra.mxu0 0
  %3785 = vmatprep.subr.bf16.mxu0 0
  %3786 = vmatpush1.bf16.msra.mxu0 0
  %3787 = vmatprep.mubr.bf16.mxu0 0
  %3788 = vmatmul.mubr.bf16.gmra.mrb[0].mxu0 %v3697
  %v3789 = vpop.f32.mrb[0].mxu0
  %v3790 = vadd.f32 %v3669, %v3789
  %v3791 = vpop.f32.mrb[0].mxu0
  %v3792 = vadd.f32 %v3669, %v3791
  %v3793 = vpop.f32.mrb[0].mxu0
  %v3794 = vadd.f32 %v3674, %v3793
  %v3795 = vpop.f32.mrb[0].mxu0
  %v3796 = vadd.f32 %v3674, %v3795
  %3797 = vmatprep.mubr.bf16.mxu0 0
  %3798 = vmatmul.mubr.bf16.gmra.mrb[0].mxu0 %v3700
  %v3799 = vpop.f32.mrb[0].mxu0
  %v3800 = vadd.f32 %v3679, %v3799
  %v3801 = vpop.f32.mrb[0].mxu0
  %v3802 = vadd.f32 %v3679, %v3801
  %v3803 = vpop.f32.mrb[0].mxu0
  %v3804 = vadd.f32 %v3684, %v3803
  %v3805 = vpop.f32.mrb[0].mxu0
  %v3806 = vadd.f32 %v3684, %v3805
  %3807 = vdwg.mxu0
  %3808 = vmatprep.subr.bf16.mxu0 %v3657
  %3809 = vmatpush1.bf16.msra.mxu0 %v3656
  %3810 = vmatprep.subr.bf16.mxu0 0
  %3811 = vmatpush1.bf16.msra.mxu0 0
  %3812 = vmatprep.subr.bf16.mxu0 0
  %3813 = vmatpush1.bf16.msra.mxu0 0
  %3814 = vmatprep.subr.bf16.mxu0 0
  %3815 = vmatpush1.bf16.msra.mxu0 0
  %3816 = vmatprep.subr.bf16.mxu0 0
  %3817 = vmatpush1.bf16.msra.mxu0 0
  %3818 = vmatprep.subr.bf16.mxu0 0
  %3819 = vmatpush1.bf16.msra.mxu0 0
  %3820 = vmatprep.subr.bf16.mxu0 0
  %3821 = vmatpush1.bf16.msra.mxu0 0
  %3822 = vmatprep.subr.bf16.mxu0 0
  %3823 = vmatpush1.bf16.msra.mxu0 0
  %3824 = vmatprep.subr.bf16.mxu0 0
  %3825 = vmatpush1.bf16.msra.mxu0 0
  %3826 = vmatprep.subr.bf16.mxu0 0
  %3827 = vmatpush1.bf16.msra.mxu0 0
  %3828 = vmatprep.subr.bf16.mxu0 0
  %3829 = vmatpush1.bf16.msra.mxu0 0
  %3830 = vmatprep.subr.bf16.mxu0 0
  %3831 = vmatpush1.bf16.msra.mxu0 0
  %3832 = vmatprep.subr.bf16.mxu0 0
  %3833 = vmatpush1.bf16.msra.mxu0 0
  %3834 = vmatprep.subr.bf16.mxu0 0
  %3835 = vmatpush1.bf16.msra.mxu0 0
  %3836 = vmatprep.subr.bf16.mxu0 0
  %3837 = vmatpush1.bf16.msra.mxu0 0
  %3838 = vmatprep.subr.bf16.mxu0 0
  %3839 = vmatpush1.bf16.msra.mxu0 0
  %3840 = vmatprep.mubr.bf16.mxu0 0
  %3841 = vmatmul.mubr.bf16.gmra.mrb[0].mxu0 %v3697
  %v3842 = vpop.f32.mrb[0].mxu0
  %v3843 = vadd.f32 %v3669, %v3842
  %v3844 = vpop.f32.mrb[0].mxu0
  %v3845 = vadd.f32 %v3669, %v3844
  %v3846 = vpop.f32.mrb[0].mxu0
  %v3847 = vadd.f32 %v3674, %v3846
  %v3848 = vpop.f32.mrb[0].mxu0
  %v3849 = vadd.f32 %v3674, %v3848
  %3850 = vmatprep.mubr.bf16.mxu0 0
  %3851 = vmatmul.mubr.bf16.gmra.mrb[0].mxu0 %v3700
  %v3852 = vpop.f32.mrb[0].mxu0
  %v3853 = vadd.f32 %v3679, %v3852
  %v3854 = vpop.f32.mrb[0].mxu0
  %v3855 = vadd.f32 %v3679, %v3854
  %v3856 = vpop.f32.mrb[0].mxu0
  %v3857 = vadd.f32 %v3684, %v3856
  %v3858 = vpop.f32.mrb[0].mxu0
  %v3859 = vadd.f32 %v3684, %v3858
  %3860 = vdwg.mxu0
  %v3861 = vld [vmem:[#allocation3] sm:$0xff]
  %v3862 = vld [vmem:[#allocation3 + $0x8] sm:$0xff]
  %v3863 = vld [vmem:[#allocation3 + $0x10] sm:$0xff]
  %v3864 = vld [vmem:[#allocation3 + $0x18] sm:$0xff]
  %v3865 = vld [vmem:[#allocation3 + $0x20] sm:$0xff]
  %v3866 = vld [vmem:[#allocation3 + $0x28] sm:$0xff]
  %v3867 = vld [vmem:[#allocation3 + $0x30] sm:$0xff]
  %v3868 = vld [vmem:[#allocation3 + $0x38] sm:$0xff]
  %v3869 = vld [vmem:[#allocation3 + $0x40] sm:$0xff]
  %v3870 = vld [vmem:[#allocation3 + $0x48] sm:$0xff]
  %v3871 = vld [vmem:[#allocation3 + $0x50] sm:$0xff]
  %v3872 = vld [vmem:[#allocation3 + $0x58] sm:$0xff]
  %v3873 = vld [vmem:[#allocation3 + $0x60] sm:$0xff]
  %v3874 = vld [vmem:[#allocation3 + $0x68] sm:$0xff]
  %v3875 = vld [vmem:[#allocation3 + $0x70] sm:$0xff]
  %v3876 = vld [vmem:[#allocation3 + $0x78] sm:$0xff]
  %v3877 = vld [vmem:[#allocation3 + $0x80] sm:$0xff]
  %v3878 = vld [vmem:[#allocation3 + $0x88] sm:$0xff]
  %v3879 = vld [vmem:[#allocation3 + $0x90] sm:$0xff]
  %v3880 = vld [vmem:[#allocation3 + $0x98] sm:$0xff]
  %v3881 = vld [vmem:[#allocation3 + $0xa0] sm:$0xff]
  %v3882 = vld [vmem:[#allocation3 + $0xa8] sm:$0xff]
  %v3883 = vld [vmem:[#allocation3 + $0xb0] sm:$0xff]
  %v3884 = vld [vmem:[#allocation3 + $0xb8] sm:$0xff]
  %v3885 = vld [vmem:[#allocation3 + $0xc0] sm:$0xff]
  %v3886 = vld [vmem:[#allocation3 + $0xc8] sm:$0xff]
  %v3887 = vld [vmem:[#allocation3 + $0xd0] sm:$0xff]
  %v3888 = vld [vmem:[#allocation3 + $0xd8] sm:$0xff]
  %v3889 = vld [vmem:[#allocation3 + $0xe0] sm:$0xff]
  %v3890 = vld [vmem:[#allocation3 + $0xe8] sm:$0xff]
  %v3891 = vld [vmem:[#allocation3 + $0xf0] sm:$0xff]
  %v3892 = vld [vmem:[#allocation3 + $0xf8] sm:$0xff]
  %v3893 = vpack.c.bf16 %v3869, %v3861
  %v3894 = vpack.c.bf16 %v3870, %v3862
  %v3895 = vpack.c.bf16 %v3871, %v3863
  %v3896 = vpack.c.bf16 %v3872, %v3864
  %v3897 = vpack.c.bf16 %v3873, %v3865
  %v3898 = vpack.c.bf16 %v3874, %v3866
  %v3899 = vpack.c.bf16 %v3875, %v3867
  %v3900 = vpack.c.bf16 %v3885, %v3877
  %v3901 = vpack.c.bf16 %v3886, %v3878
  %v3902 = vpack.c.bf16 %v3887, %v3879
  %v3903 = vpack.c.bf16 %v3888, %v3880
  %v3904 = vpack.c.bf16 %v3889, %v3881
  %v3905 = vpack.c.bf16 %v3890, %v3882
  %v3906 = vpack.c.bf16 %v3891, %v3883
  %3921 = vrot.lane.b32.xlu0 %v3893, 38
  %v3922 = vpop.permute.xlu0 %3921
  %3923 = vrot.lane.b32.xlu0 %v3894, 38
  %v3924 = vpop.permute.xlu0 %3923
  %3925 = vrot.lane.b32.xlu0 %v3895, 38
  %v3926 = vpop.permute.xlu0 %3925
  %3927 = vrot.lane.b32.xlu0 %v3896, 38
  %v3928 = vpop.permute.xlu0 %3927
  %3929 = vrot.lane.b32.xlu0 %v3897, 38
  %v3930 = vpop.permute.xlu0 %3929
  %3931 = vrot.lane.b32.xlu0 %v3898, 38
  %v3932 = vpop.permute.xlu0 %3931
  %3933 = vrot.lane.b32.xlu0 %v3899, 38
  %v3934 = vpop.permute.xlu0 %3933
  %3935 = vrot.lane.b32.xlu0 %v3900, 38
  %v3936 = vpop.permute.xlu0 %3935
  %3937 = vrot.lane.b32.xlu0 %v3901, 38
  %v3938 = vpop.permute.xlu0 %3937
  %3939 = vrot.lane.b32.xlu0 %v3902, 38
  %v3940 = vpop.permute.xlu0 %3939
  %3941 = vrot.lane.b32.xlu0 %v3903, 38
  %v3942 = vpop.permute.xlu0 %3941
  %3943 = vrot.lane.b32.xlu0 %v3904, 38
  %v3944 = vpop.permute.xlu0 %3943
  %3945 = vrot.lane.b32.xlu0 %v3905, 38
  %v3946 = vpop.permute.xlu0 %3945
  %3947 = vrot.lane.b32.xlu0 %v3906, 38
  %v3948 = vpop.permute.xlu0 %3947
  %vm3949 = vcmask 310272
  %v3950 = vsel %vm3949, %v3922, %v3924
  %v3951 = vsel %vm3949, %v3924, %v3926
  %v3952 = vsel %vm3949, %v3926, %v3928
  %v3953 = vsel %vm3949, %v3928, %v3930
  %v3954 = vsel %vm3949, %v3930, %v3932
  %v3955 = vsel %vm3949, %v3932, %v3934
  %v3956 = vsel %vm3949, %v3936, %v3938
  %v3957 = vsel %vm3949, %v3938, %v3940
  %v3958 = vsel %vm3949, %v3940, %v3942
  %v3959 = vsel %vm3949, %v3942, %v3944
  %v3960 = vsel %vm3949, %v3944, %v3946
  %v3961 = vsel %vm3949, %v3946, %v3948
  %3974 = vst [vmem:[#allocation4] sm:$0xff] %v3950
  %3975 = vst [vmem:[#allocation4 + $0x8] sm:$0xff] %v3951
  %3976 = vst [vmem:[#allocation4 + $0x10] sm:$0xff] %v3952
  %3977 = vst [vmem:[#allocation4 + $0x18] sm:$0xff] %v3953
  %3978 = vst [vmem:[#allocation4 + $0x20] sm:$0xff] %v3954
  %3979 = vst [vmem:[#allocation4 + $0x28] sm:$0xff] %v3955
  %3980 = vst [vmem:[#allocation4 + $0x30] sm:$0xff] %v3956
  %3981 = vst [vmem:[#allocation4 + $0x38] sm:$0xff] %v3957
  %3982 = vst [vmem:[#allocation4 + $0x40] sm:$0xff] %v3958
  %3983 = vst [vmem:[#allocation4 + $0x48] sm:$0xff] %v3959
  %3984 = vst [vmem:[#allocation4 + $0x50] sm:$0xff] %v3960
  %3985 = vst [vmem:[#allocation4 + $0x58] sm:$0xff] %v3961
  %3986 = vrot.lane.b32.xlu0 %v3893, 36
  %v3987 = vpop.permute.xlu0 %3986
  %3988 = vrot.lane.b32.xlu0 %v3894, 36
  %v3989 = vpop.permute.xlu0 %3988
  %3990 = vrot.lane.b32.xlu0 %v3895, 36
  %v3991 = vpop.permute.xlu0 %3990
  %3992 = vrot.lane.b32.xlu0 %v3896, 36
  %v3993 = vpop.permute.xlu0 %3992
  %3994 = vrot.lane.b32.xlu0 %v3897, 36
  %v3995 = vpop.permute.xlu0 %3994
  %3996 = vrot.lane.b32.xlu0 %v3898, 36
  %v3997 = vpop.permute.xlu0 %3996
  %3998 = vrot.lane.b32.xlu0 %v3899, 36
  %v3999 = vpop.permute.xlu0 %3998
  %4000 = vrot.lane.b32.xlu0 %v3900, 36
  %v4001 = vpop.permute.xlu0 %4000
  %4002 = vrot.lane.b32.xlu0 %v3901, 36
  %v4003 = vpop.permute.xlu0 %4002
  %4004 = vrot.lane.b32.xlu0 %v3902, 36
  %v4005 = vpop.permute.xlu0 %4004
  %4006 = vrot.lane.b32.xlu0 %v3903, 36
  %v4007 = vpop.permute.xlu0 %4006
  %4008 = vrot.lane.b32.xlu0 %v3904, 36
  %v4009 = vpop.permute.xlu0 %4008
  %4010 = vrot.lane.b32.xlu0 %v3905, 36
  %v4011 = vpop.permute.xlu0 %4010
  %4012 = vrot.lane.b32.xlu0 %v3906, 36
  %v4013 = vpop.permute.xlu0 %4012
  %vm4014 = vcmask 293888
  %v4015 = vsel %vm4014, %v3987, %v3989
  %v4016 = vsel %vm4014, %v3989, %v3991
  %v4017 = vsel %vm4014, %v3991, %v3993
  %v4018 = vsel %vm4014, %v3993, %v3995
  %v4019 = vsel %vm4014, %v3995, %v3997
  %v4020 = vsel %vm4014, %v3997, %v3999
  %v4021 = vsel %vm4014, %v4001, %v4003
  %v4022 = vsel %vm4014, %v4003, %v4005
  %v4023 = vsel %vm4014, %v4005, %v4007
  %v4024 = vsel %vm4014, %v4007, %v4009
  %v4025 = vsel %vm4014, %v4009, %v4011
  %v4026 = vsel %vm4014, %v4011, %v4013
  %4039 = vst [vmem:[#allocation4 + $0x60] sm:$0xff] %v4015
  %4040 = vst [vmem:[#allocation4 + $0x68] sm:$0xff] %v4016
  %4041 = vst [vmem:[#allocation4 + $0x70] sm:$0xff] %v4017
  %4042 = vst [vmem:[#allocation4 + $0x78] sm:$0xff] %v4018
  %4043 = vst [vmem:[#allocation4 + $0x80] sm:$0xff] %v4019
  %4044 = vst [vmem:[#allocation4 + $0x88] sm:$0xff] %v4020
  %4045 = vst [vmem:[#allocation4 + $0x90] sm:$0xff] %v4021
  %4046 = vst [vmem:[#allocation4 + $0x98] sm:$0xff] %v4022
  %4047 = vst [vmem:[#allocation4 + $0xa0] sm:$0xff] %v4023
  %4048 = vst [vmem:[#allocation4 + $0xa8] sm:$0xff] %v4024
  %4049 = vst [vmem:[#allocation4 + $0xb0] sm:$0xff] %v4025
  %4050 = vst [vmem:[#allocation4 + $0xb8] sm:$0xff] %v4026
  %4051 = vrot.lane.b32.xlu0 %v3893, 34
  %v4052 = vpop.permute.xlu0 %4051
  %4053 = vrot.lane.b32.xlu0 %v3894, 34
  %v4054 = vpop.permute.xlu0 %4053
  %4055 = vrot.lane.b32.xlu0 %v3895, 34
  %v4056 = vpop.permute.xlu0 %4055
  %4057 = vrot.lane.b32.xlu0 %v3896, 34
  %v4058 = vpop.permute.xlu0 %4057
  %4059 = vrot.lane.b32.xlu0 %v3897, 34
  %v4060 = vpop.permute.xlu0 %4059
  %4061 = vrot.lane.b32.xlu0 %v3898, 34
  %v4062 = vpop.permute.xlu0 %4061
  %4063 = vrot.lane.b32.xlu0 %v3899, 34
  %v4064 = vpop.permute.xlu0 %4063
  %4065 = vrot.lane.b32.xlu0 %v3900, 34
  %v4066 = vpop.permute.xlu0 %4065
  %4067 = vrot.lane.b32.xlu0 %v3901, 34
  %v4068 = vpop.permute.xlu0 %4067
  %4069 = vrot.lane.b32.xlu0 %v3902, 34
  %v4070 = vpop.permute.xlu0 %4069
  %4071 = vrot.lane.b32.xlu0 %v3903, 34
  %v4072 = vpop.permute.xlu0 %4071
  %4073 = vrot.lane.b32.xlu0 %v3904, 34
  %v4074 = vpop.permute.xlu0 %4073
  %4075 = vrot.lane.b32.xlu0 %v3905, 34
  %v4076 = vpop.permute.xlu0 %4075
  %4077 = vrot.lane.b32.xlu0 %v3906, 34
  %v4078 = vpop.permute.xlu0 %4077
  %vm4079 = vcmask 277504
  %v4080 = vsel %vm4079, %v4052, %v4054
  %v4081 = vsel %vm4079, %v4054, %v4056
  %v4082 = vsel %vm4079, %v4056, %v4058
  %v4083 = vsel %vm4079, %v4058, %v4060
  %v4084 = vsel %vm4079, %v4060, %v4062
  %v4085 = vsel %vm4079, %v4062, %v4064
  %v4086 = vsel %vm4079, %v4066, %v4068
  %v4087 = vsel %vm4079, %v4068, %v4070
  %v4088 = vsel %vm4079, %v4070, %v4072
  %v4089 = vsel %vm4079, %v4072, %v4074
  %v4090 = vsel %vm4079, %v4074, %v4076
  %v4091 = vsel %vm4079, %v4076, %v4078
  %4104 = vst [vmem:[#allocation4 + $0xc0] sm:$0xff] %v4080
  %4105 = vst [vmem:[#allocation4 + $0xc8] sm:$0xff] %v4081
  %4106 = vst [vmem:[#allocation4 + $0xd0] sm:$0xff] %v4082
  %4107 = vst [vmem:[#allocation4 + $0xd8] sm:$0xff] %v4083
  %4108 = vst [vmem:[#allocation4 + $0xe0] sm:$0xff] %v4084
  %4109 = vst [vmem:[#allocation4 + $0xe8] sm:$0xff] %v4085
  %4110 = vst [vmem:[#allocation4 + $0xf0] sm:$0xff] %v4086
  %4111 = vst [vmem:[#allocation4 + $0xf8] sm:$0xff] %v4087
  %4112 = vst [vmem:[#allocation4 + $0x100] sm:$0xff] %v4088
  %4113 = vst [vmem:[#allocation4 + $0x108] sm:$0xff] %v4089
  %4114 = vst [vmem:[#allocation4 + $0x110] sm:$0xff] %v4090
  %4115 = vst [vmem:[#allocation4 + $0x118] sm:$0xff] %v4091
  %4116 = vrot.lane.b32.xlu0 %v3893, 2
  %v4117 = vpop.permute.xlu0 %4116
  %4118 = vrot.lane.b32.xlu0 %v3894, 2
  %v4119 = vpop.permute.xlu0 %4118
  %4120 = vrot.lane.b32.xlu0 %v3895, 2
  %v4121 = vpop.permute.xlu0 %4120
  %4122 = vrot.lane.b32.xlu0 %v3896, 2
  %v4123 = vpop.permute.xlu0 %4122
  %4124 = vrot.lane.b32.xlu0 %v3897, 2
  %v4125 = vpop.permute.xlu0 %4124
  %4126 = vrot.lane.b32.xlu0 %v3898, 2
  %v4127 = vpop.permute.xlu0 %4126
  %4128 = vrot.lane.b32.xlu0 %v3899, 2
  %v4129 = vpop.permute.xlu0 %4128
  %4130 = vrot.lane.b32.xlu0 %v3900, 2
  %v4131 = vpop.permute.xlu0 %4130
  %4132 = vrot.lane.b32.xlu0 %v3901, 2
  %v4133 = vpop.permute.xlu0 %4132
  %4134 = vrot.lane.b32.xlu0 %v3902, 2
  %v4135 = vpop.permute.xlu0 %4134
  %4136 = vrot.lane.b32.xlu0 %v3903, 2
  %v4137 = vpop.permute.xlu0 %4136
  %4138 = vrot.lane.b32.xlu0 %v3904, 2
  %v4139 = vpop.permute.xlu0 %4138
  %4140 = vrot.lane.b32.xlu0 %v3905, 2
  %v4141 = vpop.permute.xlu0 %4140
  %4142 = vrot.lane.b32.xlu0 %v3906, 2
  %v4143 = vpop.permute.xlu0 %4142
  %vm4144 = vcmask 15360
  %v4145 = vsel %vm4144, %v4117, %v4119
  %v4146 = vsel %vm4144, %v4119, %v4121
  %v4147 = vsel %vm4144, %v4121, %v4123
  %v4148 = vsel %vm4144, %v4123, %v4125
  %v4149 = vsel %vm4144, %v4125, %v4127
  %v4150 = vsel %vm4144, %v4127, %v4129
  %v4151 = vsel %vm4144, %v4131, %v4133
  %v4152 = vsel %vm4144, %v4133, %v4135
  %v4153 = vsel %vm4144, %v4135, %v4137
  %v4154 = vsel %vm4144, %v4137, %v4139
  %v4155 = vsel %vm4144, %v4139, %v4141
  %v4156 = vsel %vm4144, %v4141, %v4143
  %4169 = vst [vmem:[#allocation4 + $0x120] sm:$0xff] %v4145
  %4170 = vst [vmem:[#allocation4 + $0x128] sm:$0xff] %v4146
  %4171 = vst [vmem:[#allocation4 + $0x130] sm:$0xff] %v4147
  %4172 = vst [vmem:[#allocation4 + $0x138] sm:$0xff] %v4148
  %4173 = vst [vmem:[#allocation4 + $0x140] sm:$0xff] %v4149
  %4174 = vst [vmem:[#allocation4 + $0x148] sm:$0xff] %v4150
  %4175 = vst [vmem:[#allocation4 + $0x150] sm:$0xff] %v4151
  %4176 = vst [vmem:[#allocation4 + $0x158] sm:$0xff] %v4152
  %4177 = vst [vmem:[#allocation4 + $0x160] sm:$0xff] %v4153
  %4178 = vst [vmem:[#allocation4 + $0x168] sm:$0xff] %v4154
  %4179 = vst [vmem:[#allocation4 + $0x170] sm:$0xff] %v4155
  %4180 = vst [vmem:[#allocation4 + $0x178] sm:$0xff] %v4156
  %4181 = vst [vmem:[#allocation4 + $0x180] sm:$0xff] %v3894
  %4182 = vst [vmem:[#allocation4 + $0x188] sm:$0xff] %v3895
  %4183 = vst [vmem:[#allocation4 + $0x190] sm:$0xff] %v3896
  %4184 = vst [vmem:[#allocation4 + $0x198] sm:$0xff] %v3897
  %4185 = vst [vmem:[#allocation4 + $0x1a0] sm:$0xff] %v3898
  %4186 = vst [vmem:[#allocation4 + $0x1a8] sm:$0xff] %v3899
  %4187 = vst [vmem:[#allocation4 + $0x1b0] sm:$0xff] %v3901
  %4188 = vst [vmem:[#allocation4 + $0x1b8] sm:$0xff] %v3902
  %4189 = vst [vmem:[#allocation4 + $0x1c0] sm:$0xff] %v3903
  %4190 = vst [vmem:[#allocation4 + $0x1c8] sm:$0xff] %v3904
  %4191 = vst [vmem:[#allocation4 + $0x1d0] sm:$0xff] %v3905
  %4192 = vst [vmem:[#allocation4 + $0x1d8] sm:$0xff] %v3906
  %v4193 = vpack.c.bf16 %v3876, %v3868
  %v4194 = vpack.c.bf16 %v3892, %v3884
  %4197 = vrot.lane.b32.xlu0 %v3894, 126
  %v4198 = vpop.permute.xlu0 %4197
  %4199 = vrot.lane.b32.xlu0 %v3895, 126
  %v4200 = vpop.permute.xlu0 %4199
  %4201 = vrot.lane.b32.xlu0 %v3896, 126
  %v4202 = vpop.permute.xlu0 %4201
  %4203 = vrot.lane.b32.xlu0 %v3897, 126
  %v4204 = vpop.permute.xlu0 %4203
  %4205 = vrot.lane.b32.xlu0 %v3898, 126
  %v4206 = vpop.permute.xlu0 %4205
  %4207 = vrot.lane.b32.xlu0 %v3899, 126
  %v4208 = vpop.permute.xlu0 %4207
  %4209 = vrot.lane.b32.xlu0 %v4193, 126
  %v4210 = vpop.permute.xlu0 %4209
  %4211 = vrot.lane.b32.xlu0 %v3901, 126
  %v4212 = vpop.permute.xlu0 %4211
  %4213 = vrot.lane.b32.xlu0 %v3902, 126
  %v4214 = vpop.permute.xlu0 %4213
  %4215 = vrot.lane.b32.xlu0 %v3903, 126
  %v4216 = vpop.permute.xlu0 %4215
  %4217 = vrot.lane.b32.xlu0 %v3904, 126
  %v4218 = vpop.permute.xlu0 %4217
  %4219 = vrot.lane.b32.xlu0 %v3905, 126
  %v4220 = vpop.permute.xlu0 %4219
  %4221 = vrot.lane.b32.xlu0 %v3906, 126
  %v4222 = vpop.permute.xlu0 %4221
  %4223 = vrot.lane.b32.xlu0 %v4194, 126
  %v4224 = vpop.permute.xlu0 %4223
  %vm4225 = vcmask 1031168
  %v4226 = vsel %vm4225, %v4198, %v4200
  %v4227 = vsel %vm4225, %v4200, %v4202
  %v4228 = vsel %vm4225, %v4202, %v4204
  %v4229 = vsel %vm4225, %v4204, %v4206
  %v4230 = vsel %vm4225, %v4206, %v4208
  %v4231 = vsel %vm4225, %v4208, %v4210
  %v4232 = vsel %vm4225, %v4212, %v4214
  %v4233 = vsel %vm4225, %v4214, %v4216
  %v4234 = vsel %vm4225, %v4216, %v4218
  %v4235 = vsel %vm4225, %v4218, %v4220
  %v4236 = vsel %vm4225, %v4220, %v4222
  %v4237 = vsel %vm4225, %v4222, %v4224
  %4250 = vst [vmem:[#allocation4 + $0x1e0] sm:$0xff] %v4226
  %4251 = vst [vmem:[#allocation4 + $0x1e8] sm:$0xff] %v4227
  %4252 = vst [vmem:[#allocation4 + $0x1f0] sm:$0xff] %v4228
  %4253 = vst [vmem:[#allocation4 + $0x1f8] sm:$0xff] %v4229
  %4254 = vst [vmem:[#allocation4 + $0x200] sm:$0xff] %v4230
  %4255 = vst [vmem:[#allocation4 + $0x208] sm:$0xff] %v4231
  %4256 = vst [vmem:[#allocation4 + $0x210] sm:$0xff] %v4232
  %4257 = vst [vmem:[#allocation4 + $0x218] sm:$0xff] %v4233
  %4258 = vst [vmem:[#allocation4 + $0x220] sm:$0xff] %v4234
  %4259 = vst [vmem:[#allocation4 + $0x228] sm:$0xff] %v4235
  %4260 = vst [vmem:[#allocation4 + $0x230] sm:$0xff] %v4236
  %4261 = vst [vmem:[#allocation4 + $0x238] sm:$0xff] %v4237
  %4262 = vrot.lane.b32.xlu0 %v3894, 94
  %v4263 = vpop.permute.xlu0 %4262
  %4264 = vrot.lane.b32.xlu0 %v3895, 94
  %v4265 = vpop.permute.xlu0 %4264
  %4266 = vrot.lane.b32.xlu0 %v3896, 94
  %v4267 = vpop.permute.xlu0 %4266
  %4268 = vrot.lane.b32.xlu0 %v3897, 94
  %v4269 = vpop.permute.xlu0 %4268
  %4270 = vrot.lane.b32.xlu0 %v3898, 94
  %v4271 = vpop.permute.xlu0 %4270
  %4272 = vrot.lane.b32.xlu0 %v3899, 94
  %v4273 = vpop.permute.xlu0 %4272
  %4274 = vrot.lane.b32.xlu0 %v4193, 94
  %v4275 = vpop.permute.xlu0 %4274
  %4276 = vrot.lane.b32.xlu0 %v3901, 94
  %v4277 = vpop.permute.xlu0 %4276
  %4278 = vrot.lane.b32.xlu0 %v3902, 94
  %v4279 = vpop.permute.xlu0 %4278
  %4280 = vrot.lane.b32.xlu0 %v3903, 94
  %v4281 = vpop.permute.xlu0 %4280
  %4282 = vrot.lane.b32.xlu0 %v3904, 94
  %v4283 = vpop.permute.xlu0 %4282
  %4284 = vrot.lane.b32.xlu0 %v3905, 94
  %v4285 = vpop.permute.xlu0 %4284
  %4286 = vrot.lane.b32.xlu0 %v3906, 94
  %v4287 = vpop.permute.xlu0 %4286
  %4288 = vrot.lane.b32.xlu0 %v4194, 94
  %v4289 = vpop.permute.xlu0 %4288
  %vm4290 = vcmask 769024
  %v4291 = vsel %vm4290, %v4263, %v4265
  %v4292 = vsel %vm4290, %v4265, %v4267
  %v4293 = vsel %vm4290, %v4267, %v4269
  %v4294 = vsel %vm4290, %v4269, %v4271
  %v4295 = vsel %vm4290, %v4271, %v4273
  %v4296 = vsel %vm4290, %v4273, %v4275
  %v4297 = vsel %vm4290, %v4277, %v4279
  %v4298 = vsel %vm4290, %v4279, %v4281
  %v4299 = vsel %vm4290, %v4281, %v4283
  %v4300 = vsel %vm4290, %v4283, %v4285
  %v4301 = vsel %vm4290, %v4285, %v4287
  %v4302 = vsel %vm4290, %v4287, %v4289
  %4315 = vst [vmem:[#allocation4 + $0x240] sm:$0xff] %v4291
  %4316 = vst [vmem:[#allocation4 + $0x248] sm:$0xff] %v4292
  %4317 = vst [vmem:[#allocation4 + $0x250] sm:$0xff] %v4293
  %4318 = vst [vmem:[#allocation4 + $0x258] sm:$0xff] %v4294
  %4319 = vst [vmem:[#allocation4 + $0x260] sm:$0xff] %v4295
  %4320 = vst [vmem:[#allocation4 + $0x268] sm:$0xff] %v4296
  %4321 = vst [vmem:[#allocation4 + $0x270] sm:$0xff] %v4297
  %4322 = vst [vmem:[#allocation4 + $0x278] sm:$0xff] %v4298
  %4323 = vst [vmem:[#allocation4 + $0x280] sm:$0xff] %v4299
  %4324 = vst [vmem:[#allocation4 + $0x288] sm:$0xff] %v4300
  %4325 = vst [vmem:[#allocation4 + $0x290] sm:$0xff] %v4301
  %4326 = vst [vmem:[#allocation4 + $0x298] sm:$0xff] %v4302
  %4327 = vrot.lane.b32.xlu0 %v3894, 92
  %v4328 = vpop.permute.xlu0 %4327
  %4329 = vrot.lane.b32.xlu0 %v3895, 92
  %v4330 = vpop.permute.xlu0 %4329
  %4331 = vrot.lane.b32.xlu0 %v3896, 92
  %v4332 = vpop.permute.xlu0 %4331
  %4333 = vrot.lane.b32.xlu0 %v3897, 92
  %v4334 = vpop.permute.xlu0 %4333
  %4335 = vrot.lane.b32.xlu0 %v3898, 92
  %v4336 = vpop.permute.xlu0 %4335
  %4337 = vrot.lane.b32.xlu0 %v3899, 92
  %v4338 = vpop.permute.xlu0 %4337
  %4339 = vrot.lane.b32.xlu0 %v4193, 92
  %v4340 = vpop.permute.xlu0 %4339
  %4341 = vrot.lane.b32.xlu0 %v3901, 92
  %v4342 = vpop.permute.xlu0 %4341
  %4343 = vrot.lane.b32.xlu0 %v3902, 92
  %v4344 = vpop.permute.xlu0 %4343
  %4345 = vrot.lane.b32.xlu0 %v3903, 92
  %v4346 = vpop.permute.xlu0 %4345
  %4347 = vrot.lane.b32.xlu0 %v3904, 92
  %v4348 = vpop.permute.xlu0 %4347
  %4349 = vrot.lane.b32.xlu0 %v3905, 92
  %v4350 = vpop.permute.xlu0 %4349
  %4351 = vrot.lane.b32.xlu0 %v3906, 92
  %v4352 = vpop.permute.xlu0 %4351
  %4353 = vrot.lane.b32.xlu0 %v4194, 92
  %v4354 = vpop.permute.xlu0 %4353
  %vm4355 = vcmask 752640
  %v4356 = vsel %vm4355, %v4328, %v4330
  %v4357 = vsel %vm4355, %v4330, %v4332
  %v4358 = vsel %vm4355, %v4332, %v4334
  %v4359 = vsel %vm4355, %v4334, %v4336
  %v4360 = vsel %vm4355, %v4336, %v4338
  %v4361 = vsel %vm4355, %v4338, %v4340
  %v4362 = vsel %vm4355, %v4342, %v4344
  %v4363 = vsel %vm4355, %v4344, %v4346
  %v4364 = vsel %vm4355, %v4346, %v4348
  %v4365 = vsel %vm4355, %v4348, %v4350
  %v4366 = vsel %vm4355, %v4350, %v4352
  %v4367 = vsel %vm4355, %v4352, %v4354
  %4380 = vst [vmem:[#allocation4 + $0x2a0] sm:$0xff] %v4356
  %4381 = vst [vmem:[#allocation4 + $0x2a8] sm:$0xff] %v4357
  %4382 = vst [vmem:[#allocation4 + $0x2b0] sm:$0xff] %v4358
  %4383 = vst [vmem:[#allocation4 + $0x2b8] sm:$0xff] %v4359
  %4384 = vst [vmem:[#allocation4 + $0x2c0] sm:$0xff] %v4360
  %4385 = vst [vmem:[#allocation4 + $0x2c8] sm:$0xff] %v4361
  %4386 = vst [vmem:[#allocation4 + $0x2d0] sm:$0xff] %v4362
  %4387 = vst [vmem:[#allocation4 + $0x2d8] sm:$0xff] %v4363
  %4388 = vst [vmem:[#allocation4 + $0x2e0] sm:$0xff] %v4364
  %4389 = vst [vmem:[#allocation4 + $0x2e8] sm:$0xff] %v4365
  %4390 = vst [vmem:[#allocation4 + $0x2f0] sm:$0xff] %v4366
  %4391 = vst [vmem:[#allocation4 + $0x2f8] sm:$0xff] %v4367
  %4392 = vrot.lane.b32.xlu0 %v3894, 90
  %v4393 = vpop.permute.xlu0 %4392
  %4394 = vrot.lane.b32.xlu0 %v3895, 90
  %v4395 = vpop.permute.xlu0 %4394
  %4396 = vrot.lane.b32.xlu0 %v3896, 90
  %v4397 = vpop.permute.xlu0 %4396
  %4398 = vrot.lane.b32.xlu0 %v3897, 90
  %v4399 = vpop.permute.xlu0 %4398
  %4400 = vrot.lane.b32.xlu0 %v3898, 90
  %v4401 = vpop.permute.xlu0 %4400
  %4402 = vrot.lane.b32.xlu0 %v3899, 90
  %v4403 = vpop.permute.xlu0 %4402
  %4404 = vrot.lane.b32.xlu0 %v4193, 90
  %v4405 = vpop.permute.xlu0 %4404
  %4406 = vrot.lane.b32.xlu0 %v3901, 90
  %v4407 = vpop.permute.xlu0 %4406
  %4408 = vrot.lane.b32.xlu0 %v3902, 90
  %v4409 = vpop.permute.xlu0 %4408
  %4410 = vrot.lane.b32.xlu0 %v3903, 90
  %v4411 = vpop.permute.xlu0 %4410
  %4412 = vrot.lane.b32.xlu0 %v3904, 90
  %v4413 = vpop.permute.xlu0 %4412
  %4414 = vrot.lane.b32.xlu0 %v3905, 90
  %v4415 = vpop.permute.xlu0 %4414
  %4416 = vrot.lane.b32.xlu0 %v3906, 90
  %v4417 = vpop.permute.xlu0 %4416
  %4418 = vrot.lane.b32.xlu0 %v4194, 90
  %v4419 = vpop.permute.xlu0 %4418
  %vm4420 = vcmask 736256
  %v4421 = vsel %vm4420, %v4393, %v4395
  %v4422 = vsel %vm4420, %v4395, %v4397
  %v4423 = vsel %vm4420, %v4397, %v4399
  %v4424 = vsel %vm4420, %v4399, %v4401
  %v4425 = vsel %vm4420, %v4401, %v4403
  %v4426 = vsel %vm4420, %v4403, %v4405
  %v4427 = vsel %vm4420, %v4407, %v4409
  %v4428 = vsel %vm4420, %v4409, %v4411
  %v4429 = vsel %vm4420, %v4411, %v4413
  %v4430 = vsel %vm4420, %v4413, %v4415
  %v4431 = vsel %vm4420, %v4415, %v4417
  %v4432 = vsel %vm4420, %v4417, %v4419
  %4445 = vst [vmem:[#allocation4 + $0x300] sm:$0xff] %v4421
  %4446 = vst [vmem:[#allocation4 + $0x308] sm:$0xff] %v4422
  %4447 = vst [vmem:[#allocation4 + $0x310] sm:$0xff] %v4423
  %4448 = vst [vmem:[#allocation4 + $0x318] sm:$0xff] %v4424
  %4449 = vst [vmem:[#allocation4 + $0x320] sm:$0xff] %v4425
  %4450 = vst [vmem:[#allocation4 + $0x328] sm:$0xff] %v4426
  %4451 = vst [vmem:[#allocation4 + $0x330] sm:$0xff] %v4427
  %4452 = vst [vmem:[#allocation4 + $0x338] sm:$0xff] %v4428
  %4453 = vst [vmem:[#allocation4 + $0x340] sm:$0xff] %v4429
  %4454 = vst [vmem:[#allocation4 + $0x348] sm:$0xff] %v4430
  %4455 = vst [vmem:[#allocation4 + $0x350] sm:$0xff] %v4431
  %4456 = vst [vmem:[#allocation4 + $0x358] sm:$0xff] %v4432
  %v4457 = vld [vmem:[%s2 + $0xa8] sm:$0xff]
  %v4458 = vld [vmem:[%s2 + $0xb0] sm:$0xf]
  %v4459 = vld [vmem:[%s2 + $0xb4] sm:$0xff]
  %v4460 = vld [vmem:[%s2 + $0xbc] sm:$0xf]
  %v4461 = vld [vmem:[%s2 + $0xc0] sm:$0xff]
  %v4462 = vld [vmem:[%s2 + $0xc8] sm:$0xf]
  %v4463 = vld [vmem:[%s2 + $0xcc] sm:$0xff]
  %v4464 = vld [vmem:[%s2 + $0xd4] sm:$0xf]
  %v4465 = vld [vmem:[#allocation4] sm:$0xff]
  %v4466 = vld [vmem:[#allocation4 + $0x8] sm:$0xff]
  %v4467 = vld [vmem:[#allocation4 + $0x10] sm:$0xff]
  %v4468 = vld [vmem:[#allocation4 + $0x18] sm:$0xff]
  %v4469 = vld [vmem:[#allocation4 + $0x20] sm:$0xff]
  %v4470 = vld [vmem:[#allocation4 + $0x28] sm:$0xff]
  %v4471 = vld [vmem:[#allocation4 + $0x30] sm:$0xff]
  %v4472 = vld [vmem:[#allocation4 + $0x38] sm:$0xff]
  %v4473 = vld [vmem:[#allocation4 + $0x40] sm:$0xff]
  %v4474 = vld [vmem:[#allocation4 + $0x48] sm:$0xff]
  %v4475 = vld [vmem:[#allocation4 + $0x50] sm:$0xff]
  %v4476 = vld [vmem:[#allocation4 + $0x58] sm:$0xff]
  %v4477 = vld [vmem:[#allocation4 + $0x60] sm:$0xff]
  %v4478 = vld [vmem:[#allocation4 + $0x68] sm:$0xff]
  %v4479 = vld [vmem:[#allocation4 + $0x70] sm:$0xff]
  %v4480 = vld [vmem:[#allocation4 + $0x78] sm:$0xff]
  %v4481 = vld [vmem:[#allocation4 + $0x80] sm:$0xff]
  %v4482 = vld [vmem:[#allocation4 + $0x88] sm:$0xff]
  %v4483 = vld [vmem:[#allocation4 + $0x90] sm:$0xff]
  %v4484 = vld [vmem:[#allocation4 + $0x98] sm:$0xff]
  %v4485 = vld [vmem:[#allocation4 + $0xa0] sm:$0xff]
  %v4486 = vld [vmem:[#allocation4 + $0xa8] sm:$0xff]
  %v4487 = vld [vmem:[#allocation4 + $0xb0] sm:$0xff]
  %v4488 = vld [vmem:[#allocation4 + $0xb8] sm:$0xff]
  %v4489 = vld [vmem:[#allocation4 + $0xc0] sm:$0xff]
  %v4490 = vld [vmem:[#allocation4 + $0xc8] sm:$0xff]
  %v4491 = vld [vmem:[#allocation4 + $0xd0] sm:$0xff]
  %v4492 = vld [vmem:[#allocation4 + $0xd8] sm:$0xff]
  %v4493 = vld [vmem:[#allocation4 + $0xe0] sm:$0xff]
  %v4494 = vld [vmem:[#allocation4 + $0xe8] sm:$0xff]
  %v4495 = vld [vmem:[#allocation4 + $0xf0] sm:$0xff]
  %v4496 = vld [vmem:[#allocation4 + $0xf8] sm:$0xff]
  %v4497 = vld [vmem:[#allocation4 + $0x100] sm:$0xff]
  %v4498 = vld [vmem:[#allocation4 + $0x108] sm:$0xff]
  %v4499 = vld [vmem:[#allocation4 + $0x110] sm:$0xff]
  %v4500 = vld [vmem:[#allocation4 + $0x118] sm:$0xff]
  %v4501 = vld [vmem:[#allocation4 + $0x120] sm:$0xff]
  %v4502 = vld [vmem:[#allocation4 + $0x128] sm:$0xff]
  %v4503 = vld [vmem:[#allocation4 + $0x130] sm:$0xff]
  %v4504 = vld [vmem:[#allocation4 + $0x138] sm:$0xff]
  %v4505 = vld [vmem:[#allocation4 + $0x140] sm:$0xff]
  %v4506 = vld [vmem:[#allocation4 + $0x148] sm:$0xff]
  %v4507 = vld [vmem:[#allocation4 + $0x150] sm:$0xff]
  %v4508 = vld [vmem:[#allocation4 + $0x158] sm:$0xff]
  %v4509 = vld [vmem:[#allocation4 + $0x160] sm:$0xff]
  %v4510 = vld [vmem:[#allocation4 + $0x168] sm:$0xff]
  %v4511 = vld [vmem:[#allocation4 + $0x170] sm:$0xff]
  %v4512 = vld [vmem:[#allocation4 + $0x178] sm:$0xff]
  %v4513 = vld [vmem:[#allocation4 + $0x180] sm:$0xff]
  %v4514 = vld [vmem:[#allocation4 + $0x188] sm:$0xff]
  %v4515 = vld [vmem:[#allocation4 + $0x190] sm:$0xff]
  %v4516 = vld [vmem:[#allocation4 + $0x198] sm:$0xff]
  %v4517 = vld [vmem:[#allocation4 + $0x1a0] sm:$0xff]
  %v4518 = vld [vmem:[#allocation4 + $0x1a8] sm:$0xff]
  %v4519 = vld [vmem:[#allocation4 + $0x1b0] sm:$0xff]
  %v4520 = vld [vmem:[#allocation4 + $0x1b8] sm:$0xff]
  %v4521 = vld [vmem:[#allocation4 + $0x1c0] sm:$0xff]
  %v4522 = vld [vmem:[#allocation4 + $0x1c8] sm:$0xff]
  %v4523 = vld [vmem:[#allocation4 + $0x1d0] sm:$0xff]
  %v4524 = vld [vmem:[#allocation4 + $0x1d8] sm:$0xff]
  %v4525 = vld [vmem:[#allocation4 + $0x1e0] sm:$0xff]
  %v4526 = vld [vmem:[#allocation4 + $0x1e8] sm:$0xff]
  %v4527 = vld [vmem:[#allocation4 + $0x1f0] sm:$0xff]
  %v4528 = vld [vmem:[#allocation4 + $0x1f8] sm:$0xff]
  %v4529 = vld [vmem:[#allocation4 + $0x200] sm:$0xff]
  %v4530 = vld [vmem:[#allocation4 + $0x208] sm:$0xff]
  %v4531 = vld [vmem:[#allocation4 + $0x210] sm:$0xff]
  %v4532 = vld [vmem:[#allocation4 + $0x218] sm:$0xff]
  %v4533 = vld [vmem:[#allocation4 + $0x220] sm:$0xff]
  %v4534 = vld [vmem:[#allocation4 + $0x228] sm:$0xff]
  %v4535 = vld [vmem:[#allocation4 + $0x230] sm:$0xff]
  %v4536 = vld [vmem:[#allocation4 + $0x238] sm:$0xff]
  %v4537 = vld [vmem:[#allocation4 + $0x240] sm:$0xff]
  %v4538 = vld [vmem:[#allocation4 + $0x248] sm:$0xff]
  %v4539 = vld [vmem:[#allocation4 + $0x250] sm:$0xff]
  %v4540 = vld [vmem:[#allocation4 + $0x258] sm:$0xff]
  %v4541 = vld [vmem:[#allocation4 + $0x260] sm:$0xff]
  %v4542 = vld [vmem:[#allocation4 + $0x268] sm:$0xff]
  %v4543 = vld [vmem:[#allocation4 + $0x270] sm:$0xff]
  %v4544 = vld [vmem:[#allocation4 + $0x278] sm:$0xff]
  %v4545 = vld [vmem:[#allocation4 + $0x280] sm:$0xff]
  %v4546 = vld [vmem:[#allocation4 + $0x288] sm:$0xff]
  %v4547 = vld [vmem:[#allocation4 + $0x290] sm:$0xff]
  %v4548 = vld [vmem:[#allocation4 + $0x298] sm:$0xff]
  %v4549 = vld [vmem:[#allocation4 + $0x2a0] sm:$0xff]
  %v4550 = vld [vmem:[#allocation4 + $0x2a8] sm:$0xff]
  %v4551 = vld [vmem:[#allocation4 + $0x2b0] sm:$0xff]
  %v4552 = vld [vmem:[#allocation4 + $0x2b8] sm:$0xff]
  %v4553 = vld [vmem:[#allocation4 + $0x2c0] sm:$0xff]
  %v4554 = vld [vmem:[#allocation4 + $0x2c8] sm:$0xff]
  %v4555 = vld [vmem:[#allocation4 + $0x2d0] sm:$0xff]
  %v4556 = vld [vmem:[#allocation4 + $0x2d8] sm:$0xff]
  %v4557 = vld [vmem:[#allocation4 + $0x2e0] sm:$0xff]
  %v4558 = vld [vmem:[#allocation4 + $0x2e8] sm:$0xff]
  %v4559 = vld [vmem:[#allocation4 + $0x2f0] sm:$0xff]
  %v4560 = vld [vmem:[#allocation4 + $0x2f8] sm:$0xff]
  %v4561 = vld [vmem:[#allocation4 + $0x300] sm:$0xff]
  %v4562 = vld [vmem:[#allocation4 + $0x308] sm:$0xff]
  %v4563 = vld [vmem:[#allocation4 + $0x310] sm:$0xff]
  %v4564 = vld [vmem:[#allocation4 + $0x318] sm:$0xff]
  %v4565 = vld [vmem:[#allocation4 + $0x320] sm:$0xff]
  %v4566 = vld [vmem:[#allocation4 + $0x328] sm:$0xff]
  %v4567 = vld [vmem:[#allocation4 + $0x330] sm:$0xff]
  %v4568 = vld [vmem:[#allocation4 + $0x338] sm:$0xff]
  %v4569 = vld [vmem:[#allocation4 + $0x340] sm:$0xff]
  %v4570 = vld [vmem:[#allocation4 + $0x348] sm:$0xff]
  %v4571 = vld [vmem:[#allocation4 + $0x350] sm:$0xff]
  %v4572 = vld [vmem:[#allocation4 + $0x358] sm:$0xff]
  %v4573 = vld [vmem:[%s3 + $0x70] sm:$0xff]
  %v4574 = vld [vmem:[%s3 + $0x78] sm:$0xff]
  %v4575 = vld [vmem:[%s3 + $0x80] sm:$0xff]
  %v4576 = vld [vmem:[%s3 + $0x88] sm:$0xff]
  %4578 = vset.pattern.permute.xlu0 0
  %4579 = vperm.xlu0 %4578, %v4573
  %v4580 = vpop.permute.xlu0 %4579
  %4583 = vset.pattern.permute.xlu0 0
  %4584 = vperm.xlu0 %4583, %v4574
  %v4585 = vpop.permute.xlu0 %4584
  %4588 = vset.pattern.permute.xlu0 0
  %4589 = vperm.xlu0 %4588, %v4575
  %v4590 = vpop.permute.xlu0 %4589
  %4593 = vset.pattern.permute.xlu0 0
  %4594 = vperm.xlu0 %4593, %v4576
  %v4595 = vpop.permute.xlu0 %4594
  %v4605 = vunpack.c.l.b16 %v4457
  %v4606 = vunpack.c.h.b16 %v4457
  %v4607 = vunpack.c.l.b16 %v4458
  %v4608 = vunpack.c.l.b16 %v4459
  %v4609 = vunpack.c.h.b16 %v4459
  %v4610 = vunpack.c.l.b16 %v4460
  %v4611 = vunpack.c.l.b16 %v4461
  %v4612 = vunpack.c.h.b16 %v4461
  %v4613 = vunpack.c.l.b16 %v4462
  %v4614 = vunpack.c.l.b16 %v4463
  %v4615 = vunpack.c.h.b16 %v4463
  %v4616 = vunpack.c.l.b16 %v4464
  %v4617 = vpack.c.b16 %v4608, %v4605
  %v4618 = vpack.c.b16 %v4609, %v4606
  %v4619 = vpack.c.b16 %v4610, %v4607
  %v4620 = vpack.c.b16 %v4614, %v4611
  %v4621 = vpack.c.b16 %v4615, %v4612
  %v4622 = vpack.c.b16 %v4616, %v4613
  %vm4627 = vcmask 261120
  %v4629 = vsel %vm4627, %v4619, 0
  %v4632 = vsel %vm4627, %v4622, 0
  %4634 = vmatprep.subr.bf16.mxu0 %v4466
  %4635 = vmatpush1.bf16.msra.mxu0 %v4465
  %4636 = vmatprep.subr.bf16.mxu0 %v4472
  %4637 = vmatpush1.bf16.msra.mxu0 %v4471
  %4638 = vmatprep.subr.bf16.mxu0 %v4478
  %4639 = vmatpush1.bf16.msra.mxu0 %v4477
  %4640 = vmatprep.subr.bf16.mxu0 %v4484
  %4641 = vmatpush1.bf16.msra.mxu0 %v4483
  %4642 = vmatprep.subr.bf16.mxu0 %v4490
  %4643 = vmatpush1.bf16.msra.mxu0 %v4489
  %4644 = vmatprep.subr.bf16.mxu0 %v4496
  %4645 = vmatpush1.bf16.msra.mxu0 %v4495
  %4646 = vmatprep.subr.bf16.mxu0 %v4502
  %4647 = vmatpush1.bf16.msra.mxu0 %v4501
  %4648 = vmatprep.subr.bf16.mxu0 %v4508
  %4649 = vmatpush1.bf16.msra.mxu0 %v4507
  %4650 = vmatprep.subr.bf16.mxu0 %v4514
  %4651 = vmatpush1.bf16.msra.mxu0 %v4513
  %4652 = vmatprep.subr.bf16.mxu0 %v4520
  %4653 = vmatpush1.bf16.msra.mxu0 %v4519
  %4654 = vmatprep.subr.bf16.mxu0 %v4526
  %4655 = vmatpush1.bf16.msra.mxu0 %v4525
  %4656 = vmatprep.subr.bf16.mxu0 %v4532
  %4657 = vmatpush1.bf16.msra.mxu0 %v4531
  %4658 = vmatprep.subr.bf16.mxu0 %v4538
  %4659 = vmatpush1.bf16.msra.mxu0 %v4537
  %4660 = vmatprep.subr.bf16.mxu0 %v4544
  %4661 = vmatpush1.bf16.msra.mxu0 %v4543
  %4662 = vmatprep.subr.bf16.mxu0 %v4550
  %4663 = vmatpush1.bf16.msra.mxu0 %v4549
  %4664 = vmatprep.subr.bf16.mxu0 %v4556
  %4665 = vmatpush1.bf16.msra.mxu0 %v4555
  %4666 = vmatprep.mubr.bf16.mxu0 %v4618
  %4667 = vmatmul.mubr.bf16.gmra.mrb[0].mxu0 %v4617
  %v4668 = vpop.f32.mrb[0].mxu0
  %v4669 = vadd.f32 %v4580, %v4668
  %v4670 = vpop.f32.mrb[0].mxu0
  %v4671 = vadd.f32 %v4580, %v4670
  %v4672 = vpop.f32.mrb[0].mxu0
  %v4673 = vadd.f32 %v4585, %v4672
  %v4674 = vpop.f32.mrb[0].mxu0
  %v4675 = vadd.f32 %v4585, %v4674
  %4676 = vmatprep.mubr.bf16.mxu0 %v4621
  %4677 = vmatmul.mubr.bf16.gmra.mrb[0].mxu0 %v4620
  %v4678 = vpop.f32.mrb[0].mxu0
  %v4679 = vadd.f32 %v4590, %v4678
  %v4680 = vpop.f32.mrb[0].mxu0
  %v4681 = vadd.f32 %v4590, %v4680
  %v4682 = vpop.f32.mrb[0].mxu0
  %v4683 = vadd.f32 %v4595, %v4682
  %v4684 = vpop.f32.mrb[0].mxu0
  %v4685 = vadd.f32 %v4595, %v4684
  %4686 = vdwg.mxu0
  %4687 = vmatprep.subr.bf16.mxu0 %v4562
  %4688 = vmatpush1.bf16.msra.mxu0 %v4561
  %4689 = vmatprep.subr.bf16.mxu0 %v4568
  %4690 = vmatpush1.bf16.msra.mxu0 %v4567
  %4691 = vmatprep.subr.bf16.mxu0 0
  %4692 = vmatpush1.bf16.msra.mxu0 0
  %4693 = vmatprep.subr.bf16.mxu0 0
  %4694 = vmatpush1.bf16.msra.mxu0 0
  %4695 = vmatprep.subr.bf16.mxu0 0
  %4696 = vmatpush1.bf16.msra.mxu0 0
  %4697 = vmatprep.subr.bf16.mxu0 0
  %4698 = vmatpush1.bf16.msra.mxu0 0
  %4699 = vmatprep.subr.bf16.mxu0 0
  %4700 = vmatpush1.bf16.msra.mxu0 0
  %4701 = vmatprep.subr.bf16.mxu0 0
  %4702 = vmatpush1.bf16.msra.mxu0 0
  %4703 = vmatprep.subr.bf16.mxu0 0
  %4704 = vmatpush1.bf16.msra.mxu0 0
  %4705 = vmatprep.subr.bf16.mxu0 0
  %4706 = vmatpush1.bf16.msra.mxu0 0
  %4707 = vmatprep.subr.bf16.mxu0 0
  %4708 = vmatpush1.bf16.msra.mxu0 0
  %4709 = vmatprep.subr.bf16.mxu0 0
  %4710 = vmatpush1.bf16.msra.mxu0 0
  %4711 = vmatprep.subr.bf16.mxu0 0
  %4712 = vmatpush1.bf16.msra.mxu0 0
  %4713 = vmatprep.subr.bf16.mxu0 0
  %4714 = vmatpush1.bf16.msra.mxu0 0
  %4715 = vmatprep.subr.bf16.mxu0 0
  %4716 = vmatpush1.bf16.msra.mxu0 0
  %4717 = vmatprep.subr.bf16.mxu0 0
  %4718 = vmatpush1.bf16.msra.mxu0 0
  %4719 = vmatprep.mubr.bf16.mxu0 0
  %4720 = vmatmul.mubr.bf16.gmra.mrb[0].mxu0 %v4629
  %v4721 = vpop.f32.mrb[0].mxu0
  %v4722 = vadd.f32 %v4669, %v4721
  %v4723 = vpop.f32.mrb[0].mxu0
  %v4724 = vadd.f32 %v4671, %v4723
  %v4725 = vpop.f32.mrb[0].mxu0
  %v4726 = vadd.f32 %v4673, %v4725
  %v4727 = vpop.f32.mrb[0].mxu0
  %v4728 = vadd.f32 %v4675, %v4727
  %4729 = vmatprep.mubr.bf16.mxu0 0
  %4730 = vmatmul.mubr.bf16.gmra.mrb[0].mxu0 %v4632
  %v4731 = vpop.f32.mrb[0].mxu0
  %v4732 = vadd.f32 %v4679, %v4731
  %v4733 = vpop.f32.mrb[0].mxu0
  %v4734 = vadd.f32 %v4681, %v4733
  %v4735 = vpop.f32.mrb[0].mxu0
  %v4736 = vadd.f32 %v4683, %v4735
  %v4737 = vpop.f32.mrb[0].mxu0
  %v4738 = vadd.f32 %v4685, %v4737
  %4739 = vdwg.mxu0
  %4740 = vmatprep.subr.bf16.mxu0 %v4468
  %4741 = vmatpush1.bf16.msra.mxu0 %v4467
  %4742 = vmatprep.subr.bf16.mxu0 %v4474
  %4743 = vmatpush1.bf16.msra.mxu0 %v4473
  %4744 = vmatprep.subr.bf16.mxu0 %v4480
  %4745 = vmatpush1.bf16.msra.mxu0 %v4479
  %4746 = vmatprep.subr.bf16.mxu0 %v4486
  %4747 = vmatpush1.bf16.msra.mxu0 %v4485
  %4748 = vmatprep.subr.bf16.mxu0 %v4492
  %4749 = vmatpush1.bf16.msra.mxu0 %v4491
  %4750 = vmatprep.subr.bf16.mxu0 %v4498
  %4751 = vmatpush1.bf16.msra.mxu0 %v4497
  %4752 = vmatprep.subr.bf16.mxu0 %v4504
  %4753 = vmatpush1.bf16.msra.mxu0 %v4503
  %4754 = vmatprep.subr.bf16.mxu0 %v4510
  %4755 = vmatpush1.bf16.msra.mxu0 %v4509
  %4756 = vmatprep.subr.bf16.mxu0 %v4516
  %4757 = vmatpush1.bf16.msra.mxu0 %v4515
  %4758 = vmatprep.subr.bf16.mxu0 %v4522
  %4759 = vmatpush1.bf16.msra.mxu0 %v4521
  %4760 = vmatprep.subr.bf16.mxu0 %v4528
  %4761 = vmatpush1.bf16.msra.mxu0 %v4527
  %4762 = vmatprep.subr.bf16.mxu0 %v4534
  %4763 = vmatpush1.bf16.msra.mxu0 %v4533
  %4764 = vmatprep.subr.bf16.mxu0 %v4540
  %4765 = vmatpush1.bf16.msra.mxu0 %v4539
  %4766 = vmatprep.subr.bf16.mxu0 %v4546
  %4767 = vmatpush1.bf16.msra.mxu0 %v4545
  %4768 = vmatprep.subr.bf16.mxu0 %v4552
  %4769 = vmatpush1.bf16.msra.mxu0 %v4551
  %4770 = vmatprep.subr.bf16.mxu0 %v4558
  %4771 = vmatpush1.bf16.msra.mxu0 %v4557
  %4772 = vmatprep.mubr.bf16.mxu0 %v4618
  %4773 = vmatmul.mubr.bf16.gmra.mrb[0].mxu0 %v4617
  %v4774 = vpop.f32.mrb[0].mxu0
  %v4775 = vadd.f32 %v4580, %v4774
  %v4776 = vpop.f32.mrb[0].mxu0
  %v4777 = vadd.f32 %v4580, %v4776
  %v4778 = vpop.f32.mrb[0].mxu0
  %v4779 = vadd.f32 %v4585, %v4778
  %v4780 = vpop.f32.mrb[0].mxu0
  %v4781 = vadd.f32 %v4585, %v4780
  %4782 = vmatprep.mubr.bf16.mxu0 %v4621
  %4783 = vmatmul.mubr.bf16.gmra.mrb[0].mxu0 %v4620
  %v4784 = vpop.f32.mrb[0].mxu0
  %v4785 = vadd.f32 %v4590, %v4784
  %v4786 = vpop.f32.mrb[0].mxu0
  %v4787 = vadd.f32 %v4590, %v4786
  %v4788 = vpop.f32.mrb[0].mxu0
  %v4789 = vadd.f32 %v4595, %v4788
  %v4790 = vpop.f32.mrb[0].mxu0
  %v4791 = vadd.f32 %v4595, %v4790
  %4792 = vdwg.mxu0
  %4793 = vmatprep.subr.bf16.mxu0 %v4564
  %4794 = vmatpush1.bf16.msra.mxu0 %v4563
  %4795 = vmatprep.subr.bf16.mxu0 %v4570
  %4796 = vmatpush1.bf16.msra.mxu0 %v4569
  %4797 = vmatprep.subr.bf16.mxu0 0
  %4798 = vmatpush1.bf16.msra.mxu0 0
  %4799 = vmatprep.subr.bf16.mxu0 0
  %4800 = vmatpush1.bf16.msra.mxu0 0
  %4801 = vmatprep.subr.bf16.mxu0 0
  %4802 = vmatpush1.bf16.msra.mxu0 0
  %4803 = vmatprep.subr.bf16.mxu0 0
  %4804 = vmatpush1.bf16.msra.mxu0 0
  %4805 = vmatprep.subr.bf16.mxu0 0
  %4806 = vmatpush1.bf16.msra.mxu0 0
  %4807 = vmatprep.subr.bf16.mxu0 0
  %4808 = vmatpush1.bf16.msra.mxu0 0
  %4809 = vmatprep.subr.bf16.mxu0 0
  %4810 = vmatpush1.bf16.msra.mxu0 0
  %4811 = vmatprep.subr.bf16.mxu0 0
  %4812 = vmatpush1.bf16.msra.mxu0 0
  %4813 = vmatprep.subr.bf16.mxu0 0
  %4814 = vmatpush1.bf16.msra.mxu0 0
  %4815 = vmatprep.subr.bf16.mxu0 0
  %4816 = vmatpush1.bf16.msra.mxu0 0
  %4817 = vmatprep.subr.bf16.mxu0 0
  %4818 = vmatpush1.bf16.msra.mxu0 0
  %4819 = vmatprep.subr.bf16.mxu0 0
  %4820 = vmatpush1.bf16.msra.mxu0 0
  %4821 = vmatprep.subr.bf16.mxu0 0
  %4822 = vmatpush1.bf16.msra.mxu0 0
  %4823 = vmatprep.subr.bf16.mxu0 0
  %4824 = vmatpush1.bf16.msra.mxu0 0
  %4825 = vmatprep.mubr.bf16.mxu0 0
  %4826 = vmatmul.mubr.bf16.gmra.mrb[0].mxu0 %v4629
  %v4827 = vpop.f32.mrb[0].mxu0
  %v4828 = vadd.f32 %v4775, %v4827
  %v4829 = vpop.f32.mrb[0].mxu0
  %v4830 = vadd.f32 %v4777, %v4829
  %v4831 = vpop.f32.mrb[0].mxu0
  %v4832 = vadd.f32 %v4779, %v4831
  %v4833 = vpop.f32.mrb[0].mxu0
  %v4834 = vadd.f32 %v4781, %v4833
  %4835 = vmatprep.mubr.bf16.mxu0 0
  %4836 = vmatmul.mubr.bf16.gmra.mrb[0].mxu0 %v4632
  %v4837 = vpop.f32.mrb[0].mxu0
  %v4838 = vadd.f32 %v4785, %v4837
  %v4839 = vpop.f32.mrb[0].mxu0
  %v4840 = vadd.f32 %v4787, %v4839
  %v4841 = vpop.f32.mrb[0].mxu0
  %v4842 = vadd.f32 %v4789, %v4841
  %v4843 = vpop.f32.mrb[0].mxu0
  %v4844 = vadd.f32 %v4791, %v4843
  %4845 = vdwg.mxu0
  %4846 = vmatprep.subr.bf16.mxu0 %v4470
  %4847 = vmatpush1.bf16.msra.mxu0 %v4469
  %4848 = vmatprep.subr.bf16.mxu0 %v4476
  %4849 = vmatpush1.bf16.msra.mxu0 %v4475
  %4850 = vmatprep.subr.bf16.mxu0 %v4482
  %4851 = vmatpush1.bf16.msra.mxu0 %v4481
  %4852 = vmatprep.subr.bf16.mxu0 %v4488
  %4853 = vmatpush1.bf16.msra.mxu0 %v4487
  %4854 = vmatprep.subr.bf16.mxu0 %v4494
  %4855 = vmatpush1.bf16.msra.mxu0 %v4493
  %4856 = vmatprep.subr.bf16.mxu0 %v4500
  %4857 = vmatpush1.bf16.msra.mxu0 %v4499
  %4858 = vmatprep.subr.bf16.mxu0 %v4506
  %4859 = vmatpush1.bf16.msra.mxu0 %v4505
  %4860 = vmatprep.subr.bf16.mxu0 %v4512
  %4861 = vmatpush1.bf16.msra.mxu0 %v4511
  %4862 = vmatprep.subr.bf16.mxu0 %v4518
  %4863 = vmatpush1.bf16.msra.mxu0 %v4517
  %4864 = vmatprep.subr.bf16.mxu0 %v4524
  %4865 = vmatpush1.bf16.msra.mxu0 %v4523
  %4866 = vmatprep.subr.bf16.mxu0 %v4530
  %4867 = vmatpush1.bf16.msra.mxu0 %v4529
  %4868 = vmatprep.subr.bf16.mxu0 %v4536
  %4869 = vmatpush1.bf16.msra.mxu0 %v4535
  %4870 = vmatprep.subr.bf16.mxu0 %v4542
  %4871 = vmatpush1.bf16.msra.mxu0 %v4541
  %4872 = vmatprep.subr.bf16.mxu0 %v4548
  %4873 = vmatpush1.bf16.msra.mxu0 %v4547
  %4874 = vmatprep.subr.bf16.mxu0 %v4554
  %4875 = vmatpush1.bf16.msra.mxu0 %v4553
  %4876 = vmatprep.subr.bf16.mxu0 %v4560
  %4877 = vmatpush1.bf16.msra.mxu0 %v4559
  %4878 = vmatprep.mubr.bf16.mxu0 %v4618
  %4879 = vmatmul.mubr.bf16.gmra.mrb[0].mxu0 %v4617
  %v4880 = vpop.f32.mrb[0].mxu0
  %v4881 = vadd.f32 %v4580, %v4880
  %v4882 = vpop.f32.mrb[0].mxu0
  %v4883 = vadd.f32 %v4580, %v4882
  %v4884 = vpop.f32.mrb[0].mxu0
  %v4885 = vadd.f32 %v4585, %v4884
  %v4886 = vpop.f32.mrb[0].mxu0
  %v4887 = vadd.f32 %v4585, %v4886
  %4888 = vmatprep.mubr.bf16.mxu0 %v4621
  %4889 = vmatmul.mubr.bf16.gmra.mrb[0].mxu0 %v4620
  %v4890 = vpop.f32.mrb[0].mxu0
  %v4891 = vadd.f32 %v4590, %v4890
  %v4892 = vpop.f32.mrb[0].mxu0
  %v4893 = vadd.f32 %v4590, %v4892
  %v4894 = vpop.f32.mrb[0].mxu0
  %v4895 = vadd.f32 %v4595, %v4894
  %v4896 = vpop.f32.mrb[0].mxu0
  %v4897 = vadd.f32 %v4595, %v4896
  %4898 = vdwg.mxu0
  %4899 = vmatprep.subr.bf16.mxu0 %v4566
  %4900 = vmatpush1.bf16.msra.mxu0 %v4565
  %4901 = vmatprep.subr.bf16.mxu0 %v4572
  %4902 = vmatpush1.bf16.msra.mxu0 %v4571
  %4903 = vmatprep.subr.bf16.mxu0 0
  %4904 = vmatpush1.bf16.msra.mxu0 0
  %4905 = vmatprep.subr.bf16.mxu0 0
  %4906 = vmatpush1.bf16.msra.mxu0 0
  %4907 = vmatprep.subr.bf16.mxu0 0
  %4908 = vmatpush1.bf16.msra.mxu0 0
  %4909 = vmatprep.subr.bf16.mxu0 0
  %4910 = vmatpush1.bf16.msra.mxu0 0
  %4911 = vmatprep.subr.bf16.mxu0 0
  %4912 = vmatpush1.bf16.msra.mxu0 0
  %4913 = vmatprep.subr.bf16.mxu0 0
  %4914 = vmatpush1.bf16.msra.mxu0 0
  %4915 = vmatprep.subr.bf16.mxu0 0
  %4916 = vmatpush1.bf16.msra.mxu0 0
  %4917 = vmatprep.subr.bf16.mxu0 0
  %4918 = vmatpush1.bf16.msra.mxu0 0
  %4919 = vmatprep.subr.bf16.mxu0 0
  %4920 = vmatpush1.bf16.msra.mxu0 0
  %4921 = vmatprep.subr.bf16.mxu0 0
  %4922 = vmatpush1.bf16.msra.mxu0 0
  %4923 = vmatprep.subr.bf16.mxu0 0
  %4924 = vmatpush1.bf16.msra.mxu0 0
  %4925 = vmatprep.subr.bf16.mxu0 0
  %4926 = vmatpush1.bf16.msra.mxu0 0
  %4927 = vmatprep.subr.bf16.mxu0 0
  %4928 = vmatpush1.bf16.msra.mxu0 0
  %4929 = vmatprep.subr.bf16.mxu0 0
  %4930 = vmatpush1.bf16.msra.mxu0 0
  %4931 = vmatprep.mubr.bf16.mxu0 0
  %4932 = vmatmul.mubr.bf16.gmra.mrb[0].mxu0 %v4629
  %v4933 = vpop.f32.mrb[0].mxu0
  %v4934 = vadd.f32 %v4881, %v4933
  %v4935 = vpop.f32.mrb[0].mxu0
  %v4936 = vadd.f32 %v4883, %v4935
  %v4937 = vpop.f32.mrb[0].mxu0
  %v4938 = vadd.f32 %v4885, %v4937
  %v4939 = vpop.f32.mrb[0].mxu0
  %v4940 = vadd.f32 %v4887, %v4939
  %4941 = vmatprep.mubr.bf16.mxu0 0
  %4942 = vmatmul.mubr.bf16.gmra.mrb[0].mxu0 %v4632
  %v4943 = vpop.f32.mrb[0].mxu0
  %v4944 = vadd.f32 %v4891, %v4943
  %v4945 = vpop.f32.mrb[0].mxu0
  %v4946 = vadd.f32 %v4893, %v4945
  %v4947 = vpop.f32.mrb[0].mxu0
  %v4948 = vadd.f32 %v4895, %v4947
  %v4949 = vpop.f32.mrb[0].mxu0
  %v4950 = vadd.f32 %v4897, %v4949
  %4951 = vdwg.mxu0
  %v4952 = vadd.f32 %v4722, %v3737
  %v4953 = vadd.f32 %v4724, %v3739
  %v4954 = vadd.f32 %v4828, %v3790
  %v4955 = vadd.f32 %v4830, %v3792
  %v4956 = vadd.f32 %v4934, %v3843
  %v4957 = vadd.f32 %v4936, %v3845
  %v4958 = vadd.f32 %v4726, %v3741
  %v4959 = vadd.f32 %v4728, %v3743
  %v4960 = vadd.f32 %v4832, %v3794
  %v4961 = vadd.f32 %v4834, %v3796
  %v4962 = vadd.f32 %v4938, %v3847
  %v4963 = vadd.f32 %v4940, %v3849
  %v4964 = vadd.f32 %v4732, %v3747
  %v4965 = vadd.f32 %v4734, %v3749
  %v4966 = vadd.f32 %v4838, %v3800
  %v4967 = vadd.f32 %v4840, %v3802
  %v4968 = vadd.f32 %v4944, %v3853
  %v4969 = vadd.f32 %v4946, %v3855
  %v4970 = vadd.f32 %v4736, %v3751
  %v4971 = vadd.f32 %v4738, %v3753
  %v4972 = vadd.f32 %v4842, %v3804
  %v4973 = vadd.f32 %v4844, %v3806
  %v4974 = vadd.f32 %v4948, %v3857
  %v4975 = vadd.f32 %v4950, %v3859
  %v4976 = vmax.f32 %v4952, 0.0
  %v4977 = vmax.f32 %v4953, 0.0
  %v4978 = vmax.f32 %v4954, 0.0
  %v4979 = vmax.f32 %v4955, 0.0
  %v4980 = vmax.f32 %v4956, 0.0
  %v4981 = vmax.f32 %v4957, 0.0
  %v4982 = vmax.f32 %v4958, 0.0
  %v4983 = vmax.f32 %v4959, 0.0
  %v4984 = vmax.f32 %v4960, 0.0
  %v4985 = vmax.f32 %v4961, 0.0
  %v4986 = vmax.f32 %v4962, 0.0
  %v4987 = vmax.f32 %v4963, 0.0
  %v4988 = vmax.f32 %v4964, 0.0
  %v4989 = vmax.f32 %v4965, 0.0
  %v4990 = vmax.f32 %v4966, 0.0
  %v4991 = vmax.f32 %v4967, 0.0
  %v4992 = vmax.f32 %v4968, 0.0
  %v4993 = vmax.f32 %v4969, 0.0
  %v4994 = vmax.f32 %v4970, 0.0
  %v4995 = vmax.f32 %v4971, 0.0
  %v4996 = vmax.f32 %v4972, 0.0
  %v4997 = vmax.f32 %v4973, 0.0
  %v4998 = vmax.f32 %v4974, 0.0
  %v4999 = vmax.f32 %v4975, 0.0
  %v5000 = vmul.f32 %v4976, %v3571
  %v5001 = vmul.f32 %v4977, %v3575
  %v5002 = vmul.f32 %v4978, %v3579
  %v5003 = vmul.f32 %v4979, %v3583
  %v5004 = vmul.f32 %v4980, %v3587
  %v5005 = vmul.f32 %v4981, %v3591
  %v5006 = vmul.f32 %v4982, %v3571
  %v5007 = vmul.f32 %v4983, %v3575
  %v5008 = vmul.f32 %v4984, %v3579
  %v5009 = vmul.f32 %v4985, %v3583
  %v5010 = vmul.f32 %v4986, %v3587
  %v5011 = vmul.f32 %v4987, %v3591
  %v5012 = vmul.f32 %v4988, %v3571
  %v5013 = vmul.f32 %v4989, %v3575
  %v5014 = vmul.f32 %v4990, %v3579
  %v5015 = vmul.f32 %v4991, %v3583
  %v5016 = vmul.f32 %v4992, %v3587
  %v5017 = vmul.f32 %v4993, %v3591
  %v5018 = vmul.f32 %v4994, %v3571
  %v5019 = vmul.f32 %v4995, %v3575
  %v5020 = vmul.f32 %v4996, %v3579
  %v5021 = vmul.f32 %v4997, %v3583
  %v5022 = vmul.f32 %v4998, %v3587
  %v5023 = vmul.f32 %v4999, %v3591
  %5024 = vst [vmem:[#allocation2 + $0x8] sm:$0xff] %v5000
  %5025 = vst [vmem:[#allocation2 + $0x10] sm:$0xff] %v5001
  %5026 = vst [vmem:[#allocation2 + $0x18] sm:$0xff] %v5002
  %5027 = vst [vmem:[#allocation2 + $0x20] sm:$0xff] %v5003
  %5028 = vst [vmem:[#allocation2 + $0x28] sm:$0xff] %v5004
  %5029 = vst [vmem:[#allocation2 + $0x30] sm:$0xff] %v5005
  %5030 = vst [vmem:[#allocation2 + $0x48] sm:$0xff] %v5006
  %5031 = vst [vmem:[#allocation2 + $0x50] sm:$0xff] %v5007
  %5032 = vst [vmem:[#allocation2 + $0x58] sm:$0xff] %v5008
  %5033 = vst [vmem:[#allocation2 + $0x60] sm:$0xff] %v5009
  %5034 = vst [vmem:[#allocation2 + $0x68] sm:$0xff] %v5010
  %5035 = vst [vmem:[#allocation2 + $0x70] sm:$0xff] %v5011
  %5036 = vst [vmem:[#allocation2 + $0x88] sm:$0xff] %v5012
  %5037 = vst [vmem:[#allocation2 + $0x90] sm:$0xff] %v5013
  %5038 = vst [vmem:[#allocation2 + $0x98] sm:$0xff] %v5014
  %5039 = vst [vmem:[#allocation2 + $0xa0] sm:$0xff] %v5015
  %5040 = vst [vmem:[#allocation2 + $0xa8] sm:$0xff] %v5016
  %5041 = vst [vmem:[#allocation2 + $0xb0] sm:$0xff] %v5017
  %5042 = vst [vmem:[#allocation2 + $0xc8] sm:$0xff] %v5018
  %5043 = vst [vmem:[#allocation2 + $0xd0] sm:$0xff] %v5019
  %5044 = vst [vmem:[#allocation2 + $0xd8] sm:$0xff] %v5020
  %5045 = vst [vmem:[#allocation2 + $0xe0] sm:$0xff] %v5021
  %5046 = vst [vmem:[#allocation2 + $0xe8] sm:$0xff] %v5022
  %5047 = vst [vmem:[#allocation2 + $0xf0] sm:$0xff] %v5023
  %v5048 = vld [vmem:[#allocation2] sm:$0xff]
  %v5049 = vld [vmem:[#allocation2 + $0x8] sm:$0xff]
  %v5050 = vld [vmem:[#allocation2 + $0x10] sm:$0xff]
  %v5051 = vld [vmem:[#allocation2 + $0x18] sm:$0xff]
  %v5052 = vld [vmem:[#allocation2 + $0x20] sm:$0xff]
  %v5053 = vld [vmem:[#allocation2 + $0x28] sm:$0xff]
  %v5054 = vld [vmem:[#allocation2 + $0x30] sm:$0xff]
  %v5055 = vld [vmem:[#allocation2 + $0x38] sm:$0xff]
  %v5056 = vld [vmem:[#allocation2 + $0x40] sm:$0xff]
  %v5057 = vld [vmem:[#allocation2 + $0x48] sm:$0xff]
  %v5058 = vld [vmem:[#allocation2 + $0x50] sm:$0xff]
  %v5059 = vld [vmem:[#allocation2 + $0x58] sm:$0xff]
  %v5060 = vld [vmem:[#allocation2 + $0x60] sm:$0xff]
  %v5061 = vld [vmem:[#allocation2 + $0x68] sm:$0xff]
  %v5062 = vld [vmem:[#allocation2 + $0x70] sm:$0xff]
  %v5063 = vld [vmem:[#allocation2 + $0x78] sm:$0xff]
  %v5064 = vld [vmem:[#allocation2 + $0x80] sm:$0xff]
  %v5065 = vld [vmem:[#allocation2 + $0x88] sm:$0xff]
  %v5066 = vld [vmem:[#allocation2 + $0x90] sm:$0xff]
  %v5067 = vld [vmem:[#allocation2 + $0x98] sm:$0xff]
  %v5068 = vld [vmem:[#allocation2 + $0xa0] sm:$0xff]
  %v5069 = vld [vmem:[#allocation2 + $0xa8] sm:$0xff]
  %v5070 = vld [vmem:[#allocation2 + $0xb0] sm:$0xff]
  %v5071 = vld [vmem:[#allocation2 + $0xb8] sm:$0xff]
  %v5072 = vld [vmem:[#allocation2 + $0xc0] sm:$0xff]
  %v5073 = vld [vmem:[#allocation2 + $0xc8] sm:$0xff]
  %v5074 = vld [vmem:[#allocation2 + $0xd0] sm:$0xff]
  %v5075 = vld [vmem:[#allocation2 + $0xd8] sm:$0xff]
  %v5076 = vld [vmem:[#allocation2 + $0xe0] sm:$0xff]
  %v5077 = vld [vmem:[#allocation2 + $0xe8] sm:$0xff]
  %v5078 = vld [vmem:[#allocation2 + $0xf0] sm:$0xff]
  %v5079 = vld [vmem:[#allocation2 + $0xf8] sm:$0xff]
  %v5080 = vpack.c.bf16 %v5056, %v5048
  %v5081 = vpack.c.bf16 %v5057, %v5049
  %v5082 = vpack.c.bf16 %v5058, %v5050
  %v5083 = vpack.c.bf16 %v5059, %v5051
  %v5084 = vpack.c.bf16 %v5060, %v5052
  %v5085 = vpack.c.bf16 %v5061, %v5053
  %v5086 = vpack.c.bf16 %v5062, %v5054
  %v5087 = vpack.c.bf16 %v5072, %v5064
  %v5088 = vpack.c.bf16 %v5073, %v5065
  %v5089 = vpack.c.bf16 %v5074, %v5066
  %v5090 = vpack.c.bf16 %v5075, %v5067
  %v5091 = vpack.c.bf16 %v5076, %v5068
  %v5092 = vpack.c.bf16 %v5077, %v5069
  %v5093 = vpack.c.bf16 %v5078, %v5070
  %5108 = vrot.lane.b32.xlu0 %v5080, 38
  %v5109 = vpop.permute.xlu0 %5108
  %5110 = vrot.lane.b32.xlu0 %v5081, 38
  %v5111 = vpop.permute.xlu0 %5110
  %5112 = vrot.lane.b32.xlu0 %v5082, 38
  %v5113 = vpop.permute.xlu0 %5112
  %5114 = vrot.lane.b32.xlu0 %v5083, 38
  %v5115 = vpop.permute.xlu0 %5114
  %5116 = vrot.lane.b32.xlu0 %v5084, 38
  %v5117 = vpop.permute.xlu0 %5116
  %5118 = vrot.lane.b32.xlu0 %v5085, 38
  %v5119 = vpop.permute.xlu0 %5118
  %5120 = vrot.lane.b32.xlu0 %v5086, 38
  %v5121 = vpop.permute.xlu0 %5120
  %5122 = vrot.lane.b32.xlu0 %v5087, 38
  %v5123 = vpop.permute.xlu0 %5122
  %5124 = vrot.lane.b32.xlu0 %v5088, 38
  %v5125 = vpop.permute.xlu0 %5124
  %5126 = vrot.lane.b32.xlu0 %v5089, 38
  %v5127 = vpop.permute.xlu0 %5126
  %5128 = vrot.lane.b32.xlu0 %v5090, 38
  %v5129 = vpop.permute.xlu0 %5128
  %5130 = vrot.lane.b32.xlu0 %v5091, 38
  %v5131 = vpop.permute.xlu0 %5130
  %5132 = vrot.lane.b32.xlu0 %v5092, 38
  %v5133 = vpop.permute.xlu0 %5132
  %5134 = vrot.lane.b32.xlu0 %v5093, 38
  %v5135 = vpop.permute.xlu0 %5134
  %v5136 = vsel %vm3949, %v5109, %v5111
  %v5137 = vsel %vm3949, %v5111, %v5113
  %v5138 = vsel %vm3949, %v5113, %v5115
  %v5139 = vsel %vm3949, %v5115, %v5117
  %v5140 = vsel %vm3949, %v5117, %v5119
  %v5141 = vsel %vm3949, %v5119, %v5121
  %v5142 = vsel %vm3949, %v5123, %v5125
  %v5143 = vsel %vm3949, %v5125, %v5127
  %v5144 = vsel %vm3949, %v5127, %v5129
  %v5145 = vsel %vm3949, %v5129, %v5131
  %v5146 = vsel %vm3949, %v5131, %v5133
  %v5147 = vsel %vm3949, %v5133, %v5135
  %5160 = vst [vmem:[#allocation4] sm:$0xff] %v5136
  %5161 = vst [vmem:[#allocation4 + $0x8] sm:$0xff] %v5137
  %5162 = vst [vmem:[#allocation4 + $0x10] sm:$0xff] %v5138
  %5163 = vst [vmem:[#allocation4 + $0x18] sm:$0xff] %v5139
  %5164 = vst [vmem:[#allocation4 + $0x20] sm:$0xff] %v5140
  %5165 = vst [vmem:[#allocation4 + $0x28] sm:$0xff] %v5141
  %5166 = vst [vmem:[#allocation4 + $0x30] sm:$0xff] %v5142
  %5167 = vst [vmem:[#allocation4 + $0x38] sm:$0xff] %v5143
  %5168 = vst [vmem:[#allocation4 + $0x40] sm:$0xff] %v5144
  %5169 = vst [vmem:[#allocation4 + $0x48] sm:$0xff] %v5145
  %5170 = vst [vmem:[#allocation4 + $0x50] sm:$0xff] %v5146
  %5171 = vst [vmem:[#allocation4 + $0x58] sm:$0xff] %v5147
  %5172 = vrot.lane.b32.xlu0 %v5080, 36
  %v5173 = vpop.permute.xlu0 %5172
  %5174 = vrot.lane.b32.xlu0 %v5081, 36
  %v5175 = vpop.permute.xlu0 %5174
  %5176 = vrot.lane.b32.xlu0 %v5082, 36
  %v5177 = vpop.permute.xlu0 %5176
  %5178 = vrot.lane.b32.xlu0 %v5083, 36
  %v5179 = vpop.permute.xlu0 %5178
  %5180 = vrot.lane.b32.xlu0 %v5084, 36
  %v5181 = vpop.permute.xlu0 %5180
  %5182 = vrot.lane.b32.xlu0 %v5085, 36
  %v5183 = vpop.permute.xlu0 %5182
  %5184 = vrot.lane.b32.xlu0 %v5086, 36
  %v5185 = vpop.permute.xlu0 %5184
  %5186 = vrot.lane.b32.xlu0 %v5087, 36
  %v5187 = vpop.permute.xlu0 %5186
  %5188 = vrot.lane.b32.xlu0 %v5088, 36
  %v5189 = vpop.permute.xlu0 %5188
  %5190 = vrot.lane.b32.xlu0 %v5089, 36
  %v5191 = vpop.permute.xlu0 %5190
  %5192 = vrot.lane.b32.xlu0 %v5090, 36
  %v5193 = vpop.permute.xlu0 %5192
  %5194 = vrot.lane.b32.xlu0 %v5091, 36
  %v5195 = vpop.permute.xlu0 %5194
  %5196 = vrot.lane.b32.xlu0 %v5092, 36
  %v5197 = vpop.permute.xlu0 %5196
  %5198 = vrot.lane.b32.xlu0 %v5093, 36
  %v5199 = vpop.permute.xlu0 %5198
  %v5200 = vsel %vm4014, %v5173, %v5175
  %v5201 = vsel %vm4014, %v5175, %v5177
  %v5202 = vsel %vm4014, %v5177, %v5179
  %v5203 = vsel %vm4014, %v5179, %v5181
  %v5204 = vsel %vm4014, %v5181, %v5183
  %v5205 = vsel %vm4014, %v5183, %v5185
  %v5206 = vsel %vm4014, %v5187, %v5189
  %v5207 = vsel %vm4014, %v5189, %v5191
  %v5208 = vsel %vm4014, %v5191, %v5193
  %v5209 = vsel %vm4014, %v5193, %v5195
  %v5210 = vsel %vm4014, %v5195, %v5197
  %v5211 = vsel %vm4014, %v5197, %v5199
  %5224 = vst [vmem:[#allocation4 + $0x60] sm:$0xff] %v5200
  %5225 = vst [vmem:[#allocation4 + $0x68] sm:$0xff] %v5201
  %5226 = vst [vmem:[#allocation4 + $0x70] sm:$0xff] %v5202
  %5227 = vst [vmem:[#allocation4 + $0x78] sm:$0xff] %v5203
  %5228 = vst [vmem:[#allocation4 + $0x80] sm:$0xff] %v5204
  %5229 = vst [vmem:[#allocation4 + $0x88] sm:$0xff] %v5205
  %5230 = vst [vmem:[#allocation4 + $0x90] sm:$0xff] %v5206
  %5231 = vst [vmem:[#allocation4 + $0x98] sm:$0xff] %v5207
  %5232 = vst [vmem:[#allocation4 + $0xa0] sm:$0xff] %v5208
  %5233 = vst [vmem:[#allocation4 + $0xa8] sm:$0xff] %v5209
  %5234 = vst [vmem:[#allocation4 + $0xb0] sm:$0xff] %v5210
  %5235 = vst [vmem:[#allocation4 + $0xb8] sm:$0xff] %v5211
  %5236 = vrot.lane.b32.xlu0 %v5080, 34
  %v5237 = vpop.permute.xlu0 %5236
  %5238 = vrot.lane.b32.xlu0 %v5081, 34
  %v5239 = vpop.permute.xlu0 %5238
  %5240 = vrot.lane.b32.xlu0 %v5082, 34
  %v5241 = vpop.permute.xlu0 %5240
  %5242 = vrot.lane.b32.xlu0 %v5083, 34
  %v5243 = vpop.permute.xlu0 %5242
  %5244 = vrot.lane.b32.xlu0 %v5084, 34
  %v5245 = vpop.permute.xlu0 %5244
  %5246 = vrot.lane.b32.xlu0 %v5085, 34
  %v5247 = vpop.permute.xlu0 %5246
  %5248 = vrot.lane.b32.xlu0 %v5086, 34
  %v5249 = vpop.permute.xlu0 %5248
  %5250 = vrot.lane.b32.xlu0 %v5087, 34
  %v5251 = vpop.permute.xlu0 %5250
  %5252 = vrot.lane.b32.xlu0 %v5088, 34
  %v5253 = vpop.permute.xlu0 %5252
  %5254 = vrot.lane.b32.xlu0 %v5089, 34
  %v5255 = vpop.permute.xlu0 %5254
  %5256 = vrot.lane.b32.xlu0 %v5090, 34
  %v5257 = vpop.permute.xlu0 %5256
  %5258 = vrot.lane.b32.xlu0 %v5091, 34
  %v5259 = vpop.permute.xlu0 %5258
  %5260 = vrot.lane.b32.xlu0 %v5092, 34
  %v5261 = vpop.permute.xlu0 %5260
  %5262 = vrot.lane.b32.xlu0 %v5093, 34
  %v5263 = vpop.permute.xlu0 %5262
  %v5264 = vsel %vm4079, %v5237, %v5239
  %v5265 = vsel %vm4079, %v5239, %v5241
  %v5266 = vsel %vm4079, %v5241, %v5243
  %v5267 = vsel %vm4079, %v5243, %v5245
  %v5268 = vsel %vm4079, %v5245, %v5247
  %v5269 = vsel %vm4079, %v5247, %v5249
  %v5270 = vsel %vm4079, %v5251, %v5253
  %v5271 = vsel %vm4079, %v5253, %v5255
  %v5272 = vsel %vm4079, %v5255, %v5257
  %v5273 = vsel %vm4079, %v5257, %v5259
  %v5274 = vsel %vm4079, %v5259, %v5261
  %v5275 = vsel %vm4079, %v5261, %v5263
  %5288 = vst [vmem:[#allocation4 + $0xc0] sm:$0xff] %v5264
  %5289 = vst [vmem:[#allocation4 + $0xc8] sm:$0xff] %v5265
  %5290 = vst [vmem:[#allocation4 + $0xd0] sm:$0xff] %v5266
  %5291 = vst [vmem:[#allocation4 + $0xd8] sm:$0xff] %v5267
  %5292 = vst [vmem:[#allocation4 + $0xe0] sm:$0xff] %v5268
  %5293 = vst [vmem:[#allocation4 + $0xe8] sm:$0xff] %v5269
  %5294 = vst [vmem:[#allocation4 + $0xf0] sm:$0xff] %v5270
  %5295 = vst [vmem:[#allocation4 + $0xf8] sm:$0xff] %v5271
  %5296 = vst [vmem:[#allocation4 + $0x100] sm:$0xff] %v5272
  %5297 = vst [vmem:[#allocation4 + $0x108] sm:$0xff] %v5273
  %5298 = vst [vmem:[#allocation4 + $0x110] sm:$0xff] %v5274
  %5299 = vst [vmem:[#allocation4 + $0x118] sm:$0xff] %v5275
  %5300 = vrot.lane.b32.xlu0 %v5080, 2
  %v5301 = vpop.permute.xlu0 %5300
  %5302 = vrot.lane.b32.xlu0 %v5081, 2
  %v5303 = vpop.permute.xlu0 %5302
  %5304 = vrot.lane.b32.xlu0 %v5082, 2
  %v5305 = vpop.permute.xlu0 %5304
  %5306 = vrot.lane.b32.xlu0 %v5083, 2
  %v5307 = vpop.permute.xlu0 %5306
  %5308 = vrot.lane.b32.xlu0 %v5084, 2
  %v5309 = vpop.permute.xlu0 %5308
  %5310 = vrot.lane.b32.xlu0 %v5085, 2
  %v5311 = vpop.permute.xlu0 %5310
  %5312 = vrot.lane.b32.xlu0 %v5086, 2
  %v5313 = vpop.permute.xlu0 %5312
  %5314 = vrot.lane.b32.xlu0 %v5087, 2
  %v5315 = vpop.permute.xlu0 %5314
  %5316 = vrot.lane.b32.xlu0 %v5088, 2
  %v5317 = vpop.permute.xlu0 %5316
  %5318 = vrot.lane.b32.xlu0 %v5089, 2
  %v5319 = vpop.permute.xlu0 %5318
  %5320 = vrot.lane.b32.xlu0 %v5090, 2
  %v5321 = vpop.permute.xlu0 %5320
  %5322 = vrot.lane.b32.xlu0 %v5091, 2
  %v5323 = vpop.permute.xlu0 %5322
  %5324 = vrot.lane.b32.xlu0 %v5092, 2
  %v5325 = vpop.permute.xlu0 %5324
  %5326 = vrot.lane.b32.xlu0 %v5093, 2
  %v5327 = vpop.permute.xlu0 %5326
  %v5328 = vsel %vm4144, %v5301, %v5303
  %v5329 = vsel %vm4144, %v5303, %v5305
  %v5330 = vsel %vm4144, %v5305, %v5307
  %v5331 = vsel %vm4144, %v5307, %v5309
  %v5332 = vsel %vm4144, %v5309, %v5311
  %v5333 = vsel %vm4144, %v5311, %v5313
  %v5334 = vsel %vm4144, %v5315, %v5317
  %v5335 = vsel %vm4144, %v5317, %v5319
  %v5336 = vsel %vm4144, %v5319, %v5321
  %v5337 = vsel %vm4144, %v5321, %v5323
  %v5338 = vsel %vm4144, %v5323, %v5325
  %v5339 = vsel %vm4144, %v5325, %v5327
  %5352 = vst [vmem:[#allocation4 + $0x120] sm:$0xff] %v5328
  %5353 = vst [vmem:[#allocation4 + $0x128] sm:$0xff] %v5329
  %5354 = vst [vmem:[#allocation4 + $0x130] sm:$0xff] %v5330
  %5355 = vst [vmem:[#allocation4 + $0x138] sm:$0xff] %v5331
  %5356 = vst [vmem:[#allocation4 + $0x140] sm:$0xff] %v5332
  %5357 = vst [vmem:[#allocation4 + $0x148] sm:$0xff] %v5333
  %5358 = vst [vmem:[#allocation4 + $0x150] sm:$0xff] %v5334
  %5359 = vst [vmem:[#allocation4 + $0x158] sm:$0xff] %v5335
  %5360 = vst [vmem:[#allocation4 + $0x160] sm:$0xff] %v5336
  %5361 = vst [vmem:[#allocation4 + $0x168] sm:$0xff] %v5337
  %5362 = vst [vmem:[#allocation4 + $0x170] sm:$0xff] %v5338
  %5363 = vst [vmem:[#allocation4 + $0x178] sm:$0xff] %v5339
  %5364 = vst [vmem:[#allocation4 + $0x180] sm:$0xff] %v5081
  %5365 = vst [vmem:[#allocation4 + $0x188] sm:$0xff] %v5082
  %5366 = vst [vmem:[#allocation4 + $0x190] sm:$0xff] %v5083
  %5367 = vst [vmem:[#allocation4 + $0x198] sm:$0xff] %v5084
  %5368 = vst [vmem:[#allocation4 + $0x1a0] sm:$0xff] %v5085
  %5369 = vst [vmem:[#allocation4 + $0x1a8] sm:$0xff] %v5086
  %5370 = vst [vmem:[#allocation4 + $0x1b0] sm:$0xff] %v5088
  %5371 = vst [vmem:[#allocation4 + $0x1b8] sm:$0xff] %v5089
  %5372 = vst [vmem:[#allocation4 + $0x1c0] sm:$0xff] %v5090
  %5373 = vst [vmem:[#allocation4 + $0x1c8] sm:$0xff] %v5091
  %5374 = vst [vmem:[#allocation4 + $0x1d0] sm:$0xff] %v5092
  %5375 = vst [vmem:[#allocation4 + $0x1d8] sm:$0xff] %v5093
  %v5376 = vpack.c.bf16 %v5063, %v5055
  %v5377 = vpack.c.bf16 %v5079, %v5071
  %5380 = vrot.lane.b32.xlu0 %v5081, 126
  %v5381 = vpop.permute.xlu0 %5380
  %5382 = vrot.lane.b32.xlu0 %v5082, 126
  %v5383 = vpop.permute.xlu0 %5382
  %5384 = vrot.lane.b32.xlu0 %v5083, 126
  %v5385 = vpop.permute.xlu0 %5384
  %5386 = vrot.lane.b32.xlu0 %v5084, 126
  %v5387 = vpop.permute.xlu0 %5386
  %5388 = vrot.lane.b32.xlu0 %v5085, 126
  %v5389 = vpop.permute.xlu0 %5388
  %5390 = vrot.lane.b32.xlu0 %v5086, 126
  %v5391 = vpop.permute.xlu0 %5390
  %5392 = vrot.lane.b32.xlu0 %v5376, 126
  %v5393 = vpop.permute.xlu0 %5392
  %5394 = vrot.lane.b32.xlu0 %v5088, 126
  %v5395 = vpop.permute.xlu0 %5394
  %5396 = vrot.lane.b32.xlu0 %v5089, 126
  %v5397 = vpop.permute.xlu0 %5396
  %5398 = vrot.lane.b32.xlu0 %v5090, 126
  %v5399 = vpop.permute.xlu0 %5398
  %5400 = vrot.lane.b32.xlu0 %v5091, 126
  %v5401 = vpop.permute.xlu0 %5400
  %5402 = vrot.lane.b32.xlu0 %v5092, 126
  %v5403 = vpop.permute.xlu0 %5402
  %5404 = vrot.lane.b32.xlu0 %v5093, 126
  %v5405 = vpop.permute.xlu0 %5404
  %5406 = vrot.lane.b32.xlu0 %v5377, 126
  %v5407 = vpop.permute.xlu0 %5406
  %v5408 = vsel %vm4225, %v5381, %v5383
  %v5409 = vsel %vm4225, %v5383, %v5385
  %v5410 = vsel %vm4225, %v5385, %v5387
  %v5411 = vsel %vm4225, %v5387, %v5389
  %v5412 = vsel %vm4225, %v5389, %v5391
  %v5413 = vsel %vm4225, %v5391, %v5393
  %v5414 = vsel %vm4225, %v5395, %v5397
  %v5415 = vsel %vm4225, %v5397, %v5399
  %v5416 = vsel %vm4225, %v5399, %v5401
  %v5417 = vsel %vm4225, %v5401, %v5403
  %v5418 = vsel %vm4225, %v5403, %v5405
  %v5419 = vsel %vm4225, %v5405, %v5407
  %5432 = vst [vmem:[#allocation4 + $0x1e0] sm:$0xff] %v5408
  %5433 = vst [vmem:[#allocation4 + $0x1e8] sm:$0xff] %v5409
  %5434 = vst [vmem:[#allocation4 + $0x1f0] sm:$0xff] %v5410
  %5435 = vst [vmem:[#allocation4 + $0x1f8] sm:$0xff] %v5411
  %5436 = vst [vmem:[#allocation4 + $0x200] sm:$0xff] %v5412
  %5437 = vst [vmem:[#allocation4 + $0x208] sm:$0xff] %v5413
  %5438 = vst [vmem:[#allocation4 + $0x210] sm:$0xff] %v5414
  %5439 = vst [vmem:[#allocation4 + $0x218] sm:$0xff] %v5415
  %5440 = vst [vmem:[#allocation4 + $0x220] sm:$0xff] %v5416
  %5441 = vst [vmem:[#allocation4 + $0x228] sm:$0xff] %v5417
  %5442 = vst [vmem:[#allocation4 + $0x230] sm:$0xff] %v5418
  %5443 = vst [vmem:[#allocation4 + $0x238] sm:$0xff] %v5419
  %5444 = vrot.lane.b32.xlu0 %v5081, 94
  %v5445 = vpop.permute.xlu0 %5444
  %5446 = vrot.lane.b32.xlu0 %v5082, 94
  %v5447 = vpop.permute.xlu0 %5446
  %5448 = vrot.lane.b32.xlu0 %v5083, 94
  %v5449 = vpop.permute.xlu0 %5448
  %5450 = vrot.lane.b32.xlu0 %v5084, 94
  %v5451 = vpop.permute.xlu0 %5450
  %5452 = vrot.lane.b32.xlu0 %v5085, 94
  %v5453 = vpop.permute.xlu0 %5452
  %5454 = vrot.lane.b32.xlu0 %v5086, 94
  %v5455 = vpop.permute.xlu0 %5454
  %5456 = vrot.lane.b32.xlu0 %v5376, 94
  %v5457 = vpop.permute.xlu0 %5456
  %5458 = vrot.lane.b32.xlu0 %v5088, 94
  %v5459 = vpop.permute.xlu0 %5458
  %5460 = vrot.lane.b32.xlu0 %v5089, 94
  %v5461 = vpop.permute.xlu0 %5460
  %5462 = vrot.lane.b32.xlu0 %v5090, 94
  %v5463 = vpop.permute.xlu0 %5462
  %5464 = vrot.lane.b32.xlu0 %v5091, 94
  %v5465 = vpop.permute.xlu0 %5464
  %5466 = vrot.lane.b32.xlu0 %v5092, 94
  %v5467 = vpop.permute.xlu0 %5466
  %5468 = vrot.lane.b32.xlu0 %v5093, 94
  %v5469 = vpop.permute.xlu0 %5468
  %5470 = vrot.lane.b32.xlu0 %v5377, 94
  %v5471 = vpop.permute.xlu0 %5470
  %v5472 = vsel %vm4290, %v5445, %v5447
  %v5473 = vsel %vm4290, %v5447, %v5449
  %v5474 = vsel %vm4290, %v5449, %v5451
  %v5475 = vsel %vm4290, %v5451, %v5453
  %v5476 = vsel %vm4290, %v5453, %v5455
  %v5477 = vsel %vm4290, %v5455, %v5457
  %v5478 = vsel %vm4290, %v5459, %v5461
  %v5479 = vsel %vm4290, %v5461, %v5463
  %v5480 = vsel %vm4290, %v5463, %v5465
  %v5481 = vsel %vm4290, %v5465, %v5467
  %v5482 = vsel %vm4290, %v5467, %v5469
  %v5483 = vsel %vm4290, %v5469, %v5471
  %5496 = vst [vmem:[#allocation4 + $0x240] sm:$0xff] %v5472
  %5497 = vst [vmem:[#allocation4 + $0x248] sm:$0xff] %v5473
  %5498 = vst [vmem:[#allocation4 + $0x250] sm:$0xff] %v5474
  %5499 = vst [vmem:[#allocation4 + $0x258] sm:$0xff] %v5475
  %5500 = vst [vmem:[#allocation4 + $0x260] sm:$0xff] %v5476
  %5501 = vst [vmem:[#allocation4 + $0x268] sm:$0xff] %v5477
  %5502 = vst [vmem:[#allocation4 + $0x270] sm:$0xff] %v5478
  %5503 = vst [vmem:[#allocation4 + $0x278] sm:$0xff] %v5479
  %5504 = vst [vmem:[#allocation4 + $0x280] sm:$0xff] %v5480
  %5505 = vst [vmem:[#allocation4 + $0x288] sm:$0xff] %v5481
  %5506 = vst [vmem:[#allocation4 + $0x290] sm:$0xff] %v5482
  %5507 = vst [vmem:[#allocation4 + $0x298] sm:$0xff] %v5483
  %5508 = vrot.lane.b32.xlu0 %v5081, 92
  %v5509 = vpop.permute.xlu0 %5508
  %5510 = vrot.lane.b32.xlu0 %v5082, 92
  %v5511 = vpop.permute.xlu0 %5510
  %5512 = vrot.lane.b32.xlu0 %v5083, 92
  %v5513 = vpop.permute.xlu0 %5512
  %5514 = vrot.lane.b32.xlu0 %v5084, 92
  %v5515 = vpop.permute.xlu0 %5514
  %5516 = vrot.lane.b32.xlu0 %v5085, 92
  %v5517 = vpop.permute.xlu0 %5516
  %5518 = vrot.lane.b32.xlu0 %v5086, 92
  %v5519 = vpop.permute.xlu0 %5518
  %5520 = vrot.lane.b32.xlu0 %v5376, 92
  %v5521 = vpop.permute.xlu0 %5520
  %5522 = vrot.lane.b32.xlu0 %v5088, 92
  %v5523 = vpop.permute.xlu0 %5522
  %5524 = vrot.lane.b32.xlu0 %v5089, 92
  %v5525 = vpop.permute.xlu0 %5524
  %5526 = vrot.lane.b32.xlu0 %v5090, 92
  %v5527 = vpop.permute.xlu0 %5526
  %5528 = vrot.lane.b32.xlu0 %v5091, 92
  %v5529 = vpop.permute.xlu0 %5528
  %5530 = vrot.lane.b32.xlu0 %v5092, 92
  %v5531 = vpop.permute.xlu0 %5530
  %5532 = vrot.lane.b32.xlu0 %v5093, 92
  %v5533 = vpop.permute.xlu0 %5532
  %5534 = vrot.lane.b32.xlu0 %v5377, 92
  %v5535 = vpop.permute.xlu0 %5534
  %v5536 = vsel %vm4355, %v5509, %v5511
  %v5537 = vsel %vm4355, %v5511, %v5513
  %v5538 = vsel %vm4355, %v5513, %v5515
  %v5539 = vsel %vm4355, %v5515, %v5517
  %v5540 = vsel %vm4355, %v5517, %v5519
  %v5541 = vsel %vm4355, %v5519, %v5521
  %v5542 = vsel %vm4355, %v5523, %v5525
  %v5543 = vsel %vm4355, %v5525, %v5527
  %v5544 = vsel %vm4355, %v5527, %v5529
  %v5545 = vsel %vm4355, %v5529, %v5531
  %v5546 = vsel %vm4355, %v5531, %v5533
  %v5547 = vsel %vm4355, %v5533, %v5535
  %5560 = vst [vmem:[#allocation4 + $0x2a0] sm:$0xff] %v5536
  %5561 = vst [vmem:[#allocation4 + $0x2a8] sm:$0xff] %v5537
  %5562 = vst [vmem:[#allocation4 + $0x2b0] sm:$0xff] %v5538
  %5563 = vst [vmem:[#allocation4 + $0x2b8] sm:$0xff] %v5539
  %5564 = vst [vmem:[#allocation4 + $0x2c0] sm:$0xff] %v5540
  %5565 = vst [vmem:[#allocation4 + $0x2c8] sm:$0xff] %v5541
  %5566 = vst [vmem:[#allocation4 + $0x2d0] sm:$0xff] %v5542
  %5567 = vst [vmem:[#allocation4 + $0x2d8] sm:$0xff] %v5543
  %5568 = vst [vmem:[#allocation4 + $0x2e0] sm:$0xff] %v5544
  %5569 = vst [vmem:[#allocation4 + $0x2e8] sm:$0xff] %v5545
  %5570 = vst [vmem:[#allocation4 + $0x2f0] sm:$0xff] %v5546
  %5571 = vst [vmem:[#allocation4 + $0x2f8] sm:$0xff] %v5547
  %5572 = vrot.lane.b32.xlu0 %v5081, 90
  %v5573 = vpop.permute.xlu0 %5572
  %5574 = vrot.lane.b32.xlu0 %v5082, 90
  %v5575 = vpop.permute.xlu0 %5574
  %5576 = vrot.lane.b32.xlu0 %v5083, 90
  %v5577 = vpop.permute.xlu0 %5576
  %5578 = vrot.lane.b32.xlu0 %v5084, 90
  %v5579 = vpop.permute.xlu0 %5578
  %5580 = vrot.lane.b32.xlu0 %v5085, 90
  %v5581 = vpop.permute.xlu0 %5580
  %5582 = vrot.lane.b32.xlu0 %v5086, 90
  %v5583 = vpop.permute.xlu0 %5582
  %5584 = vrot.lane.b32.xlu0 %v5376, 90
  %v5585 = vpop.permute.xlu0 %5584
  %5586 = vrot.lane.b32.xlu0 %v5088, 90
  %v5587 = vpop.permute.xlu0 %5586
  %5588 = vrot.lane.b32.xlu0 %v5089, 90
  %v5589 = vpop.permute.xlu0 %5588
  %5590 = vrot.lane.b32.xlu0 %v5090, 90
  %v5591 = vpop.permute.xlu0 %5590
  %5592 = vrot.lane.b32.xlu0 %v5091, 90
  %v5593 = vpop.permute.xlu0 %5592
  %5594 = vrot.lane.b32.xlu0 %v5092, 90
  %v5595 = vpop.permute.xlu0 %5594
  %5596 = vrot.lane.b32.xlu0 %v5093, 90
  %v5597 = vpop.permute.xlu0 %5596
  %5598 = vrot.lane.b32.xlu0 %v5377, 90
  %v5599 = vpop.permute.xlu0 %5598
  %v5600 = vsel %vm4420, %v5573, %v5575
  %v5601 = vsel %vm4420, %v5575, %v5577
  %v5602 = vsel %vm4420, %v5577, %v5579
  %v5603 = vsel %vm4420, %v5579, %v5581
  %v5604 = vsel %vm4420, %v5581, %v5583
  %v5605 = vsel %vm4420, %v5583, %v5585
  %v5606 = vsel %vm4420, %v5587, %v5589
  %v5607 = vsel %vm4420, %v5589, %v5591
  %v5608 = vsel %vm4420, %v5591, %v5593
  %v5609 = vsel %vm4420, %v5593, %v5595
  %v5610 = vsel %vm4420, %v5595, %v5597
  %v5611 = vsel %vm4420, %v5597, %v5599
  %5624 = vst [vmem:[#allocation4 + $0x300] sm:$0xff] %v5600
  %5625 = vst [vmem:[#allocation4 + $0x308] sm:$0xff] %v5601
  %5626 = vst [vmem:[#allocation4 + $0x310] sm:$0xff] %v5602
  %5627 = vst [vmem:[#allocation4 + $0x318] sm:$0xff] %v5603
  %5628 = vst [vmem:[#allocation4 + $0x320] sm:$0xff] %v5604
  %5629 = vst [vmem:[#allocation4 + $0x328] sm:$0xff] %v5605
  %5630 = vst [vmem:[#allocation4 + $0x330] sm:$0xff] %v5606
  %5631 = vst [vmem:[#allocation4 + $0x338] sm:$0xff] %v5607
  %5632 = vst [vmem:[#allocation4 + $0x340] sm:$0xff] %v5608
  %5633 = vst [vmem:[#allocation4 + $0x348] sm:$0xff] %v5609
  %5634 = vst [vmem:[#allocation4 + $0x350] sm:$0xff] %v5610
  %5635 = vst [vmem:[#allocation4 + $0x358] sm:$0xff] %v5611
  %v5636 = vld [vmem:[%s2 + $0xd8] sm:$0xff]
  %v5637 = vld [vmem:[%s2 + $0xe0] sm:$0xf]
  %v5638 = vld [vmem:[%s2 + $0xe4] sm:$0xff]
  %v5639 = vld [vmem:[%s2 + $0xec] sm:$0xf]
  %v5640 = vld [vmem:[%s2 + $0xf0] sm:$0xff]
  %v5641 = vld [vmem:[%s2 + $0xf8] sm:$0xf]
  %v5642 = vld [vmem:[%s2 + $0xfc] sm:$0xff]
  %v5643 = vld [vmem:[%s2 + $0x104] sm:$0xf]
  %v5644 = vld [vmem:[#allocation4] sm:$0xff]
  %v5645 = vld [vmem:[#allocation4 + $0x8] sm:$0xff]
  %v5646 = vld [vmem:[#allocation4 + $0x10] sm:$0xff]
  %v5647 = vld [vmem:[#allocation4 + $0x18] sm:$0xff]
  %v5648 = vld [vmem:[#allocation4 + $0x20] sm:$0xff]
  %v5649 = vld [vmem:[#allocation4 + $0x28] sm:$0xff]
  %v5650 = vld [vmem:[#allocation4 + $0x30] sm:$0xff]
  %v5651 = vld [vmem:[#allocation4 + $0x38] sm:$0xff]
  %v5652 = vld [vmem:[#allocation4 + $0x40] sm:$0xff]
  %v5653 = vld [vmem:[#allocation4 + $0x48] sm:$0xff]
  %v5654 = vld [vmem:[#allocation4 + $0x50] sm:$0xff]
  %v5655 = vld [vmem:[#allocation4 + $0x58] sm:$0xff]
  %v5656 = vld [vmem:[#allocation4 + $0x60] sm:$0xff]
  %v5657 = vld [vmem:[#allocation4 + $0x68] sm:$0xff]
  %v5658 = vld [vmem:[#allocation4 + $0x70] sm:$0xff]
  %v5659 = vld [vmem:[#allocation4 + $0x78] sm:$0xff]
  %v5660 = vld [vmem:[#allocation4 + $0x80] sm:$0xff]
  %v5661 = vld [vmem:[#allocation4 + $0x88] sm:$0xff]
  %v5662 = vld [vmem:[#allocation4 + $0x90] sm:$0xff]
  %v5663 = vld [vmem:[#allocation4 + $0x98] sm:$0xff]
  %v5664 = vld [vmem:[#allocation4 + $0xa0] sm:$0xff]
  %v5665 = vld [vmem:[#allocation4 + $0xa8] sm:$0xff]
  %v5666 = vld [vmem:[#allocation4 + $0xb0] sm:$0xff]
  %v5667 = vld [vmem:[#allocation4 + $0xb8] sm:$0xff]
  %v5668 = vld [vmem:[#allocation4 + $0xc0] sm:$0xff]
  %v5669 = vld [vmem:[#allocation4 + $0xc8] sm:$0xff]
  %v5670 = vld [vmem:[#allocation4 + $0xd0] sm:$0xff]
  %v5671 = vld [vmem:[#allocation4 + $0xd8] sm:$0xff]
  %v5672 = vld [vmem:[#allocation4 + $0xe0] sm:$0xff]
  %v5673 = vld [vmem:[#allocation4 + $0xe8] sm:$0xff]
  %v5674 = vld [vmem:[#allocation4 + $0xf0] sm:$0xff]
  %v5675 = vld [vmem:[#allocation4 + $0xf8] sm:$0xff]
  %v5676 = vld [vmem:[#allocation4 + $0x100] sm:$0xff]
  %v5677 = vld [vmem:[#allocation4 + $0x108] sm:$0xff]
  %v5678 = vld [vmem:[#allocation4 + $0x110] sm:$0xff]
  %v5679 = vld [vmem:[#allocation4 + $0x118] sm:$0xff]
  %v5680 = vld [vmem:[#allocation4 + $0x120] sm:$0xff]
  %v5681 = vld [vmem:[#allocation4 + $0x128] sm:$0xff]
  %v5682 = vld [vmem:[#allocation4 + $0x130] sm:$0xff]
  %v5683 = vld [vmem:[#allocation4 + $0x138] sm:$0xff]
  %v5684 = vld [vmem:[#allocation4 + $0x140] sm:$0xff]
  %v5685 = vld [vmem:[#allocation4 + $0x148] sm:$0xff]
  %v5686 = vld [vmem:[#allocation4 + $0x150] sm:$0xff]
  %v5687 = vld [vmem:[#allocation4 + $0x158] sm:$0xff]
  %v5688 = vld [vmem:[#allocation4 + $0x160] sm:$0xff]
  %v5689 = vld [vmem:[#allocation4 + $0x168] sm:$0xff]
  %v5690 = vld [vmem:[#allocation4 + $0x170] sm:$0xff]
  %v5691 = vld [vmem:[#allocation4 + $0x178] sm:$0xff]
  %v5692 = vld [vmem:[#allocation4 + $0x180] sm:$0xff]
  %v5693 = vld [vmem:[#allocation4 + $0x188] sm:$0xff]
  %v5694 = vld [vmem:[#allocation4 + $0x190] sm:$0xff]
  %v5695 = vld [vmem:[#allocation4 + $0x198] sm:$0xff]
  %v5696 = vld [vmem:[#allocation4 + $0x1a0] sm:$0xff]
  %v5697 = vld [vmem:[#allocation4 + $0x1a8] sm:$0xff]
  %v5698 = vld [vmem:[#allocation4 + $0x1b0] sm:$0xff]
  %v5699 = vld [vmem:[#allocation4 + $0x1b8] sm:$0xff]
  %v5700 = vld [vmem:[#allocation4 + $0x1c0] sm:$0xff]
  %v5701 = vld [vmem:[#allocation4 + $0x1c8] sm:$0xff]
  %v5702 = vld [vmem:[#allocation4 + $0x1d0] sm:$0xff]
  %v5703 = vld [vmem:[#allocation4 + $0x1d8] sm:$0xff]
  %v5704 = vld [vmem:[#allocation4 + $0x1e0] sm:$0xff]
  %v5705 = vld [vmem:[#allocation4 + $0x1e8] sm:$0xff]
  %v5706 = vld [vmem:[#allocation4 + $0x1f0] sm:$0xff]
  %v5707 = vld [vmem:[#allocation4 + $0x1f8] sm:$0xff]
  %v5708 = vld [vmem:[#allocation4 + $0x200] sm:$0xff]
  %v5709 = vld [vmem:[#allocation4 + $0x208] sm:$0xff]
  %v5710 = vld [vmem:[#allocation4 + $0x210] sm:$0xff]
  %v5711 = vld [vmem:[#allocation4 + $0x218] sm:$0xff]
  %v5712 = vld [vmem:[#allocation4 + $0x220] sm:$0xff]
  %v5713 = vld [vmem:[#allocation4 + $0x228] sm:$0xff]
  %v5714 = vld [vmem:[#allocation4 + $0x230] sm:$0xff]
  %v5715 = vld [vmem:[#allocation4 + $0x238] sm:$0xff]
  %v5716 = vld [vmem:[#allocation4 + $0x240] sm:$0xff]
  %v5717 = vld [vmem:[#allocation4 + $0x248] sm:$0xff]
  %v5718 = vld [vmem:[#allocation4 + $0x250] sm:$0xff]
  %v5719 = vld [vmem:[#allocation4 + $0x258] sm:$0xff]
  %v5720 = vld [vmem:[#allocation4 + $0x260] sm:$0xff]
  %v5721 = vld [vmem:[#allocation4 + $0x268] sm:$0xff]
  %v5722 = vld [vmem:[#allocation4 + $0x270] sm:$0xff]
  %v5723 = vld [vmem:[#allocation4 + $0x278] sm:$0xff]
  %v5724 = vld [vmem:[#allocation4 + $0x280] sm:$0xff]
  %v5725 = vld [vmem:[#allocation4 + $0x288] sm:$0xff]
  %v5726 = vld [vmem:[#allocation4 + $0x290] sm:$0xff]
  %v5727 = vld [vmem:[#allocation4 + $0x298] sm:$0xff]
  %v5728 = vld [vmem:[#allocation4 + $0x2a0] sm:$0xff]
  %v5729 = vld [vmem:[#allocation4 + $0x2a8] sm:$0xff]
  %v5730 = vld [vmem:[#allocation4 + $0x2b0] sm:$0xff]
  %v5731 = vld [vmem:[#allocation4 + $0x2b8] sm:$0xff]
  %v5732 = vld [vmem:[#allocation4 + $0x2c0] sm:$0xff]
  %v5733 = vld [vmem:[#allocation4 + $0x2c8] sm:$0xff]
  %v5734 = vld [vmem:[#allocation4 + $0x2d0] sm:$0xff]
  %v5735 = vld [vmem:[#allocation4 + $0x2d8] sm:$0xff]
  %v5736 = vld [vmem:[#allocation4 + $0x2e0] sm:$0xff]
  %v5737 = vld [vmem:[#allocation4 + $0x2e8] sm:$0xff]
  %v5738 = vld [vmem:[#allocation4 + $0x2f0] sm:$0xff]
  %v5739 = vld [vmem:[#allocation4 + $0x2f8] sm:$0xff]
  %v5740 = vld [vmem:[#allocation4 + $0x300] sm:$0xff]
  %v5741 = vld [vmem:[#allocation4 + $0x308] sm:$0xff]
  %v5742 = vld [vmem:[#allocation4 + $0x310] sm:$0xff]
  %v5743 = vld [vmem:[#allocation4 + $0x318] sm:$0xff]
  %v5744 = vld [vmem:[#allocation4 + $0x320] sm:$0xff]
  %v5745 = vld [vmem:[#allocation4 + $0x328] sm:$0xff]
  %v5746 = vld [vmem:[#allocation4 + $0x330] sm:$0xff]
  %v5747 = vld [vmem:[#allocation4 + $0x338] sm:$0xff]
  %v5748 = vld [vmem:[#allocation4 + $0x340] sm:$0xff]
  %v5749 = vld [vmem:[#allocation4 + $0x348] sm:$0xff]
  %v5750 = vld [vmem:[#allocation4 + $0x350] sm:$0xff]
  %v5751 = vld [vmem:[#allocation4 + $0x358] sm:$0xff]
  %v5752 = vld [vmem:[%s3 + $0x90] sm:$0xff]
  %v5753 = vld [vmem:[%s3 + $0x98] sm:$0xff]
  %v5754 = vld [vmem:[%s3 + $0xa0] sm:$0xff]
  %v5755 = vld [vmem:[%s3 + $0xa8] sm:$0xff]
  %5757 = vset.pattern.permute.xlu0 0
  %5758 = vperm.xlu0 %5757, %v5752
  %v5759 = vpop.permute.xlu0 %5758
  %5762 = vset.pattern.permute.xlu0 0
  %5763 = vperm.xlu0 %5762, %v5753
  %v5764 = vpop.permute.xlu0 %5763
  %5767 = vset.pattern.permute.xlu0 0
  %5768 = vperm.xlu0 %5767, %v5754
  %v5769 = vpop.permute.xlu0 %5768
  %5772 = vset.pattern.permute.xlu0 0
  %5773 = vperm.xlu0 %5772, %v5755
  %v5774 = vpop.permute.xlu0 %5773
  %v5784 = vunpack.c.l.b16 %v5636
  %v5785 = vunpack.c.h.b16 %v5636
  %v5786 = vunpack.c.l.b16 %v5637
  %v5787 = vunpack.c.l.b16 %v5638
  %v5788 = vunpack.c.h.b16 %v5638
  %v5789 = vunpack.c.l.b16 %v5639
  %v5790 = vunpack.c.l.b16 %v5640
  %v5791 = vunpack.c.h.b16 %v5640
  %v5792 = vunpack.c.l.b16 %v5641
  %v5793 = vunpack.c.l.b16 %v5642
  %v5794 = vunpack.c.h.b16 %v5642
  %v5795 = vunpack.c.l.b16 %v5643
  %v5796 = vpack.c.b16 %v5787, %v5784
  %v5797 = vpack.c.b16 %v5788, %v5785
  %v5798 = vpack.c.b16 %v5789, %v5786
  %v5799 = vpack.c.b16 %v5793, %v5790
  %v5800 = vpack.c.b16 %v5794, %v5791
  %v5801 = vpack.c.b16 %v5795, %v5792
  %v5807 = vsel %vm4627, %v5798, 0
  %v5810 = vsel %vm4627, %v5801, 0
  %5812 = vmatprep.subr.bf16.mxu0 %v5645
  %5813 = vmatpush1.bf16.msra.mxu0 %v5644
  %5814 = vmatprep.subr.bf16.mxu0 %v5651
  %5815 = vmatpush1.bf16.msra.mxu0 %v5650
  %5816 = vmatprep.subr.bf16.mxu0 %v5657
  %5817 = vmatpush1.bf16.msra.mxu0 %v5656
  %5818 = vmatprep.subr.bf16.mxu0 %v5663
  %5819 = vmatpush1.bf16.msra.mxu0 %v5662
  %5820 = vmatprep.subr.bf16.mxu0 %v5669
  %5821 = vmatpush1.bf16.msra.mxu0 %v5668
  %5822 = vmatprep.subr.bf16.mxu0 %v5675
  %5823 = vmatpush1.bf16.msra.mxu0 %v5674
  %5824 = vmatprep.subr.bf16.mxu0 %v5681
  %5825 = vmatpush1.bf16.msra.mxu0 %v5680
  %5826 = vmatprep.subr.bf16.mxu0 %v5687
  %5827 = vmatpush1.bf16.msra.mxu0 %v5686
  %5828 = vmatprep.subr.bf16.mxu0 %v5693
  %5829 = vmatpush1.bf16.msra.mxu0 %v5692
  %5830 = vmatprep.subr.bf16.mxu0 %v5699
  %5831 = vmatpush1.bf16.msra.mxu0 %v5698
  %5832 = vmatprep.subr.bf16.mxu0 %v5705
  %5833 = vmatpush1.bf16.msra.mxu0 %v5704
  %5834 = vmatprep.subr.bf16.mxu0 %v5711
  %5835 = vmatpush1.bf16.msra.mxu0 %v5710
  %5836 = vmatprep.subr.bf16.mxu0 %v5717
  %5837 = vmatpush1.bf16.msra.mxu0 %v5716
  %5838 = vmatprep.subr.bf16.mxu0 %v5723
  %5839 = vmatpush1.bf16.msra.mxu0 %v5722
  %5840 = vmatprep.subr.bf16.mxu0 %v5729
  %5841 = vmatpush1.bf16.msra.mxu0 %v5728
  %5842 = vmatprep.subr.bf16.mxu0 %v5735
  %5843 = vmatpush1.bf16.msra.mxu0 %v5734
  %5844 = vmatprep.mubr.bf16.mxu0 %v5797
  %5845 = vmatmul.mubr.bf16.gmra.mrb[0].mxu0 %v5796
  %v5846 = vpop.f32.mrb[0].mxu0
  %v5847 = vadd.f32 %v5759, %v5846
  %v5848 = vpop.f32.mrb[0].mxu0
  %v5849 = vadd.f32 %v5759, %v5848
  %v5850 = vpop.f32.mrb[0].mxu0
  %v5851 = vadd.f32 %v5764, %v5850
  %v5852 = vpop.f32.mrb[0].mxu0
  %v5853 = vadd.f32 %v5764, %v5852
  %5854 = vmatprep.mubr.bf16.mxu0 %v5800
  %5855 = vmatmul.mubr.bf16.gmra.mrb[0].mxu0 %v5799
  %v5856 = vpop.f32.mrb[0].mxu0
  %v5857 = vadd.f32 %v5769, %v5856
  %v5858 = vpop.f32.mrb[0].mxu0
  %v5859 = vadd.f32 %v5769, %v5858
  %v5860 = vpop.f32.mrb[0].mxu0
  %v5861 = vadd.f32 %v5774, %v5860
  %v5862 = vpop.f32.mrb[0].mxu0
  %v5863 = vadd.f32 %v5774, %v5862
  %5864 = vdwg.mxu0
  %5865 = vmatprep.subr.bf16.mxu0 %v5741
  %5866 = vmatpush1.bf16.msra.mxu0 %v5740
  %5867 = vmatprep.subr.bf16.mxu0 %v5747
  %5868 = vmatpush1.bf16.msra.mxu0 %v5746
  %5869 = vmatprep.subr.bf16.mxu0 0
  %5870 = vmatpush1.bf16.msra.mxu0 0
  %5871 = vmatprep.subr.bf16.mxu0 0
  %5872 = vmatpush1.bf16.msra.mxu0 0
  %5873 = vmatprep.subr.bf16.mxu0 0
  %5874 = vmatpush1.bf16.msra.mxu0 0
  %5875 = vmatprep.subr.bf16.mxu0 0
  %5876 = vmatpush1.bf16.msra.mxu0 0
  %5877 = vmatprep.subr.bf16.mxu0 0
  %5878 = vmatpush1.bf16.msra.mxu0 0
  %5879 = vmatprep.subr.bf16.mxu0 0
  %5880 = vmatpush1.bf16.msra.mxu0 0
  %5881 = vmatprep.subr.bf16.mxu0 0
  %5882 = vmatpush1.bf16.msra.mxu0 0
  %5883 = vmatprep.subr.bf16.mxu0 0
  %5884 = vmatpush1.bf16.msra.mxu0 0
  %5885 = vmatprep.subr.bf16.mxu0 0
  %5886 = vmatpush1.bf16.msra.mxu0 0
  %5887 = vmatprep.subr.bf16.mxu0 0
  %5888 = vmatpush1.bf16.msra.mxu0 0
  %5889 = vmatprep.subr.bf16.mxu0 0
  %5890 = vmatpush1.bf16.msra.mxu0 0
  %5891 = vmatprep.subr.bf16.mxu0 0
  %5892 = vmatpush1.bf16.msra.mxu0 0
  %5893 = vmatprep.subr.bf16.mxu0 0
  %5894 = vmatpush1.bf16.msra.mxu0 0
  %5895 = vmatprep.subr.bf16.mxu0 0
  %5896 = vmatpush1.bf16.msra.mxu0 0
  %5897 = vmatprep.mubr.bf16.mxu0 0
  %5898 = vmatmul.mubr.bf16.gmra.mrb[0].mxu0 %v5807
  %v5899 = vpop.f32.mrb[0].mxu0
  %v5900 = vadd.f32 %v5847, %v5899
  %v5901 = vpop.f32.mrb[0].mxu0
  %v5902 = vadd.f32 %v5849, %v5901
  %v5903 = vpop.f32.mrb[0].mxu0
  %v5904 = vadd.f32 %v5851, %v5903
  %v5905 = vpop.f32.mrb[0].mxu0
  %v5906 = vadd.f32 %v5853, %v5905
  %5907 = vmatprep.mubr.bf16.mxu0 0
  %5908 = vmatmul.mubr.bf16.gmra.mrb[0].mxu0 %v5810
  %v5909 = vpop.f32.mrb[0].mxu0
  %v5910 = vadd.f32 %v5857, %v5909
  %v5911 = vpop.f32.mrb[0].mxu0
  %v5912 = vadd.f32 %v5859, %v5911
  %v5913 = vpop.f32.mrb[0].mxu0
  %v5914 = vadd.f32 %v5861, %v5913
  %v5915 = vpop.f32.mrb[0].mxu0
  %v5916 = vadd.f32 %v5863, %v5915
  %5917 = vdwg.mxu0
  %5918 = vmatprep.subr.bf16.mxu0 %v5647
  %5919 = vmatpush1.bf16.msra.mxu0 %v5646
  %5920 = vmatprep.subr.bf16.mxu0 %v5653
  %5921 = vmatpush1.bf16.msra.mxu0 %v5652
  %5922 = vmatprep.subr.bf16.mxu0 %v5659
  %5923 = vmatpush1.bf16.msra.mxu0 %v5658
  %5924 = vmatprep.subr.bf16.mxu0 %v5665
  %5925 = vmatpush1.bf16.msra.mxu0 %v5664
  %5926 = vmatprep.subr.bf16.mxu0 %v5671
  %5927 = vmatpush1.bf16.msra.mxu0 %v5670
  %5928 = vmatprep.subr.bf16.mxu0 %v5677
  %5929 = vmatpush1.bf16.msra.mxu0 %v5676
  %5930 = vmatprep.subr.bf16.mxu0 %v5683
  %5931 = vmatpush1.bf16.msra.mxu0 %v5682
  %5932 = vmatprep.subr.bf16.mxu0 %v5689
  %5933 = vmatpush1.bf16.msra.mxu0 %v5688
  %5934 = vmatprep.subr.bf16.mxu0 %v5695
  %5935 = vmatpush1.bf16.msra.mxu0 %v5694
  %5936 = vmatprep.subr.bf16.mxu0 %v5701
  %5937 = vmatpush1.bf16.msra.mxu0 %v5700
  %5938 = vmatprep.subr.bf16.mxu0 %v5707
  %5939 = vmatpush1.bf16.msra.mxu0 %v5706
  %5940 = vmatprep.subr.bf16.mxu0 %v5713
  %5941 = vmatpush1.bf16.msra.mxu0 %v5712
  %5942 = vmatprep.subr.bf16.mxu0 %v5719
  %5943 = vmatpush1.bf16.msra.mxu0 %v5718
  %5944 = vmatprep.subr.bf16.mxu0 %v5725
  %5945 = vmatpush1.bf16.msra.mxu0 %v5724
  %5946 = vmatprep.subr.bf16.mxu0 %v5731
  %5947 = vmatpush1.bf16.msra.mxu0 %v5730
  %5948 = vmatprep.subr.bf16.mxu0 %v5737
  %5949 = vmatpush1.bf16.msra.mxu0 %v5736
  %5950 = vmatprep.mubr.bf16.mxu0 %v5797
  %5951 = vmatmul.mubr.bf16.gmra.mrb[0].mxu0 %v5796
  %v5952 = vpop.f32.mrb[0].mxu0
  %v5953 = vadd.f32 %v5759, %v5952
  %v5954 = vpop.f32.mrb[0].mxu0
  %v5955 = vadd.f32 %v5759, %v5954
  %v5956 = vpop.f32.mrb[0].mxu0
  %v5957 = vadd.f32 %v5764, %v5956
  %v5958 = vpop.f32.mrb[0].mxu0
  %v5959 = vadd.f32 %v5764, %v5958
  %5960 = vmatprep.mubr.bf16.mxu0 %v5800
  %5961 = vmatmul.mubr.bf16.gmra.mrb[0].mxu0 %v5799
  %v5962 = vpop.f32.mrb[0].mxu0
  %v5963 = vadd.f32 %v5769, %v5962
  %v5964 = vpop.f32.mrb[0].mxu0
  %v5965 = vadd.f32 %v5769, %v5964
  %v5966 = vpop.f32.mrb[0].mxu0
  %v5967 = vadd.f32 %v5774, %v5966
  %v5968 = vpop.f32.mrb[0].mxu0
  %v5969 = vadd.f32 %v5774, %v5968
  %5970 = vdwg.mxu0
  %5971 = vmatprep.subr.bf16.mxu0 %v5743
  %5972 = vmatpush1.bf16.msra.mxu0 %v5742
  %5973 = vmatprep.subr.bf16.mxu0 %v5749
  %5974 = vmatpush1.bf16.msra.mxu0 %v5748
  %5975 = vmatprep.subr.bf16.mxu0 0
  %5976 = vmatpush1.bf16.msra.mxu0 0
  %5977 = vmatprep.subr.bf16.mxu0 0
  %5978 = vmatpush1.bf16.msra.mxu0 0
  %5979 = vmatprep.subr.bf16.mxu0 0
  %5980 = vmatpush1.bf16.msra.mxu0 0
  %5981 = vmatprep.subr.bf16.mxu0 0
  %5982 = vmatpush1.bf16.msra.mxu0 0
  %5983 = vmatprep.subr.bf16.mxu0 0
  %5984 = vmatpush1.bf16.msra.mxu0 0
  %5985 = vmatprep.subr.bf16.mxu0 0
  %5986 = vmatpush1.bf16.msra.mxu0 0
  %5987 = vmatprep.subr.bf16.mxu0 0
  %5988 = vmatpush1.bf16.msra.mxu0 0
  %5989 = vmatprep.subr.bf16.mxu0 0
  %5990 = vmatpush1.bf16.msra.mxu0 0
  %5991 = vmatprep.subr.bf16.mxu0 0
  %5992 = vmatpush1.bf16.msra.mxu0 0
  %5993 = vmatprep.subr.bf16.mxu0 0
  %5994 = vmatpush1.bf16.msra.mxu0 0
  %5995 = vmatprep.subr.bf16.mxu0 0
  %5996 = vmatpush1.bf16.msra.mxu0 0
  %5997 = vmatprep.subr.bf16.mxu0 0
  %5998 = vmatpush1.bf16.msra.mxu0 0
  %5999 = vmatprep.subr.bf16.mxu0 0
  %6000 = vmatpush1.bf16.msra.mxu0 0
  %6001 = vmatprep.subr.bf16.mxu0 0
  %6002 = vmatpush1.bf16.msra.mxu0 0
  %6003 = vmatprep.mubr.bf16.mxu0 0
  %6004 = vmatmul.mubr.bf16.gmra.mrb[0].mxu0 %v5807
  %v6005 = vpop.f32.mrb[0].mxu0
  %v6006 = vadd.f32 %v5953, %v6005
  %v6007 = vpop.f32.mrb[0].mxu0
  %v6008 = vadd.f32 %v5955, %v6007
  %v6009 = vpop.f32.mrb[0].mxu0
  %v6010 = vadd.f32 %v5957, %v6009
  %v6011 = vpop.f32.mrb[0].mxu0
  %v6012 = vadd.f32 %v5959, %v6011
  %6013 = vmatprep.mubr.bf16.mxu0 0
  %6014 = vmatmul.mubr.bf16.gmra.mrb[0].mxu0 %v5810
  %v6015 = vpop.f32.mrb[0].mxu0
  %v6016 = vadd.f32 %v5963, %v6015
  %v6017 = vpop.f32.mrb[0].mxu0
  %v6018 = vadd.f32 %v5965, %v6017
  %v6019 = vpop.f32.mrb[0].mxu0
  %v6020 = vadd.f32 %v5967, %v6019
  %v6021 = vpop.f32.mrb[0].mxu0
  %v6022 = vadd.f32 %v5969, %v6021
  %6023 = vdwg.mxu0
  %6024 = vmatprep.subr.bf16.mxu0 %v5649
  %6025 = vmatpush1.bf16.msra.mxu0 %v5648
  %6026 = vmatprep.subr.bf16.mxu0 %v5655
  %6027 = vmatpush1.bf16.msra.mxu0 %v5654
  %6028 = vmatprep.subr.bf16.mxu0 %v5661
  %6029 = vmatpush1.bf16.msra.mxu0 %v5660
  %6030 = vmatprep.subr.bf16.mxu0 %v5667
  %6031 = vmatpush1.bf16.msra.mxu0 %v5666
  %6032 = vmatprep.subr.bf16.mxu0 %v5673
  %6033 = vmatpush1.bf16.msra.mxu0 %v5672
  %6034 = vmatprep.subr.bf16.mxu0 %v5679
  %6035 = vmatpush1.bf16.msra.mxu0 %v5678
  %6036 = vmatprep.subr.bf16.mxu0 %v5685
  %6037 = vmatpush1.bf16.msra.mxu0 %v5684
  %6038 = vmatprep.subr.bf16.mxu0 %v5691
  %6039 = vmatpush1.bf16.msra.mxu0 %v5690
  %6040 = vmatprep.subr.bf16.mxu0 %v5697
  %6041 = vmatpush1.bf16.msra.mxu0 %v5696
  %6042 = vmatprep.subr.bf16.mxu0 %v5703
  %6043 = vmatpush1.bf16.msra.mxu0 %v5702
  %6044 = vmatprep.subr.bf16.mxu0 %v5709
  %6045 = vmatpush1.bf16.msra.mxu0 %v5708
  %6046 = vmatprep.subr.bf16.mxu0 %v5715
  %6047 = vmatpush1.bf16.msra.mxu0 %v5714
  %6048 = vmatprep.subr.bf16.mxu0 %v5721
  %6049 = vmatpush1.bf16.msra.mxu0 %v5720
  %6050 = vmatprep.subr.bf16.mxu0 %v5727
  %6051 = vmatpush1.bf16.msra.mxu0 %v5726
  %6052 = vmatprep.subr.bf16.mxu0 %v5733
  %6053 = vmatpush1.bf16.msra.mxu0 %v5732
  %6054 = vmatprep.subr.bf16.mxu0 %v5739
  %6055 = vmatpush1.bf16.msra.mxu0 %v5738
  %6056 = vmatprep.mubr.bf16.mxu0 %v5797
  %6057 = vmatmul.mubr.bf16.gmra.mrb[0].mxu0 %v5796
  %v6058 = vpop.f32.mrb[0].mxu0
  %v6059 = vadd.f32 %v5759, %v6058
  %v6060 = vpop.f32.mrb[0].mxu0
  %v6061 = vadd.f32 %v5759, %v6060
  %v6062 = vpop.f32.mrb[0].mxu0
  %v6063 = vadd.f32 %v5764, %v6062
  %v6064 = vpop.f32.mrb[0].mxu0
  %v6065 = vadd.f32 %v5764, %v6064
  %6066 = vmatprep.mubr.bf16.mxu0 %v5800
  %6067 = vmatmul.mubr.bf16.gmra.mrb[0].mxu0 %v5799
  %v6068 = vpop.f32.mrb[0].mxu0
  %v6069 = vadd.f32 %v5769, %v6068
  %v6070 = vpop.f32.mrb[0].mxu0
  %v6071 = vadd.f32 %v5769, %v6070
  %v6072 = vpop.f32.mrb[0].mxu0
  %v6073 = vadd.f32 %v5774, %v6072
  %v6074 = vpop.f32.mrb[0].mxu0
  %v6075 = vadd.f32 %v5774, %v6074
  %6076 = vdwg.mxu0
  %6077 = vmatprep.subr.bf16.mxu0 %v5745
  %6078 = vmatpush1.bf16.msra.mxu0 %v5744
  %6079 = vmatprep.subr.bf16.mxu0 %v5751
  %6080 = vmatpush1.bf16.msra.mxu0 %v5750
  %6081 = vmatprep.subr.bf16.mxu0 0
  %6082 = vmatpush1.bf16.msra.mxu0 0
  %6083 = vmatprep.subr.bf16.mxu0 0
  %6084 = vmatpush1.bf16.msra.mxu0 0
  %6085 = vmatprep.subr.bf16.mxu0 0
  %6086 = vmatpush1.bf16.msra.mxu0 0
  %6087 = vmatprep.subr.bf16.mxu0 0
  %6088 = vmatpush1.bf16.msra.mxu0 0
  %6089 = vmatprep.subr.bf16.mxu0 0
  %6090 = vmatpush1.bf16.msra.mxu0 0
  %6091 = vmatprep.subr.bf16.mxu0 0
  %6092 = vmatpush1.bf16.msra.mxu0 0
  %6093 = vmatprep.subr.bf16.mxu0 0
  %6094 = vmatpush1.bf16.msra.mxu0 0
  %6095 = vmatprep.subr.bf16.mxu0 0
  %6096 = vmatpush1.bf16.msra.mxu0 0
  %6097 = vmatprep.subr.bf16.mxu0 0
  %6098 = vmatpush1.bf16.msra.mxu0 0
  %6099 = vmatprep.subr.bf16.mxu0 0
  %6100 = vmatpush1.bf16.msra.mxu0 0
  %6101 = vmatprep.subr.bf16.mxu0 0
  %6102 = vmatpush1.bf16.msra.mxu0 0
  %6103 = vmatprep.subr.bf16.mxu0 0
  %6104 = vmatpush1.bf16.msra.mxu0 0
  %6105 = vmatprep.subr.bf16.mxu0 0
  %6106 = vmatpush1.bf16.msra.mxu0 0
  %6107 = vmatprep.subr.bf16.mxu0 0
  %6108 = vmatpush1.bf16.msra.mxu0 0
  %6109 = vmatprep.mubr.bf16.mxu0 0
  %6110 = vmatmul.mubr.bf16.gmra.mrb[0].mxu0 %v5807
  %v6111 = vpop.f32.mrb[0].mxu0
  %v6112 = vadd.f32 %v6059, %v6111
  %v6113 = vpop.f32.mrb[0].mxu0
  %v6114 = vadd.f32 %v6061, %v6113
  %v6115 = vpop.f32.mrb[0].mxu0
  %v6116 = vadd.f32 %v6063, %v6115
  %v6117 = vpop.f32.mrb[0].mxu0
  %v6118 = vadd.f32 %v6065, %v6117
  %6119 = vmatprep.mubr.bf16.mxu0 0
  %6120 = vmatmul.mubr.bf16.gmra.mrb[0].mxu0 %v5810
  %v6121 = vpop.f32.mrb[0].mxu0
  %v6122 = vadd.f32 %v6069, %v6121
  %v6123 = vpop.f32.mrb[0].mxu0
  %v6124 = vadd.f32 %v6071, %v6123
  %v6125 = vpop.f32.mrb[0].mxu0
  %v6126 = vadd.f32 %v6073, %v6125
  %v6127 = vpop.f32.mrb[0].mxu0
  %v6128 = vadd.f32 %v6075, %v6127
  %6129 = vdwg.mxu0
  %v6130 = vmax.f32 %v5900, 0.0
  %v6131 = vmax.f32 %v5902, 0.0
  %v6132 = vmax.f32 %v6006, 0.0
  %v6133 = vmax.f32 %v6008, 0.0
  %v6134 = vmax.f32 %v6112, 0.0
  %v6135 = vmax.f32 %v6114, 0.0
  %v6136 = vmax.f32 %v5904, 0.0
  %v6137 = vmax.f32 %v5906, 0.0
  %v6138 = vmax.f32 %v6010, 0.0
  %v6139 = vmax.f32 %v6012, 0.0
  %v6140 = vmax.f32 %v6116, 0.0
  %v6141 = vmax.f32 %v6118, 0.0
  %v6142 = vmax.f32 %v5910, 0.0
  %v6143 = vmax.f32 %v5912, 0.0
  %v6144 = vmax.f32 %v6016, 0.0
  %v6145 = vmax.f32 %v6018, 0.0
  %v6146 = vmax.f32 %v6122, 0.0
  %v6147 = vmax.f32 %v6124, 0.0
  %v6148 = vmax.f32 %v5914, 0.0
  %v6149 = vmax.f32 %v5916, 0.0
  %v6150 = vmax.f32 %v6020, 0.0
  %v6151 = vmax.f32 %v6022, 0.0
  %v6152 = vmax.f32 %v6126, 0.0
  %v6153 = vmax.f32 %v6128, 0.0
  %v6154 = vmul.f32 %v6130, %v3571
  %v6155 = vmul.f32 %v6131, %v3575
  %v6156 = vmul.f32 %v6132, %v3579
  %v6157 = vmul.f32 %v6133, %v3583
  %v6158 = vmul.f32 %v6134, %v3587
  %v6159 = vmul.f32 %v6135, %v3591
  %v6160 = vmul.f32 %v6136, %v3571
  %v6161 = vmul.f32 %v6137, %v3575
  %v6162 = vmul.f32 %v6138, %v3579
  %v6163 = vmul.f32 %v6139, %v3583
  %v6164 = vmul.f32 %v6140, %v3587
  %v6165 = vmul.f32 %v6141, %v3591
  %v6166 = vmul.f32 %v6142, %v3571
  %v6167 = vmul.f32 %v6143, %v3575
  %v6168 = vmul.f32 %v6144, %v3579
  %v6169 = vmul.f32 %v6145, %v3583
  %v6170 = vmul.f32 %v6146, %v3587
  %v6171 = vmul.f32 %v6147, %v3591
  %v6172 = vmul.f32 %v6148, %v3571
  %v6173 = vmul.f32 %v6149, %v3575
  %v6174 = vmul.f32 %v6150, %v3579
  %v6175 = vmul.f32 %v6151, %v3583
  %v6176 = vmul.f32 %v6152, %v3587
  %v6177 = vmul.f32 %v6153, %v3591
  %6178 = vst [vmem:[#allocation3 + $0x8] sm:$0xff] %v6154
  %6179 = vst [vmem:[#allocation3 + $0x10] sm:$0xff] %v6155
  %6180 = vst [vmem:[#allocation3 + $0x18] sm:$0xff] %v6156
  %6181 = vst [vmem:[#allocation3 + $0x20] sm:$0xff] %v6157
  %6182 = vst [vmem:[#allocation3 + $0x28] sm:$0xff] %v6158
  %6183 = vst [vmem:[#allocation3 + $0x30] sm:$0xff] %v6159
  %6184 = vst [vmem:[#allocation3 + $0x48] sm:$0xff] %v6160
  %6185 = vst [vmem:[#allocation3 + $0x50] sm:$0xff] %v6161
  %6186 = vst [vmem:[#allocation3 + $0x58] sm:$0xff] %v6162
  %6187 = vst [vmem:[#allocation3 + $0x60] sm:$0xff] %v6163
  %6188 = vst [vmem:[#allocation3 + $0x68] sm:$0xff] %v6164
  %6189 = vst [vmem:[#allocation3 + $0x70] sm:$0xff] %v6165
  %6190 = vst [vmem:[#allocation3 + $0x88] sm:$0xff] %v6166
  %6191 = vst [vmem:[#allocation3 + $0x90] sm:$0xff] %v6167
  %6192 = vst [vmem:[#allocation3 + $0x98] sm:$0xff] %v6168
  %6193 = vst [vmem:[#allocation3 + $0xa0] sm:$0xff] %v6169
  %6194 = vst [vmem:[#allocation3 + $0xa8] sm:$0xff] %v6170
  %6195 = vst [vmem:[#allocation3 + $0xb0] sm:$0xff] %v6171
  %6196 = vst [vmem:[#allocation3 + $0xc8] sm:$0xff] %v6172
  %6197 = vst [vmem:[#allocation3 + $0xd0] sm:$0xff] %v6173
  %6198 = vst [vmem:[#allocation3 + $0xd8] sm:$0xff] %v6174
  %6199 = vst [vmem:[#allocation3 + $0xe0] sm:$0xff] %v6175
  %6200 = vst [vmem:[#allocation3 + $0xe8] sm:$0xff] %v6176
  %6201 = vst [vmem:[#allocation3 + $0xf0] sm:$0xff] %v6177
  %v6202 = vld [vmem:[#allocation2 + $0x8] sm:$0xff]
  %v6203 = vld [vmem:[#allocation2 + $0x10] sm:$0xff]
  %v6204 = vld [vmem:[#allocation2 + $0x18] sm:$0xff]
  %v6205 = vld [vmem:[#allocation2 + $0x20] sm:$0xff]
  %v6206 = vld [vmem:[#allocation2 + $0x28] sm:$0xff]
  %v6207 = vld [vmem:[#allocation2 + $0x30] sm:$0xff]
  %v6208 = vld [vmem:[#allocation2 + $0x48] sm:$0xff]
  %v6209 = vld [vmem:[#allocation2 + $0x50] sm:$0xff]
  %v6210 = vld [vmem:[#allocation2 + $0x58] sm:$0xff]
  %v6211 = vld [vmem:[#allocation2 + $0x60] sm:$0xff]
  %v6212 = vld [vmem:[#allocation2 + $0x68] sm:$0xff]
  %v6213 = vld [vmem:[#allocation2 + $0x70] sm:$0xff]
  %v6214 = vld [vmem:[#allocation2 + $0x88] sm:$0xff]
  %v6215 = vld [vmem:[#allocation2 + $0x90] sm:$0xff]
  %v6216 = vld [vmem:[#allocation2 + $0x98] sm:$0xff]
  %v6217 = vld [vmem:[#allocation2 + $0xa0] sm:$0xff]
  %v6218 = vld [vmem:[#allocation2 + $0xa8] sm:$0xff]
  %v6219 = vld [vmem:[#allocation2 + $0xb0] sm:$0xff]
  %v6220 = vld [vmem:[#allocation2 + $0xc8] sm:$0xff]
  %v6221 = vld [vmem:[#allocation2 + $0xd0] sm:$0xff]
  %v6222 = vld [vmem:[#allocation2 + $0xd8] sm:$0xff]
  %v6223 = vld [vmem:[#allocation2 + $0xe0] sm:$0xff]
  %v6224 = vld [vmem:[#allocation2 + $0xe8] sm:$0xff]
  %v6225 = vld [vmem:[#allocation2 + $0xf0] sm:$0xff]
  %v6226 = vld [vmem:[#allocation3] sm:$0xff]
  %v6227 = vld [vmem:[#allocation3 + $0x8] sm:$0xff]
  %v6228 = vld [vmem:[#allocation3 + $0x10] sm:$0xff]
  %v6229 = vld [vmem:[#allocation3 + $0x18] sm:$0xff]
  %v6230 = vld [vmem:[#allocation3 + $0x20] sm:$0xff]
  %v6231 = vld [vmem:[#allocation3 + $0x28] sm:$0xff]
  %v6232 = vld [vmem:[#allocation3 + $0x30] sm:$0xff]
  %v6233 = vld [vmem:[#allocation3 + $0x38] sm:$0xff]
  %v6234 = vld [vmem:[#allocation3 + $0x40] sm:$0xff]
  %v6235 = vld [vmem:[#allocation3 + $0x48] sm:$0xff]
  %v6236 = vld [vmem:[#allocation3 + $0x50] sm:$0xff]
  %v6237 = vld [vmem:[#allocation3 + $0x58] sm:$0xff]
  %v6238 = vld [vmem:[#allocation3 + $0x60] sm:$0xff]
  %v6239 = vld [vmem:[#allocation3 + $0x68] sm:$0xff]
  %v6240 = vld [vmem:[#allocation3 + $0x70] sm:$0xff]
  %v6241 = vld [vmem:[#allocation3 + $0x78] sm:$0xff]
  %v6242 = vld [vmem:[#allocation3 + $0x80] sm:$0xff]
  %v6243 = vld [vmem:[#allocation3 + $0x88] sm:$0xff]
  %v6244 = vld [vmem:[#allocation3 + $0x90] sm:$0xff]
  %v6245 = vld [vmem:[#allocation3 + $0x98] sm:$0xff]
  %v6246 = vld [vmem:[#allocation3 + $0xa0] sm:$0xff]
  %v6247 = vld [vmem:[#allocation3 + $0xa8] sm:$0xff]
  %v6248 = vld [vmem:[#allocation3 + $0xb0] sm:$0xff]
  %v6249 = vld [vmem:[#allocation3 + $0xb8] sm:$0xff]
  %v6250 = vld [vmem:[#allocation3 + $0xc0] sm:$0xff]
  %v6251 = vld [vmem:[#allocation3 + $0xc8] sm:$0xff]
  %v6252 = vld [vmem:[#allocation3 + $0xd0] sm:$0xff]
  %v6253 = vld [vmem:[#allocation3 + $0xd8] sm:$0xff]
  %v6254 = vld [vmem:[#allocation3 + $0xe0] sm:$0xff]
  %v6255 = vld [vmem:[#allocation3 + $0xe8] sm:$0xff]
  %v6256 = vld [vmem:[#allocation3 + $0xf0] sm:$0xff]
  %v6257 = vld [vmem:[#allocation3 + $0xf8] sm:$0xff]
  %v6258 = vpack.c.bf16 %v6234, %v6226
  %v6259 = vpack.c.bf16 %v6235, %v6227
  %v6260 = vpack.c.bf16 %v6236, %v6228
  %v6261 = vpack.c.bf16 %v6237, %v6229
  %v6262 = vpack.c.bf16 %v6238, %v6230
  %v6263 = vpack.c.bf16 %v6239, %v6231
  %v6264 = vpack.c.bf16 %v6240, %v6232
  %v6265 = vpack.c.bf16 %v6250, %v6242
  %v6266 = vpack.c.bf16 %v6251, %v6243
  %v6267 = vpack.c.bf16 %v6252, %v6244
  %v6268 = vpack.c.bf16 %v6253, %v6245
  %v6269 = vpack.c.bf16 %v6254, %v6246
  %v6270 = vpack.c.bf16 %v6255, %v6247
  %v6271 = vpack.c.bf16 %v6256, %v6248
  %6286 = vrot.lane.b32.xlu0 %v6258, 38
  %v6287 = vpop.permute.xlu0 %6286
  %6288 = vrot.lane.b32.xlu0 %v6259, 38
  %v6289 = vpop.permute.xlu0 %6288
  %6290 = vrot.lane.b32.xlu0 %v6260, 38
  %v6291 = vpop.permute.xlu0 %6290
  %6292 = vrot.lane.b32.xlu0 %v6261, 38
  %v6293 = vpop.permute.xlu0 %6292
  %6294 = vrot.lane.b32.xlu0 %v6262, 38
  %v6295 = vpop.permute.xlu0 %6294
  %6296 = vrot.lane.b32.xlu0 %v6263, 38
  %v6297 = vpop.permute.xlu0 %6296
  %6298 = vrot.lane.b32.xlu0 %v6264, 38
  %v6299 = vpop.permute.xlu0 %6298
  %6300 = vrot.lane.b32.xlu0 %v6265, 38
  %v6301 = vpop.permute.xlu0 %6300
  %6302 = vrot.lane.b32.xlu0 %v6266, 38
  %v6303 = vpop.permute.xlu0 %6302
  %6304 = vrot.lane.b32.xlu0 %v6267, 38
  %v6305 = vpop.permute.xlu0 %6304
  %6306 = vrot.lane.b32.xlu0 %v6268, 38
  %v6307 = vpop.permute.xlu0 %6306
  %6308 = vrot.lane.b32.xlu0 %v6269, 38
  %v6309 = vpop.permute.xlu0 %6308
  %6310 = vrot.lane.b32.xlu0 %v6270, 38
  %v6311 = vpop.permute.xlu0 %6310
  %6312 = vrot.lane.b32.xlu0 %v6271, 38
  %v6313 = vpop.permute.xlu0 %6312
  %v6314 = vsel %vm3949, %v6287, %v6289
  %v6315 = vsel %vm3949, %v6289, %v6291
  %v6316 = vsel %vm3949, %v6291, %v6293
  %v6317 = vsel %vm3949, %v6293, %v6295
  %v6318 = vsel %vm3949, %v6295, %v6297
  %v6319 = vsel %vm3949, %v6297, %v6299
  %v6320 = vsel %vm3949, %v6301, %v6303
  %v6321 = vsel %vm3949, %v6303, %v6305
  %v6322 = vsel %vm3949, %v6305, %v6307
  %v6323 = vsel %vm3949, %v6307, %v6309
  %v6324 = vsel %vm3949, %v6309, %v6311
  %v6325 = vsel %vm3949, %v6311, %v6313
  %6338 = vst [vmem:[#allocation4] sm:$0xff] %v6314
  %6339 = vst [vmem:[#allocation4 + $0x8] sm:$0xff] %v6315
  %6340 = vst [vmem:[#allocation4 + $0x10] sm:$0xff] %v6316
  %6341 = vst [vmem:[#allocation4 + $0x18] sm:$0xff] %v6317
  %6342 = vst [vmem:[#allocation4 + $0x20] sm:$0xff] %v6318
  %6343 = vst [vmem:[#allocation4 + $0x28] sm:$0xff] %v6319
  %6344 = vst [vmem:[#allocation4 + $0x30] sm:$0xff] %v6320
  %6345 = vst [vmem:[#allocation4 + $0x38] sm:$0xff] %v6321
  %6346 = vst [vmem:[#allocation4 + $0x40] sm:$0xff] %v6322
  %6347 = vst [vmem:[#allocation4 + $0x48] sm:$0xff] %v6323
  %6348 = vst [vmem:[#allocation4 + $0x50] sm:$0xff] %v6324
  %6349 = vst [vmem:[#allocation4 + $0x58] sm:$0xff] %v6325
  %6350 = vrot.lane.b32.xlu0 %v6258, 36
  %v6351 = vpop.permute.xlu0 %6350
  %6352 = vrot.lane.b32.xlu0 %v6259, 36
  %v6353 = vpop.permute.xlu0 %6352
  %6354 = vrot.lane.b32.xlu0 %v6260, 36
  %v6355 = vpop.permute.xlu0 %6354
  %6356 = vrot.lane.b32.xlu0 %v6261, 36
  %v6357 = vpop.permute.xlu0 %6356
  %6358 = vrot.lane.b32.xlu0 %v6262, 36
  %v6359 = vpop.permute.xlu0 %6358
  %6360 = vrot.lane.b32.xlu0 %v6263, 36
  %v6361 = vpop.permute.xlu0 %6360
  %6362 = vrot.lane.b32.xlu0 %v6264, 36
  %v6363 = vpop.permute.xlu0 %6362
  %6364 = vrot.lane.b32.xlu0 %v6265, 36
  %v6365 = vpop.permute.xlu0 %6364
  %6366 = vrot.lane.b32.xlu0 %v6266, 36
  %v6367 = vpop.permute.xlu0 %6366
  %6368 = vrot.lane.b32.xlu0 %v6267, 36
  %v6369 = vpop.permute.xlu0 %6368
  %6370 = vrot.lane.b32.xlu0 %v6268, 36
  %v6371 = vpop.permute.xlu0 %6370
  %6372 = vrot.lane.b32.xlu0 %v6269, 36
  %v6373 = vpop.permute.xlu0 %6372
  %6374 = vrot.lane.b32.xlu0 %v6270, 36
  %v6375 = vpop.permute.xlu0 %6374
  %6376 = vrot.lane.b32.xlu0 %v6271, 36
  %v6377 = vpop.permute.xlu0 %6376
  %v6378 = vsel %vm4014, %v6351, %v6353
  %v6379 = vsel %vm4014, %v6353, %v6355
  %v6380 = vsel %vm4014, %v6355, %v6357
  %v6381 = vsel %vm4014, %v6357, %v6359
  %v6382 = vsel %vm4014, %v6359, %v6361
  %v6383 = vsel %vm4014, %v6361, %v6363
  %v6384 = vsel %vm4014, %v6365, %v6367
  %v6385 = vsel %vm4014, %v6367, %v6369
  %v6386 = vsel %vm4014, %v6369, %v6371
  %v6387 = vsel %vm4014, %v6371, %v6373
  %v6388 = vsel %vm4014, %v6373, %v6375
  %v6389 = vsel %vm4014, %v6375, %v6377
  %6402 = vst [vmem:[#allocation4 + $0x60] sm:$0xff] %v6378
  %6403 = vst [vmem:[#allocation4 + $0x68] sm:$0xff] %v6379
  %6404 = vst [vmem:[#allocation4 + $0x70] sm:$0xff] %v6380
  %6405 = vst [vmem:[#allocation4 + $0x78] sm:$0xff] %v6381
  %6406 = vst [vmem:[#allocation4 + $0x80] sm:$0xff] %v6382
  %6407 = vst [vmem:[#allocation4 + $0x88] sm:$0xff] %v6383
  %6408 = vst [vmem:[#allocation4 + $0x90] sm:$0xff] %v6384
  %6409 = vst [vmem:[#allocation4 + $0x98] sm:$0xff] %v6385
  %6410 = vst [vmem:[#allocation4 + $0xa0] sm:$0xff] %v6386
  %6411 = vst [vmem:[#allocation4 + $0xa8] sm:$0xff] %v6387
  %6412 = vst [vmem:[#allocation4 + $0xb0] sm:$0xff] %v6388
  %6413 = vst [vmem:[#allocation4 + $0xb8] sm:$0xff] %v6389
  %6414 = vrot.lane.b32.xlu0 %v6258, 34
  %v6415 = vpop.permute.xlu0 %6414
  %6416 = vrot.lane.b32.xlu0 %v6259, 34
  %v6417 = vpop.permute.xlu0 %6416
  %6418 = vrot.lane.b32.xlu0 %v6260, 34
  %v6419 = vpop.permute.xlu0 %6418
  %6420 = vrot.lane.b32.xlu0 %v6261, 34
  %v6421 = vpop.permute.xlu0 %6420
  %6422 = vrot.lane.b32.xlu0 %v6262, 34
  %v6423 = vpop.permute.xlu0 %6422
  %6424 = vrot.lane.b32.xlu0 %v6263, 34
  %v6425 = vpop.permute.xlu0 %6424
  %6426 = vrot.lane.b32.xlu0 %v6264, 34
  %v6427 = vpop.permute.xlu0 %6426
  %6428 = vrot.lane.b32.xlu0 %v6265, 34
  %v6429 = vpop.permute.xlu0 %6428
  %6430 = vrot.lane.b32.xlu0 %v6266, 34
  %v6431 = vpop.permute.xlu0 %6430
  %6432 = vrot.lane.b32.xlu0 %v6267, 34
  %v6433 = vpop.permute.xlu0 %6432
  %6434 = vrot.lane.b32.xlu0 %v6268, 34
  %v6435 = vpop.permute.xlu0 %6434
  %6436 = vrot.lane.b32.xlu0 %v6269, 34
  %v6437 = vpop.permute.xlu0 %6436
  %6438 = vrot.lane.b32.xlu0 %v6270, 34
  %v6439 = vpop.permute.xlu0 %6438
  %6440 = vrot.lane.b32.xlu0 %v6271, 34
  %v6441 = vpop.permute.xlu0 %6440
  %v6442 = vsel %vm4079, %v6415, %v6417
  %v6443 = vsel %vm4079, %v6417, %v6419
  %v6444 = vsel %vm4079, %v6419, %v6421
  %v6445 = vsel %vm4079, %v6421, %v6423
  %v6446 = vsel %vm4079, %v6423, %v6425
  %v6447 = vsel %vm4079, %v6425, %v6427
  %v6448 = vsel %vm4079, %v6429, %v6431
  %v6449 = vsel %vm4079, %v6431, %v6433
  %v6450 = vsel %vm4079, %v6433, %v6435
  %v6451 = vsel %vm4079, %v6435, %v6437
  %v6452 = vsel %vm4079, %v6437, %v6439
  %v6453 = vsel %vm4079, %v6439, %v6441
  %6466 = vst [vmem:[#allocation4 + $0xc0] sm:$0xff] %v6442
  %6467 = vst [vmem:[#allocation4 + $0xc8] sm:$0xff] %v6443
  %6468 = vst [vmem:[#allocation4 + $0xd0] sm:$0xff] %v6444
  %6469 = vst [vmem:[#allocation4 + $0xd8] sm:$0xff] %v6445
  %6470 = vst [vmem:[#allocation4 + $0xe0] sm:$0xff] %v6446
  %6471 = vst [vmem:[#allocation4 + $0xe8] sm:$0xff] %v6447
  %6472 = vst [vmem:[#allocation4 + $0xf0] sm:$0xff] %v6448
  %6473 = vst [vmem:[#allocation4 + $0xf8] sm:$0xff] %v6449
  %6474 = vst [vmem:[#allocation4 + $0x100] sm:$0xff] %v6450
  %6475 = vst [vmem:[#allocation4 + $0x108] sm:$0xff] %v6451
  %6476 = vst [vmem:[#allocation4 + $0x110] sm:$0xff] %v6452
  %6477 = vst [vmem:[#allocation4 + $0x118] sm:$0xff] %v6453
  %6478 = vrot.lane.b32.xlu0 %v6258, 2
  %v6479 = vpop.permute.xlu0 %6478
  %6480 = vrot.lane.b32.xlu0 %v6259, 2
  %v6481 = vpop.permute.xlu0 %6480
  %6482 = vrot.lane.b32.xlu0 %v6260, 2
  %v6483 = vpop.permute.xlu0 %6482
  %6484 = vrot.lane.b32.xlu0 %v6261, 2
  %v6485 = vpop.permute.xlu0 %6484
  %6486 = vrot.lane.b32.xlu0 %v6262, 2
  %v6487 = vpop.permute.xlu0 %6486
  %6488 = vrot.lane.b32.xlu0 %v6263, 2
  %v6489 = vpop.permute.xlu0 %6488
  %6490 = vrot.lane.b32.xlu0 %v6264, 2
  %v6491 = vpop.permute.xlu0 %6490
  %6492 = vrot.lane.b32.xlu0 %v6265, 2
  %v6493 = vpop.permute.xlu0 %6492
  %6494 = vrot.lane.b32.xlu0 %v6266, 2
  %v6495 = vpop.permute.xlu0 %6494
  %6496 = vrot.lane.b32.xlu0 %v6267, 2
  %v6497 = vpop.permute.xlu0 %6496
  %6498 = vrot.lane.b32.xlu0 %v6268, 2
  %v6499 = vpop.permute.xlu0 %6498
  %6500 = vrot.lane.b32.xlu0 %v6269, 2
  %v6501 = vpop.permute.xlu0 %6500
  %6502 = vrot.lane.b32.xlu0 %v6270, 2
  %v6503 = vpop.permute.xlu0 %6502
  %6504 = vrot.lane.b32.xlu0 %v6271, 2
  %v6505 = vpop.permute.xlu0 %6504
  %v6506 = vsel %vm4144, %v6479, %v6481
  %v6507 = vsel %vm4144, %v6481, %v6483
  %v6508 = vsel %vm4144, %v6483, %v6485
  %v6509 = vsel %vm4144, %v6485, %v6487
  %v6510 = vsel %vm4144, %v6487, %v6489
  %v6511 = vsel %vm4144, %v6489, %v6491
  %v6512 = vsel %vm4144, %v6493, %v6495
  %v6513 = vsel %vm4144, %v6495, %v6497
  %v6514 = vsel %vm4144, %v6497, %v6499
  %v6515 = vsel %vm4144, %v6499, %v6501
  %v6516 = vsel %vm4144, %v6501, %v6503
  %v6517 = vsel %vm4144, %v6503, %v6505
  %6530 = vst [vmem:[#allocation4 + $0x120] sm:$0xff] %v6506
  %6531 = vst [vmem:[#allocation4 + $0x128] sm:$0xff] %v6507
  %6532 = vst [vmem:[#allocation4 + $0x130] sm:$0xff] %v6508
  %6533 = vst [vmem:[#allocation4 + $0x138] sm:$0xff] %v6509
  %6534 = vst [vmem:[#allocation4 + $0x140] sm:$0xff] %v6510
  %6535 = vst [vmem:[#allocation4 + $0x148] sm:$0xff] %v6511
  %6536 = vst [vmem:[#allocation4 + $0x150] sm:$0xff] %v6512
  %6537 = vst [vmem:[#allocation4 + $0x158] sm:$0xff] %v6513
  %6538 = vst [vmem:[#allocation4 + $0x160] sm:$0xff] %v6514
  %6539 = vst [vmem:[#allocation4 + $0x168] sm:$0xff] %v6515
  %6540 = vst [vmem:[#allocation4 + $0x170] sm:$0xff] %v6516
  %6541 = vst [vmem:[#allocation4 + $0x178] sm:$0xff] %v6517
  %6542 = vst [vmem:[#allocation4 + $0x180] sm:$0xff] %v6259
  %6543 = vst [vmem:[#allocation4 + $0x188] sm:$0xff] %v6260
  %6544 = vst [vmem:[#allocation4 + $0x190] sm:$0xff] %v6261
  %6545 = vst [vmem:[#allocation4 + $0x198] sm:$0xff] %v6262
  %6546 = vst [vmem:[#allocation4 + $0x1a0] sm:$0xff] %v6263
  %6547 = vst [vmem:[#allocation4 + $0x1a8] sm:$0xff] %v6264
  %6548 = vst [vmem:[#allocation4 + $0x1b0] sm:$0xff] %v6266
  %6549 = vst [vmem:[#allocation4 + $0x1b8] sm:$0xff] %v6267
  %6550 = vst [vmem:[#allocation4 + $0x1c0] sm:$0xff] %v6268
  %6551 = vst [vmem:[#allocation4 + $0x1c8] sm:$0xff] %v6269
  %6552 = vst [vmem:[#allocation4 + $0x1d0] sm:$0xff] %v6270
  %6553 = vst [vmem:[#allocation4 + $0x1d8] sm:$0xff] %v6271
  %v6554 = vpack.c.bf16 %v6241, %v6233
  %v6555 = vpack.c.bf16 %v6257, %v6249
  %6558 = vrot.lane.b32.xlu0 %v6259, 126
  %v6559 = vpop.permute.xlu0 %6558
  %6560 = vrot.lane.b32.xlu0 %v6260, 126
  %v6561 = vpop.permute.xlu0 %6560
  %6562 = vrot.lane.b32.xlu0 %v6261, 126
  %v6563 = vpop.permute.xlu0 %6562
  %6564 = vrot.lane.b32.xlu0 %v6262, 126
  %v6565 = vpop.permute.xlu0 %6564
  %6566 = vrot.lane.b32.xlu0 %v6263, 126
  %v6567 = vpop.permute.xlu0 %6566
  %6568 = vrot.lane.b32.xlu0 %v6264, 126
  %v6569 = vpop.permute.xlu0 %6568
  %6570 = vrot.lane.b32.xlu0 %v6554, 126
  %v6571 = vpop.permute.xlu0 %6570
  %6572 = vrot.lane.b32.xlu0 %v6266, 126
  %v6573 = vpop.permute.xlu0 %6572
  %6574 = vrot.lane.b32.xlu0 %v6267, 126
  %v6575 = vpop.permute.xlu0 %6574
  %6576 = vrot.lane.b32.xlu0 %v6268, 126
  %v6577 = vpop.permute.xlu0 %6576
  %6578 = vrot.lane.b32.xlu0 %v6269, 126
  %v6579 = vpop.permute.xlu0 %6578
  %6580 = vrot.lane.b32.xlu0 %v6270, 126
  %v6581 = vpop.permute.xlu0 %6580
  %6582 = vrot.lane.b32.xlu0 %v6271, 126
  %v6583 = vpop.permute.xlu0 %6582
  %6584 = vrot.lane.b32.xlu0 %v6555, 126
  %v6585 = vpop.permute.xlu0 %6584
  %v6586 = vsel %vm4225, %v6559, %v6561
  %v6587 = vsel %vm4225, %v6561, %v6563
  %v6588 = vsel %vm4225, %v6563, %v6565
  %v6589 = vsel %vm4225, %v6565, %v6567
  %v6590 = vsel %vm4225, %v6567, %v6569
  %v6591 = vsel %vm4225, %v6569, %v6571
  %v6592 = vsel %vm4225, %v6573, %v6575
  %v6593 = vsel %vm4225, %v6575, %v6577
  %v6594 = vsel %vm4225, %v6577, %v6579
  %v6595 = vsel %vm4225, %v6579, %v6581
  %v6596 = vsel %vm4225, %v6581, %v6583
  %v6597 = vsel %vm4225, %v6583, %v6585
  %6610 = vst [vmem:[#allocation4 + $0x1e0] sm:$0xff] %v6586
  %6611 = vst [vmem:[#allocation4 + $0x1e8] sm:$0xff] %v6587
  %6612 = vst [vmem:[#allocation4 + $0x1f0] sm:$0xff] %v6588
  %6613 = vst [vmem:[#allocation4 + $0x1f8] sm:$0xff] %v6589
  %6614 = vst [vmem:[#allocation4 + $0x200] sm:$0xff] %v6590
  %6615 = vst [vmem:[#allocation4 + $0x208] sm:$0xff] %v6591
  %6616 = vst [vmem:[#allocation4 + $0x210] sm:$0xff] %v6592
  %6617 = vst [vmem:[#allocation4 + $0x218] sm:$0xff] %v6593
  %6618 = vst [vmem:[#allocation4 + $0x220] sm:$0xff] %v6594
  %6619 = vst [vmem:[#allocation4 + $0x228] sm:$0xff] %v6595
  %6620 = vst [vmem:[#allocation4 + $0x230] sm:$0xff] %v6596
  %6621 = vst [vmem:[#allocation4 + $0x238] sm:$0xff] %v6597
  %6622 = vrot.lane.b32.xlu0 %v6259, 94
  %v6623 = vpop.permute.xlu0 %6622
  %6624 = vrot.lane.b32.xlu0 %v6260, 94
  %v6625 = vpop.permute.xlu0 %6624
  %6626 = vrot.lane.b32.xlu0 %v6261, 94
  %v6627 = vpop.permute.xlu0 %6626
  %6628 = vrot.lane.b32.xlu0 %v6262, 94
  %v6629 = vpop.permute.xlu0 %6628
  %6630 = vrot.lane.b32.xlu0 %v6263, 94
  %v6631 = vpop.permute.xlu0 %6630
  %6632 = vrot.lane.b32.xlu0 %v6264, 94
  %v6633 = vpop.permute.xlu0 %6632
  %6634 = vrot.lane.b32.xlu0 %v6554, 94
  %v6635 = vpop.permute.xlu0 %6634
  %6636 = vrot.lane.b32.xlu0 %v6266, 94
  %v6637 = vpop.permute.xlu0 %6636
  %6638 = vrot.lane.b32.xlu0 %v6267, 94
  %v6639 = vpop.permute.xlu0 %6638
  %6640 = vrot.lane.b32.xlu0 %v6268, 94
  %v6641 = vpop.permute.xlu0 %6640
  %6642 = vrot.lane.b32.xlu0 %v6269, 94
  %v6643 = vpop.permute.xlu0 %6642
  %6644 = vrot.lane.b32.xlu0 %v6270, 94
  %v6645 = vpop.permute.xlu0 %6644
  %6646 = vrot.lane.b32.xlu0 %v6271, 94
  %v6647 = vpop.permute.xlu0 %6646
  %6648 = vrot.lane.b32.xlu0 %v6555, 94
  %v6649 = vpop.permute.xlu0 %6648
  %v6650 = vsel %vm4290, %v6623, %v6625
  %v6651 = vsel %vm4290, %v6625, %v6627
  %v6652 = vsel %vm4290, %v6627, %v6629
  %v6653 = vsel %vm4290, %v6629, %v6631
  %v6654 = vsel %vm4290, %v6631, %v6633
  %v6655 = vsel %vm4290, %v6633, %v6635
  %v6656 = vsel %vm4290, %v6637, %v6639
  %v6657 = vsel %vm4290, %v6639, %v6641
  %v6658 = vsel %vm4290, %v6641, %v6643
  %v6659 = vsel %vm4290, %v6643, %v6645
  %v6660 = vsel %vm4290, %v6645, %v6647
  %v6661 = vsel %vm4290, %v6647, %v6649
  %6674 = vst [vmem:[#allocation4 + $0x240] sm:$0xff] %v6650
  %6675 = vst [vmem:[#allocation4 + $0x248] sm:$0xff] %v6651
  %6676 = vst [vmem:[#allocation4 + $0x250] sm:$0xff] %v6652
  %6677 = vst [vmem:[#allocation4 + $0x258] sm:$0xff] %v6653
  %6678 = vst [vmem:[#allocation4 + $0x260] sm:$0xff] %v6654
  %6679 = vst [vmem:[#allocation4 + $0x268] sm:$0xff] %v6655
  %6680 = vst [vmem:[#allocation4 + $0x270] sm:$0xff] %v6656
  %6681 = vst [vmem:[#allocation4 + $0x278] sm:$0xff] %v6657
  %6682 = vst [vmem:[#allocation4 + $0x280] sm:$0xff] %v6658
  %6683 = vst [vmem:[#allocation4 + $0x288] sm:$0xff] %v6659
  %6684 = vst [vmem:[#allocation4 + $0x290] sm:$0xff] %v6660
  %6685 = vst [vmem:[#allocation4 + $0x298] sm:$0xff] %v6661
  %6686 = vrot.lane.b32.xlu0 %v6259, 92
  %v6687 = vpop.permute.xlu0 %6686
  %6688 = vrot.lane.b32.xlu0 %v6260, 92
  %v6689 = vpop.permute.xlu0 %6688
  %6690 = vrot.lane.b32.xlu0 %v6261, 92
  %v6691 = vpop.permute.xlu0 %6690
  %6692 = vrot.lane.b32.xlu0 %v6262, 92
  %v6693 = vpop.permute.xlu0 %6692
  %6694 = vrot.lane.b32.xlu0 %v6263, 92
  %v6695 = vpop.permute.xlu0 %6694
  %6696 = vrot.lane.b32.xlu0 %v6264, 92
  %v6697 = vpop.permute.xlu0 %6696
  %6698 = vrot.lane.b32.xlu0 %v6554, 92
  %v6699 = vpop.permute.xlu0 %6698
  %6700 = vrot.lane.b32.xlu0 %v6266, 92
  %v6701 = vpop.permute.xlu0 %6700
  %6702 = vrot.lane.b32.xlu0 %v6267, 92
  %v6703 = vpop.permute.xlu0 %6702
  %6704 = vrot.lane.b32.xlu0 %v6268, 92
  %v6705 = vpop.permute.xlu0 %6704
  %6706 = vrot.lane.b32.xlu0 %v6269, 92
  %v6707 = vpop.permute.xlu0 %6706
  %6708 = vrot.lane.b32.xlu0 %v6270, 92
  %v6709 = vpop.permute.xlu0 %6708
  %6710 = vrot.lane.b32.xlu0 %v6271, 92
  %v6711 = vpop.permute.xlu0 %6710
  %6712 = vrot.lane.b32.xlu0 %v6555, 92
  %v6713 = vpop.permute.xlu0 %6712
  %v6714 = vsel %vm4355, %v6687, %v6689
  %v6715 = vsel %vm4355, %v6689, %v6691
  %v6716 = vsel %vm4355, %v6691, %v6693
  %v6717 = vsel %vm4355, %v6693, %v6695
  %v6718 = vsel %vm4355, %v6695, %v6697
  %v6719 = vsel %vm4355, %v6697, %v6699
  %v6720 = vsel %vm4355, %v6701, %v6703
  %v6721 = vsel %vm4355, %v6703, %v6705
  %v6722 = vsel %vm4355, %v6705, %v6707
  %v6723 = vsel %vm4355, %v6707, %v6709
  %v6724 = vsel %vm4355, %v6709, %v6711
  %v6725 = vsel %vm4355, %v6711, %v6713
  %6738 = vst [vmem:[#allocation4 + $0x2a0] sm:$0xff] %v6714
  %6739 = vst [vmem:[#allocation4 + $0x2a8] sm:$0xff] %v6715
  %6740 = vst [vmem:[#allocation4 + $0x2b0] sm:$0xff] %v6716
  %6741 = vst [vmem:[#allocation4 + $0x2b8] sm:$0xff] %v6717
  %6742 = vst [vmem:[#allocation4 + $0x2c0] sm:$0xff] %v6718
  %6743 = vst [vmem:[#allocation4 + $0x2c8] sm:$0xff] %v6719
  %6744 = vst [vmem:[#allocation4 + $0x2d0] sm:$0xff] %v6720
  %6745 = vst [vmem:[#allocation4 + $0x2d8] sm:$0xff] %v6721
  %6746 = vst [vmem:[#allocation4 + $0x2e0] sm:$0xff] %v6722
  %6747 = vst [vmem:[#allocation4 + $0x2e8] sm:$0xff] %v6723
  %6748 = vst [vmem:[#allocation4 + $0x2f0] sm:$0xff] %v6724
  %6749 = vst [vmem:[#allocation4 + $0x2f8] sm:$0xff] %v6725
  %6750 = vrot.lane.b32.xlu0 %v6259, 90
  %v6751 = vpop.permute.xlu0 %6750
  %6752 = vrot.lane.b32.xlu0 %v6260, 90
  %v6753 = vpop.permute.xlu0 %6752
  %6754 = vrot.lane.b32.xlu0 %v6261, 90
  %v6755 = vpop.permute.xlu0 %6754
  %6756 = vrot.lane.b32.xlu0 %v6262, 90
  %v6757 = vpop.permute.xlu0 %6756
  %6758 = vrot.lane.b32.xlu0 %v6263, 90
  %v6759 = vpop.permute.xlu0 %6758
  %6760 = vrot.lane.b32.xlu0 %v6264, 90
  %v6761 = vpop.permute.xlu0 %6760
  %6762 = vrot.lane.b32.xlu0 %v6554, 90
  %v6763 = vpop.permute.xlu0 %6762
  %6764 = vrot.lane.b32.xlu0 %v6266, 90
  %v6765 = vpop.permute.xlu0 %6764
  %6766 = vrot.lane.b32.xlu0 %v6267, 90
  %v6767 = vpop.permute.xlu0 %6766
  %6768 = vrot.lane.b32.xlu0 %v6268, 90
  %v6769 = vpop.permute.xlu0 %6768
  %6770 = vrot.lane.b32.xlu0 %v6269, 90
  %v6771 = vpop.permute.xlu0 %6770
  %6772 = vrot.lane.b32.xlu0 %v6270, 90
  %v6773 = vpop.permute.xlu0 %6772
  %6774 = vrot.lane.b32.xlu0 %v6271, 90
  %v6775 = vpop.permute.xlu0 %6774
  %6776 = vrot.lane.b32.xlu0 %v6555, 90
  %v6777 = vpop.permute.xlu0 %6776
  %v6778 = vsel %vm4420, %v6751, %v6753
  %v6779 = vsel %vm4420, %v6753, %v6755
  %v6780 = vsel %vm4420, %v6755, %v6757
  %v6781 = vsel %vm4420, %v6757, %v6759
  %v6782 = vsel %vm4420, %v6759, %v6761
  %v6783 = vsel %vm4420, %v6761, %v6763
  %v6784 = vsel %vm4420, %v6765, %v6767
  %v6785 = vsel %vm4420, %v6767, %v6769
  %v6786 = vsel %vm4420, %v6769, %v6771
  %v6787 = vsel %vm4420, %v6771, %v6773
  %v6788 = vsel %vm4420, %v6773, %v6775
  %v6789 = vsel %vm4420, %v6775, %v6777
  %6802 = vst [vmem:[#allocation4 + $0x300] sm:$0xff] %v6778
  %6803 = vst [vmem:[#allocation4 + $0x308] sm:$0xff] %v6779
  %6804 = vst [vmem:[#allocation4 + $0x310] sm:$0xff] %v6780
  %6805 = vst [vmem:[#allocation4 + $0x318] sm:$0xff] %v6781
  %6806 = vst [vmem:[#allocation4 + $0x320] sm:$0xff] %v6782
  %6807 = vst [vmem:[#allocation4 + $0x328] sm:$0xff] %v6783
  %6808 = vst [vmem:[#allocation4 + $0x330] sm:$0xff] %v6784
  %6809 = vst [vmem:[#allocation4 + $0x338] sm:$0xff] %v6785
  %6810 = vst [vmem:[#allocation4 + $0x340] sm:$0xff] %v6786
  %6811 = vst [vmem:[#allocation4 + $0x348] sm:$0xff] %v6787
  %6812 = vst [vmem:[#allocation4 + $0x350] sm:$0xff] %v6788
  %6813 = vst [vmem:[#allocation4 + $0x358] sm:$0xff] %v6789
  %v6814 = vld [vmem:[%s2 + $0x108] sm:$0xff]
  %v6815 = vld [vmem:[%s2 + $0x110] sm:$0xf]
  %v6816 = vld [vmem:[%s2 + $0x114] sm:$0xff]
  %v6817 = vld [vmem:[%s2 + $0x11c] sm:$0xf]
  %v6818 = vld [vmem:[%s2 + $0x120] sm:$0xff]
  %v6819 = vld [vmem:[%s2 + $0x128] sm:$0xf]
  %v6820 = vld [vmem:[%s2 + $0x12c] sm:$0xff]
  %v6821 = vld [vmem:[%s2 + $0x134] sm:$0xf]
  %v6822 = vld [vmem:[#allocation4] sm:$0xff]
  %v6823 = vld [vmem:[#allocation4 + $0x8] sm:$0xff]
  %v6824 = vld [vmem:[#allocation4 + $0x10] sm:$0xff]
  %v6825 = vld [vmem:[#allocation4 + $0x18] sm:$0xff]
  %v6826 = vld [vmem:[#allocation4 + $0x20] sm:$0xff]
  %v6827 = vld [vmem:[#allocation4 + $0x28] sm:$0xff]
  %v6828 = vld [vmem:[#allocation4 + $0x30] sm:$0xff]
  %v6829 = vld [vmem:[#allocation4 + $0x38] sm:$0xff]
  %v6830 = vld [vmem:[#allocation4 + $0x40] sm:$0xff]
  %v6831 = vld [vmem:[#allocation4 + $0x48] sm:$0xff]
  %v6832 = vld [vmem:[#allocation4 + $0x50] sm:$0xff]
  %v6833 = vld [vmem:[#allocation4 + $0x58] sm:$0xff]
  %v6834 = vld [vmem:[#allocation4 + $0x60] sm:$0xff]
  %v6835 = vld [vmem:[#allocation4 + $0x68] sm:$0xff]
  %v6836 = vld [vmem:[#allocation4 + $0x70] sm:$0xff]
  %v6837 = vld [vmem:[#allocation4 + $0x78] sm:$0xff]
  %v6838 = vld [vmem:[#allocation4 + $0x80] sm:$0xff]
  %v6839 = vld [vmem:[#allocation4 + $0x88] sm:$0xff]
  %v6840 = vld [vmem:[#allocation4 + $0x90] sm:$0xff]
  %v6841 = vld [vmem:[#allocation4 + $0x98] sm:$0xff]
  %v6842 = vld [vmem:[#allocation4 + $0xa0] sm:$0xff]
  %v6843 = vld [vmem:[#allocation4 + $0xa8] sm:$0xff]
  %v6844 = vld [vmem:[#allocation4 + $0xb0] sm:$0xff]
  %v6845 = vld [vmem:[#allocation4 + $0xb8] sm:$0xff]
  %v6846 = vld [vmem:[#allocation4 + $0xc0] sm:$0xff]
  %v6847 = vld [vmem:[#allocation4 + $0xc8] sm:$0xff]
  %v6848 = vld [vmem:[#allocation4 + $0xd0] sm:$0xff]
  %v6849 = vld [vmem:[#allocation4 + $0xd8] sm:$0xff]
  %v6850 = vld [vmem:[#allocation4 + $0xe0] sm:$0xff]
  %v6851 = vld [vmem:[#allocation4 + $0xe8] sm:$0xff]
  %v6852 = vld [vmem:[#allocation4 + $0xf0] sm:$0xff]
  %v6853 = vld [vmem:[#allocation4 + $0xf8] sm:$0xff]
  %v6854 = vld [vmem:[#allocation4 + $0x100] sm:$0xff]
  %v6855 = vld [vmem:[#allocation4 + $0x108] sm:$0xff]
  %v6856 = vld [vmem:[#allocation4 + $0x110] sm:$0xff]
  %v6857 = vld [vmem:[#allocation4 + $0x118] sm:$0xff]
  %v6858 = vld [vmem:[#allocation4 + $0x120] sm:$0xff]
  %v6859 = vld [vmem:[#allocation4 + $0x128] sm:$0xff]
  %v6860 = vld [vmem:[#allocation4 + $0x130] sm:$0xff]
  %v6861 = vld [vmem:[#allocation4 + $0x138] sm:$0xff]
  %v6862 = vld [vmem:[#allocation4 + $0x140] sm:$0xff]
  %v6863 = vld [vmem:[#allocation4 + $0x148] sm:$0xff]
  %v6864 = vld [vmem:[#allocation4 + $0x150] sm:$0xff]
  %v6865 = vld [vmem:[#allocation4 + $0x158] sm:$0xff]
  %v6866 = vld [vmem:[#allocation4 + $0x160] sm:$0xff]
  %v6867 = vld [vmem:[#allocation4 + $0x168] sm:$0xff]
  %v6868 = vld [vmem:[#allocation4 + $0x170] sm:$0xff]
  %v6869 = vld [vmem:[#allocation4 + $0x178] sm:$0xff]
  %v6870 = vld [vmem:[#allocation4 + $0x180] sm:$0xff]
  %v6871 = vld [vmem:[#allocation4 + $0x188] sm:$0xff]
  %v6872 = vld [vmem:[#allocation4 + $0x190] sm:$0xff]
  %v6873 = vld [vmem:[#allocation4 + $0x198] sm:$0xff]
  %v6874 = vld [vmem:[#allocation4 + $0x1a0] sm:$0xff]
  %v6875 = vld [vmem:[#allocation4 + $0x1a8] sm:$0xff]
  %v6876 = vld [vmem:[#allocation4 + $0x1b0] sm:$0xff]
  %v6877 = vld [vmem:[#allocation4 + $0x1b8] sm:$0xff]
  %v6878 = vld [vmem:[#allocation4 + $0x1c0] sm:$0xff]
  %v6879 = vld [vmem:[#allocation4 + $0x1c8] sm:$0xff]
  %v6880 = vld [vmem:[#allocation4 + $0x1d0] sm:$0xff]
  %v6881 = vld [vmem:[#allocation4 + $0x1d8] sm:$0xff]
  %v6882 = vld [vmem:[#allocation4 + $0x1e0] sm:$0xff]
  %v6883 = vld [vmem:[#allocation4 + $0x1e8] sm:$0xff]
  %v6884 = vld [vmem:[#allocation4 + $0x1f0] sm:$0xff]
  %v6885 = vld [vmem:[#allocation4 + $0x1f8] sm:$0xff]
  %v6886 = vld [vmem:[#allocation4 + $0x200] sm:$0xff]
  %v6887 = vld [vmem:[#allocation4 + $0x208] sm:$0xff]
  %v6888 = vld [vmem:[#allocation4 + $0x210] sm:$0xff]
  %v6889 = vld [vmem:[#allocation4 + $0x218] sm:$0xff]
  %v6890 = vld [vmem:[#allocation4 + $0x220] sm:$0xff]
  %v6891 = vld [vmem:[#allocation4 + $0x228] sm:$0xff]
  %v6892 = vld [vmem:[#allocation4 + $0x230] sm:$0xff]
  %v6893 = vld [vmem:[#allocation4 + $0x238] sm:$0xff]
  %v6894 = vld [vmem:[#allocation4 + $0x240] sm:$0xff]
  %v6895 = vld [vmem:[#allocation4 + $0x248] sm:$0xff]
  %v6896 = vld [vmem:[#allocation4 + $0x250] sm:$0xff]
  %v6897 = vld [vmem:[#allocation4 + $0x258] sm:$0xff]
  %v6898 = vld [vmem:[#allocation4 + $0x260] sm:$0xff]
  %v6899 = vld [vmem:[#allocation4 + $0x268] sm:$0xff]
  %v6900 = vld [vmem:[#allocation4 + $0x270] sm:$0xff]
  %v6901 = vld [vmem:[#allocation4 + $0x278] sm:$0xff]
  %v6902 = vld [vmem:[#allocation4 + $0x280] sm:$0xff]
  %v6903 = vld [vmem:[#allocation4 + $0x288] sm:$0xff]
  %v6904 = vld [vmem:[#allocation4 + $0x290] sm:$0xff]
  %v6905 = vld [vmem:[#allocation4 + $0x298] sm:$0xff]
  %v6906 = vld [vmem:[#allocation4 + $0x2a0] sm:$0xff]
  %v6907 = vld [vmem:[#allocation4 + $0x2a8] sm:$0xff]
  %v6908 = vld [vmem:[#allocation4 + $0x2b0] sm:$0xff]
  %v6909 = vld [vmem:[#allocation4 + $0x2b8] sm:$0xff]
  %v6910 = vld [vmem:[#allocation4 + $0x2c0] sm:$0xff]
  %v6911 = vld [vmem:[#allocation4 + $0x2c8] sm:$0xff]
  %v6912 = vld [vmem:[#allocation4 + $0x2d0] sm:$0xff]
  %v6913 = vld [vmem:[#allocation4 + $0x2d8] sm:$0xff]
  %v6914 = vld [vmem:[#allocation4 + $0x2e0] sm:$0xff]
  %v6915 = vld [vmem:[#allocation4 + $0x2e8] sm:$0xff]
  %v6916 = vld [vmem:[#allocation4 + $0x2f0] sm:$0xff]
  %v6917 = vld [vmem:[#allocation4 + $0x2f8] sm:$0xff]
  %v6918 = vld [vmem:[#allocation4 + $0x300] sm:$0xff]
  %v6919 = vld [vmem:[#allocation4 + $0x308] sm:$0xff]
  %v6920 = vld [vmem:[#allocation4 + $0x310] sm:$0xff]
  %v6921 = vld [vmem:[#allocation4 + $0x318] sm:$0xff]
  %v6922 = vld [vmem:[#allocation4 + $0x320] sm:$0xff]
  %v6923 = vld [vmem:[#allocation4 + $0x328] sm:$0xff]
  %v6924 = vld [vmem:[#allocation4 + $0x330] sm:$0xff]
  %v6925 = vld [vmem:[#allocation4 + $0x338] sm:$0xff]
  %v6926 = vld [vmem:[#allocation4 + $0x340] sm:$0xff]
  %v6927 = vld [vmem:[#allocation4 + $0x348] sm:$0xff]
  %v6928 = vld [vmem:[#allocation4 + $0x350] sm:$0xff]
  %v6929 = vld [vmem:[#allocation4 + $0x358] sm:$0xff]
  %v6930 = vld [vmem:[%s3 + $0xb0] sm:$0xff]
  %v6931 = vld [vmem:[%s3 + $0xb8] sm:$0xff]
  %v6932 = vld [vmem:[%s3 + $0xc0] sm:$0xff]
  %v6933 = vld [vmem:[%s3 + $0xc8] sm:$0xff]
  %6935 = vset.pattern.permute.xlu0 0
  %6936 = vperm.xlu0 %6935, %v6930
  %v6937 = vpop.permute.xlu0 %6936
  %6940 = vset.pattern.permute.xlu0 0
  %6941 = vperm.xlu0 %6940, %v6931
  %v6942 = vpop.permute.xlu0 %6941
  %6945 = vset.pattern.permute.xlu0 0
  %6946 = vperm.xlu0 %6945, %v6932
  %v6947 = vpop.permute.xlu0 %6946
  %6950 = vset.pattern.permute.xlu0 0
  %6951 = vperm.xlu0 %6950, %v6933
  %v6952 = vpop.permute.xlu0 %6951
  %v6962 = vunpack.c.l.b16 %v6814
  %v6963 = vunpack.c.h.b16 %v6814
  %v6964 = vunpack.c.l.b16 %v6815
  %v6965 = vunpack.c.l.b16 %v6816
  %v6966 = vunpack.c.h.b16 %v6816
  %v6967 = vunpack.c.l.b16 %v6817
  %v6968 = vunpack.c.l.b16 %v6818
  %v6969 = vunpack.c.h.b16 %v6818
  %v6970 = vunpack.c.l.b16 %v6819
  %v6971 = vunpack.c.l.b16 %v6820
  %v6972 = vunpack.c.h.b16 %v6820
  %v6973 = vunpack.c.l.b16 %v6821
  %v6974 = vpack.c.b16 %v6965, %v6962
  %v6975 = vpack.c.b16 %v6966, %v6963
  %v6976 = vpack.c.b16 %v6967, %v6964
  %v6977 = vpack.c.b16 %v6971, %v6968
  %v6978 = vpack.c.b16 %v6972, %v6969
  %v6979 = vpack.c.b16 %v6973, %v6970
  %v6985 = vsel %vm4627, %v6976, 0
  %v6988 = vsel %vm4627, %v6979, 0
  %6990 = vmatprep.subr.bf16.mxu0 %v6823
  %6991 = vmatpush1.bf16.msra.mxu0 %v6822
  %6992 = vmatprep.subr.bf16.mxu0 %v6829
  %6993 = vmatpush1.bf16.msra.mxu0 %v6828
  %6994 = vmatprep.subr.bf16.mxu0 %v6835
  %6995 = vmatpush1.bf16.msra.mxu0 %v6834
  %6996 = vmatprep.subr.bf16.mxu0 %v6841
  %6997 = vmatpush1.bf16.msra.mxu0 %v6840
  %6998 = vmatprep.subr.bf16.mxu0 %v6847
  %6999 = vmatpush1.bf16.msra.mxu0 %v6846
  %7000 = vmatprep.subr.bf16.mxu0 %v6853
  %7001 = vmatpush1.bf16.msra.mxu0 %v6852
  %7002 = vmatprep.subr.bf16.mxu0 %v6859
  %7003 = vmatpush1.bf16.msra.mxu0 %v6858
  %7004 = vmatprep.subr.bf16.mxu0 %v6865
  %7005 = vmatpush1.bf16.msra.mxu0 %v6864
  %7006 = vmatprep.subr.bf16.mxu0 %v6871
  %7007 = vmatpush1.bf16.msra.mxu0 %v6870
  %7008 = vmatprep.subr.bf16.mxu0 %v6877
  %7009 = vmatpush1.bf16.msra.mxu0 %v6876
  %7010 = vmatprep.subr.bf16.mxu0 %v6883
  %7011 = vmatpush1.bf16.msra.mxu0 %v6882
  %7012 = vmatprep.subr.bf16.mxu0 %v6889
  %7013 = vmatpush1.bf16.msra.mxu0 %v6888
  %7014 = vmatprep.subr.bf16.mxu0 %v6895
  %7015 = vmatpush1.bf16.msra.mxu0 %v6894
  %7016 = vmatprep.subr.bf16.mxu0 %v6901
  %7017 = vmatpush1.bf16.msra.mxu0 %v6900
  %7018 = vmatprep.subr.bf16.mxu0 %v6907
  %7019 = vmatpush1.bf16.msra.mxu0 %v6906
  %7020 = vmatprep.subr.bf16.mxu0 %v6913
  %7021 = vmatpush1.bf16.msra.mxu0 %v6912
  %7022 = vmatprep.mubr.bf16.mxu0 %v6975
  %7023 = vmatmul.mubr.bf16.gmra.mrb[0].mxu0 %v6974
  %v7024 = vpop.f32.mrb[0].mxu0
  %v7025 = vadd.f32 %v6937, %v7024
  %v7026 = vpop.f32.mrb[0].mxu0
  %v7027 = vadd.f32 %v6937, %v7026
  %v7028 = vpop.f32.mrb[0].mxu0
  %v7029 = vadd.f32 %v6942, %v7028
  %v7030 = vpop.f32.mrb[0].mxu0
  %v7031 = vadd.f32 %v6942, %v7030
  %7032 = vmatprep.mubr.bf16.mxu0 %v6978
  %7033 = vmatmul.mubr.bf16.gmra.mrb[0].mxu0 %v6977
  %v7034 = vpop.f32.mrb[0].mxu0
  %v7035 = vadd.f32 %v6947, %v7034
  %v7036 = vpop.f32.mrb[0].mxu0
  %v7037 = vadd.f32 %v6947, %v7036
  %v7038 = vpop.f32.mrb[0].mxu0
  %v7039 = vadd.f32 %v6952, %v7038
  %v7040 = vpop.f32.mrb[0].mxu0
  %v7041 = vadd.f32 %v6952, %v7040
  %7042 = vdwg.mxu0
  %7043 = vmatprep.subr.bf16.mxu0 %v6919
  %7044 = vmatpush1.bf16.msra.mxu0 %v6918
  %7045 = vmatprep.subr.bf16.mxu0 %v6925
  %7046 = vmatpush1.bf16.msra.mxu0 %v6924
  %7047 = vmatprep.subr.bf16.mxu0 0
  %7048 = vmatpush1.bf16.msra.mxu0 0
  %7049 = vmatprep.subr.bf16.mxu0 0
  %7050 = vmatpush1.bf16.msra.mxu0 0
  %7051 = vmatprep.subr.bf16.mxu0 0
  %7052 = vmatpush1.bf16.msra.mxu0 0
  %7053 = vmatprep.subr.bf16.mxu0 0
  %7054 = vmatpush1.bf16.msra.mxu0 0
  %7055 = vmatprep.subr.bf16.mxu0 0
  %7056 = vmatpush1.bf16.msra.mxu0 0
  %7057 = vmatprep.subr.bf16.mxu0 0
  %7058 = vmatpush1.bf16.msra.mxu0 0
  %7059 = vmatprep.subr.bf16.mxu0 0
  %7060 = vmatpush1.bf16.msra.mxu0 0
  %7061 = vmatprep.subr.bf16.mxu0 0
  %7062 = vmatpush1.bf16.msra.mxu0 0
  %7063 = vmatprep.subr.bf16.mxu0 0
  %7064 = vmatpush1.bf16.msra.mxu0 0
  %7065 = vmatprep.subr.bf16.mxu0 0
  %7066 = vmatpush1.bf16.msra.mxu0 0
  %7067 = vmatprep.subr.bf16.mxu0 0
  %7068 = vmatpush1.bf16.msra.mxu0 0
  %7069 = vmatprep.subr.bf16.mxu0 0
  %7070 = vmatpush1.bf16.msra.mxu0 0
  %7071 = vmatprep.subr.bf16.mxu0 0
  %7072 = vmatpush1.bf16.msra.mxu0 0
  %7073 = vmatprep.subr.bf16.mxu0 0
  %7074 = vmatpush1.bf16.msra.mxu0 0
  %7075 = vmatprep.mubr.bf16.mxu0 0
  %7076 = vmatmul.mubr.bf16.gmra.mrb[0].mxu0 %v6985
  %v7077 = vpop.f32.mrb[0].mxu0
  %v7078 = vadd.f32 %v7025, %v7077
  %v7079 = vpop.f32.mrb[0].mxu0
  %v7080 = vadd.f32 %v7027, %v7079
  %v7081 = vpop.f32.mrb[0].mxu0
  %v7082 = vadd.f32 %v7029, %v7081
  %v7083 = vpop.f32.mrb[0].mxu0
  %v7084 = vadd.f32 %v7031, %v7083
  %7085 = vmatprep.mubr.bf16.mxu0 0
  %7086 = vmatmul.mubr.bf16.gmra.mrb[0].mxu0 %v6988
  %v7087 = vpop.f32.mrb[0].mxu0
  %v7088 = vadd.f32 %v7035, %v7087
  %v7089 = vpop.f32.mrb[0].mxu0
  %v7090 = vadd.f32 %v7037, %v7089
  %v7091 = vpop.f32.mrb[0].mxu0
  %v7092 = vadd.f32 %v7039, %v7091
  %v7093 = vpop.f32.mrb[0].mxu0
  %v7094 = vadd.f32 %v7041, %v7093
  %7095 = vdwg.mxu0
  %7096 = vmatprep.subr.bf16.mxu0 %v6825
  %7097 = vmatpush1.bf16.msra.mxu0 %v6824
  %7098 = vmatprep.subr.bf16.mxu0 %v6831
  %7099 = vmatpush1.bf16.msra.mxu0 %v6830
  %7100 = vmatprep.subr.bf16.mxu0 %v6837
  %7101 = vmatpush1.bf16.msra.mxu0 %v6836
  %7102 = vmatprep.subr.bf16.mxu0 %v6843
  %7103 = vmatpush1.bf16.msra.mxu0 %v6842
  %7104 = vmatprep.subr.bf16.mxu0 %v6849
  %7105 = vmatpush1.bf16.msra.mxu0 %v6848
  %7106 = vmatprep.subr.bf16.mxu0 %v6855
  %7107 = vmatpush1.bf16.msra.mxu0 %v6854
  %7108 = vmatprep.subr.bf16.mxu0 %v6861
  %7109 = vmatpush1.bf16.msra.mxu0 %v6860
  %7110 = vmatprep.subr.bf16.mxu0 %v6867
  %7111 = vmatpush1.bf16.msra.mxu0 %v6866
  %7112 = vmatprep.subr.bf16.mxu0 %v6873
  %7113 = vmatpush1.bf16.msra.mxu0 %v6872
  %7114 = vmatprep.subr.bf16.mxu0 %v6879
  %7115 = vmatpush1.bf16.msra.mxu0 %v6878
  %7116 = vmatprep.subr.bf16.mxu0 %v6885
  %7117 = vmatpush1.bf16.msra.mxu0 %v6884
  %7118 = vmatprep.subr.bf16.mxu0 %v6891
  %7119 = vmatpush1.bf16.msra.mxu0 %v6890
  %7120 = vmatprep.subr.bf16.mxu0 %v6897
  %7121 = vmatpush1.bf16.msra.mxu0 %v6896
  %7122 = vmatprep.subr.bf16.mxu0 %v6903
  %7123 = vmatpush1.bf16.msra.mxu0 %v6902
  %7124 = vmatprep.subr.bf16.mxu0 %v6909
  %7125 = vmatpush1.bf16.msra.mxu0 %v6908
  %7126 = vmatprep.subr.bf16.mxu0 %v6915
  %7127 = vmatpush1.bf16.msra.mxu0 %v6914
  %7128 = vmatprep.mubr.bf16.mxu0 %v6975
  %7129 = vmatmul.mubr.bf16.gmra.mrb[0].mxu0 %v6974
  %v7130 = vpop.f32.mrb[0].mxu0
  %v7131 = vadd.f32 %v6937, %v7130
  %v7132 = vpop.f32.mrb[0].mxu0
  %v7133 = vadd.f32 %v6937, %v7132
  %v7134 = vpop.f32.mrb[0].mxu0
  %v7135 = vadd.f32 %v6942, %v7134
  %v7136 = vpop.f32.mrb[0].mxu0
  %v7137 = vadd.f32 %v6942, %v7136
  %7138 = vmatprep.mubr.bf16.mxu0 %v6978
  %7139 = vmatmul.mubr.bf16.gmra.mrb[0].mxu0 %v6977
  %v7140 = vpop.f32.mrb[0].mxu0
  %v7141 = vadd.f32 %v6947, %v7140
  %v7142 = vpop.f32.mrb[0].mxu0
  %v7143 = vadd.f32 %v6947, %v7142
  %v7144 = vpop.f32.mrb[0].mxu0
  %v7145 = vadd.f32 %v6952, %v7144
  %v7146 = vpop.f32.mrb[0].mxu0
  %v7147 = vadd.f32 %v6952, %v7146
  %7148 = vdwg.mxu0
  %7149 = vmatprep.subr.bf16.mxu0 %v6921
  %7150 = vmatpush1.bf16.msra.mxu0 %v6920
  %7151 = vmatprep.subr.bf16.mxu0 %v6927
  %7152 = vmatpush1.bf16.msra.mxu0 %v6926
  %7153 = vmatprep.subr.bf16.mxu0 0
  %7154 = vmatpush1.bf16.msra.mxu0 0
  %7155 = vmatprep.subr.bf16.mxu0 0
  %7156 = vmatpush1.bf16.msra.mxu0 0
  %7157 = vmatprep.subr.bf16.mxu0 0
  %7158 = vmatpush1.bf16.msra.mxu0 0
  %7159 = vmatprep.subr.bf16.mxu0 0
  %7160 = vmatpush1.bf16.msra.mxu0 0
  %7161 = vmatprep.subr.bf16.mxu0 0
  %7162 = vmatpush1.bf16.msra.mxu0 0
  %7163 = vmatprep.subr.bf16.mxu0 0
  %7164 = vmatpush1.bf16.msra.mxu0 0
  %7165 = vmatprep.subr.bf16.mxu0 0
  %7166 = vmatpush1.bf16.msra.mxu0 0
  %7167 = vmatprep.subr.bf16.mxu0 0
  %7168 = vmatpush1.bf16.msra.mxu0 0
  %7169 = vmatprep.subr.bf16.mxu0 0
  %7170 = vmatpush1.bf16.msra.mxu0 0
  %7171 = vmatprep.subr.bf16.mxu0 0
  %7172 = vmatpush1.bf16.msra.mxu0 0
  %7173 = vmatprep.subr.bf16.mxu0 0
  %7174 = vmatpush1.bf16.msra.mxu0 0
  %7175 = vmatprep.subr.bf16.mxu0 0
  %7176 = vmatpush1.bf16.msra.mxu0 0
  %7177 = vmatprep.subr.bf16.mxu0 0
  %7178 = vmatpush1.bf16.msra.mxu0 0
  %7179 = vmatprep.subr.bf16.mxu0 0
  %7180 = vmatpush1.bf16.msra.mxu0 0
  %7181 = vmatprep.mubr.bf16.mxu0 0
  %7182 = vmatmul.mubr.bf16.gmra.mrb[0].mxu0 %v6985
  %v7183 = vpop.f32.mrb[0].mxu0
  %v7184 = vadd.f32 %v7131, %v7183
  %v7185 = vpop.f32.mrb[0].mxu0
  %v7186 = vadd.f32 %v7133, %v7185
  %v7187 = vpop.f32.mrb[0].mxu0
  %v7188 = vadd.f32 %v7135, %v7187
  %v7189 = vpop.f32.mrb[0].mxu0
  %v7190 = vadd.f32 %v7137, %v7189
  %7191 = vmatprep.mubr.bf16.mxu0 0
  %7192 = vmatmul.mubr.bf16.gmra.mrb[0].mxu0 %v6988
  %v7193 = vpop.f32.mrb[0].mxu0
  %v7194 = vadd.f32 %v7141, %v7193
  %v7195 = vpop.f32.mrb[0].mxu0
  %v7196 = vadd.f32 %v7143, %v7195
  %v7197 = vpop.f32.mrb[0].mxu0
  %v7198 = vadd.f32 %v7145, %v7197
  %v7199 = vpop.f32.mrb[0].mxu0
  %v7200 = vadd.f32 %v7147, %v7199
  %7201 = vdwg.mxu0
  %7202 = vmatprep.subr.bf16.mxu0 %v6827
  %7203 = vmatpush1.bf16.msra.mxu0 %v6826
  %7204 = vmatprep.subr.bf16.mxu0 %v6833
  %7205 = vmatpush1.bf16.msra.mxu0 %v6832
  %7206 = vmatprep.subr.bf16.mxu0 %v6839
  %7207 = vmatpush1.bf16.msra.mxu0 %v6838
  %7208 = vmatprep.subr.bf16.mxu0 %v6845
  %7209 = vmatpush1.bf16.msra.mxu0 %v6844
  %7210 = vmatprep.subr.bf16.mxu0 %v6851
  %7211 = vmatpush1.bf16.msra.mxu0 %v6850
  %7212 = vmatprep.subr.bf16.mxu0 %v6857
  %7213 = vmatpush1.bf16.msra.mxu0 %v6856
  %7214 = vmatprep.subr.bf16.mxu0 %v6863
  %7215 = vmatpush1.bf16.msra.mxu0 %v6862
  %7216 = vmatprep.subr.bf16.mxu0 %v6869
  %7217 = vmatpush1.bf16.msra.mxu0 %v6868
  %7218 = vmatprep.subr.bf16.mxu0 %v6875
  %7219 = vmatpush1.bf16.msra.mxu0 %v6874
  %7220 = vmatprep.subr.bf16.mxu0 %v6881
  %7221 = vmatpush1.bf16.msra.mxu0 %v6880
  %7222 = vmatprep.subr.bf16.mxu0 %v6887
  %7223 = vmatpush1.bf16.msra.mxu0 %v6886
  %7224 = vmatprep.subr.bf16.mxu0 %v6893
  %7225 = vmatpush1.bf16.msra.mxu0 %v6892
  %7226 = vmatprep.subr.bf16.mxu0 %v6899
  %7227 = vmatpush1.bf16.msra.mxu0 %v6898
  %7228 = vmatprep.subr.bf16.mxu0 %v6905
  %7229 = vmatpush1.bf16.msra.mxu0 %v6904
  %7230 = vmatprep.subr.bf16.mxu0 %v6911
  %7231 = vmatpush1.bf16.msra.mxu0 %v6910
  %7232 = vmatprep.subr.bf16.mxu0 %v6917
  %7233 = vmatpush1.bf16.msra.mxu0 %v6916
  %7234 = vmatprep.mubr.bf16.mxu0 %v6975
  %7235 = vmatmul.mubr.bf16.gmra.mrb[0].mxu0 %v6974
  %v7236 = vpop.f32.mrb[0].mxu0
  %v7237 = vadd.f32 %v6937, %v7236
  %v7238 = vpop.f32.mrb[0].mxu0
  %v7239 = vadd.f32 %v6937, %v7238
  %v7240 = vpop.f32.mrb[0].mxu0
  %v7241 = vadd.f32 %v6942, %v7240
  %v7242 = vpop.f32.mrb[0].mxu0
  %v7243 = vadd.f32 %v6942, %v7242
  %7244 = vmatprep.mubr.bf16.mxu0 %v6978
  %7245 = vmatmul.mubr.bf16.gmra.mrb[0].mxu0 %v6977
  %v7246 = vpop.f32.mrb[0].mxu0
  %v7247 = vadd.f32 %v6947, %v7246
  %v7248 = vpop.f32.mrb[0].mxu0
  %v7249 = vadd.f32 %v6947, %v7248
  %v7250 = vpop.f32.mrb[0].mxu0
  %v7251 = vadd.f32 %v6952, %v7250
  %v7252 = vpop.f32.mrb[0].mxu0
  %v7253 = vadd.f32 %v6952, %v7252
  %7254 = vdwg.mxu0
  %7255 = vmatprep.subr.bf16.mxu0 %v6923
  %7256 = vmatpush1.bf16.msra.mxu0 %v6922
  %7257 = vmatprep.subr.bf16.mxu0 %v6929
  %7258 = vmatpush1.bf16.msra.mxu0 %v6928
  %7259 = vmatprep.subr.bf16.mxu0 0
  %7260 = vmatpush1.bf16.msra.mxu0 0
  %7261 = vmatprep.subr.bf16.mxu0 0
  %7262 = vmatpush1.bf16.msra.mxu0 0
  %7263 = vmatprep.subr.bf16.mxu0 0
  %7264 = vmatpush1.bf16.msra.mxu0 0
  %7265 = vmatprep.subr.bf16.mxu0 0
  %7266 = vmatpush1.bf16.msra.mxu0 0
  %7267 = vmatprep.subr.bf16.mxu0 0
  %7268 = vmatpush1.bf16.msra.mxu0 0
  %7269 = vmatprep.subr.bf16.mxu0 0
  %7270 = vmatpush1.bf16.msra.mxu0 0
  %7271 = vmatprep.subr.bf16.mxu0 0
  %7272 = vmatpush1.bf16.msra.mxu0 0
  %7273 = vmatprep.subr.bf16.mxu0 0
  %7274 = vmatpush1.bf16.msra.mxu0 0
  %7275 = vmatprep.subr.bf16.mxu0 0
  %7276 = vmatpush1.bf16.msra.mxu0 0
  %7277 = vmatprep.subr.bf16.mxu0 0
  %7278 = vmatpush1.bf16.msra.mxu0 0
  %7279 = vmatprep.subr.bf16.mxu0 0
  %7280 = vmatpush1.bf16.msra.mxu0 0
  %7281 = vmatprep.subr.bf16.mxu0 0
  %7282 = vmatpush1.bf16.msra.mxu0 0
  %7283 = vmatprep.subr.bf16.mxu0 0
  %7284 = vmatpush1.bf16.msra.mxu0 0
  %7285 = vmatprep.subr.bf16.mxu0 0
  %7286 = vmatpush1.bf16.msra.mxu0 0
  %7287 = vmatprep.mubr.bf16.mxu0 0
  %7288 = vmatmul.mubr.bf16.gmra.mrb[0].mxu0 %v6985
  %v7289 = vpop.f32.mrb[0].mxu0
  %v7290 = vadd.f32 %v7237, %v7289
  %v7291 = vpop.f32.mrb[0].mxu0
  %v7292 = vadd.f32 %v7239, %v7291
  %v7293 = vpop.f32.mrb[0].mxu0
  %v7294 = vadd.f32 %v7241, %v7293
  %v7295 = vpop.f32.mrb[0].mxu0
  %v7296 = vadd.f32 %v7243, %v7295
  %7297 = vmatprep.mubr.bf16.mxu0 0
  %7298 = vmatmul.mubr.bf16.gmra.mrb[0].mxu0 %v6988
  %v7299 = vpop.f32.mrb[0].mxu0
  %v7300 = vadd.f32 %v7247, %v7299
  %v7301 = vpop.f32.mrb[0].mxu0
  %v7302 = vadd.f32 %v7249, %v7301
  %v7303 = vpop.f32.mrb[0].mxu0
  %v7304 = vadd.f32 %v7251, %v7303
  %v7305 = vpop.f32.mrb[0].mxu0
  %v7306 = vadd.f32 %v7253, %v7305
  %7307 = vdwg.mxu0
  %v7308 = vadd.f32 %v7078, %v6202
  %v7309 = vadd.f32 %v7080, %v6203
  %v7310 = vadd.f32 %v7184, %v6204
  %v7311 = vadd.f32 %v7186, %v6205
  %v7312 = vadd.f32 %v7290, %v6206
  %v7313 = vadd.f32 %v7292, %v6207
  %v7314 = vadd.f32 %v7082, %v6208
  %v7315 = vadd.f32 %v7084, %v6209
  %v7316 = vadd.f32 %v7188, %v6210
  %v7317 = vadd.f32 %v7190, %v6211
  %v7318 = vadd.f32 %v7294, %v6212
  %v7319 = vadd.f32 %v7296, %v6213
  %v7320 = vadd.f32 %v7088, %v6214
  %v7321 = vadd.f32 %v7090, %v6215
  %v7322 = vadd.f32 %v7194, %v6216
  %v7323 = vadd.f32 %v7196, %v6217
  %v7324 = vadd.f32 %v7300, %v6218
  %v7325 = vadd.f32 %v7302, %v6219
  %v7326 = vadd.f32 %v7092, %v6220
  %v7327 = vadd.f32 %v7094, %v6221
  %v7328 = vadd.f32 %v7198, %v6222
  %v7329 = vadd.f32 %v7200, %v6223
  %v7330 = vadd.f32 %v7304, %v6224
  %v7331 = vadd.f32 %v7306, %v6225
  %v7332 = vmax.f32 %v7308, 0.0
  %v7333 = vmax.f32 %v7309, 0.0
  %v7334 = vmax.f32 %v7310, 0.0
  %v7335 = vmax.f32 %v7311, 0.0
  %v7336 = vmax.f32 %v7312, 0.0
  %v7337 = vmax.f32 %v7313, 0.0
  %v7338 = vmax.f32 %v7314, 0.0
  %v7339 = vmax.f32 %v7315, 0.0
  %v7340 = vmax.f32 %v7316, 0.0
  %v7341 = vmax.f32 %v7317, 0.0
  %v7342 = vmax.f32 %v7318, 0.0
  %v7343 = vmax.f32 %v7319, 0.0
  %v7344 = vmax.f32 %v7320, 0.0
  %v7345 = vmax.f32 %v7321, 0.0
  %v7346 = vmax.f32 %v7322, 0.0
  %v7347 = vmax.f32 %v7323, 0.0
  %v7348 = vmax.f32 %v7324, 0.0
  %v7349 = vmax.f32 %v7325, 0.0
  %v7350 = vmax.f32 %v7326, 0.0
  %v7351 = vmax.f32 %v7327, 0.0
  %v7352 = vmax.f32 %v7328, 0.0
  %v7353 = vmax.f32 %v7329, 0.0
  %v7354 = vmax.f32 %v7330, 0.0
  %v7355 = vmax.f32 %v7331, 0.0
  %v7356 = vmul.f32 %v7332, %v3571
  %v7357 = vmul.f32 %v7333, %v3575
  %v7358 = vmul.f32 %v7334, %v3579
  %v7359 = vmul.f32 %v7335, %v3583
  %v7360 = vmul.f32 %v7336, %v3587
  %v7361 = vmul.f32 %v7337, %v3591
  %v7362 = vmul.f32 %v7338, %v3571
  %v7363 = vmul.f32 %v7339, %v3575
  %v7364 = vmul.f32 %v7340, %v3579
  %v7365 = vmul.f32 %v7341, %v3583
  %v7366 = vmul.f32 %v7342, %v3587
  %v7367 = vmul.f32 %v7343, %v3591
  %v7368 = vmul.f32 %v7344, %v3571
  %v7369 = vmul.f32 %v7345, %v3575
  %v7370 = vmul.f32 %v7346, %v3579
  %v7371 = vmul.f32 %v7347, %v3583
  %v7372 = vmul.f32 %v7348, %v3587
  %v7373 = vmul.f32 %v7349, %v3591
  %v7374 = vmul.f32 %v7350, %v3571
  %v7375 = vmul.f32 %v7351, %v3575
  %v7376 = vmul.f32 %v7352, %v3579
  %v7377 = vmul.f32 %v7353, %v3583
  %v7378 = vmul.f32 %v7354, %v3587
  %v7379 = vmul.f32 %v7355, %v3591
  %v7380 = vld [vmem:[%s3 + $0x100] sm:$0xff]
  %7382 = vset.pattern.permute.xlu0 0
  %7383 = vperm.xlu0 %7382, %v7380
  %v7384 = vpop.permute.xlu0 %7383
  %v7385 = vrot.slane %v7384, 1
  %v7387 = vsel %vm4627, %v7380, 0
  %7389 = vmatprep.subr.mxu0 %v7357
  %7390 = vmatpush1.msra.mxu0 %v7356
  %7391 = vmatprep.subr.mxu0 %v7363
  %7392 = vmatpush1.msra.mxu0 %v7362
  %7393 = vmatprep.subr.mxu0 %v7369
  %7394 = vmatpush1.msra.mxu0 %v7368
  %7395 = vmatprep.subr.mxu0 %v7375
  %7396 = vmatpush1.msra.mxu0 %v7374
  %7397 = vmatprep.subr.mxu0 0.0
  %7398 = vmatpush1.msra.mxu0 0.0
  %7399 = vmatprep.subr.mxu0 0.0
  %7400 = vmatpush1.msra.mxu0 0.0
  %7401 = vmatprep.subr.mxu0 0.0
  %7402 = vmatpush1.msra.mxu0 0.0
  %7403 = vmatprep.subr.mxu0 0.0
  %7404 = vmatpush1.msra.mxu0 0.0
  %7405 = vmatprep.subr.mxu0 0.0
  %7406 = vmatpush1.msra.mxu0 0.0
  %7407 = vmatprep.subr.mxu0 0.0
  %7408 = vmatpush1.msra.mxu0 0.0
  %7409 = vmatprep.subr.mxu0 0.0
  %7410 = vmatpush1.msra.mxu0 0.0
  %7411 = vmatprep.subr.mxu0 0.0
  %7412 = vmatpush1.msra.mxu0 0.0
  %7413 = vmatprep.subr.mxu0 0.0
  %7414 = vmatpush1.msra.mxu0 0.0
  %7415 = vmatprep.subr.mxu0 0.0
  %7416 = vmatpush1.msra.mxu0 0.0
  %7417 = vmatprep.subr.mxu0 0.0
  %7418 = vmatpush1.msra.mxu0 0.0
  %7419 = vmatprep.subr.mxu0 0.0
  %7420 = vmatpush1.msra.mxu0 0.0
  %7421 = vmatprep.subr.mxu0 0.0
  %7422 = vmatpush1.msra.mxu0 0.0
  %7423 = vmatprep.subr.mxu0 0.0
  %7424 = vmatpush1.msra.mxu0 0.0
  %7425 = vmatprep.subr.mxu0 0.0
  %7426 = vmatpush1.msra.mxu0 0.0
  %7427 = vmatprep.subr.mxu0 0.0
  %7428 = vmatpush1.msra.mxu0 0.0
  %7429 = vmatprep.subr.mxu0 0.0
  %7430 = vmatpush1.msra.mxu0 0.0
  %7431 = vmatprep.subr.mxu0 0.0
  %7432 = vmatpush1.msra.mxu0 0.0
  %7433 = vmatprep.subr.mxu0 0.0
  %7434 = vmatpush1.msra.mxu0 0.0
  %7435 = vmatprep.subr.mxu0 0.0
  %7436 = vmatpush1.msra.mxu0 0.0
  %7437 = vmatprep.subr.mxu0 0.0
  %7438 = vmatpush1.msra.mxu0 0.0
  %7439 = vmatprep.subr.mxu0 0.0
  %7440 = vmatpush1.msra.mxu0 0.0
  %7441 = vmatprep.subr.mxu0 0.0
  %7442 = vmatpush1.msra.mxu0 0.0
  %7443 = vmatprep.subr.mxu0 0.0
  %7444 = vmatpush1.msra.mxu0 0.0
  %7445 = vmatprep.subr.mxu0 0.0
  %7446 = vmatpush1.msra.mxu0 0.0
  %7447 = vmatprep.subr.mxu0 0.0
  %7448 = vmatpush1.msra.mxu0 0.0
  %7449 = vmatprep.subr.mxu0 0.0
  %7450 = vmatpush1.msra.mxu0 0.0
  %7451 = vmatprep.subr.mxu0 0.0
  %7452 = vmatpush1.msra.mxu0 0.0
  %7453 = vmatprep.mubr.f32.mxu0 0.0
  %7454 = vmatmul.mubr.f32.gmra.mrb[0].mxu0 %v7387
  %v7455 = vpop.f32.mrb[0].mxu0
  %v7456 = vadd.f32 %v7385, %v7455
  %v7457 = vpop.f32.mrb[0].mxu0
  %v7458 = vadd.f32 %v7385, %v7457
  %7459 = vdwg.mxu0
  %7460 = vmatprep.subr.mxu0 %v7359
  %7461 = vmatpush1.msra.mxu0 %v7358
  %7462 = vmatprep.subr.mxu0 %v7365
  %7463 = vmatpush1.msra.mxu0 %v7364
  %7464 = vmatprep.subr.mxu0 %v7371
  %7465 = vmatpush1.msra.mxu0 %v7370
  %7466 = vmatprep.subr.mxu0 %v7377
  %7467 = vmatpush1.msra.mxu0 %v7376
  %7468 = vmatprep.subr.mxu0 0.0
  %7469 = vmatpush1.msra.mxu0 0.0
  %7470 = vmatprep.subr.mxu0 0.0
  %7471 = vmatpush1.msra.mxu0 0.0
  %7472 = vmatprep.subr.mxu0 0.0
  %7473 = vmatpush1.msra.mxu0 0.0
  %7474 = vmatprep.subr.mxu0 0.0
  %7475 = vmatpush1.msra.mxu0 0.0
  %7476 = vmatprep.subr.mxu0 0.0
  %7477 = vmatpush1.msra.mxu0 0.0
  %7478 = vmatprep.subr.mxu0 0.0
  %7479 = vmatpush1.msra.mxu0 0.0
  %7480 = vmatprep.subr.mxu0 0.0
  %7481 = vmatpush1.msra.mxu0 0.0
  %7482 = vmatprep.subr.mxu0 0.0
  %7483 = vmatpush1.msra.mxu0 0.0
  %7484 = vmatprep.subr.mxu0 0.0
  %7485 = vmatpush1.msra.mxu0 0.0
  %7486 = vmatprep.subr.mxu0 0.0
  %7487 = vmatpush1.msra.mxu0 0.0
  %7488 = vmatprep.subr.mxu0 0.0
  %7489 = vmatpush1.msra.mxu0 0.0
  %7490 = vmatprep.subr.mxu0 0.0
  %7491 = vmatpush1.msra.mxu0 0.0
  %7492 = vmatprep.subr.mxu0 0.0
  %7493 = vmatpush1.msra.mxu0 0.0
  %7494 = vmatprep.subr.mxu0 0.0
  %7495 = vmatpush1.msra.mxu0 0.0
  %7496 = vmatprep.subr.mxu0 0.0
  %7497 = vmatpush1.msra.mxu0 0.0
  %7498 = vmatprep.subr.mxu0 0.0
  %7499 = vmatpush1.msra.mxu0 0.0
  %7500 = vmatprep.subr.mxu0 0.0
  %7501 = vmatpush1.msra.mxu0 0.0
  %7502 = vmatprep.subr.mxu0 0.0
  %7503 = vmatpush1.msra.mxu0 0.0
  %7504 = vmatprep.subr.mxu0 0.0
  %7505 = vmatpush1.msra.mxu0 0.0
  %7506 = vmatprep.subr.mxu0 0.0
  %7507 = vmatpush1.msra.mxu0 0.0
  %7508 = vmatprep.subr.mxu0 0.0
  %7509 = vmatpush1.msra.mxu0 0.0
  %7510 = vmatprep.subr.mxu0 0.0
  %7511 = vmatpush1.msra.mxu0 0.0
  %7512 = vmatprep.subr.mxu0 0.0
  %7513 = vmatpush1.msra.mxu0 0.0
  %7514 = vmatprep.subr.mxu0 0.0
  %7515 = vmatpush1.msra.mxu0 0.0
  %7516 = vmatprep.subr.mxu0 0.0
  %7517 = vmatpush1.msra.mxu0 0.0
  %7518 = vmatprep.subr.mxu0 0.0
  %7519 = vmatpush1.msra.mxu0 0.0
  %7520 = vmatprep.subr.mxu0 0.0
  %7521 = vmatpush1.msra.mxu0 0.0
  %7522 = vmatprep.subr.mxu0 0.0
  %7523 = vmatpush1.msra.mxu0 0.0
  %7524 = vmatprep.mubr.f32.mxu0 0.0
  %7525 = vmatmul.mubr.f32.gmra.mrb[0].mxu0 %v7387
  %v7526 = vpop.f32.mrb[0].mxu0
  %v7527 = vadd.f32 %v7385, %v7526
  %v7528 = vpop.f32.mrb[0].mxu0
  %v7529 = vadd.f32 %v7385, %v7528
  %7530 = vdwg.mxu0
  %7531 = vmatprep.subr.mxu0 %v7361
  %7532 = vmatpush1.msra.mxu0 %v7360
  %7533 = vmatprep.subr.mxu0 %v7367
  %7534 = vmatpush1.msra.mxu0 %v7366
  %7535 = vmatprep.subr.mxu0 %v7373
  %7536 = vmatpush1.msra.mxu0 %v7372
  %7537 = vmatprep.subr.mxu0 %v7379
  %7538 = vmatpush1.msra.mxu0 %v7378
  %7539 = vmatprep.subr.mxu0 0.0
  %7540 = vmatpush1.msra.mxu0 0.0
  %7541 = vmatprep.subr.mxu0 0.0
  %7542 = vmatpush1.msra.mxu0 0.0
  %7543 = vmatprep.subr.mxu0 0.0
  %7544 = vmatpush1.msra.mxu0 0.0
  %7545 = vmatprep.subr.mxu0 0.0
  %7546 = vmatpush1.msra.mxu0 0.0
  %7547 = vmatprep.subr.mxu0 0.0
  %7548 = vmatpush1.msra.mxu0 0.0
  %7549 = vmatprep.subr.mxu0 0.0
  %7550 = vmatpush1.msra.mxu0 0.0
  %7551 = vmatprep.subr.mxu0 0.0
  %7552 = vmatpush1.msra.mxu0 0.0
  %7553 = vmatprep.subr.mxu0 0.0
  %7554 = vmatpush1.msra.mxu0 0.0
  %7555 = vmatprep.subr.mxu0 0.0
  %7556 = vmatpush1.msra.mxu0 0.0
  %7557 = vmatprep.subr.mxu0 0.0
  %7558 = vmatpush1.msra.mxu0 0.0
  %7559 = vmatprep.subr.mxu0 0.0
  %7560 = vmatpush1.msra.mxu0 0.0
  %7561 = vmatprep.subr.mxu0 0.0
  %7562 = vmatpush1.msra.mxu0 0.0
  %7563 = vmatprep.subr.mxu0 0.0
  %7564 = vmatpush1.msra.mxu0 0.0
  %7565 = vmatprep.subr.mxu0 0.0
  %7566 = vmatpush1.msra.mxu0 0.0
  %7567 = vmatprep.subr.mxu0 0.0
  %7568 = vmatpush1.msra.mxu0 0.0
  %7569 = vmatprep.subr.mxu0 0.0
  %7570 = vmatpush1.msra.mxu0 0.0
  %7571 = vmatprep.subr.mxu0 0.0
  %7572 = vmatpush1.msra.mxu0 0.0
  %7573 = vmatprep.subr.mxu0 0.0
  %7574 = vmatpush1.msra.mxu0 0.0
  %7575 = vmatprep.subr.mxu0 0.0
  %7576 = vmatpush1.msra.mxu0 0.0
  %7577 = vmatprep.subr.mxu0 0.0
  %7578 = vmatpush1.msra.mxu0 0.0
  %7579 = vmatprep.subr.mxu0 0.0
  %7580 = vmatpush1.msra.mxu0 0.0
  %7581 = vmatprep.subr.mxu0 0.0
  %7582 = vmatpush1.msra.mxu0 0.0
  %7583 = vmatprep.subr.mxu0 0.0
  %7584 = vmatpush1.msra.mxu0 0.0
  %7585 = vmatprep.subr.mxu0 0.0
  %7586 = vmatpush1.msra.mxu0 0.0
  %7587 = vmatprep.subr.mxu0 0.0
  %7588 = vmatpush1.msra.mxu0 0.0
  %7589 = vmatprep.subr.mxu0 0.0
  %7590 = vmatpush1.msra.mxu0 0.0
  %7591 = vmatprep.subr.mxu0 0.0
  %7592 = vmatpush1.msra.mxu0 0.0
  %7593 = vmatprep.subr.mxu0 0.0
  %7594 = vmatpush1.msra.mxu0 0.0
  %7595 = vmatprep.mubr.f32.mxu0 0.0
  %7596 = vmatmul.mubr.f32.gmra.mrb[0].mxu0 %v7387
  %v7597 = vpop.f32.mrb[0].mxu0
  %v7598 = vadd.f32 %v7385, %v7597
  %v7599 = vpop.f32.mrb[0].mxu0
  %v7600 = vadd.f32 %v7385, %v7599
  %7601 = vdwg.mxu0
  %v7608 = vcombine.low %v7456, %v7458
  %v7609 = vcombine.low %v7527, %v7529
  %v7610 = vcombine.low %v7598, %v7600
  %v7612 = vunpack.c.l.s4 1966171168
  %v7613 = vunpack.c.0.s8 %v7612
  %v7614 = vlaneseq
  %v7615 = vshrl.u32 %v7614, 7
  %v7616 = vsub.s32 %v7613, %v7615
  %v7617 = vrot.slane %v7608, %v7616
  %v7619 = vunpack.c.l.s4 1966171168
  %v7620 = vunpack.c.0.s8 %v7619
  %v7621 = vlaneseq
  %v7622 = vshrl.u32 %v7621, 7
  %v7623 = vsub.s32 %v7620, %v7622
  %v7624 = vrot.slane %v7609, %v7623
  %v7626 = vunpack.c.l.s4 1966171168
  %v7627 = vunpack.c.0.s8 %v7626
  %v7628 = vlaneseq
  %v7629 = vshrl.u32 %v7628, 7
  %v7630 = vsub.s32 %v7627, %v7629
  %v7631 = vrot.slane %v7610, %v7630
  %v7632 = vcombine.low %v7617, %v7624
  %v7634 = vunpack.c.l.s4 1966171168
  %v7635 = vunpack.c.0.s8 %v7634
  %v7636 = vlaneseq
  %v7637 = vshrl.u32 %v7636, 7
  %v7638 = vsub.s32 %v7635, %v7637
  %v7639 = vrot.slane %v7632, %v7638
  %v7641 = vunpack.c.l.s4 1966171168
  %v7642 = vunpack.c.0.s8 %v7641
  %v7643 = vlaneseq
  %v7644 = vshrl.u32 %v7643, 7
  %v7645 = vsub.s32 %v7642, %v7644
  %v7646 = vrot.slane %v7631, %v7645
  %v7647 = vcombine.low %v7639, %v7646
  %v7649 = vlaneseq
  %vm7650 = vcmp.ge.s32.totalorder %v7649, 0
  %vm7651 = vcmp.lt.s32.totalorder %v7649, 768
  %vm7652 = vmand %vm7650, %vm7651
  %7653 = vst.msk [vmem:[%s4] sm:$0x3f] %vm7652, %v7647
  // Predicated region
  $region18: #{res_net_forward.1} parent=0 // pred_check
    _
  $region19: #{res_net_forward.1} parent=0 // pred_check_branch
    %7655 = sbr.rel (0) target = $region21
  $region20: #{res_net_forward.1} parent=0 // pred_region
    _
  $region21: #{res_net_forward.1} parent=0 // pred_fallthru
    _
  // Predicated region
  $region22: #{res_net_forward.1} parent=0 // pred_check
    _
  $region23: #{res_net_forward.1} parent=0 // pred_check_branch
    %7657 = sbr.rel (0) target = $region25
  $region24: #{res_net_forward.1} parent=0 // pred_region
    _
  $region25: #{res_net_forward.1} parent=0 // pred_fallthru
    _

</llo_original>
